<compile_context>
chip_gen: v7x
topology: tpu7x:2x2x1
jax: 0.10.0
libtpu: 0.0.40
codegen_flags: <defaults>
</compile_context>

<pallas_src>
import jax
import jax.numpy as jnp
from jax import lax
from jax.experimental import pallas as pl
from jax.experimental.pallas import tpu as pltpu


# ---------------------------------------------------------------------------
# Kernels
# ---------------------------------------------------------------------------

def ffn_kernel_resident(x_ref, gamma_ref, beta_ref, w1_ref, b1_ref, w2_ref,
                        b2_ref, out_ref):
    """Weights fully VMEM-resident; 1-D grid over row tiles."""
    # LayerNorm over features (eps=1e-6, biased variance) in f32.
    x = x_ref[...].astype(jnp.float32)
    mean = jnp.mean(x, axis=-1, keepdims=True)
    cen = x - mean
    var = jnp.mean(cen * cen, axis=-1, keepdims=True)
    xn = cen * lax.rsqrt(var + 1e-6)
    xn = (xn * gamma_ref[...].astype(jnp.float32)
          + beta_ref[...].astype(jnp.float32))
    # w_1 -> bias -> ReLU -> w_2; native-dtype MXU operands, f32 accumulation.
    h = jnp.dot(xn.astype(w1_ref.dtype), w1_ref[...],
                preferred_element_type=jnp.float32)
    h = jnp.maximum(h + b1_ref[...].astype(jnp.float32), 0.0)
    y = jnp.dot(h.astype(w2_ref.dtype), w2_ref[...],
                preferred_element_type=jnp.float32)
    # TODO(synk): dropout is identity here (inference); training-mode dropout
    # would use pltpu.prng_seed + pltpu.prng_random_bits.
    y = y + b2_ref[...].astype(jnp.float32) + x        # residual = pre-LN x
    out_ref[...] = y.astype(out_ref.dtype)


def ffn_kernel_stream(x_ref, gamma_ref, beta_ref, w1_ref, b1_ref, w2_ref,
                      b2_ref, out_ref, xn_ref, acc_ref):
    """Weights streamed over the d_hid contraction axis (grid axis 1)."""
    k = pl.program_id(1)

    @pl.when(k == 0)
    def _():
        # LayerNorm once per row tile; cache at the MXU (weight) dtype.
        x = x_ref[...].astype(jnp.float32)
        mean = jnp.mean(x, axis=-1, keepdims=True)
        cen = x - mean
        var = jnp.mean(cen * cen, axis=-1, keepdims=True)
        xn = cen * lax.rsqrt(var + 1e-6)
        xn = (xn * gamma_ref[...].astype(jnp.float32)
              + beta_ref[...].astype(jnp.float32))
        xn_ref[...] = xn.astype(xn_ref.dtype)

    h = jnp.dot(xn_ref[...], w1_ref[...], preferred_element_type=jnp.float32)
    h = jnp.maximum(h + b1_ref[...].astype(jnp.float32), 0.0)
    part = jnp.dot(h.astype(w2_ref.dtype), w2_ref[...],
                   preferred_element_type=jnp.float32)

    @pl.when(k == 0)
    def _():
        acc_ref[...] = part          # direct store: no zero-fill + reload

    @pl.when(k > 0)
    def _():
        acc_ref[...] += part

    @pl.when(k == pl.num_programs(1) - 1)
    def _():
        # TODO(synk): dropout is identity here (inference).
        y = acc_ref[...] + b2_ref[...].astype(jnp.float32)
        y = y + x_ref[...].astype(jnp.float32)         # residual = pre-LN x
        out_ref[...] = y.astype(out_ref.dtype)


# ---------------------------------------------------------------------------
# Tiling / device policy helpers
# ---------------------------------------------------------------------------

def _device_info():
    """(device_kind, vmem_capacity_bytes, mxu_align, is_v5, is_v7)."""
    kind = ""
    try:
        kind = jax.devices()[0].device_kind.lower()
    except Exception:
        pass
    vmem_cap = None
    try:
        vmem_cap = int(getattr(pltpu.get_tpu_info(), "vmem_capacity_bytes"))
    except Exception:
        vmem_cap = None
    if vmem_cap is None:
        vmem_cap = (64 << 20) if "v7" in kind else (128 << 20)
    is_v5 = "v5" in kind
    is_v7 = ("v7" in kind) or vmem_cap <= (64 << 20)
    mxu_align = 128 if is_v5 else 256          # MXU is 128x128 on v5e, 256 on v6e/v7x
    return kind, vmem_cap, mxu_align, is_v5, is_v7


def _vmem_budget(vmem_cap, is_v7):
    if is_v7 or vmem_cap <= (64 << 20):
        # 64 MiB/TC on v7x: leave ~12 MiB headroom for compiler scratch.
        return max(vmem_cap - (12 << 20), 32 << 20)
    # 128 MiB parts (v5e/v6e): allow ~104 MiB instead of a blanket 64 MiB cap.
    return min(vmem_cap - (24 << 20), 104 << 20)


def _aligned_divisors(dim, align):
    """Divisors of `dim` that are multiples of `align`, descending."""
    return [t for t in range(align, dim + 1, align) if dim % t == 0][::-1]


def _pick_tm(M, cap, aligns, fits):
    """Largest divisor-of-M row tile <= cap that fits VMEM, preferring the
    MXU alignment, then 128, then bf16 sublane-friendly 16/8."""
    for align in aligns:
        if M % align:
            continue
        for t in _aligned_divisors(M, align):
            if t <= cap and fits(t):
                return t
    return None


def _pick_th(d_hid, mxu_align, cap=1024):
    for align in (mxu_align, 128):
        if d_hid % align:
            continue
        for t in _aligned_divisors(d_hid, align):
            if t <= cap:
                return t
    return d_hid


def _resident_vmem(tm, d_in, d_hid, x_bytes, w_bytes):
    return (4 * tm * d_in * x_bytes                 # x + out tiles, double-buffered
            + 2 * d_in * d_hid * w_bytes            # w1 + w2, single-buffered
            + (d_hid + 3 * d_in) * 4                # b1, b2, gamma, beta
            + tm * d_in * 4                         # f32 LN intermediate
            + tm * d_hid * 4)                       # f32 hidden intermediate


def _stream_vmem(tm, th, d_in, x_bytes, w_bytes):
    return (4 * tm * d_in * x_bytes                 # x + out tiles, double-buffered
            + 4 * d_in * th * w_bytes               # w1/w2 tiles, double-buffered
            + 2 * (th + 3 * d_in) * 4               # biases / LN params
            + tm * d_in * w_bytes                   # xn scratch
            + tm * d_in * 4                         # f32 accumulator scratch
            + tm * th * 4)                          # f32 hidden intermediate


# ---------------------------------------------------------------------------
# Wrapper
# ---------------------------------------------------------------------------

def positionwise_feed_forward(x, gamma, beta, w1, b1, w2, b2, *,
                              tm=None, th=None):
    """x: (B, S, d_in) -> (B, S, d_in).  w1: (d_in, d_hid), w2: (d_hid, d_in)."""
    B, S, d_in = x.shape
    d_hid = w1.shape[1]
    assert w1.shape == (d_in, d_hid) and w2.shape == (d_hid, d_in)
    # Lane / sublane guards: unaligned d_in would force masked vst.msk stores.
    # TODO(synk): pad d_in / d_hid / M instead of asserting for ragged shapes.
    assert d_in % 128 == 0, "d_in must be a multiple of 128 (lane dim)"
    assert d_hid % 128 == 0, "d_hid must be a multiple of 128 (lane dim)"
    M = B * S
    assert M % 8 == 0, "B*S must be a multiple of 8 (sublane dim)"

    x_bytes = jnp.dtype(x.dtype).itemsize
    w_bytes = jnp.dtype(w1.dtype).itemsize
    _, vmem_cap, mxu_align, is_v5, is_v7 = _device_info()
    budget = _vmem_budget(vmem_cap, is_v7)

    tm_aligns = []
    for a in (mxu_align, 128, 64, 32, 16, 8):
        if a <= M and a not in tm_aligns:
            tm_aligns.append(a)

    # ---- choose schedule & tiles -------------------------------------------
    resident = None if th is None else (th == d_hid)

    def resident_fits(t):
        return _resident_vmem(t, d_in, d_hid, x_bytes, w_bytes) <= budget

    if resident is None or resident:
        resident_tm_cap = min(M, 512 if is_v5 else 256)
        if tm is not None:
            tm_res = tm if resident_fits(tm) else None
        else:
            tm_res = _pick_tm(M, resident_tm_cap, tm_aligns, resident_fits)
        if tm_res is not None:
            resident, tm, th = True, tm_res, d_hid
        elif resident:
            raise ValueError("th == d_hid requested but weights do not fit VMEM")
        else:
            resident = False

    if not resident:
        if th is None:
            th = _pick_th(d_hid, mxu_align, cap=1024)
        assert d_hid % th == 0

        def stream_fits(t):
            return _stream_vmem(t, th, d_in, x_bytes, w_bytes) <= budget

        if tm is None:
            # Roofline targets so streamed weights are amortized over enough
            # MXU work: ~256 rows on v5e, ~512 on v7x, ~768 on v6e.
            tm_target = 256 if is_v5 else (512 if is_v7 else 768)
            tm = _pick_tm(M, min(M, max(tm_target, 1024)), tm_aligns, stream_fits)
            if tm is None:
                th = 128
                tm = _pick_tm(M, min(M, 1024), tm_aligns, stream_fits)
            if tm is None:
                tm = 8   # TODO(synk): tile d_in as well for very large d_in.
        # TODO(synk): on v5e, pl.Buffered(3) on the streamed w1/w2 specs can
        # hide the lower HBM bandwidth once VMEM allows it.

    assert M % tm == 0 and d_hid % th == 0
    n_k = d_hid // th

    # ---- flatten operands ----------------------------------------------------
    x2 = x.reshape(M, d_in)
    gamma2 = gamma.reshape(1, d_in)
    beta2 = beta.reshape(1, d_in)
    b1_2 = b1.reshape(1, d_hid)
    b2_2 = b2.reshape(1, d_in)

    est = (_resident_vmem(tm, d_in, d_hid, x_bytes, w_bytes) if resident
           else _stream_vmem(tm, th, d_in, x_bytes, w_bytes))
    vmem_limit = int(min(budget, max(int(1.5 * est), 32 << 20)))

    # CostEstimate reflects real traffic: streaming re-reads weights per row tile.
    weight_passes = 1 if resident else (M // tm)
    cost = pl.CostEstimate(
        flops=4 * M * d_in * d_hid,
        transcendentals=M,
        bytes_accessed=(2 * M * d_in * x_bytes
                        + weight_passes * 2 * d_in * d_hid * w_bytes
                        + (d_hid + 3 * d_in) * 4))

    # ---- build pallas_call ---------------------------------------------------
    if resident:
        def build(single_buffer):
            def wspec(shape):
                if single_buffer:
                    # Constant-index operands: single-buffered -> resident,
                    # half the VMEM, DMA'd from HBM exactly once.
                    return pl.BlockSpec(shape, lambda i: (0, 0),
                                        pipeline_mode=pl.Buffered(1))
                return pl.BlockSpec(shape, lambda i: (0, 0))
            return pl.pallas_call(
                ffn_kernel_resident,
                out_shape=jax.ShapeDtypeStruct((M, d_in), x.dtype),
                grid_spec=pltpu.PrefetchScalarGridSpec(
                    num_scalar_prefetch=0,
                    grid=(M // tm,),
                    in_specs=[
                        pl.BlockSpec((tm, d_in), lambda i: (i, 0)),  # x rows
                        wspec((1, d_in)),                            # gamma
                        wspec((1, d_in)),                            # beta
                        wspec((d_in, d_hid)),                        # w1 (transposed)
                        wspec((1, d_hid)),                           # b1
                        wspec((d_hid, d_in)),                        # w2 (transposed)
                        wspec((1, d_in)),                            # b2
                    ],
                    out_specs=pl.BlockSpec((tm, d_in), lambda i: (i, 0))),
                compiler_params=pltpu.CompilerParams(
                    dimension_semantics=("parallel",),
                    vmem_limit_bytes=vmem_limit),
                cost_estimate=cost,
            )

        def run(single_buffer):
            return build(single_buffer)(x2, gamma2, beta2, w1, b1_2, w2, b2_2)

        try:
            out = jax.block_until_ready(run(True))
        except Exception:
            # Fallback if this JAX build rejects pipeline_mode=pl.Buffered(1).
            out = run(False)
    else:
        out = pl.pallas_call(
            ffn_kernel_stream,
            out_shape=jax.ShapeDtypeStruct((M, d_in), x.dtype),
            grid_spec=pltpu.PrefetchScalarGridSpec(
                num_scalar_prefetch=0,
                grid=(M // tm, n_k),
                in_specs=[
                    pl.BlockSpec((tm, d_in), lambda i, k: (i, 0)),   # x rows
                    pl.BlockSpec((1, d_in), lambda i, k: (0, 0)),    # gamma
                    pl.BlockSpec((1, d_in), lambda i, k: (0, 0)),    # beta
                    pl.BlockSpec((d_in, th), lambda i, k: (0, k)),   # w1 tile
                    pl.BlockSpec((1, th), lambda i, k: (0, k)),      # b1 tile
                    pl.BlockSpec((th, d_in), lambda i, k: (k, 0)),   # w2 tile
                    pl.BlockSpec((1, d_in), lambda i, k: (0, 0)),    # b2
                ],
                out_specs=pl.BlockSpec((tm, d_in), lambda i, k: (i, 0)),
                scratch_shapes=[
                    pltpu.VMEM((tm, d_in), w1.dtype),     # cached LN output
                    pltpu.VMEM((tm, d_in), jnp.float32),  # f32 accumulator
                ]),
            compiler_params=pltpu.CompilerParams(
                dimension_semantics=("parallel", "arbitrary"),
                vmem_limit_bytes=vmem_limit),
            cost_estimate=cost,
        )(x2, gamma2, beta2, w1, b1_2, w2, b2_2)

    return out.reshape(B, S, d_in)


# ---------------------------------------------------------------------------
# Reference + demo
# ---------------------------------------------------------------------------

def _reference(x, gamma, beta, w1, b1, w2, b2):
    # Pure-JAX reference; emulates the kernel's operand-dtype casts at the matmuls.
    xf = x.astype(jnp.float32)
    mean = jnp.mean(xf, axis=-1, keepdims=True)
    var = jnp.mean((xf - mean) ** 2, axis=-1, keepdims=True)
    xn = (xf - mean) / jnp.sqrt(var + 1e-6) * gamma + beta
    xn = xn.astype(w1.dtype).astype(jnp.float32)
    h = jnp.maximum(xn @ w1.astype(jnp.float32) + b1, 0.0)
    h = h.astype(w2.dtype).astype(jnp.float32)
    y = h @ w2.astype(jnp.float32) + b2
    return (y + xf).astype(x.dtype)


if __name__ == "__main__":
    # Small, lane-aligned shapes (d_in, d_hid multiples of 128).  On any TPU
    # generation this takes the weights-resident path with tm=256/512, so the
    # grid still has >1 row-tile step (exercises pipelining / megacore).
    B, S, d_in, d_hid = 2, 256, 128, 1024

    key = jax.random.PRNGKey(0)
    kx, k1, k2, k3, k4 = jax.random.split(key, 5)

    # bf16 activations / weights (MXU-native path); f32 LN params and biases.
    x = jax.random.normal(kx, (B, S, d_in), dtype=jnp.float32).astype(jnp.bfloat16)
    lim1 = 1.0 / (d_in ** 0.5)   # nn.Linear default init bound
    lim2 = 1.0 / (d_hid ** 0.5)
    w1 = jax.random.uniform(k1, (d_in, d_hid), jnp.float32, -lim1, lim1).astype(jnp.bfloat16)
    b1 = jax.random.uniform(k2, (d_hid,), jnp.float32, -lim1, lim1)
    w2 = jax.random.uniform(k3, (d_hid, d_in), jnp.float32, -lim2, lim2).astype(jnp.bfloat16)
    b2 = jax.random.uniform(k4, (d_in,), jnp.float32, -lim2, lim2)
    gamma = jnp.ones((d_in,), jnp.float32)    # nn.LayerNorm default weight
    beta = jnp.zeros((d_in,), jnp.float32)    # nn.LayerNorm default bias

    out = jax.block_until_ready(
        positionwise_feed_forward(x, gamma, beta, w1, b1, w2, b2))

    assert out.shape == x.shape and out.dtype == x.dtype

    ref = _reference(x, gamma, beta, w1, b1, w2, b2)
    err = jnp.max(jnp.abs(out.astype(jnp.float32) - ref.astype(jnp.float32)))
    ok = jnp.allclose(out.astype(jnp.float32), ref.astype(jnp.float32),
                      atol=5e-2, rtol=5e-2)
    assert bool(ok), f"mismatch vs reference: max abs err = {err}"
    print("KERNEL_OK")
</pallas_src>

<mosaic_0001>
module attributes {stable_mosaic.version = 11 : i64} {
  func.func @ffn_kernel_resident(%arg0: i32, %arg1: memref<256x128xbf16, #tpu.memory_space<vmem>>, %arg2: memref<1x128xf32, #tpu.memory_space<vmem>>, %arg3: memref<1x128xf32, #tpu.memory_space<vmem>>, %arg4: memref<128x1024xbf16, #tpu.memory_space<vmem>>, %arg5: memref<1x1024xf32, #tpu.memory_space<vmem>>, %arg6: memref<1024x128xbf16, #tpu.memory_space<vmem>>, %arg7: memref<1x128xf32, #tpu.memory_space<vmem>>, %arg8: memref<256x128xbf16, #tpu.memory_space<vmem>>) attributes {dimension_semantics = [#tpu.dimension_semantics<parallel>], iteration_bounds = array<i64: 2>, scalar_prefetch = 0 : i64, scratch_operands = 0 : i64, tpu.core_type = #tpu.core_type<tc>, window_params = [{transform_indices = @transform_0, window_bounds = array<i64: 256, 128>}, {pipeline_mode = #tpu.pipeline_mode<synchronous>, transform_indices = @transform_1, window_bounds = array<i64: 1, 128>}, {pipeline_mode = #tpu.pipeline_mode<synchronous>, transform_indices = @transform_2, window_bounds = array<i64: 1, 128>}, {pipeline_mode = #tpu.pipeline_mode<synchronous>, transform_indices = @transform_3, window_bounds = array<i64: 128, 1024>}, {pipeline_mode = #tpu.pipeline_mode<synchronous>, transform_indices = @transform_4, window_bounds = array<i64: 1, 1024>}, {pipeline_mode = #tpu.pipeline_mode<synchronous>, transform_indices = @transform_5, window_bounds = array<i64: 1024, 128>}, {pipeline_mode = #tpu.pipeline_mode<synchronous>, transform_indices = @transform_6, window_bounds = array<i64: 1, 128>}, {transform_indices = @transform_7, window_bounds = array<i64: 256, 128>}]} {
    %c0 = arith.constant 0 : index
    %c0_0 = arith.constant 0 : index
    %0 = vector.load %arg1[%c0, %c0_0] : memref<256x128xbf16, #tpu.memory_space<vmem>>, vector<256x128xbf16>
    %1 = arith.extf %0 : vector<256x128xbf16> to vector<256x128xf32>
    %cst = arith.constant dense<0.000000e+00> : vector<256xf32>
    %2 = vector.multi_reduction <add>, %1, %cst [1] : vector<256x128xf32> to vector<256xf32>
    %3 = vector.shape_cast %2 : vector<256xf32> to vector<256x1xf32>
    %cst_1 = arith.constant 1.280000e+02 : f32
    %4 = vector.broadcast %cst_1 : f32 to vector<256x1xf32>
    %5 = arith.divf %3, %4 : vector<256x1xf32>
    %6 = vector.broadcast %5 : vector<256x1xf32> to vector<256x128xf32>
    %7 = arith.subf %1, %6 : vector<256x128xf32>
    %8 = arith.mulf %7, %7 : vector<256x128xf32>
    %cst_2 = arith.constant dense<0.000000e+00> : vector<256xf32>
    %9 = vector.multi_reduction <add>, %8, %cst_2 [1] : vector<256x128xf32> to vector<256xf32>
    %10 = vector.shape_cast %9 : vector<256xf32> to vector<256x1xf32>
    %cst_3 = arith.constant 1.280000e+02 : f32
    %11 = vector.broadcast %cst_3 : f32 to vector<256x1xf32>
    %12 = arith.divf %10, %11 : vector<256x1xf32>
    %cst_4 = arith.constant 9.99999997E-7 : f32
    %13 = vector.broadcast %cst_4 : f32 to vector<256x1xf32>
    %14 = arith.addf %12, %13 : vector<256x1xf32>
    %15 = math.rsqrt %14 : vector<256x1xf32>
    %16 = vector.broadcast %15 : vector<256x1xf32> to vector<256x128xf32>
    %17 = arith.mulf %7, %16 : vector<256x128xf32>
    %c0_5 = arith.constant 0 : index
    %c0_6 = arith.constant 0 : index
    %18 = vector.load %arg2[%c0_5, %c0_6] : memref<1x128xf32, #tpu.memory_space<vmem>>, vector<1x128xf32>
    %19 = vector.broadcast %18 : vector<1x128xf32> to vector<256x128xf32>
    %20 = arith.mulf %17, %19 : vector<256x128xf32>
    %c0_7 = arith.constant 0 : index
    %c0_8 = arith.constant 0 : index
    %21 = vector.load %arg3[%c0_7, %c0_8] : memref<1x128xf32, #tpu.memory_space<vmem>>, vector<1x128xf32>
    %22 = vector.broadcast %21 : vector<1x128xf32> to vector<256x128xf32>
    %23 = arith.addf %20, %22 : vector<256x128xf32>
    %24 = arith.truncf %23 : vector<256x128xf32> to vector<256x128xbf16>
    %c0_9 = arith.constant 0 : index
    %c0_10 = arith.constant 0 : index
    %25 = vector.load %arg4[%c0_9, %c0_10] : memref<128x1024xbf16, #tpu.memory_space<vmem>>, vector<128x1024xbf16>
    %cst_11 = arith.constant dense<0.000000e+00> : vector<256x1024xf32>
    %26 = tpu.matmul %24, %25, %cst_11 {dimension_numbers = #tpu.dot_dimension_numbers<[1], [0], [0], [1], [0, 0, 1, 1], [], []>} : vector<256x128xbf16>, vector<128x1024xbf16>, vector<256x1024xf32> -> vector<256x1024xf32>
    %c0_12 = arith.constant 0 : index
    %c0_13 = arith.constant 0 : index
    %27 = vector.load %arg5[%c0_12, %c0_13] : memref<1x1024xf32, #tpu.memory_space<vmem>>, vector<1x1024xf32>
    %28 = vector.broadcast %27 : vector<1x1024xf32> to vector<256x1024xf32>
    %29 = arith.addf %26, %28 : vector<256x1024xf32>
    %cst_14 = arith.constant 0.000000e+00 : f32
    %30 = vector.broadcast %cst_14 : f32 to vector<256x1024xf32>
    %31 = arith.maximumf %29, %30 : vector<256x1024xf32>
    %32 = arith.truncf %31 : vector<256x1024xf32> to vector<256x1024xbf16>
    %c0_15 = arith.constant 0 : index
    %c0_16 = arith.constant 0 : index
    %33 = vector.load %arg6[%c0_15, %c0_16] : memref<1024x128xbf16, #tpu.memory_space<vmem>>, vector<1024x128xbf16>
    %cst_17 = arith.constant dense<0.000000e+00> : vector<256x128xf32>
    %34 = tpu.matmul %32, %33, %cst_17 {dimension_numbers = #tpu.dot_dimension_numbers<[1], [0], [0], [1], [0, 0, 1, 1], [], []>} : vector<256x1024xbf16>, vector<1024x128xbf16>, vector<256x128xf32> -> vector<256x128xf32>
    %c0_18 = arith.constant 0 : index
    %c0_19 = arith.constant 0 : index
    %35 = vector.load %arg7[%c0_18, %c0_19] : memref<1x128xf32, #tpu.memory_space<vmem>>, vector<1x128xf32>
    %36 = vector.broadcast %35 : vector<1x128xf32> to vector<256x128xf32>
    %37 = arith.addf %34, %36 : vector<256x128xf32>
    %38 = arith.addf %37, %1 : vector<256x128xf32>
    %39 = arith.truncf %38 : vector<256x128xf32> to vector<256x128xbf16>
    %c0_20 = arith.constant 0 : index
    %c0_21 = arith.constant 0 : index
    %40 = vector.load %arg8[%c0_20, %c0_21] : memref<256x128xbf16, #tpu.memory_space<vmem>>, vector<256x128xbf16>
    tpu.vector_store %arg8[%c0_20, %c0_21], %39 {strides = array<i32>} : memref<256x128xbf16, #tpu.memory_space<vmem>>, vector<256x128xbf16>,
    return
  }
  func.func @transform_0(%arg0: i32) -> (i32, i32) {
    %c0_i32 = arith.constant 0 : i32
    %c0_i32_0 = arith.constant 0 : i32
    return %arg0, %c0_i32 : i32, i32
  }
  func.func @transform_1(%arg0: i32) -> (i32, i32) {
    %c0_i32 = arith.constant 0 : i32
    %c0_i32_0 = arith.constant 0 : i32
    %c0_i32_1 = arith.constant 0 : i32
    return %c0_i32, %c0_i32_0 : i32, i32
  }
  func.func @transform_2(%arg0: i32) -> (i32, i32) {
    %c0_i32 = arith.constant 0 : i32
    %c0_i32_0 = arith.constant 0 : i32
    %c0_i32_1 = arith.constant 0 : i32
    return %c0_i32, %c0_i32_0 : i32, i32
  }
  func.func @transform_3(%arg0: i32) -> (i32, i32) {
    %c0_i32 = arith.constant 0 : i32
    %c0_i32_0 = arith.constant 0 : i32
    %c0_i32_1 = arith.constant 0 : i32
    return %c0_i32, %c0_i32_0 : i32, i32
  }
  func.func @transform_4(%arg0: i32) -> (i32, i32) {
    %c0_i32 = arith.constant 0 : i32
    %c0_i32_0 = arith.constant 0 : i32
    %c0_i32_1 = arith.constant 0 : i32
    return %c0_i32, %c0_i32_0 : i32, i32
  }
  func.func @transform_5(%arg0: i32) -> (i32, i32) {
    %c0_i32 = arith.constant 0 : i32
    %c0_i32_0 = arith.constant 0 : i32
    %c0_i32_1 = arith.constant 0 : i32
    return %c0_i32, %c0_i32_0 : i32, i32
  }
  func.func @transform_6(%arg0: i32) -> (i32, i32) {
    %c0_i32 = arith.constant 0 : i32
    %c0_i32_0 = arith.constant 0 : i32
    %c0_i32_1 = arith.constant 0 : i32
    return %c0_i32, %c0_i32_0 : i32, i32
  }
  func.func @transform_7(%arg0: i32) -> (i32, i32) {
    %c0_i32 = arith.constant 0 : i32
    %c0_i32_0 = arith.constant 0 : i32
    return %arg0, %c0_i32 : i32, i32
  }
}

module attributes {stable_mosaic.version = 11 : i64} {
  func.func @ffn_kernel_resident(%arg0: i32, %arg1: memref<256x128xbf16, #tpu.memory_space<vmem>>, %arg2: memref<1x128xf32, #tpu.memory_space<vmem>>, %arg3: memref<1x128xf32, #tpu.memory_space<vmem>>, %arg4: memref<128x1024xbf16, #tpu.memory_space<vmem>>, %arg5: memref<1x1024xf32, #tpu.memory_space<vmem>>, %arg6: memref<1024x128xbf16, #tpu.memory_space<vmem>>, %arg7: memref<1x128xf32, #tpu.memory_space<vmem>>, %arg8: memref<256x128xbf16, #tpu.memory_space<vmem>>) attributes {dimension_semantics = [#tpu.dimension_semantics<parallel>], iteration_bounds = array<i64: 2>, scalar_prefetch = 0 : i64, scratch_operands = 0 : i64, tpu.core_type = #tpu.core_type<tc>, window_params = [{transform_indices = @transform_0, window_bounds = array<i64: 256, 128>}, {pipeline_mode = #tpu.pipeline_mode<synchronous>, transform_indices = @transform_1, window_bounds = array<i64: 1, 128>}, {pipeline_mode = #tpu.pipeline_mode<synchronous>, transform_indices = @transform_2, window_bounds = array<i64: 1, 128>}, {pipeline_mode = #tpu.pipeline_mode<synchronous>, transform_indices = @transform_3, window_bounds = array<i64: 128, 1024>}, {pipeline_mode = #tpu.pipeline_mode<synchronous>, transform_indices = @transform_4, window_bounds = array<i64: 1, 1024>}, {pipeline_mode = #tpu.pipeline_mode<synchronous>, transform_indices = @transform_5, window_bounds = array<i64: 1024, 128>}, {pipeline_mode = #tpu.pipeline_mode<synchronous>, transform_indices = @transform_6, window_bounds = array<i64: 1, 128>}, {transform_indices = @transform_7, window_bounds = array<i64: 256, 128>}]} {
    %c0 = arith.constant 0 : index
    %c0_0 = arith.constant 0 : index
    %0 = vector.load %arg1[%c0, %c0_0] : memref<256x128xbf16, #tpu.memory_space<vmem>>, vector<256x128xbf16>
    %1 = arith.extf %0 : vector<256x128xbf16> to vector<256x128xf32>
    %cst = arith.constant dense<0.000000e+00> : vector<256xf32>
    %2 = vector.multi_reduction <add>, %1, %cst [1] : vector<256x128xf32> to vector<256xf32>
    %3 = vector.shape_cast %2 : vector<256xf32> to vector<256x1xf32>
    %cst_1 = arith.constant 1.280000e+02 : f32
    %4 = vector.broadcast %cst_1 : f32 to vector<256x1xf32>
    %5 = arith.divf %3, %4 : vector<256x1xf32>
    %6 = vector.broadcast %5 : vector<256x1xf32> to vector<256x128xf32>
    %7 = arith.subf %1, %6 : vector<256x128xf32>
    %8 = arith.mulf %7, %7 : vector<256x128xf32>
    %cst_2 = arith.constant dense<0.000000e+00> : vector<256xf32>
    %9 = vector.multi_reduction <add>, %8, %cst_2 [1] : vector<256x128xf32> to vector<256xf32>
    %10 = vector.shape_cast %9 : vector<256xf32> to vector<256x1xf32>
    %cst_3 = arith.constant 1.280000e+02 : f32
    %11 = vector.broadcast %cst_3 : f32 to vector<256x1xf32>
    %12 = arith.divf %10, %11 : vector<256x1xf32>
    %cst_4 = arith.constant 9.99999997E-7 : f32
    %13 = vector.broadcast %cst_4 : f32 to vector<256x1xf32>
    %14 = arith.addf %12, %13 : vector<256x1xf32>
    %15 = math.rsqrt %14 : vector<256x1xf32>
    %16 = vector.broadcast %15 : vector<256x1xf32> to vector<256x128xf32>
    %17 = arith.mulf %7, %16 : vector<256x128xf32>
    %c0_5 = arith.constant 0 : index
    %c0_6 = arith.constant 0 : index
    %18 = vector.load %arg2[%c0_5, %c0_6] : memref<1x128xf32, #tpu.memory_space<vmem>>, vector<1x128xf32>
    %19 = vector.broadcast %18 : vector<1x128xf32> to vector<256x128xf32>
    %20 = arith.mulf %17, %19 : vector<256x128xf32>
    %c0_7 = arith.constant 0 : index
    %c0_8 = arith.constant 0 : index
    %21 = vector.load %arg3[%c0_7, %c0_8] : memref<1x128xf32, #tpu.memory_space<vmem>>, vector<1x128xf32>
    %22 = vector.broadcast %21 : vector<1x128xf32> to vector<256x128xf32>
    %23 = arith.addf %20, %22 : vector<256x128xf32>
    %24 = arith.truncf %23 : vector<256x128xf32> to vector<256x128xbf16>
    %c0_9 = arith.constant 0 : index
    %c0_10 = arith.constant 0 : index
    %25 = vector.load %arg4[%c0_9, %c0_10] : memref<128x1024xbf16, #tpu.memory_space<vmem>>, vector<128x1024xbf16>
    %cst_11 = arith.constant dense<0.000000e+00> : vector<256x1024xf32>
    %26 = tpu.matmul %24, %25, %cst_11 {dimension_numbers = #tpu.dot_dimension_numbers<[1], [0], [0], [1], [0, 0, 1, 1], [], []>} : vector<256x128xbf16>, vector<128x1024xbf16>, vector<256x1024xf32> -> vector<256x1024xf32>
    %c0_12 = arith.constant 0 : index
    %c0_13 = arith.constant 0 : index
    %27 = vector.load %arg5[%c0_12, %c0_13] : memref<1x1024xf32, #tpu.memory_space<vmem>>, vector<1x1024xf32>
    %28 = vector.broadcast %27 : vector<1x1024xf32> to vector<256x1024xf32>
    %29 = arith.addf %26, %28 : vector<256x1024xf32>
    %cst_14 = arith.constant 0.000000e+00 : f32
    %30 = vector.broadcast %cst_14 : f32 to vector<256x1024xf32>
    %31 = arith.maximumf %29, %30 : vector<256x1024xf32>
    %32 = arith.truncf %31 : vector<256x1024xf32> to vector<256x1024xbf16>
    %c0_15 = arith.constant 0 : index
    %c0_16 = arith.constant 0 : index
    %33 = vector.load %arg6[%c0_15, %c0_16] : memref<1024x128xbf16, #tpu.memory_space<vmem>>, vector<1024x128xbf16>
    %cst_17 = arith.constant dense<0.000000e+00> : vector<256x128xf32>
    %34 = tpu.matmul %32, %33, %cst_17 {dimension_numbers = #tpu.dot_dimension_numbers<[1], [0], [0], [1], [0, 0, 1, 1], [], []>} : vector<256x1024xbf16>, vector<1024x128xbf16>, vector<256x128xf32> -> vector<256x128xf32>
    %c0_18 = arith.constant 0 : index
    %c0_19 = arith.constant 0 : index
    %35 = vector.load %arg7[%c0_18, %c0_19] : memref<1x128xf32, #tpu.memory_space<vmem>>, vector<1x128xf32>
    %36 = vector.broadcast %35 : vector<1x128xf32> to vector<256x128xf32>
    %37 = arith.addf %34, %36 : vector<256x128xf32>
    %38 = arith.addf %37, %1 : vector<256x128xf32>
    %39 = arith.truncf %38 : vector<256x128xf32> to vector<256x128xbf16>
    %c0_20 = arith.constant 0 : index
    %c0_21 = arith.constant 0 : index
    %40 = vector.load %arg8[%c0_20, %c0_21] : memref<256x128xbf16, #tpu.memory_space<vmem>>, vector<256x128xbf16>
    tpu.vector_store %arg8[%c0_20, %c0_21], %39 {strides = array<i32>} : memref<256x128xbf16, #tpu.memory_space<vmem>>, vector<256x128xbf16>,
    return
  }
  func.func @transform_0(%arg0: i32) -> (i32, i32) {
    %c0_i32 = arith.constant 0 : i32
    %c0_i32_0 = arith.constant 0 : i32
    return %arg0, %c0_i32 : i32, i32
  }
  func.func @transform_1(%arg0: i32) -> (i32, i32) {
    %c0_i32 = arith.constant 0 : i32
    %c0_i32_0 = arith.constant 0 : i32
    %c0_i32_1 = arith.constant 0 : i32
    return %c0_i32, %c0_i32_0 : i32, i32
  }
  func.func @transform_2(%arg0: i32) -> (i32, i32) {
    %c0_i32 = arith.constant 0 : i32
    %c0_i32_0 = arith.constant 0 : i32
    %c0_i32_1 = arith.constant 0 : i32
    return %c0_i32, %c0_i32_0 : i32, i32
  }
  func.func @transform_3(%arg0: i32) -> (i32, i32) {
    %c0_i32 = arith.constant 0 : i32
    %c0_i32_0 = arith.constant 0 : i32
    %c0_i32_1 = arith.constant 0 : i32
    return %c0_i32, %c0_i32_0 : i32, i32
  }
  func.func @transform_4(%arg0: i32) -> (i32, i32) {
    %c0_i32 = arith.constant 0 : i32
    %c0_i32_0 = arith.constant 0 : i32
    %c0_i32_1 = arith.constant 0 : i32
    return %c0_i32, %c0_i32_0 : i32, i32
  }
  func.func @transform_5(%arg0: i32) -> (i32, i32) {
    %c0_i32 = arith.constant 0 : i32
    %c0_i32_0 = arith.constant 0 : i32
    %c0_i32_1 = arith.constant 0 : i32
    return %c0_i32, %c0_i32_0 : i32, i32
  }
  func.func @transform_6(%arg0: i32) -> (i32, i32) {
    %c0_i32 = arith.constant 0 : i32
    %c0_i32_0 = arith.constant 0 : i32
    %c0_i32_1 = arith.constant 0 : i32
    return %c0_i32, %c0_i32_0 : i32, i32
  }
  func.func @transform_7(%arg0: i32) -> (i32, i32) {
    %c0_i32 = arith.constant 0 : i32
    %c0_i32_0 = arith.constant 0 : i32
    return %arg0, %c0_i32 : i32, i32
  }
}

</mosaic_0001>

<llo_original>
// kernel: tpu_custom_call.1
$region0: #{tpu_custom_call.1}
  #allocation0 [shape = 'u32[]', space=smem, size = 0x4, offset = 0x4, fixed_abs, tag = 'smem constant byte address 0x4 - core index']
  #allocation1 [shape = 'u32[144,128]{1,0:T(1,128)}', space=vmem, size = 0x12000, scoped, tag = 'internal scratch']
  %s0 = inlined_call_operand.hbm [shape: bf16[512,128], index: 0, kind: input, shape index: {}]
  %s1 = inlined_call_operand.vmem [shape: f32[1,128], index: 1, kind: input, shape index: {}]
  %s2 = inlined_call_operand.vmem [shape: f32[1,128], index: 2, kind: input, shape index: {}]
  %s3 = inlined_call_operand.hbm [shape: bf16[128,1024], index: 3, kind: input, shape index: {}]
  %s4 = inlined_call_operand.vmem [shape: f32[1,1024], index: 4, kind: input, shape index: {}]
  %s5 = inlined_call_operand.hbm [shape: bf16[1024,128], index: 5, kind: input, shape index: {}]
  %s6 = inlined_call_operand.vmem [shape: f32[1,128], index: 6, kind: input, shape index: {}]
  %s7 = inlined_call_operand.hbm [shape: bf16[512,128], index: 7, kind: output, shape index: {}]
  %s8 = sld [smem:[#allocation0]]
  $region73: #{tpu_custom_call.1} parent=0
    _
  %s10 = ssub.s32 1, %s8
  %s11 = scalar_select 0, %s10, %s8
  $region1: #{tpu_custom_call.1} parent=0
    #allocation2 [shape = 'u8[131072]{0}', space=vmem, size = 0x20000, scoped, tag = 'input window, operand 0']
    #allocation3 [shape = 's32[2]{0}', space=sflag, size = 0x8, scoped, tag = 'scoped memory for tpu_custom_call.1']
    #allocation4 [shape = 's32[2]{0}', space=sflag, size = 0x8, scoped, tag = 'scoped memory for tpu_custom_call.1']
    #allocation5 [shape = 'u8[262144]{0}', space=vmem, size = 0x40000, scoped, tag = 'input window, operand 3, single buffered']
    #allocation6 [shape = 's32[1]{0}', space=sflag, size = 0x4, scoped, tag = 'scoped memory for tpu_custom_call.1']
    #allocation7 [shape = 'u8[262144]{0}', space=vmem, size = 0x40000, scoped, tag = 'input window, operand 5, single buffered']
    #allocation8 [shape = 'u8[131072]{0}', space=vmem, size = 0x20000, scoped, tag = 'output window, operand 0']
    %12 = vsyncpa [#allocation3], 0
    %s13 = scalar_lea.sflag [#allocation3], 1
    %14 = vsyncpa %s13, 0
    %15 = vsyncpa [#allocation6], 0
    %16 = vsyncpa [#allocation4], 0
    %s17 = scalar_lea.sflag [#allocation4], 1
    %18 = vsyncpa %s17, 0
    loop: start=0, step=1, limit=4
    $region2: #{tpu_custom_call.1} parent=1 // loop_pre_header
      _
    $region3: #{tpu_custom_call.1} parent=1 // loop_header
      %s20 = sphi 0, %s24
      %p21 = scmp.ge.s32.totalorder %s20, 4
      %s30 = sphi 0, %s32
      %s33 = sphi 0, %s30
      %s34 = sphi 0, %s33
      %s50 = sphi 0, %s34
      %s54 = sphi 0, %s54
      %s56 = sphi 0, %s54
      %s57 = sphi 0, %s56
      %s71 = sphi 0, %s57
      %s75 = sphi 0, %s75
      %s77 = sphi 0, %s75
      %s78 = sphi 0, %s77
      %s92 = sphi 0, %s78
      %s96 = sphi 0, %s96
      %s98 = sphi 0, %s96
      %s99 = sphi 0, %s98
      %s113 = sphi 0, %s99
      %s117 = sphi 0, %s117
      %s119 = sphi 0, %s117
      %s120 = sphi 0, %s119
      %s134 = sphi 0, %s120
      %s138 = sphi 0, %s138
      %s140 = sphi 0, %s138
      %s141 = sphi 0, %s140
      %s155 = sphi 0, %s141
      %s159 = sphi 0, %s159
      %s161 = sphi 0, %s159
      %s162 = sphi 0, %s161
      %s176 = sphi 0, %s162
      %s182 = sphi 0, %s184
      %s185 = sphi 0, %s182
      %s186 = sphi 0, %s185
      %s202 = sphi 0, %s186
    $region4: #{tpu_custom_call.1} parent=1 // loop_header_branch
      %23 = sbr.rel (%p21) target = $region8
    $region5: #{tpu_custom_call.1} parent=1 // loop_body
      %s25 = ssub.s32 %s20, 1
      %s26 = ssub.s32 %s20, 2
      %s27 = sadd.s32 %s20, 1
      %s28 = ssub.s32 %s20, %s27
      %p29 = scmp.eq.s32.totalorder %s28, 0
      %s31 = sadd.s32 %s30, 1
      %s32 = scalar_select %p29, %s30, %s31
      %p35 = pneg %p29
      %p36 = scmp.eq.s32.totalorder %s20, 1
      %p37 = por %p35, %p36
      %p38 = scmp.ne.s32.totalorder %s30, %s33
      %p39 = scmp.eq.s32.totalorder %s20, 0
      %p40 = por %p38, %p39
      %p41 = scmp.ne.s32.totalorder %s30, %s33
      %p42 = scmp.eq.s32.totalorder %s25, 1
      %p43 = por %p41, %p42
      %p44 = scmp.ne.s32.totalorder %s33, %s34
      %p45 = scmp.eq.s32.totalorder %s25, 0
      %p46 = por %p44, %p45
      %p47 = scmp.ne.s32.totalorder %s33, %s34
      %p48 = scmp.eq.s32.totalorder %s26, 1
      %p49 = por %p47, %p48
      %p51 = scmp.ne.s32.totalorder %s34, %s50
      %p52 = scmp.eq.s32.totalorder %s26, 0
      %p53 = por %p51, %p52
      %s55 = sadd.s32 %s54, 1
      %p58 = scmp.eq.s32.totalorder %s20, 1
      %p59 = scmp.ne.s32.totalorder %s54, %s56
      %p60 = scmp.eq.s32.totalorder %s20, 0
      %p61 = por %p59, %p60
      %p62 = scmp.ne.s32.totalorder %s54, %s56
      %p63 = scmp.eq.s32.totalorder %s25, 1
      %p64 = por %p62, %p63
      %p65 = scmp.ne.s32.totalorder %s56, %s57
      %p66 = scmp.eq.s32.totalorder %s25, 0
      %p67 = por %p65, %p66
      %p68 = scmp.ne.s32.totalorder %s56, %s57
      %p69 = scmp.eq.s32.totalorder %s26, 1
      %p70 = por %p68, %p69
      %p72 = scmp.ne.s32.totalorder %s57, %s71
      %p73 = scmp.eq.s32.totalorder %s26, 0
      %p74 = por %p72, %p73
      %s76 = sadd.s32 %s75, 1
      %p79 = scmp.eq.s32.totalorder %s20, 1
      %p80 = scmp.ne.s32.totalorder %s75, %s77
      %p81 = scmp.eq.s32.totalorder %s20, 0
      %p82 = por %p80, %p81
      %p83 = scmp.ne.s32.totalorder %s75, %s77
      %p84 = scmp.eq.s32.totalorder %s25, 1
      %p85 = por %p83, %p84
      %p86 = scmp.ne.s32.totalorder %s77, %s78
      %p87 = scmp.eq.s32.totalorder %s25, 0
      %p88 = por %p86, %p87
      %p89 = scmp.ne.s32.totalorder %s77, %s78
      %p90 = scmp.eq.s32.totalorder %s26, 1
      %p91 = por %p89, %p90
      %p93 = scmp.ne.s32.totalorder %s78, %s92
      %p94 = scmp.eq.s32.totalorder %s26, 0
      %p95 = por %p93, %p94
      %s97 = sadd.s32 %s96, 1
      %p100 = scmp.eq.s32.totalorder %s20, 1
      %p101 = scmp.ne.s32.totalorder %s96, %s98
      %p102 = scmp.eq.s32.totalorder %s20, 0
      %p103 = por %p101, %p102
      %p104 = scmp.ne.s32.totalorder %s96, %s98
      %p105 = scmp.eq.s32.totalorder %s25, 1
      %p106 = por %p104, %p105
      %p107 = scmp.ne.s32.totalorder %s98, %s99
      %p108 = scmp.eq.s32.totalorder %s25, 0
      %p109 = por %p107, %p108
      %p110 = scmp.ne.s32.totalorder %s98, %s99
      %p111 = scmp.eq.s32.totalorder %s26, 1
      %p112 = por %p110, %p111
      %p114 = scmp.ne.s32.totalorder %s99, %s113
      %p115 = scmp.eq.s32.totalorder %s26, 0
      %p116 = por %p114, %p115
      %s118 = sadd.s32 %s117, 1
      %p121 = scmp.eq.s32.totalorder %s20, 1
      %p122 = scmp.ne.s32.totalorder %s117, %s119
      %p123 = scmp.eq.s32.totalorder %s20, 0
      %p124 = por %p122, %p123
      %p125 = scmp.ne.s32.totalorder %s117, %s119
      %p126 = scmp.eq.s32.totalorder %s25, 1
      %p127 = por %p125, %p126
      %p128 = scmp.ne.s32.totalorder %s119, %s120
      %p129 = scmp.eq.s32.totalorder %s25, 0
      %p130 = por %p128, %p129
      %p131 = scmp.ne.s32.totalorder %s119, %s120
      %p132 = scmp.eq.s32.totalorder %s26, 1
      %p133 = por %p131, %p132
      %p135 = scmp.ne.s32.totalorder %s120, %s134
      %p136 = scmp.eq.s32.totalorder %s26, 0
      %p137 = por %p135, %p136
      %s139 = sadd.s32 %s138, 1
      %p142 = scmp.eq.s32.totalorder %s20, 1
      %p143 = scmp.ne.s32.totalorder %s138, %s140
      %p144 = scmp.eq.s32.totalorder %s20, 0
      %p145 = por %p143, %p144
      %p146 = scmp.ne.s32.totalorder %s138, %s140
      %p147 = scmp.eq.s32.totalorder %s25, 1
      %p148 = por %p146, %p147
      %p149 = scmp.ne.s32.totalorder %s140, %s141
      %p150 = scmp.eq.s32.totalorder %s25, 0
      %p151 = por %p149, %p150
      %p152 = scmp.ne.s32.totalorder %s140, %s141
      %p153 = scmp.eq.s32.totalorder %s26, 1
      %p154 = por %p152, %p153
      %p156 = scmp.ne.s32.totalorder %s141, %s155
      %p157 = scmp.eq.s32.totalorder %s26, 0
      %p158 = por %p156, %p157
      %s160 = sadd.s32 %s159, 1
      %p163 = scmp.eq.s32.totalorder %s20, 1
      %p164 = scmp.ne.s32.totalorder %s159, %s161
      %p165 = scmp.eq.s32.totalorder %s20, 0
      %p166 = por %p164, %p165
      %p167 = scmp.ne.s32.totalorder %s159, %s161
      %p168 = scmp.eq.s32.totalorder %s25, 1
      %p169 = por %p167, %p168
      %p170 = scmp.ne.s32.totalorder %s161, %s162
      %p171 = scmp.eq.s32.totalorder %s25, 0
      %p172 = por %p170, %p171
      %p173 = scmp.ne.s32.totalorder %s161, %s162
      %p174 = scmp.eq.s32.totalorder %s26, 1
      %p175 = por %p173, %p174
      %p177 = scmp.ne.s32.totalorder %s162, %s176
      %p178 = scmp.eq.s32.totalorder %s26, 0
      %p179 = por %p177, %p178
      %s180 = ssub.s32 %s20, %s27
      %p181 = scmp.eq.s32.totalorder %s180, 0
      %s183 = sadd.s32 %s182, 1
      %s184 = scalar_select %p181, %s182, %s183
      %p187 = pneg %p181
      %p188 = scmp.eq.s32.totalorder %s20, 1
      %p189 = por %p187, %p188
      %p190 = scmp.ne.s32.totalorder %s182, %s185
      %p191 = scmp.eq.s32.totalorder %s20, 0
      %p192 = por %p190, %p191
      %p193 = scmp.ne.s32.totalorder %s182, %s185
      %p194 = scmp.eq.s32.totalorder %s25, 1
      %p195 = por %p193, %p194
      %p196 = scmp.ne.s32.totalorder %s185, %s186
      %p197 = scmp.eq.s32.totalorder %s25, 0
      %p198 = por %p196, %p197
      %p199 = scmp.ne.s32.totalorder %s185, %s186
      %p200 = scmp.eq.s32.totalorder %s26, 1
      %p201 = por %p199, %p200
      %p203 = scmp.ne.s32.totalorder %s186, %s202
      %p204 = scmp.eq.s32.totalorder %s26, 0
      %p205 = por %p203, %p204
      %p206 = scmp.le.s32.totalorder 1, %s20
      %p207 = scmp.lt.s32.totalorder %s20, 3
      %p208 = pnand %p206, %p207
      %p209 = pneg %p208
      // Predicated region
      $region9: #{tpu_custom_call.1} parent=5 // pred_check
        _
      $region10: #{tpu_custom_call.1} parent=5 // pred_check_branch
        %211 = sbr.rel (%p208) target = $region12
      $region11: #{tpu_custom_call.1} parent=5 // pred_region
        %s212 = ssub.s32 %s20, 1
        // Predicated region
        $region13: #{tpu_custom_call.1} parent=11 // pred_check
          %p213 = pneg %p67
        $region14: #{tpu_custom_call.1} parent=11 // pred_check_branch
          %215 = sbr.rel (%p213) target = $region16
        $region15: #{tpu_custom_call.1} parent=11 // pred_region
          _
        $region16: #{tpu_custom_call.1} parent=11 // pred_fallthru
          _
        // Predicated region
        $region17: #{tpu_custom_call.1} parent=11 // pred_check
          %p216 = pneg %p88
        $region18: #{tpu_custom_call.1} parent=11 // pred_check_branch
          %218 = sbr.rel (%p216) target = $region20
        $region19: #{tpu_custom_call.1} parent=11 // pred_region
          _
        $region20: #{tpu_custom_call.1} parent=11 // pred_fallthru
          _
        // Predicated region
        $region21: #{tpu_custom_call.1} parent=11 // pred_check
          %p219 = pneg %p109
        $region22: #{tpu_custom_call.1} parent=11 // pred_check_branch
          %221 = sbr.rel (%p219) target = $region24
        $region23: #{tpu_custom_call.1} parent=11 // pred_region
          %s223 = ssub.s32 8192, 8192
          %224 = vsyncadd [#allocation6], %s223
          %s225 = sshll.u32 [#allocation5], 4
          %s226 = int_to_ptr.vmem [resolvable:$true] %s225
          %231 = dma.hbm_to_vmem [thread:$0]  %s3, 8192, %s226, [#allocation6], 512, 512, 32
        $region24: #{tpu_custom_call.1} parent=11 // pred_fallthru
          _
        // Predicated region
        $region25: #{tpu_custom_call.1} parent=11 // pred_check
          %p232 = pneg %p130
        $region26: #{tpu_custom_call.1} parent=11 // pred_check_branch
          %234 = sbr.rel (%p232) target = $region28
        $region27: #{tpu_custom_call.1} parent=11 // pred_region
          _
        $region28: #{tpu_custom_call.1} parent=11 // pred_fallthru
          _
        // Predicated region
        $region29: #{tpu_custom_call.1} parent=11 // pred_check
          %p235 = pneg %p151
        $region30: #{tpu_custom_call.1} parent=11 // pred_check_branch
          %237 = sbr.rel (%p235) target = $region32
        $region31: #{tpu_custom_call.1} parent=11 // pred_region
          %s239 = ssub.s32 8192, 8192
          %240 = vsyncadd [#allocation6], %s239
          %s241 = sshll.u32 [#allocation7], 4
          %s242 = int_to_ptr.vmem [resolvable:$true] %s241
          %247 = dma.hbm_to_vmem [thread:$0]  %s5, 8192, %s242, [#allocation6], 64, 64, 4
        $region32: #{tpu_custom_call.1} parent=11 // pred_fallthru
          _
        // Predicated region
        $region33: #{tpu_custom_call.1} parent=11 // pred_check
          %p248 = pneg %p172
        $region34: #{tpu_custom_call.1} parent=11 // pred_check_branch
          %250 = sbr.rel (%p248) target = $region36
        $region35: #{tpu_custom_call.1} parent=11 // pred_region
          _
        $region36: #{tpu_custom_call.1} parent=11 // pred_fallthru
          _
      $region12: #{tpu_custom_call.1} parent=5 // pred_fallthru
        _
      %p251 = scmp.lt.s32.totalorder %s20, 2
      // Predicated region
      $region37: #{tpu_custom_call.1} parent=5 // pred_check
        %p252 = pneg %p251
      $region38: #{tpu_custom_call.1} parent=5 // pred_check_branch
        %254 = sbr.rel (%p252) target = $region40
      $region39: #{tpu_custom_call.1} parent=5 // pred_region
        // Predicated region
        $region41: #{tpu_custom_call.1} parent=39 // pred_check
          %p255 = pneg %p40
        $region42: #{tpu_custom_call.1} parent=39 // pred_check_branch
          %257 = sbr.rel (%p255) target = $region44
        $region43: #{tpu_custom_call.1} parent=39 // pred_region
          %s258 = sand.u32 %s30, 1
          %s259 = scalar_lea.sflag [#allocation3], %s258
          %s260 = sand.u32 %s30, 1
          %s261 = smul.addr %s260, 128
          %s262 = scalar_lea.vmem [#allocation2], %s261
          %s263 = smul.u32 32, %s20
          %s265 = ssub.s32 2048, 2048
          %266 = vsyncadd %s259, %s265
          %s267 = smul.addr %s263, 64
          %s268 = scalar_lea.hbm %s0, %s267
          %s269 = sshll.u32 %s262, 4
          %s270 = int_to_ptr.vmem [resolvable:$true] %s269
          %275 = dma.hbm_to_vmem [thread:$0]  %s268, 2048, %s270, %s259, 64, 64, 4
        $region44: #{tpu_custom_call.1} parent=39 // pred_fallthru
          _
      $region40: #{tpu_custom_call.1} parent=5 // pred_fallthru
        _
      %p276 = scmp.le.s32.totalorder 1, %s20
      %p277 = scmp.lt.s32.totalorder %s20, 3
      %p278 = pnand %p276, %p277
      %p279 = pneg %p278
      // Predicated region
      $region45: #{tpu_custom_call.1} parent=5 // pred_check
        _
      $region46: #{tpu_custom_call.1} parent=5 // pred_check_branch
        %281 = sbr.rel (%p278) target = $region48
      $region47: #{tpu_custom_call.1} parent=5 // pred_region
        %s282 = ssub.s32 %s20, 1
        %s283 = sand.u32 %s33, 1
        %s284 = scalar_lea.sflag [#allocation3], %s283
        %s285 = sand.u32 %s33, 1
        %s286 = smul.addr %s285, 128
        %s287 = scalar_lea.vmem [#allocation2], %s286
        // Predicated region
        $region49: #{tpu_custom_call.1} parent=47 // pred_check
          %p288 = pneg %p46
        $region50: #{tpu_custom_call.1} parent=47 // pred_check_branch
          %290 = sbr.rel (%p288) target = $region52
        $region51: #{tpu_custom_call.1} parent=47 // pred_region
          %291 = dma.done %s284, 2048
        $region52: #{tpu_custom_call.1} parent=47 // pred_fallthru
          _
        // Predicated region
        $region53: #{tpu_custom_call.1} parent=47 // pred_check
          %p292 = pneg %p109
        $region54: #{tpu_custom_call.1} parent=47 // pred_check_branch
          %294 = sbr.rel (%p292) target = $region56
        $region55: #{tpu_custom_call.1} parent=47 // pred_region
          %295 = dma.done [#allocation6], 8192
        $region56: #{tpu_custom_call.1} parent=47 // pred_fallthru
          _
        // Predicated region
        $region57: #{tpu_custom_call.1} parent=47 // pred_check
          %p296 = pneg %p151
        $region58: #{tpu_custom_call.1} parent=47 // pred_check_branch
          %298 = sbr.rel (%p296) target = $region60
        $region59: #{tpu_custom_call.1} parent=47 // pred_region
          %299 = dma.done [#allocation6], 8192
        $region60: #{tpu_custom_call.1} parent=47 // pred_fallthru
          _
        %s300 = sand.u32 %s33, 1
        %s301 = scalar_lea.sflag [#allocation3], %s300
        %s302 = sand.u32 %s33, 1
        %s303 = smul.addr %s302, 128
        %s304 = scalar_lea.vmem [#allocation2], %s303
        %p305 = pneg %p46
        %p306 = pneg %p43
        %p307 = pneg %p67
        %p308 = pneg %p64
        %p309 = pneg %p88
        %p310 = pneg %p85
        %p311 = pneg %p109
        %p312 = pneg %p106
        %p313 = pneg %p130
        %p314 = pneg %p127
        %p315 = pneg %p151
        %p316 = pneg %p148
        %p317 = pneg %p172
        %p318 = pneg %p169
        %p319 = pneg %p198
        %p320 = pneg %p195
        %s321 = sand.u32 %s185, 1
        %s322 = scalar_lea.sflag [#allocation4], %s321
        %s323 = sand.u32 %s185, 1
        %s324 = smul.addr %s323, 128
        %s325 = scalar_lea.vmem [#allocation8], %s324
        %s326 = smul.u32 32, %s25
        %s327 = smul.u32 32, %s25
        %v329 = vld [vmem:[%s287] sm:$0xf]
        %v330 = vld [vmem:[%s287 + $0x4] sm:$0xf]
        %v331 = vld [vmem:[%s287 + $0x8] sm:$0xf]
        %v332 = vld [vmem:[%s287 + $0xc] sm:$0xf]
        %v333 = vld [vmem:[%s287 + $0x10] sm:$0xf]
        %v334 = vld [vmem:[%s287 + $0x14] sm:$0xf]
        %v335 = vld [vmem:[%s287 + $0x18] sm:$0xf]
        %v336 = vld [vmem:[%s287 + $0x1c] sm:$0xf]
        %v337 = vld [vmem:[%s287 + $0x20] sm:$0xf]
        %v338 = vld [vmem:[%s287 + $0x24] sm:$0xf]
        %v339 = vld [vmem:[%s287 + $0x28] sm:$0xf]
        %v340 = vld [vmem:[%s287 + $0x2c] sm:$0xf]
        %v341 = vld [vmem:[%s287 + $0x30] sm:$0xf]
        %v342 = vld [vmem:[%s287 + $0x34] sm:$0xf]
        %v343 = vld [vmem:[%s287 + $0x38] sm:$0xf]
        %v344 = vld [vmem:[%s287 + $0x3c] sm:$0xf]
        %v345 = vld [vmem:[%s287 + $0x40] sm:$0xf]
        %v346 = vld [vmem:[%s287 + $0x44] sm:$0xf]
        %v347 = vld [vmem:[%s287 + $0x48] sm:$0xf]
        %v348 = vld [vmem:[%s287 + $0x4c] sm:$0xf]
        %v349 = vld [vmem:[%s287 + $0x50] sm:$0xf]
        %v350 = vld [vmem:[%s287 + $0x54] sm:$0xf]
        %v351 = vld [vmem:[%s287 + $0x58] sm:$0xf]
        %v352 = vld [vmem:[%s287 + $0x5c] sm:$0xf]
        %v353 = vld [vmem:[%s287 + $0x60] sm:$0xf]
        %v354 = vld [vmem:[%s287 + $0x64] sm:$0xf]
        %v355 = vld [vmem:[%s287 + $0x68] sm:$0xf]
        %v356 = vld [vmem:[%s287 + $0x6c] sm:$0xf]
        %v357 = vld [vmem:[%s287 + $0x70] sm:$0xf]
        %v358 = vld [vmem:[%s287 + $0x74] sm:$0xf]
        %v359 = vld [vmem:[%s287 + $0x78] sm:$0xf]
        %v360 = vld [vmem:[%s287 + $0x7c] sm:$0xf]
        %v361 = vunpack.c.l.bf16 %v329
        %v362 = vunpack.c.l.bf16 %v330
        %v363 = vunpack.c.l.bf16 %v331
        %v364 = vunpack.c.l.bf16 %v332
        %v365 = vunpack.c.l.bf16 %v333
        %v366 = vunpack.c.l.bf16 %v334
        %v367 = vunpack.c.l.bf16 %v335
        %v368 = vunpack.c.l.bf16 %v336
        %v369 = vunpack.c.l.bf16 %v337
        %v370 = vunpack.c.l.bf16 %v338
        %v371 = vunpack.c.l.bf16 %v339
        %v372 = vunpack.c.l.bf16 %v340
        %v373 = vunpack.c.l.bf16 %v341
        %v374 = vunpack.c.l.bf16 %v342
        %v375 = vunpack.c.l.bf16 %v343
        %v376 = vunpack.c.l.bf16 %v344
        %v377 = vunpack.c.l.bf16 %v345
        %v378 = vunpack.c.l.bf16 %v346
        %v379 = vunpack.c.l.bf16 %v347
        %v380 = vunpack.c.l.bf16 %v348
        %v381 = vunpack.c.l.bf16 %v349
        %v382 = vunpack.c.l.bf16 %v350
        %v383 = vunpack.c.l.bf16 %v351
        %v384 = vunpack.c.l.bf16 %v352
        %v385 = vunpack.c.l.bf16 %v353
        %v386 = vunpack.c.l.bf16 %v354
        %v387 = vunpack.c.l.bf16 %v355
        %v388 = vunpack.c.l.bf16 %v356
        %v389 = vunpack.c.l.bf16 %v357
        %v390 = vunpack.c.l.bf16 %v358
        %v391 = vunpack.c.l.bf16 %v359
        %v392 = vunpack.c.l.bf16 %v360
        %393 = vadd.xlane.f32.xlu0 %v361
        %v394 = vpop.xlane.xlu0 %393
        %395 = vadd.xlane.f32.xlu0 %v362
        %v396 = vpop.xlane.xlu0 %395
        %397 = vadd.xlane.f32.xlu0 %v363
        %v398 = vpop.xlane.xlu0 %397
        %399 = vadd.xlane.f32.xlu0 %v364
        %v400 = vpop.xlane.xlu0 %399
        %401 = vadd.xlane.f32.xlu0 %v365
        %v402 = vpop.xlane.xlu0 %401
        %403 = vadd.xlane.f32.xlu0 %v366
        %v404 = vpop.xlane.xlu0 %403
        %405 = vadd.xlane.f32.xlu0 %v367
        %v406 = vpop.xlane.xlu0 %405
        %407 = vadd.xlane.f32.xlu0 %v368
        %v408 = vpop.xlane.xlu0 %407
        %409 = vadd.xlane.f32.xlu0 %v369
        %v410 = vpop.xlane.xlu0 %409
        %411 = vadd.xlane.f32.xlu0 %v370
        %v412 = vpop.xlane.xlu0 %411
        %413 = vadd.xlane.f32.xlu0 %v371
        %v414 = vpop.xlane.xlu0 %413
        %415 = vadd.xlane.f32.xlu0 %v372
        %v416 = vpop.xlane.xlu0 %415
        %417 = vadd.xlane.f32.xlu0 %v373
        %v418 = vpop.xlane.xlu0 %417
        %419 = vadd.xlane.f32.xlu0 %v374
        %v420 = vpop.xlane.xlu0 %419
        %421 = vadd.xlane.f32.xlu0 %v375
        %v422 = vpop.xlane.xlu0 %421
        %423 = vadd.xlane.f32.xlu0 %v376
        %v424 = vpop.xlane.xlu0 %423
        %425 = vadd.xlane.f32.xlu0 %v377
        %v426 = vpop.xlane.xlu0 %425
        %427 = vadd.xlane.f32.xlu0 %v378
        %v428 = vpop.xlane.xlu0 %427
        %429 = vadd.xlane.f32.xlu0 %v379
        %v430 = vpop.xlane.xlu0 %429
        %431 = vadd.xlane.f32.xlu0 %v380
        %v432 = vpop.xlane.xlu0 %431
        %433 = vadd.xlane.f32.xlu0 %v381
        %v434 = vpop.xlane.xlu0 %433
        %435 = vadd.xlane.f32.xlu0 %v382
        %v436 = vpop.xlane.xlu0 %435
        %437 = vadd.xlane.f32.xlu0 %v383
        %v438 = vpop.xlane.xlu0 %437
        %439 = vadd.xlane.f32.xlu0 %v384
        %v440 = vpop.xlane.xlu0 %439
        %441 = vadd.xlane.f32.xlu0 %v385
        %v442 = vpop.xlane.xlu0 %441
        %443 = vadd.xlane.f32.xlu0 %v386
        %v444 = vpop.xlane.xlu0 %443
        %445 = vadd.xlane.f32.xlu0 %v387
        %v446 = vpop.xlane.xlu0 %445
        %447 = vadd.xlane.f32.xlu0 %v388
        %v448 = vpop.xlane.xlu0 %447
        %449 = vadd.xlane.f32.xlu0 %v389
        %v450 = vpop.xlane.xlu0 %449
        %451 = vadd.xlane.f32.xlu0 %v390
        %v452 = vpop.xlane.xlu0 %451
        %453 = vadd.xlane.f32.xlu0 %v391
        %v454 = vpop.xlane.xlu0 %453
        %455 = vadd.xlane.f32.xlu0 %v392
        %v456 = vpop.xlane.xlu0 %455
        %v457 = vrcp.pop 128.0
        %v458 = vmul.f32 %v394, %v457
        %v459 = vmul.f32 %v396, %v457
        %v460 = vmul.f32 %v398, %v457
        %v461 = vmul.f32 %v400, %v457
        %v462 = vmul.f32 %v402, %v457
        %v463 = vmul.f32 %v404, %v457
        %v464 = vmul.f32 %v406, %v457
        %v465 = vmul.f32 %v408, %v457
        %v466 = vmul.f32 %v410, %v457
        %v467 = vmul.f32 %v412, %v457
        %v468 = vmul.f32 %v414, %v457
        %v469 = vmul.f32 %v416, %v457
        %v470 = vmul.f32 %v418, %v457
        %v471 = vmul.f32 %v420, %v457
        %v472 = vmul.f32 %v422, %v457
        %v473 = vmul.f32 %v424, %v457
        %v474 = vmul.f32 %v426, %v457
        %v475 = vmul.f32 %v428, %v457
        %v476 = vmul.f32 %v430, %v457
        %v477 = vmul.f32 %v432, %v457
        %v478 = vmul.f32 %v434, %v457
        %v479 = vmul.f32 %v436, %v457
        %v480 = vmul.f32 %v438, %v457
        %v481 = vmul.f32 %v440, %v457
        %v482 = vmul.f32 %v442, %v457
        %v483 = vmul.f32 %v444, %v457
        %v484 = vmul.f32 %v446, %v457
        %v485 = vmul.f32 %v448, %v457
        %v486 = vmul.f32 %v450, %v457
        %v487 = vmul.f32 %v452, %v457
        %v488 = vmul.f32 %v454, %v457
        %v489 = vmul.f32 %v456, %v457
        %v490 = vsub.f32 %v361, %v458
        %v491 = vsub.f32 %v362, %v459
        %v492 = vsub.f32 %v363, %v460
        %v493 = vsub.f32 %v364, %v461
        %v494 = vsub.f32 %v365, %v462
        %v495 = vsub.f32 %v366, %v463
        %v496 = vsub.f32 %v367, %v464
        %v497 = vsub.f32 %v368, %v465
        %v498 = vsub.f32 %v369, %v466
        %v499 = vsub.f32 %v370, %v467
        %v500 = vsub.f32 %v371, %v468
        %v501 = vsub.f32 %v372, %v469
        %v502 = vsub.f32 %v373, %v470
        %v503 = vsub.f32 %v374, %v471
        %v504 = vsub.f32 %v375, %v472
        %v505 = vsub.f32 %v376, %v473
        %v506 = vsub.f32 %v377, %v474
        %v507 = vsub.f32 %v378, %v475
        %v508 = vsub.f32 %v379, %v476
        %v509 = vsub.f32 %v380, %v477
        %v510 = vsub.f32 %v381, %v478
        %v511 = vsub.f32 %v382, %v479
        %v512 = vsub.f32 %v383, %v480
        %v513 = vsub.f32 %v384, %v481
        %v514 = vsub.f32 %v385, %v482
        %v515 = vsub.f32 %v386, %v483
        %v516 = vsub.f32 %v387, %v484
        %v517 = vsub.f32 %v388, %v485
        %v518 = vsub.f32 %v389, %v486
        %v519 = vsub.f32 %v390, %v487
        %v520 = vsub.f32 %v391, %v488
        %v521 = vsub.f32 %v392, %v489
        %v522 = vmul.f32 %v490, %v490
        %v523 = vmul.f32 %v491, %v491
        %v524 = vmul.f32 %v492, %v492
        %v525 = vmul.f32 %v493, %v493
        %v526 = vmul.f32 %v494, %v494
        %v527 = vmul.f32 %v495, %v495
        %v528 = vmul.f32 %v496, %v496
        %v529 = vmul.f32 %v497, %v497
        %v530 = vmul.f32 %v498, %v498
        %v531 = vmul.f32 %v499, %v499
        %v532 = vmul.f32 %v500, %v500
        %v533 = vmul.f32 %v501, %v501
        %v534 = vmul.f32 %v502, %v502
        %v535 = vmul.f32 %v503, %v503
        %v536 = vmul.f32 %v504, %v504
        %v537 = vmul.f32 %v505, %v505
        %v538 = vmul.f32 %v506, %v506
        %v539 = vmul.f32 %v507, %v507
        %v540 = vmul.f32 %v508, %v508
        %v541 = vmul.f32 %v509, %v509
        %v542 = vmul.f32 %v510, %v510
        %v543 = vmul.f32 %v511, %v511
        %v544 = vmul.f32 %v512, %v512
        %v545 = vmul.f32 %v513, %v513
        %v546 = vmul.f32 %v514, %v514
        %v547 = vmul.f32 %v515, %v515
        %v548 = vmul.f32 %v516, %v516
        %v549 = vmul.f32 %v517, %v517
        %v550 = vmul.f32 %v518, %v518
        %v551 = vmul.f32 %v519, %v519
        %v552 = vmul.f32 %v520, %v520
        %v553 = vmul.f32 %v521, %v521
        %554 = vadd.xlane.f32.xlu0 %v522
        %v555 = vpop.xlane.xlu0 %554
        %556 = vadd.xlane.f32.xlu0 %v523
        %v557 = vpop.xlane.xlu0 %556
        %558 = vadd.xlane.f32.xlu0 %v524
        %v559 = vpop.xlane.xlu0 %558
        %560 = vadd.xlane.f32.xlu0 %v525
        %v561 = vpop.xlane.xlu0 %560
        %562 = vadd.xlane.f32.xlu0 %v526
        %v563 = vpop.xlane.xlu0 %562
        %564 = vadd.xlane.f32.xlu0 %v527
        %v565 = vpop.xlane.xlu0 %564
        %566 = vadd.xlane.f32.xlu0 %v528
        %v567 = vpop.xlane.xlu0 %566
        %568 = vadd.xlane.f32.xlu0 %v529
        %v569 = vpop.xlane.xlu0 %568
        %570 = vadd.xlane.f32.xlu0 %v530
        %v571 = vpop.xlane.xlu0 %570
        %572 = vadd.xlane.f32.xlu0 %v531
        %v573 = vpop.xlane.xlu0 %572
        %574 = vadd.xlane.f32.xlu0 %v532
        %v575 = vpop.xlane.xlu0 %574
        %576 = vadd.xlane.f32.xlu0 %v533
        %v577 = vpop.xlane.xlu0 %576
        %578 = vadd.xlane.f32.xlu0 %v534
        %v579 = vpop.xlane.xlu0 %578
        %580 = vadd.xlane.f32.xlu0 %v535
        %v581 = vpop.xlane.xlu0 %580
        %582 = vadd.xlane.f32.xlu0 %v536
        %v583 = vpop.xlane.xlu0 %582
        %584 = vadd.xlane.f32.xlu0 %v537
        %v585 = vpop.xlane.xlu0 %584
        %586 = vadd.xlane.f32.xlu0 %v538
        %v587 = vpop.xlane.xlu0 %586
        %588 = vadd.xlane.f32.xlu0 %v539
        %v589 = vpop.xlane.xlu0 %588
        %590 = vadd.xlane.f32.xlu0 %v540
        %v591 = vpop.xlane.xlu0 %590
        %592 = vadd.xlane.f32.xlu0 %v541
        %v593 = vpop.xlane.xlu0 %592
        %594 = vadd.xlane.f32.xlu0 %v542
        %v595 = vpop.xlane.xlu0 %594
        %596 = vadd.xlane.f32.xlu0 %v543
        %v597 = vpop.xlane.xlu0 %596
        %598 = vadd.xlane.f32.xlu0 %v544
        %v599 = vpop.xlane.xlu0 %598
        %600 = vadd.xlane.f32.xlu0 %v545
        %v601 = vpop.xlane.xlu0 %600
        %602 = vadd.xlane.f32.xlu0 %v546
        %v603 = vpop.xlane.xlu0 %602
        %604 = vadd.xlane.f32.xlu0 %v547
        %v605 = vpop.xlane.xlu0 %604
        %606 = vadd.xlane.f32.xlu0 %v548
        %v607 = vpop.xlane.xlu0 %606
        %608 = vadd.xlane.f32.xlu0 %v549
        %v609 = vpop.xlane.xlu0 %608
        %610 = vadd.xlane.f32.xlu0 %v550
        %v611 = vpop.xlane.xlu0 %610
        %612 = vadd.xlane.f32.xlu0 %v551
        %v613 = vpop.xlane.xlu0 %612
        %614 = vadd.xlane.f32.xlu0 %v552
        %v615 = vpop.xlane.xlu0 %614
        %616 = vadd.xlane.f32.xlu0 %v553
        %v617 = vpop.xlane.xlu0 %616
        %v618 = vmul.f32 %v555, %v457
        %v619 = vmul.f32 %v557, %v457
        %v620 = vmul.f32 %v559, %v457
        %v621 = vmul.f32 %v561, %v457
        %v622 = vmul.f32 %v563, %v457
        %v623 = vmul.f32 %v565, %v457
        %v624 = vmul.f32 %v567, %v457
        %v625 = vmul.f32 %v569, %v457
        %v626 = vmul.f32 %v571, %v457
        %v627 = vmul.f32 %v573, %v457
        %v628 = vmul.f32 %v575, %v457
        %v629 = vmul.f32 %v577, %v457
        %v630 = vmul.f32 %v579, %v457
        %v631 = vmul.f32 %v581, %v457
        %v632 = vmul.f32 %v583, %v457
        %v633 = vmul.f32 %v585, %v457
        %v634 = vmul.f32 %v587, %v457
        %v635 = vmul.f32 %v589, %v457
        %v636 = vmul.f32 %v591, %v457
        %v637 = vmul.f32 %v593, %v457
        %v638 = vmul.f32 %v595, %v457
        %v639 = vmul.f32 %v597, %v457
        %v640 = vmul.f32 %v599, %v457
        %v641 = vmul.f32 %v601, %v457
        %v642 = vmul.f32 %v603, %v457
        %v643 = vmul.f32 %v605, %v457
        %v644 = vmul.f32 %v607, %v457
        %v645 = vmul.f32 %v609, %v457
        %v646 = vmul.f32 %v611, %v457
        %v647 = vmul.f32 %v613, %v457
        %v648 = vmul.f32 %v615, %v457
        %v649 = vmul.f32 %v617, %v457
        %v650 = vadd.f32 %v618, 1e-06
        %v651 = vadd.f32 %v619, 1e-06
        %v652 = vadd.f32 %v620, 1e-06
        %v653 = vadd.f32 %v621, 1e-06
        %v654 = vadd.f32 %v622, 1e-06
        %v655 = vadd.f32 %v623, 1e-06
        %v656 = vadd.f32 %v624, 1e-06
        %v657 = vadd.f32 %v625, 1e-06
        %v658 = vadd.f32 %v626, 1e-06
        %v659 = vadd.f32 %v627, 1e-06
        %v660 = vadd.f32 %v628, 1e-06
        %v661 = vadd.f32 %v629, 1e-06
        %v662 = vadd.f32 %v630, 1e-06
        %v663 = vadd.f32 %v631, 1e-06
        %v664 = vadd.f32 %v632, 1e-06
        %v665 = vadd.f32 %v633, 1e-06
        %v666 = vadd.f32 %v634, 1e-06
        %v667 = vadd.f32 %v635, 1e-06
        %v668 = vadd.f32 %v636, 1e-06
        %v669 = vadd.f32 %v637, 1e-06
        %v670 = vadd.f32 %v638, 1e-06
        %v671 = vadd.f32 %v639, 1e-06
        %v672 = vadd.f32 %v640, 1e-06
        %v673 = vadd.f32 %v641, 1e-06
        %v674 = vadd.f32 %v642, 1e-06
        %v675 = vadd.f32 %v643, 1e-06
        %v676 = vadd.f32 %v644, 1e-06
        %v677 = vadd.f32 %v645, 1e-06
        %v678 = vadd.f32 %v646, 1e-06
        %v679 = vadd.f32 %v647, 1e-06
        %v680 = vadd.f32 %v648, 1e-06
        %v681 = vadd.f32 %v649, 1e-06
        %v682 = vrsqrt.pop %v650
        %v683 = vrsqrt.pop %v651
        %v684 = vrsqrt.pop %v652
        %v685 = vrsqrt.pop %v653
        %v686 = vrsqrt.pop %v654
        %v687 = vrsqrt.pop %v655
        %v688 = vrsqrt.pop %v656
        %v689 = vrsqrt.pop %v657
        %v690 = vrsqrt.pop %v658
        %v691 = vrsqrt.pop %v659
        %v692 = vrsqrt.pop %v660
        %v693 = vrsqrt.pop %v661
        %v694 = vrsqrt.pop %v662
        %v695 = vrsqrt.pop %v663
        %v696 = vrsqrt.pop %v664
        %v697 = vrsqrt.pop %v665
        %v698 = vrsqrt.pop %v666
        %v699 = vrsqrt.pop %v667
        %v700 = vrsqrt.pop %v668
        %v701 = vrsqrt.pop %v669
        %v702 = vrsqrt.pop %v670
        %v703 = vrsqrt.pop %v671
        %v704 = vrsqrt.pop %v672
        %v705 = vrsqrt.pop %v673
        %v706 = vrsqrt.pop %v674
        %v707 = vrsqrt.pop %v675
        %v708 = vrsqrt.pop %v676
        %v709 = vrsqrt.pop %v677
        %v710 = vrsqrt.pop %v678
        %v711 = vrsqrt.pop %v679
        %v712 = vrsqrt.pop %v680
        %v713 = vrsqrt.pop %v681
        %v714 = vmul.f32 %v490, %v682
        %v715 = vmul.f32 %v491, %v683
        %v716 = vmul.f32 %v492, %v684
        %v717 = vmul.f32 %v493, %v685
        %v718 = vmul.f32 %v494, %v686
        %v719 = vmul.f32 %v495, %v687
        %v720 = vmul.f32 %v496, %v688
        %v721 = vmul.f32 %v497, %v689
        %v722 = vmul.f32 %v498, %v690
        %v723 = vmul.f32 %v499, %v691
        %v724 = vmul.f32 %v500, %v692
        %v725 = vmul.f32 %v501, %v693
        %v726 = vmul.f32 %v502, %v694
        %v727 = vmul.f32 %v503, %v695
        %v728 = vmul.f32 %v504, %v696
        %v729 = vmul.f32 %v505, %v697
        %v730 = vmul.f32 %v506, %v698
        %v731 = vmul.f32 %v507, %v699
        %v732 = vmul.f32 %v508, %v700
        %v733 = vmul.f32 %v509, %v701
        %v734 = vmul.f32 %v510, %v702
        %v735 = vmul.f32 %v511, %v703
        %v736 = vmul.f32 %v512, %v704
        %v737 = vmul.f32 %v513, %v705
        %v738 = vmul.f32 %v514, %v706
        %v739 = vmul.f32 %v515, %v707
        %v740 = vmul.f32 %v516, %v708
        %v741 = vmul.f32 %v517, %v709
        %v742 = vmul.f32 %v518, %v710
        %v743 = vmul.f32 %v519, %v711
        %v744 = vmul.f32 %v520, %v712
        %v745 = vmul.f32 %v521, %v713
        %v746 = vld [vmem:[%s1] sm:$0x1]
        %v748 = vlaneseq
        %v749 = vshrl.u32 %v748, 7
        %v750 = vsub.s32 0, %v749
        %v751 = vrot.slane %v746, %v750
        %v753 = vmul.f32 %v714, %v751
        %v754 = vmul.f32 %v715, %v751
        %v755 = vmul.f32 %v716, %v751
        %v756 = vmul.f32 %v717, %v751
        %v757 = vmul.f32 %v718, %v751
        %v758 = vmul.f32 %v719, %v751
        %v759 = vmul.f32 %v720, %v751
        %v760 = vmul.f32 %v721, %v751
        %v761 = vmul.f32 %v722, %v751
        %v762 = vmul.f32 %v723, %v751
        %v763 = vmul.f32 %v724, %v751
        %v764 = vmul.f32 %v725, %v751
        %v765 = vmul.f32 %v726, %v751
        %v766 = vmul.f32 %v727, %v751
        %v767 = vmul.f32 %v728, %v751
        %v768 = vmul.f32 %v729, %v751
        %v769 = vmul.f32 %v730, %v751
        %v770 = vmul.f32 %v731, %v751
        %v771 = vmul.f32 %v732, %v751
        %v772 = vmul.f32 %v733, %v751
        %v773 = vmul.f32 %v734, %v751
        %v774 = vmul.f32 %v735, %v751
        %v775 = vmul.f32 %v736, %v751
        %v776 = vmul.f32 %v737, %v751
        %v777 = vmul.f32 %v738, %v751
        %v778 = vmul.f32 %v739, %v751
        %v779 = vmul.f32 %v740, %v751
        %v780 = vmul.f32 %v741, %v751
        %v781 = vmul.f32 %v742, %v751
        %v782 = vmul.f32 %v743, %v751
        %v783 = vmul.f32 %v744, %v751
        %v784 = vmul.f32 %v745, %v751
        %v785 = vld [vmem:[%s2] sm:$0x1]
        %v787 = vlaneseq
        %v788 = vshrl.u32 %v787, 7
        %v789 = vsub.s32 0, %v788
        %v790 = vrot.slane %v785, %v789
        %v792 = vadd.f32 %v753, %v790
        %v793 = vadd.f32 %v754, %v790
        %v794 = vadd.f32 %v755, %v790
        %v795 = vadd.f32 %v756, %v790
        %v796 = vadd.f32 %v757, %v790
        %v797 = vadd.f32 %v758, %v790
        %v798 = vadd.f32 %v759, %v790
        %v799 = vadd.f32 %v760, %v790
        %v800 = vadd.f32 %v761, %v790
        %v801 = vadd.f32 %v762, %v790
        %v802 = vadd.f32 %v763, %v790
        %v803 = vadd.f32 %v764, %v790
        %v804 = vadd.f32 %v765, %v790
        %v805 = vadd.f32 %v766, %v790
        %v806 = vadd.f32 %v767, %v790
        %v807 = vadd.f32 %v768, %v790
        %v808 = vadd.f32 %v769, %v790
        %v809 = vadd.f32 %v770, %v790
        %v810 = vadd.f32 %v771, %v790
        %v811 = vadd.f32 %v772, %v790
        %v812 = vadd.f32 %v773, %v790
        %v813 = vadd.f32 %v774, %v790
        %v814 = vadd.f32 %v775, %v790
        %v815 = vadd.f32 %v776, %v790
        %v816 = vadd.f32 %v777, %v790
        %v817 = vadd.f32 %v778, %v790
        %v818 = vadd.f32 %v779, %v790
        %v819 = vadd.f32 %v780, %v790
        %v820 = vadd.f32 %v781, %v790
        %v821 = vadd.f32 %v782, %v790
        %v822 = vadd.f32 %v783, %v790
        %v823 = vadd.f32 %v784, %v790
        %v824 = vpack.c.bf16 %v793, %v792
        %v825 = vpack.c.bf16 %v795, %v794
        %v826 = vpack.c.bf16 %v797, %v796
        %v827 = vpack.c.bf16 %v799, %v798
        %v828 = vpack.c.bf16 %v801, %v800
        %v829 = vpack.c.bf16 %v803, %v802
        %v830 = vpack.c.bf16 %v805, %v804
        %v831 = vpack.c.bf16 %v807, %v806
        %v832 = vpack.c.bf16 %v809, %v808
        %v833 = vpack.c.bf16 %v811, %v810
        %v834 = vpack.c.bf16 %v813, %v812
        %v835 = vpack.c.bf16 %v815, %v814
        %v836 = vpack.c.bf16 %v817, %v816
        %v837 = vpack.c.bf16 %v819, %v818
        %v838 = vpack.c.bf16 %v821, %v820
        %v839 = vpack.c.bf16 %v823, %v822
        %v840 = vld [vmem:[#allocation5] sm:$0xff]
        %v841 = vld [vmem:[#allocation5 + $0x8] sm:$0xff]
        %v842 = vld [vmem:[#allocation5 + $0x10] sm:$0xff]
        %v843 = vld [vmem:[#allocation5 + $0x18] sm:$0xff]
        %v844 = vld [vmem:[#allocation5 + $0x20] sm:$0xff]
        %v845 = vld [vmem:[#allocation5 + $0x28] sm:$0xff]
        %v846 = vld [vmem:[#allocation5 + $0x30] sm:$0xff]
        %v847 = vld [vmem:[#allocation5 + $0x38] sm:$0xff]
        %v848 = vld [vmem:[#allocation5 + $0x40] sm:$0xff]
        %v849 = vld [vmem:[#allocation5 + $0x48] sm:$0xff]
        %v850 = vld [vmem:[#allocation5 + $0x50] sm:$0xff]
        %v851 = vld [vmem:[#allocation5 + $0x58] sm:$0xff]
        %v852 = vld [vmem:[#allocation5 + $0x60] sm:$0xff]
        %v853 = vld [vmem:[#allocation5 + $0x68] sm:$0xff]
        %v854 = vld [vmem:[#allocation5 + $0x70] sm:$0xff]
        %v855 = vld [vmem:[#allocation5 + $0x78] sm:$0xff]
        %v856 = vld [vmem:[#allocation5 + $0x80] sm:$0xff]
        %v857 = vld [vmem:[#allocation5 + $0x88] sm:$0xff]
        %v858 = vld [vmem:[#allocation5 + $0x90] sm:$0xff]
        %v859 = vld [vmem:[#allocation5 + $0x98] sm:$0xff]
        %v860 = vld [vmem:[#allocation5 + $0xa0] sm:$0xff]
        %v861 = vld [vmem:[#allocation5 + $0xa8] sm:$0xff]
        %v862 = vld [vmem:[#allocation5 + $0xb0] sm:$0xff]
        %v863 = vld [vmem:[#allocation5 + $0xb8] sm:$0xff]
        %v864 = vld [vmem:[#allocation5 + $0xc0] sm:$0xff]
        %v865 = vld [vmem:[#allocation5 + $0xc8] sm:$0xff]
        %v866 = vld [vmem:[#allocation5 + $0xd0] sm:$0xff]
        %v867 = vld [vmem:[#allocation5 + $0xd8] sm:$0xff]
        %v868 = vld [vmem:[#allocation5 + $0xe0] sm:$0xff]
        %v869 = vld [vmem:[#allocation5 + $0xe8] sm:$0xff]
        %v870 = vld [vmem:[#allocation5 + $0xf0] sm:$0xff]
        %v871 = vld [vmem:[#allocation5 + $0xf8] sm:$0xff]
        %v872 = vld [vmem:[#allocation5 + $0x100] sm:$0xff]
        %v873 = vld [vmem:[#allocation5 + $0x108] sm:$0xff]
        %v874 = vld [vmem:[#allocation5 + $0x110] sm:$0xff]
        %v875 = vld [vmem:[#allocation5 + $0x118] sm:$0xff]
        %v876 = vld [vmem:[#allocation5 + $0x120] sm:$0xff]
        %v877 = vld [vmem:[#allocation5 + $0x128] sm:$0xff]
        %v878 = vld [vmem:[#allocation5 + $0x130] sm:$0xff]
        %v879 = vld [vmem:[#allocation5 + $0x138] sm:$0xff]
        %v880 = vld [vmem:[#allocation5 + $0x140] sm:$0xff]
        %v881 = vld [vmem:[#allocation5 + $0x148] sm:$0xff]
        %v882 = vld [vmem:[#allocation5 + $0x150] sm:$0xff]
        %v883 = vld [vmem:[#allocation5 + $0x158] sm:$0xff]
        %v884 = vld [vmem:[#allocation5 + $0x160] sm:$0xff]
        %v885 = vld [vmem:[#allocation5 + $0x168] sm:$0xff]
        %v886 = vld [vmem:[#allocation5 + $0x170] sm:$0xff]
        %v887 = vld [vmem:[#allocation5 + $0x178] sm:$0xff]
        %v888 = vld [vmem:[#allocation5 + $0x180] sm:$0xff]
        %v889 = vld [vmem:[#allocation5 + $0x188] sm:$0xff]
        %v890 = vld [vmem:[#allocation5 + $0x190] sm:$0xff]
        %v891 = vld [vmem:[#allocation5 + $0x198] sm:$0xff]
        %v892 = vld [vmem:[#allocation5 + $0x1a0] sm:$0xff]
        %v893 = vld [vmem:[#allocation5 + $0x1a8] sm:$0xff]
        %v894 = vld [vmem:[#allocation5 + $0x1b0] sm:$0xff]
        %v895 = vld [vmem:[#allocation5 + $0x1b8] sm:$0xff]
        %v896 = vld [vmem:[#allocation5 + $0x1c0] sm:$0xff]
        %v897 = vld [vmem:[#allocation5 + $0x1c8] sm:$0xff]
        %v898 = vld [vmem:[#allocation5 + $0x1d0] sm:$0xff]
        %v899 = vld [vmem:[#allocation5 + $0x1d8] sm:$0xff]
        %v900 = vld [vmem:[#allocation5 + $0x1e0] sm:$0xff]
        %v901 = vld [vmem:[#allocation5 + $0x1e8] sm:$0xff]
        %v902 = vld [vmem:[#allocation5 + $0x1f0] sm:$0xff]
        %v903 = vld [vmem:[#allocation5 + $0x1f8] sm:$0xff]
        %v904 = vld [vmem:[%s4] sm:$0xff]
        %v906 = vlaneseq
        %v907 = vshrl.u32 %v906, 7
        %v908 = vsub.s32 0, %v907
        %v909 = vrot.slane %v904, %v908
        %v910 = vlaneseq
        %v911 = vshrl.u32 %v910, 7
        %v912 = vsub.s32 1, %v911
        %v913 = vrot.slane %v904, %v912
        %v914 = vlaneseq
        %v915 = vshrl.u32 %v914, 7
        %v916 = vsub.s32 2, %v915
        %v917 = vrot.slane %v904, %v916
        %v918 = vlaneseq
        %v919 = vshrl.u32 %v918, 7
        %v920 = vsub.s32 3, %v919
        %v921 = vrot.slane %v904, %v920
        %v922 = vlaneseq
        %v923 = vshrl.u32 %v922, 7
        %v924 = vsub.s32 4, %v923
        %v925 = vrot.slane %v904, %v924
        %v926 = vlaneseq
        %v927 = vshrl.u32 %v926, 7
        %v928 = vsub.s32 5, %v927
        %v929 = vrot.slane %v904, %v928
        %v930 = vlaneseq
        %v931 = vshrl.u32 %v930, 7
        %v932 = vsub.s32 6, %v931
        %v933 = vrot.slane %v904, %v932
        %v934 = vlaneseq
        %v935 = vshrl.u32 %v934, 7
        %v936 = vsub.s32 7, %v935
        %v937 = vrot.slane %v904, %v936
        %v1010 = vunpack.c.l.b16 %v840
        %v1011 = vunpack.c.h.b16 %v840
        %v1012 = vunpack.c.l.b16 %v841
        %v1013 = vunpack.c.h.b16 %v841
        %v1014 = vunpack.c.l.b16 %v842
        %v1015 = vunpack.c.h.b16 %v842
        %v1016 = vunpack.c.l.b16 %v843
        %v1017 = vunpack.c.h.b16 %v843
        %v1018 = vunpack.c.l.b16 %v844
        %v1019 = vunpack.c.h.b16 %v844
        %v1020 = vunpack.c.l.b16 %v845
        %v1021 = vunpack.c.h.b16 %v845
        %v1022 = vunpack.c.l.b16 %v846
        %v1023 = vunpack.c.h.b16 %v846
        %v1024 = vunpack.c.l.b16 %v847
        %v1025 = vunpack.c.h.b16 %v847
        %v1026 = vunpack.c.l.b16 %v848
        %v1027 = vunpack.c.h.b16 %v848
        %v1028 = vunpack.c.l.b16 %v849
        %v1029 = vunpack.c.h.b16 %v849
        %v1030 = vunpack.c.l.b16 %v850
        %v1031 = vunpack.c.h.b16 %v850
        %v1032 = vunpack.c.l.b16 %v851
        %v1033 = vunpack.c.h.b16 %v851
        %v1034 = vunpack.c.l.b16 %v852
        %v1035 = vunpack.c.h.b16 %v852
        %v1036 = vunpack.c.l.b16 %v853
        %v1037 = vunpack.c.h.b16 %v853
        %v1038 = vunpack.c.l.b16 %v854
        %v1039 = vunpack.c.h.b16 %v854
        %v1040 = vunpack.c.l.b16 %v855
        %v1041 = vunpack.c.h.b16 %v855
        %v1042 = vunpack.c.l.b16 %v856
        %v1043 = vunpack.c.h.b16 %v856
        %v1044 = vunpack.c.l.b16 %v857
        %v1045 = vunpack.c.h.b16 %v857
        %v1046 = vunpack.c.l.b16 %v858
        %v1047 = vunpack.c.h.b16 %v858
        %v1048 = vunpack.c.l.b16 %v859
        %v1049 = vunpack.c.h.b16 %v859
        %v1050 = vunpack.c.l.b16 %v860
        %v1051 = vunpack.c.h.b16 %v860
        %v1052 = vunpack.c.l.b16 %v861
        %v1053 = vunpack.c.h.b16 %v861
        %v1054 = vunpack.c.l.b16 %v862
        %v1055 = vunpack.c.h.b16 %v862
        %v1056 = vunpack.c.l.b16 %v863
        %v1057 = vunpack.c.h.b16 %v863
        %v1058 = vunpack.c.l.b16 %v864
        %v1059 = vunpack.c.h.b16 %v864
        %v1060 = vunpack.c.l.b16 %v865
        %v1061 = vunpack.c.h.b16 %v865
        %v1062 = vunpack.c.l.b16 %v866
        %v1063 = vunpack.c.h.b16 %v866
        %v1064 = vunpack.c.l.b16 %v867
        %v1065 = vunpack.c.h.b16 %v867
        %v1066 = vunpack.c.l.b16 %v868
        %v1067 = vunpack.c.h.b16 %v868
        %v1068 = vunpack.c.l.b16 %v869
        %v1069 = vunpack.c.h.b16 %v869
        %v1070 = vunpack.c.l.b16 %v870
        %v1071 = vunpack.c.h.b16 %v870
        %v1072 = vunpack.c.l.b16 %v871
        %v1073 = vunpack.c.h.b16 %v871
        %v1074 = vunpack.c.l.b16 %v872
        %v1075 = vunpack.c.h.b16 %v872
        %v1076 = vunpack.c.l.b16 %v873
        %v1077 = vunpack.c.h.b16 %v873
        %v1078 = vunpack.c.l.b16 %v874
        %v1079 = vunpack.c.h.b16 %v874
        %v1080 = vunpack.c.l.b16 %v875
        %v1081 = vunpack.c.h.b16 %v875
        %v1082 = vunpack.c.l.b16 %v876
        %v1083 = vunpack.c.h.b16 %v876
        %v1084 = vunpack.c.l.b16 %v877
        %v1085 = vunpack.c.h.b16 %v877
        %v1086 = vunpack.c.l.b16 %v878
        %v1087 = vunpack.c.h.b16 %v878
        %v1088 = vunpack.c.l.b16 %v879
        %v1089 = vunpack.c.h.b16 %v879
        %v1090 = vunpack.c.l.b16 %v880
        %v1091 = vunpack.c.h.b16 %v880
        %v1092 = vunpack.c.l.b16 %v881
        %v1093 = vunpack.c.h.b16 %v881
        %v1094 = vunpack.c.l.b16 %v882
        %v1095 = vunpack.c.h.b16 %v882
        %v1096 = vunpack.c.l.b16 %v883
        %v1097 = vunpack.c.h.b16 %v883
        %v1098 = vunpack.c.l.b16 %v884
        %v1099 = vunpack.c.h.b16 %v884
        %v1100 = vunpack.c.l.b16 %v885
        %v1101 = vunpack.c.h.b16 %v885
        %v1102 = vunpack.c.l.b16 %v886
        %v1103 = vunpack.c.h.b16 %v886
        %v1104 = vunpack.c.l.b16 %v887
        %v1105 = vunpack.c.h.b16 %v887
        %v1106 = vunpack.c.l.b16 %v888
        %v1107 = vunpack.c.h.b16 %v888
        %v1108 = vunpack.c.l.b16 %v889
        %v1109 = vunpack.c.h.b16 %v889
        %v1110 = vunpack.c.l.b16 %v890
        %v1111 = vunpack.c.h.b16 %v890
        %v1112 = vunpack.c.l.b16 %v891
        %v1113 = vunpack.c.h.b16 %v891
        %v1114 = vunpack.c.l.b16 %v892
        %v1115 = vunpack.c.h.b16 %v892
        %v1116 = vunpack.c.l.b16 %v893
        %v1117 = vunpack.c.h.b16 %v893
        %v1118 = vunpack.c.l.b16 %v894
        %v1119 = vunpack.c.h.b16 %v894
        %v1120 = vunpack.c.l.b16 %v895
        %v1121 = vunpack.c.h.b16 %v895
        %v1122 = vunpack.c.l.b16 %v896
        %v1123 = vunpack.c.h.b16 %v896
        %v1124 = vunpack.c.l.b16 %v897
        %v1125 = vunpack.c.h.b16 %v897
        %v1126 = vunpack.c.l.b16 %v898
        %v1127 = vunpack.c.h.b16 %v898
        %v1128 = vunpack.c.l.b16 %v899
        %v1129 = vunpack.c.h.b16 %v899
        %v1130 = vunpack.c.l.b16 %v900
        %v1131 = vunpack.c.h.b16 %v900
        %v1132 = vunpack.c.l.b16 %v901
        %v1133 = vunpack.c.h.b16 %v901
        %v1134 = vunpack.c.l.b16 %v902
        %v1135 = vunpack.c.h.b16 %v902
        %v1136 = vunpack.c.l.b16 %v903
        %v1137 = vunpack.c.h.b16 %v903
        %v1138 = vpack.c.b16 %v1018, %v1010
        %v1139 = vpack.c.b16 %v1019, %v1011
        %v1140 = vpack.c.b16 %v1020, %v1012
        %v1141 = vpack.c.b16 %v1021, %v1013
        %v1142 = vpack.c.b16 %v1022, %v1014
        %v1143 = vpack.c.b16 %v1023, %v1015
        %v1144 = vpack.c.b16 %v1024, %v1016
        %v1145 = vpack.c.b16 %v1025, %v1017
        %v1146 = vpack.c.b16 %v1034, %v1026
        %v1147 = vpack.c.b16 %v1035, %v1027
        %v1148 = vpack.c.b16 %v1036, %v1028
        %v1149 = vpack.c.b16 %v1037, %v1029
        %v1150 = vpack.c.b16 %v1038, %v1030
        %v1151 = vpack.c.b16 %v1039, %v1031
        %v1152 = vpack.c.b16 %v1040, %v1032
        %v1153 = vpack.c.b16 %v1041, %v1033
        %v1154 = vpack.c.b16 %v1050, %v1042
        %v1155 = vpack.c.b16 %v1051, %v1043
        %v1156 = vpack.c.b16 %v1052, %v1044
        %v1157 = vpack.c.b16 %v1053, %v1045
        %v1158 = vpack.c.b16 %v1054, %v1046
        %v1159 = vpack.c.b16 %v1055, %v1047
        %v1160 = vpack.c.b16 %v1056, %v1048
        %v1161 = vpack.c.b16 %v1057, %v1049
        %v1162 = vpack.c.b16 %v1066, %v1058
        %v1163 = vpack.c.b16 %v1067, %v1059
        %v1164 = vpack.c.b16 %v1068, %v1060
        %v1165 = vpack.c.b16 %v1069, %v1061
        %v1166 = vpack.c.b16 %v1070, %v1062
        %v1167 = vpack.c.b16 %v1071, %v1063
        %v1168 = vpack.c.b16 %v1072, %v1064
        %v1169 = vpack.c.b16 %v1073, %v1065
        %v1170 = vpack.c.b16 %v1082, %v1074
        %v1171 = vpack.c.b16 %v1083, %v1075
        %v1172 = vpack.c.b16 %v1084, %v1076
        %v1173 = vpack.c.b16 %v1085, %v1077
        %v1174 = vpack.c.b16 %v1086, %v1078
        %v1175 = vpack.c.b16 %v1087, %v1079
        %v1176 = vpack.c.b16 %v1088, %v1080
        %v1177 = vpack.c.b16 %v1089, %v1081
        %v1178 = vpack.c.b16 %v1098, %v1090
        %v1179 = vpack.c.b16 %v1099, %v1091
        %v1180 = vpack.c.b16 %v1100, %v1092
        %v1181 = vpack.c.b16 %v1101, %v1093
        %v1182 = vpack.c.b16 %v1102, %v1094
        %v1183 = vpack.c.b16 %v1103, %v1095
        %v1184 = vpack.c.b16 %v1104, %v1096
        %v1185 = vpack.c.b16 %v1105, %v1097
        %v1186 = vpack.c.b16 %v1114, %v1106
        %v1187 = vpack.c.b16 %v1115, %v1107
        %v1188 = vpack.c.b16 %v1116, %v1108
        %v1189 = vpack.c.b16 %v1117, %v1109
        %v1190 = vpack.c.b16 %v1118, %v1110
        %v1191 = vpack.c.b16 %v1119, %v1111
        %v1192 = vpack.c.b16 %v1120, %v1112
        %v1193 = vpack.c.b16 %v1121, %v1113
        %v1194 = vpack.c.b16 %v1130, %v1122
        %v1195 = vpack.c.b16 %v1131, %v1123
        %v1196 = vpack.c.b16 %v1132, %v1124
        %v1197 = vpack.c.b16 %v1133, %v1125
        %v1198 = vpack.c.b16 %v1134, %v1126
        %v1199 = vpack.c.b16 %v1135, %v1127
        %v1200 = vpack.c.b16 %v1136, %v1128
        %v1201 = vpack.c.b16 %v1137, %v1129
        %1266 = vmatprep.subr.bf16.mxu0 %v1139
        %1267 = vmatpush1.bf16.msra.mxu0 %v1138
        %1268 = vmatprep.subr.bf16.mxu0 %v1147
        %1269 = vmatpush1.bf16.msra.mxu0 %v1146
        %1270 = vmatprep.subr.bf16.mxu0 %v1155
        %1271 = vmatpush1.bf16.msra.mxu0 %v1154
        %1272 = vmatprep.subr.bf16.mxu0 %v1163
        %1273 = vmatpush1.bf16.msra.mxu0 %v1162
        %1274 = vmatprep.subr.bf16.mxu0 %v1171
        %1275 = vmatpush1.bf16.msra.mxu0 %v1170
        %1276 = vmatprep.subr.bf16.mxu0 %v1179
        %1277 = vmatpush1.bf16.msra.mxu0 %v1178
        %1278 = vmatprep.subr.bf16.mxu0 %v1187
        %1279 = vmatpush1.bf16.msra.mxu0 %v1186
        %1280 = vmatprep.subr.bf16.mxu0 %v1195
        %1281 = vmatpush1.bf16.msra.mxu0 %v1194
        %1282 = vmatprep.subr.bf16.mxu0 0
        %1283 = vmatpush1.bf16.msra.mxu0 0
        %1284 = vmatprep.subr.bf16.mxu0 0
        %1285 = vmatpush1.bf16.msra.mxu0 0
        %1286 = vmatprep.subr.bf16.mxu0 0
        %1287 = vmatpush1.bf16.msra.mxu0 0
        %1288 = vmatprep.subr.bf16.mxu0 0
        %1289 = vmatpush1.bf16.msra.mxu0 0
        %1290 = vmatprep.subr.bf16.mxu0 0
        %1291 = vmatpush1.bf16.msra.mxu0 0
        %1292 = vmatprep.subr.bf16.mxu0 0
        %1293 = vmatpush1.bf16.msra.mxu0 0
        %1294 = vmatprep.subr.bf16.mxu0 0
        %1295 = vmatpush1.bf16.msra.mxu0 0
        %1296 = vmatprep.subr.bf16.mxu0 0
        %1297 = vmatpush1.bf16.msra.mxu0 0
        %1298 = vmatprep.mubr.bf16.mxu0 0
        %1299 = vmatmul.mubr.bf16.gmra.mrb[0].mxu0 %v824
        %v1300 = vpop.f32.mrb[0].mxu0
        %v1301 = vadd.f32 %v909, %v1300
        %v1302 = vpop.f32.mrb[0].mxu0
        %v1303 = vadd.f32 %v913, %v1302
        %v1304 = vpop.f32.mrb[0].mxu0
        %v1305 = vadd.f32 %v909, %v1304
        %v1306 = vpop.f32.mrb[0].mxu0
        %v1307 = vadd.f32 %v913, %v1306
        %1308 = vmatprep.mubr.bf16.mxu0 0
        %1309 = vmatmul.mubr.bf16.gmra.mrb[0].mxu0 %v825
        %v1310 = vpop.f32.mrb[0].mxu0
        %v1311 = vadd.f32 %v909, %v1310
        %v1312 = vpop.f32.mrb[0].mxu0
        %v1313 = vadd.f32 %v913, %v1312
        %v1314 = vpop.f32.mrb[0].mxu0
        %v1315 = vadd.f32 %v909, %v1314
        %v1316 = vpop.f32.mrb[0].mxu0
        %v1317 = vadd.f32 %v913, %v1316
        %1318 = vmatprep.mubr.bf16.mxu0 0
        %1319 = vmatmul.mubr.bf16.gmra.mrb[0].mxu0 %v826
        %v1320 = vpop.f32.mrb[0].mxu0
        %v1321 = vadd.f32 %v909, %v1320
        %v1322 = vpop.f32.mrb[0].mxu0
        %v1323 = vadd.f32 %v913, %v1322
        %v1324 = vpop.f32.mrb[0].mxu0
        %v1325 = vadd.f32 %v909, %v1324
        %v1326 = vpop.f32.mrb[0].mxu0
        %v1327 = vadd.f32 %v913, %v1326
        %1328 = vmatprep.mubr.bf16.mxu0 0
        %1329 = vmatmul.mubr.bf16.gmra.mrb[0].mxu0 %v827
        %v1330 = vpop.f32.mrb[0].mxu0
        %v1331 = vadd.f32 %v909, %v1330
        %v1332 = vpop.f32.mrb[0].mxu0
        %v1333 = vadd.f32 %v913, %v1332
        %v1334 = vpop.f32.mrb[0].mxu0
        %v1335 = vadd.f32 %v909, %v1334
        %v1336 = vpop.f32.mrb[0].mxu0
        %v1337 = vadd.f32 %v913, %v1336
        %1338 = vmatprep.mubr.bf16.mxu0 0
        %1339 = vmatmul.mubr.bf16.gmra.mrb[0].mxu0 %v828
        %v1340 = vpop.f32.mrb[0].mxu0
        %v1341 = vadd.f32 %v909, %v1340
        %v1342 = vpop.f32.mrb[0].mxu0
        %v1343 = vadd.f32 %v913, %v1342
        %v1344 = vpop.f32.mrb[0].mxu0
        %v1345 = vadd.f32 %v909, %v1344
        %v1346 = vpop.f32.mrb[0].mxu0
        %v1347 = vadd.f32 %v913, %v1346
        %1348 = vmatprep.mubr.bf16.mxu0 0
        %1349 = vmatmul.mubr.bf16.gmra.mrb[0].mxu0 %v829
        %v1350 = vpop.f32.mrb[0].mxu0
        %v1351 = vadd.f32 %v909, %v1350
        %v1352 = vpop.f32.mrb[0].mxu0
        %v1353 = vadd.f32 %v913, %v1352
        %v1354 = vpop.f32.mrb[0].mxu0
        %v1355 = vadd.f32 %v909, %v1354
        %v1356 = vpop.f32.mrb[0].mxu0
        %v1357 = vadd.f32 %v913, %v1356
        %1358 = vmatprep.mubr.bf16.mxu0 0
        %1359 = vmatmul.mubr.bf16.gmra.mrb[0].mxu0 %v830
        %v1360 = vpop.f32.mrb[0].mxu0
        %v1361 = vadd.f32 %v909, %v1360
        %v1362 = vpop.f32.mrb[0].mxu0
        %v1363 = vadd.f32 %v913, %v1362
        %v1364 = vpop.f32.mrb[0].mxu0
        %v1365 = vadd.f32 %v909, %v1364
        %v1366 = vpop.f32.mrb[0].mxu0
        %v1367 = vadd.f32 %v913, %v1366
        %1368 = vmatprep.mubr.bf16.mxu0 0
        %1369 = vmatmul.mubr.bf16.gmra.mrb[0].mxu0 %v831
        %v1370 = vpop.f32.mrb[0].mxu0
        %v1371 = vadd.f32 %v909, %v1370
        %v1372 = vpop.f32.mrb[0].mxu0
        %v1373 = vadd.f32 %v913, %v1372
        %v1374 = vpop.f32.mrb[0].mxu0
        %v1375 = vadd.f32 %v909, %v1374
        %v1376 = vpop.f32.mrb[0].mxu0
        %v1377 = vadd.f32 %v913, %v1376
        %1378 = vmatprep.mubr.bf16.mxu0 0
        %1379 = vmatmul.mubr.bf16.gmra.mrb[0].mxu0 %v832
        %v1380 = vpop.f32.mrb[0].mxu0
        %v1381 = vadd.f32 %v909, %v1380
        %v1382 = vpop.f32.mrb[0].mxu0
        %v1383 = vadd.f32 %v913, %v1382
        %v1384 = vpop.f32.mrb[0].mxu0
        %v1385 = vadd.f32 %v909, %v1384
        %v1386 = vpop.f32.mrb[0].mxu0
        %v1387 = vadd.f32 %v913, %v1386
        %1388 = vmatprep.mubr.bf16.mxu0 0
        %1389 = vmatmul.mubr.bf16.gmra.mrb[0].mxu0 %v833
        %v1390 = vpop.f32.mrb[0].mxu0
        %v1391 = vadd.f32 %v909, %v1390
        %v1392 = vpop.f32.mrb[0].mxu0
        %v1393 = vadd.f32 %v913, %v1392
        %v1394 = vpop.f32.mrb[0].mxu0
        %v1395 = vadd.f32 %v909, %v1394
        %v1396 = vpop.f32.mrb[0].mxu0
        %v1397 = vadd.f32 %v913, %v1396
        %1398 = vmatprep.mubr.bf16.mxu0 0
        %1399 = vmatmul.mubr.bf16.gmra.mrb[0].mxu0 %v834
        %v1400 = vpop.f32.mrb[0].mxu0
        %v1401 = vadd.f32 %v909, %v1400
        %v1402 = vpop.f32.mrb[0].mxu0
        %v1403 = vadd.f32 %v913, %v1402
        %v1404 = vpop.f32.mrb[0].mxu0
        %v1405 = vadd.f32 %v909, %v1404
        %v1406 = vpop.f32.mrb[0].mxu0
        %v1407 = vadd.f32 %v913, %v1406
        %1408 = vmatprep.mubr.bf16.mxu0 0
        %1409 = vmatmul.mubr.bf16.gmra.mrb[0].mxu0 %v835
        %v1410 = vpop.f32.mrb[0].mxu0
        %v1411 = vadd.f32 %v909, %v1410
        %v1412 = vpop.f32.mrb[0].mxu0
        %v1413 = vadd.f32 %v913, %v1412
        %v1414 = vpop.f32.mrb[0].mxu0
        %v1415 = vadd.f32 %v909, %v1414
        %v1416 = vpop.f32.mrb[0].mxu0
        %v1417 = vadd.f32 %v913, %v1416
        %1418 = vmatprep.mubr.bf16.mxu0 0
        %1419 = vmatmul.mubr.bf16.gmra.mrb[0].mxu0 %v836
        %v1420 = vpop.f32.mrb[0].mxu0
        %v1421 = vadd.f32 %v909, %v1420
        %v1422 = vpop.f32.mrb[0].mxu0
        %v1423 = vadd.f32 %v913, %v1422
        %v1424 = vpop.f32.mrb[0].mxu0
        %v1425 = vadd.f32 %v909, %v1424
        %v1426 = vpop.f32.mrb[0].mxu0
        %v1427 = vadd.f32 %v913, %v1426
        %1428 = vmatprep.mubr.bf16.mxu0 0
        %1429 = vmatmul.mubr.bf16.gmra.mrb[0].mxu0 %v837
        %v1430 = vpop.f32.mrb[0].mxu0
        %v1431 = vadd.f32 %v909, %v1430
        %v1432 = vpop.f32.mrb[0].mxu0
        %v1433 = vadd.f32 %v913, %v1432
        %v1434 = vpop.f32.mrb[0].mxu0
        %v1435 = vadd.f32 %v909, %v1434
        %v1436 = vpop.f32.mrb[0].mxu0
        %v1437 = vadd.f32 %v913, %v1436
        %1438 = vmatprep.mubr.bf16.mxu0 0
        %1439 = vmatmul.mubr.bf16.gmra.mrb[0].mxu0 %v838
        %v1440 = vpop.f32.mrb[0].mxu0
        %v1441 = vadd.f32 %v909, %v1440
        %v1442 = vpop.f32.mrb[0].mxu0
        %v1443 = vadd.f32 %v913, %v1442
        %v1444 = vpop.f32.mrb[0].mxu0
        %v1445 = vadd.f32 %v909, %v1444
        %v1446 = vpop.f32.mrb[0].mxu0
        %v1447 = vadd.f32 %v913, %v1446
        %1448 = vmatprep.mubr.bf16.mxu0 0
        %1449 = vmatmul.mubr.bf16.gmra.mrb[0].mxu0 %v839
        %v1450 = vpop.f32.mrb[0].mxu0
        %v1451 = vadd.f32 %v909, %v1450
        %v1452 = vpop.f32.mrb[0].mxu0
        %v1453 = vadd.f32 %v913, %v1452
        %v1454 = vpop.f32.mrb[0].mxu0
        %v1455 = vadd.f32 %v909, %v1454
        %v1456 = vpop.f32.mrb[0].mxu0
        %v1457 = vadd.f32 %v913, %v1456
        %1458 = vdwg.mxu0
        %1459 = vmatprep.subr.bf16.mxu0 %v1141
        %1460 = vmatpush1.bf16.msra.mxu0 %v1140
        %1461 = vmatprep.subr.bf16.mxu0 %v1149
        %1462 = vmatpush1.bf16.msra.mxu0 %v1148
        %1463 = vmatprep.subr.bf16.mxu0 %v1157
        %1464 = vmatpush1.bf16.msra.mxu0 %v1156
        %1465 = vmatprep.subr.bf16.mxu0 %v1165
        %1466 = vmatpush1.bf16.msra.mxu0 %v1164
        %1467 = vmatprep.subr.bf16.mxu0 %v1173
        %1468 = vmatpush1.bf16.msra.mxu0 %v1172
        %1469 = vmatprep.subr.bf16.mxu0 %v1181
        %1470 = vmatpush1.bf16.msra.mxu0 %v1180
        %1471 = vmatprep.subr.bf16.mxu0 %v1189
        %1472 = vmatpush1.bf16.msra.mxu0 %v1188
        %1473 = vmatprep.subr.bf16.mxu0 %v1197
        %1474 = vmatpush1.bf16.msra.mxu0 %v1196
        %1475 = vmatprep.subr.bf16.mxu0 0
        %1476 = vmatpush1.bf16.msra.mxu0 0
        %1477 = vmatprep.subr.bf16.mxu0 0
        %1478 = vmatpush1.bf16.msra.mxu0 0
        %1479 = vmatprep.subr.bf16.mxu0 0
        %1480 = vmatpush1.bf16.msra.mxu0 0
        %1481 = vmatprep.subr.bf16.mxu0 0
        %1482 = vmatpush1.bf16.msra.mxu0 0
        %1483 = vmatprep.subr.bf16.mxu0 0
        %1484 = vmatpush1.bf16.msra.mxu0 0
        %1485 = vmatprep.subr.bf16.mxu0 0
        %1486 = vmatpush1.bf16.msra.mxu0 0
        %1487 = vmatprep.subr.bf16.mxu0 0
        %1488 = vmatpush1.bf16.msra.mxu0 0
        %1489 = vmatprep.subr.bf16.mxu0 0
        %1490 = vmatpush1.bf16.msra.mxu0 0
        %1491 = vmatprep.mubr.bf16.mxu0 0
        %1492 = vmatmul.mubr.bf16.gmra.mrb[0].mxu0 %v824
        %v1493 = vpop.f32.mrb[0].mxu0
        %v1494 = vadd.f32 %v917, %v1493
        %v1495 = vpop.f32.mrb[0].mxu0
        %v1496 = vadd.f32 %v921, %v1495
        %v1497 = vpop.f32.mrb[0].mxu0
        %v1498 = vadd.f32 %v917, %v1497
        %v1499 = vpop.f32.mrb[0].mxu0
        %v1500 = vadd.f32 %v921, %v1499
        %1501 = vmatprep.mubr.bf16.mxu0 0
        %1502 = vmatmul.mubr.bf16.gmra.mrb[0].mxu0 %v825
        %v1503 = vpop.f32.mrb[0].mxu0
        %v1504 = vadd.f32 %v917, %v1503
        %v1505 = vpop.f32.mrb[0].mxu0
        %v1506 = vadd.f32 %v921, %v1505
        %v1507 = vpop.f32.mrb[0].mxu0
        %v1508 = vadd.f32 %v917, %v1507
        %v1509 = vpop.f32.mrb[0].mxu0
        %v1510 = vadd.f32 %v921, %v1509
        %1511 = vmatprep.mubr.bf16.mxu0 0
        %1512 = vmatmul.mubr.bf16.gmra.mrb[0].mxu0 %v826
        %v1513 = vpop.f32.mrb[0].mxu0
        %v1514 = vadd.f32 %v917, %v1513
        %v1515 = vpop.f32.mrb[0].mxu0
        %v1516 = vadd.f32 %v921, %v1515
        %v1517 = vpop.f32.mrb[0].mxu0
        %v1518 = vadd.f32 %v917, %v1517
        %v1519 = vpop.f32.mrb[0].mxu0
        %v1520 = vadd.f32 %v921, %v1519
        %1521 = vmatprep.mubr.bf16.mxu0 0
        %1522 = vmatmul.mubr.bf16.gmra.mrb[0].mxu0 %v827
        %v1523 = vpop.f32.mrb[0].mxu0
        %v1524 = vadd.f32 %v917, %v1523
        %v1525 = vpop.f32.mrb[0].mxu0
        %v1526 = vadd.f32 %v921, %v1525
        %v1527 = vpop.f32.mrb[0].mxu0
        %v1528 = vadd.f32 %v917, %v1527
        %v1529 = vpop.f32.mrb[0].mxu0
        %v1530 = vadd.f32 %v921, %v1529
        %1531 = vmatprep.mubr.bf16.mxu0 0
        %1532 = vmatmul.mubr.bf16.gmra.mrb[0].mxu0 %v828
        %v1533 = vpop.f32.mrb[0].mxu0
        %v1534 = vadd.f32 %v917, %v1533
        %v1535 = vpop.f32.mrb[0].mxu0
        %v1536 = vadd.f32 %v921, %v1535
        %v1537 = vpop.f32.mrb[0].mxu0
        %v1538 = vadd.f32 %v917, %v1537
        %v1539 = vpop.f32.mrb[0].mxu0
        %v1540 = vadd.f32 %v921, %v1539
        %1541 = vmatprep.mubr.bf16.mxu0 0
        %1542 = vmatmul.mubr.bf16.gmra.mrb[0].mxu0 %v829
        %v1543 = vpop.f32.mrb[0].mxu0
        %v1544 = vadd.f32 %v917, %v1543
        %v1545 = vpop.f32.mrb[0].mxu0
        %v1546 = vadd.f32 %v921, %v1545
        %v1547 = vpop.f32.mrb[0].mxu0
        %v1548 = vadd.f32 %v917, %v1547
        %v1549 = vpop.f32.mrb[0].mxu0
        %v1550 = vadd.f32 %v921, %v1549
        %1551 = vmatprep.mubr.bf16.mxu0 0
        %1552 = vmatmul.mubr.bf16.gmra.mrb[0].mxu0 %v830
        %v1553 = vpop.f32.mrb[0].mxu0
        %v1554 = vadd.f32 %v917, %v1553
        %v1555 = vpop.f32.mrb[0].mxu0
        %v1556 = vadd.f32 %v921, %v1555
        %v1557 = vpop.f32.mrb[0].mxu0
        %v1558 = vadd.f32 %v917, %v1557
        %v1559 = vpop.f32.mrb[0].mxu0
        %v1560 = vadd.f32 %v921, %v1559
        %1561 = vmatprep.mubr.bf16.mxu0 0
        %1562 = vmatmul.mubr.bf16.gmra.mrb[0].mxu0 %v831
        %v1563 = vpop.f32.mrb[0].mxu0
        %v1564 = vadd.f32 %v917, %v1563
        %v1565 = vpop.f32.mrb[0].mxu0
        %v1566 = vadd.f32 %v921, %v1565
        %v1567 = vpop.f32.mrb[0].mxu0
        %v1568 = vadd.f32 %v917, %v1567
        %v1569 = vpop.f32.mrb[0].mxu0
        %v1570 = vadd.f32 %v921, %v1569
        %1571 = vmatprep.mubr.bf16.mxu0 0
        %1572 = vmatmul.mubr.bf16.gmra.mrb[0].mxu0 %v832
        %v1573 = vpop.f32.mrb[0].mxu0
        %v1574 = vadd.f32 %v917, %v1573
        %v1575 = vpop.f32.mrb[0].mxu0
        %v1576 = vadd.f32 %v921, %v1575
        %v1577 = vpop.f32.mrb[0].mxu0
        %v1578 = vadd.f32 %v917, %v1577
        %v1579 = vpop.f32.mrb[0].mxu0
        %v1580 = vadd.f32 %v921, %v1579
        %1581 = vmatprep.mubr.bf16.mxu0 0
        %1582 = vmatmul.mubr.bf16.gmra.mrb[0].mxu0 %v833
        %v1583 = vpop.f32.mrb[0].mxu0
        %v1584 = vadd.f32 %v917, %v1583
        %v1585 = vpop.f32.mrb[0].mxu0
        %v1586 = vadd.f32 %v921, %v1585
        %v1587 = vpop.f32.mrb[0].mxu0
        %v1588 = vadd.f32 %v917, %v1587
        %v1589 = vpop.f32.mrb[0].mxu0
        %v1590 = vadd.f32 %v921, %v1589
        %1591 = vmatprep.mubr.bf16.mxu0 0
        %1592 = vmatmul.mubr.bf16.gmra.mrb[0].mxu0 %v834
        %v1593 = vpop.f32.mrb[0].mxu0
        %v1594 = vadd.f32 %v917, %v1593
        %v1595 = vpop.f32.mrb[0].mxu0
        %v1596 = vadd.f32 %v921, %v1595
        %v1597 = vpop.f32.mrb[0].mxu0
        %v1598 = vadd.f32 %v917, %v1597
        %v1599 = vpop.f32.mrb[0].mxu0
        %v1600 = vadd.f32 %v921, %v1599
        %1601 = vmatprep.mubr.bf16.mxu0 0
        %1602 = vmatmul.mubr.bf16.gmra.mrb[0].mxu0 %v835
        %v1603 = vpop.f32.mrb[0].mxu0
        %v1604 = vadd.f32 %v917, %v1603
        %v1605 = vpop.f32.mrb[0].mxu0
        %v1606 = vadd.f32 %v921, %v1605
        %v1607 = vpop.f32.mrb[0].mxu0
        %v1608 = vadd.f32 %v917, %v1607
        %v1609 = vpop.f32.mrb[0].mxu0
        %v1610 = vadd.f32 %v921, %v1609
        %1611 = vmatprep.mubr.bf16.mxu0 0
        %1612 = vmatmul.mubr.bf16.gmra.mrb[0].mxu0 %v836
        %v1613 = vpop.f32.mrb[0].mxu0
        %v1614 = vadd.f32 %v917, %v1613
        %v1615 = vpop.f32.mrb[0].mxu0
        %v1616 = vadd.f32 %v921, %v1615
        %v1617 = vpop.f32.mrb[0].mxu0
        %v1618 = vadd.f32 %v917, %v1617
        %v1619 = vpop.f32.mrb[0].mxu0
        %v1620 = vadd.f32 %v921, %v1619
        %1621 = vmatprep.mubr.bf16.mxu0 0
        %1622 = vmatmul.mubr.bf16.gmra.mrb[0].mxu0 %v837
        %v1623 = vpop.f32.mrb[0].mxu0
        %v1624 = vadd.f32 %v917, %v1623
        %v1625 = vpop.f32.mrb[0].mxu0
        %v1626 = vadd.f32 %v921, %v1625
        %v1627 = vpop.f32.mrb[0].mxu0
        %v1628 = vadd.f32 %v917, %v1627
        %v1629 = vpop.f32.mrb[0].mxu0
        %v1630 = vadd.f32 %v921, %v1629
        %1631 = vmatprep.mubr.bf16.mxu0 0
        %1632 = vmatmul.mubr.bf16.gmra.mrb[0].mxu0 %v838
        %v1633 = vpop.f32.mrb[0].mxu0
        %v1634 = vadd.f32 %v917, %v1633
        %v1635 = vpop.f32.mrb[0].mxu0
        %v1636 = vadd.f32 %v921, %v1635
        %v1637 = vpop.f32.mrb[0].mxu0
        %v1638 = vadd.f32 %v917, %v1637
        %v1639 = vpop.f32.mrb[0].mxu0
        %v1640 = vadd.f32 %v921, %v1639
        %1641 = vmatprep.mubr.bf16.mxu0 0
        %1642 = vmatmul.mubr.bf16.gmra.mrb[0].mxu0 %v839
        %v1643 = vpop.f32.mrb[0].mxu0
        %v1644 = vadd.f32 %v917, %v1643
        %v1645 = vpop.f32.mrb[0].mxu0
        %v1646 = vadd.f32 %v921, %v1645
        %v1647 = vpop.f32.mrb[0].mxu0
        %v1648 = vadd.f32 %v917, %v1647
        %v1649 = vpop.f32.mrb[0].mxu0
        %v1650 = vadd.f32 %v921, %v1649
        %1651 = vdwg.mxu0
        %1652 = vmatprep.subr.bf16.mxu0 %v1143
        %1653 = vmatpush1.bf16.msra.mxu0 %v1142
        %1654 = vmatprep.subr.bf16.mxu0 %v1151
        %1655 = vmatpush1.bf16.msra.mxu0 %v1150
        %1656 = vmatprep.subr.bf16.mxu0 %v1159
        %1657 = vmatpush1.bf16.msra.mxu0 %v1158
        %1658 = vmatprep.subr.bf16.mxu0 %v1167
        %1659 = vmatpush1.bf16.msra.mxu0 %v1166
        %1660 = vmatprep.subr.bf16.mxu0 %v1175
        %1661 = vmatpush1.bf16.msra.mxu0 %v1174
        %1662 = vmatprep.subr.bf16.mxu0 %v1183
        %1663 = vmatpush1.bf16.msra.mxu0 %v1182
        %1664 = vmatprep.subr.bf16.mxu0 %v1191
        %1665 = vmatpush1.bf16.msra.mxu0 %v1190
        %1666 = vmatprep.subr.bf16.mxu0 %v1199
        %1667 = vmatpush1.bf16.msra.mxu0 %v1198
        %1668 = vmatprep.subr.bf16.mxu0 0
        %1669 = vmatpush1.bf16.msra.mxu0 0
        %1670 = vmatprep.subr.bf16.mxu0 0
        %1671 = vmatpush1.bf16.msra.mxu0 0
        %1672 = vmatprep.subr.bf16.mxu0 0
        %1673 = vmatpush1.bf16.msra.mxu0 0
        %1674 = vmatprep.subr.bf16.mxu0 0
        %1675 = vmatpush1.bf16.msra.mxu0 0
        %1676 = vmatprep.subr.bf16.mxu0 0
        %1677 = vmatpush1.bf16.msra.mxu0 0
        %1678 = vmatprep.subr.bf16.mxu0 0
        %1679 = vmatpush1.bf16.msra.mxu0 0
        %1680 = vmatprep.subr.bf16.mxu0 0
        %1681 = vmatpush1.bf16.msra.mxu0 0
        %1682 = vmatprep.subr.bf16.mxu0 0
        %1683 = vmatpush1.bf16.msra.mxu0 0
        %1684 = vmatprep.mubr.bf16.mxu0 0
        %1685 = vmatmul.mubr.bf16.gmra.mrb[0].mxu0 %v824
        %v1686 = vpop.f32.mrb[0].mxu0
        %v1687 = vadd.f32 %v925, %v1686
        %v1688 = vpop.f32.mrb[0].mxu0
        %v1689 = vadd.f32 %v929, %v1688
        %v1690 = vpop.f32.mrb[0].mxu0
        %v1691 = vadd.f32 %v925, %v1690
        %v1692 = vpop.f32.mrb[0].mxu0
        %v1693 = vadd.f32 %v929, %v1692
        %1694 = vmatprep.mubr.bf16.mxu0 0
        %1695 = vmatmul.mubr.bf16.gmra.mrb[0].mxu0 %v825
        %v1696 = vpop.f32.mrb[0].mxu0
        %v1697 = vadd.f32 %v925, %v1696
        %v1698 = vpop.f32.mrb[0].mxu0
        %v1699 = vadd.f32 %v929, %v1698
        %v1700 = vpop.f32.mrb[0].mxu0
        %v1701 = vadd.f32 %v925, %v1700
        %v1702 = vpop.f32.mrb[0].mxu0
        %v1703 = vadd.f32 %v929, %v1702
        %1704 = vmatprep.mubr.bf16.mxu0 0
        %1705 = vmatmul.mubr.bf16.gmra.mrb[0].mxu0 %v826
        %v1706 = vpop.f32.mrb[0].mxu0
        %v1707 = vadd.f32 %v925, %v1706
        %v1708 = vpop.f32.mrb[0].mxu0
        %v1709 = vadd.f32 %v929, %v1708
        %v1710 = vpop.f32.mrb[0].mxu0
        %v1711 = vadd.f32 %v925, %v1710
        %v1712 = vpop.f32.mrb[0].mxu0
        %v1713 = vadd.f32 %v929, %v1712
        %1714 = vmatprep.mubr.bf16.mxu0 0
        %1715 = vmatmul.mubr.bf16.gmra.mrb[0].mxu0 %v827
        %v1716 = vpop.f32.mrb[0].mxu0
        %v1717 = vadd.f32 %v925, %v1716
        %v1718 = vpop.f32.mrb[0].mxu0
        %v1719 = vadd.f32 %v929, %v1718
        %v1720 = vpop.f32.mrb[0].mxu0
        %v1721 = vadd.f32 %v925, %v1720
        %v1722 = vpop.f32.mrb[0].mxu0
        %v1723 = vadd.f32 %v929, %v1722
        %1724 = vmatprep.mubr.bf16.mxu0 0
        %1725 = vmatmul.mubr.bf16.gmra.mrb[0].mxu0 %v828
        %v1726 = vpop.f32.mrb[0].mxu0
        %v1727 = vadd.f32 %v925, %v1726
        %v1728 = vpop.f32.mrb[0].mxu0
        %v1729 = vadd.f32 %v929, %v1728
        %v1730 = vpop.f32.mrb[0].mxu0
        %v1731 = vadd.f32 %v925, %v1730
        %v1732 = vpop.f32.mrb[0].mxu0
        %v1733 = vadd.f32 %v929, %v1732
        %1734 = vmatprep.mubr.bf16.mxu0 0
        %1735 = vmatmul.mubr.bf16.gmra.mrb[0].mxu0 %v829
        %v1736 = vpop.f32.mrb[0].mxu0
        %v1737 = vadd.f32 %v925, %v1736
        %v1738 = vpop.f32.mrb[0].mxu0
        %v1739 = vadd.f32 %v929, %v1738
        %v1740 = vpop.f32.mrb[0].mxu0
        %v1741 = vadd.f32 %v925, %v1740
        %v1742 = vpop.f32.mrb[0].mxu0
        %v1743 = vadd.f32 %v929, %v1742
        %1744 = vmatprep.mubr.bf16.mxu0 0
        %1745 = vmatmul.mubr.bf16.gmra.mrb[0].mxu0 %v830
        %v1746 = vpop.f32.mrb[0].mxu0
        %v1747 = vadd.f32 %v925, %v1746
        %v1748 = vpop.f32.mrb[0].mxu0
        %v1749 = vadd.f32 %v929, %v1748
        %v1750 = vpop.f32.mrb[0].mxu0
        %v1751 = vadd.f32 %v925, %v1750
        %v1752 = vpop.f32.mrb[0].mxu0
        %v1753 = vadd.f32 %v929, %v1752
        %1754 = vmatprep.mubr.bf16.mxu0 0
        %1755 = vmatmul.mubr.bf16.gmra.mrb[0].mxu0 %v831
        %v1756 = vpop.f32.mrb[0].mxu0
        %v1757 = vadd.f32 %v925, %v1756
        %v1758 = vpop.f32.mrb[0].mxu0
        %v1759 = vadd.f32 %v929, %v1758
        %v1760 = vpop.f32.mrb[0].mxu0
        %v1761 = vadd.f32 %v925, %v1760
        %v1762 = vpop.f32.mrb[0].mxu0
        %v1763 = vadd.f32 %v929, %v1762
        %1764 = vmatprep.mubr.bf16.mxu0 0
        %1765 = vmatmul.mubr.bf16.gmra.mrb[0].mxu0 %v832
        %v1766 = vpop.f32.mrb[0].mxu0
        %v1767 = vadd.f32 %v925, %v1766
        %v1768 = vpop.f32.mrb[0].mxu0
        %v1769 = vadd.f32 %v929, %v1768
        %v1770 = vpop.f32.mrb[0].mxu0
        %v1771 = vadd.f32 %v925, %v1770
        %v1772 = vpop.f32.mrb[0].mxu0
        %v1773 = vadd.f32 %v929, %v1772
        %1774 = vmatprep.mubr.bf16.mxu0 0
        %1775 = vmatmul.mubr.bf16.gmra.mrb[0].mxu0 %v833
        %v1776 = vpop.f32.mrb[0].mxu0
        %v1777 = vadd.f32 %v925, %v1776
        %v1778 = vpop.f32.mrb[0].mxu0
        %v1779 = vadd.f32 %v929, %v1778
        %v1780 = vpop.f32.mrb[0].mxu0
        %v1781 = vadd.f32 %v925, %v1780
        %v1782 = vpop.f32.mrb[0].mxu0
        %v1783 = vadd.f32 %v929, %v1782
        %1784 = vmatprep.mubr.bf16.mxu0 0
        %1785 = vmatmul.mubr.bf16.gmra.mrb[0].mxu0 %v834
        %v1786 = vpop.f32.mrb[0].mxu0
        %v1787 = vadd.f32 %v925, %v1786
        %v1788 = vpop.f32.mrb[0].mxu0
        %v1789 = vadd.f32 %v929, %v1788
        %v1790 = vpop.f32.mrb[0].mxu0
        %v1791 = vadd.f32 %v925, %v1790
        %v1792 = vpop.f32.mrb[0].mxu0
        %v1793 = vadd.f32 %v929, %v1792
        %1794 = vmatprep.mubr.bf16.mxu0 0
        %1795 = vmatmul.mubr.bf16.gmra.mrb[0].mxu0 %v835
        %v1796 = vpop.f32.mrb[0].mxu0
        %v1797 = vadd.f32 %v925, %v1796
        %v1798 = vpop.f32.mrb[0].mxu0
        %v1799 = vadd.f32 %v929, %v1798
        %v1800 = vpop.f32.mrb[0].mxu0
        %v1801 = vadd.f32 %v925, %v1800
        %v1802 = vpop.f32.mrb[0].mxu0
        %v1803 = vadd.f32 %v929, %v1802
        %1804 = vmatprep.mubr.bf16.mxu0 0
        %1805 = vmatmul.mubr.bf16.gmra.mrb[0].mxu0 %v836
        %v1806 = vpop.f32.mrb[0].mxu0
        %v1807 = vadd.f32 %v925, %v1806
        %v1808 = vpop.f32.mrb[0].mxu0
        %v1809 = vadd.f32 %v929, %v1808
        %v1810 = vpop.f32.mrb[0].mxu0
        %v1811 = vadd.f32 %v925, %v1810
        %v1812 = vpop.f32.mrb[0].mxu0
        %v1813 = vadd.f32 %v929, %v1812
        %1814 = vmatprep.mubr.bf16.mxu0 0
        %1815 = vmatmul.mubr.bf16.gmra.mrb[0].mxu0 %v837
        %v1816 = vpop.f32.mrb[0].mxu0
        %v1817 = vadd.f32 %v925, %v1816
        %v1818 = vpop.f32.mrb[0].mxu0
        %v1819 = vadd.f32 %v929, %v1818
        %v1820 = vpop.f32.mrb[0].mxu0
        %v1821 = vadd.f32 %v925, %v1820
        %v1822 = vpop.f32.mrb[0].mxu0
        %v1823 = vadd.f32 %v929, %v1822
        %1824 = vmatprep.mubr.bf16.mxu0 0
        %1825 = vmatmul.mubr.bf16.gmra.mrb[0].mxu0 %v838
        %v1826 = vpop.f32.mrb[0].mxu0
        %v1827 = vadd.f32 %v925, %v1826
        %v1828 = vpop.f32.mrb[0].mxu0
        %v1829 = vadd.f32 %v929, %v1828
        %v1830 = vpop.f32.mrb[0].mxu0
        %v1831 = vadd.f32 %v925, %v1830
        %v1832 = vpop.f32.mrb[0].mxu0
        %v1833 = vadd.f32 %v929, %v1832
        %1834 = vmatprep.mubr.bf16.mxu0 0
        %1835 = vmatmul.mubr.bf16.gmra.mrb[0].mxu0 %v839
        %v1836 = vpop.f32.mrb[0].mxu0
        %v1837 = vadd.f32 %v925, %v1836
        %v1838 = vpop.f32.mrb[0].mxu0
        %v1839 = vadd.f32 %v929, %v1838
        %v1840 = vpop.f32.mrb[0].mxu0
        %v1841 = vadd.f32 %v925, %v1840
        %v1842 = vpop.f32.mrb[0].mxu0
        %v1843 = vadd.f32 %v929, %v1842
        %1844 = vdwg.mxu0
        %1845 = vmatprep.subr.bf16.mxu0 %v1145
        %1846 = vmatpush1.bf16.msra.mxu0 %v1144
        %1847 = vmatprep.subr.bf16.mxu0 %v1153
        %1848 = vmatpush1.bf16.msra.mxu0 %v1152
        %1849 = vmatprep.subr.bf16.mxu0 %v1161
        %1850 = vmatpush1.bf16.msra.mxu0 %v1160
        %1851 = vmatprep.subr.bf16.mxu0 %v1169
        %1852 = vmatpush1.bf16.msra.mxu0 %v1168
        %1853 = vmatprep.subr.bf16.mxu0 %v1177
        %1854 = vmatpush1.bf16.msra.mxu0 %v1176
        %1855 = vmatprep.subr.bf16.mxu0 %v1185
        %1856 = vmatpush1.bf16.msra.mxu0 %v1184
        %1857 = vmatprep.subr.bf16.mxu0 %v1193
        %1858 = vmatpush1.bf16.msra.mxu0 %v1192
        %1859 = vmatprep.subr.bf16.mxu0 %v1201
        %1860 = vmatpush1.bf16.msra.mxu0 %v1200
        %1861 = vmatprep.subr.bf16.mxu0 0
        %1862 = vmatpush1.bf16.msra.mxu0 0
        %1863 = vmatprep.subr.bf16.mxu0 0
        %1864 = vmatpush1.bf16.msra.mxu0 0
        %1865 = vmatprep.subr.bf16.mxu0 0
        %1866 = vmatpush1.bf16.msra.mxu0 0
        %1867 = vmatprep.subr.bf16.mxu0 0
        %1868 = vmatpush1.bf16.msra.mxu0 0
        %1869 = vmatprep.subr.bf16.mxu0 0
        %1870 = vmatpush1.bf16.msra.mxu0 0
        %1871 = vmatprep.subr.bf16.mxu0 0
        %1872 = vmatpush1.bf16.msra.mxu0 0
        %1873 = vmatprep.subr.bf16.mxu0 0
        %1874 = vmatpush1.bf16.msra.mxu0 0
        %1875 = vmatprep.subr.bf16.mxu0 0
        %1876 = vmatpush1.bf16.msra.mxu0 0
        %1877 = vmatprep.mubr.bf16.mxu0 0
        %1878 = vmatmul.mubr.bf16.gmra.mrb[0].mxu0 %v824
        %v1879 = vpop.f32.mrb[0].mxu0
        %v1880 = vadd.f32 %v933, %v1879
        %v1881 = vpop.f32.mrb[0].mxu0
        %v1882 = vadd.f32 %v937, %v1881
        %v1883 = vpop.f32.mrb[0].mxu0
        %v1884 = vadd.f32 %v933, %v1883
        %v1885 = vpop.f32.mrb[0].mxu0
        %v1886 = vadd.f32 %v937, %v1885
        %1887 = vmatprep.mubr.bf16.mxu0 0
        %1888 = vmatmul.mubr.bf16.gmra.mrb[0].mxu0 %v825
        %v1889 = vpop.f32.mrb[0].mxu0
        %v1890 = vadd.f32 %v933, %v1889
        %v1891 = vpop.f32.mrb[0].mxu0
        %v1892 = vadd.f32 %v937, %v1891
        %v1893 = vpop.f32.mrb[0].mxu0
        %v1894 = vadd.f32 %v933, %v1893
        %v1895 = vpop.f32.mrb[0].mxu0
        %v1896 = vadd.f32 %v937, %v1895
        %1897 = vmatprep.mubr.bf16.mxu0 0
        %1898 = vmatmul.mubr.bf16.gmra.mrb[0].mxu0 %v826
        %v1899 = vpop.f32.mrb[0].mxu0
        %v1900 = vadd.f32 %v933, %v1899
        %v1901 = vpop.f32.mrb[0].mxu0
        %v1902 = vadd.f32 %v937, %v1901
        %v1903 = vpop.f32.mrb[0].mxu0
        %v1904 = vadd.f32 %v933, %v1903
        %v1905 = vpop.f32.mrb[0].mxu0
        %v1906 = vadd.f32 %v937, %v1905
        %1907 = vmatprep.mubr.bf16.mxu0 0
        %1908 = vmatmul.mubr.bf16.gmra.mrb[0].mxu0 %v827
        %v1909 = vpop.f32.mrb[0].mxu0
        %v1910 = vadd.f32 %v933, %v1909
        %v1911 = vpop.f32.mrb[0].mxu0
        %v1912 = vadd.f32 %v937, %v1911
        %v1913 = vpop.f32.mrb[0].mxu0
        %v1914 = vadd.f32 %v933, %v1913
        %v1915 = vpop.f32.mrb[0].mxu0
        %v1916 = vadd.f32 %v937, %v1915
        %1917 = vmatprep.mubr.bf16.mxu0 0
        %1918 = vmatmul.mubr.bf16.gmra.mrb[0].mxu0 %v828
        %v1919 = vpop.f32.mrb[0].mxu0
        %v1920 = vadd.f32 %v933, %v1919
        %v1921 = vpop.f32.mrb[0].mxu0
        %v1922 = vadd.f32 %v937, %v1921
        %v1923 = vpop.f32.mrb[0].mxu0
        %v1924 = vadd.f32 %v933, %v1923
        %v1925 = vpop.f32.mrb[0].mxu0
        %v1926 = vadd.f32 %v937, %v1925
        %1927 = vmatprep.mubr.bf16.mxu0 0
        %1928 = vmatmul.mubr.bf16.gmra.mrb[0].mxu0 %v829
        %v1929 = vpop.f32.mrb[0].mxu0
        %v1930 = vadd.f32 %v933, %v1929
        %v1931 = vpop.f32.mrb[0].mxu0
        %v1932 = vadd.f32 %v937, %v1931
        %v1933 = vpop.f32.mrb[0].mxu0
        %v1934 = vadd.f32 %v933, %v1933
        %v1935 = vpop.f32.mrb[0].mxu0
        %v1936 = vadd.f32 %v937, %v1935
        %1937 = vmatprep.mubr.bf16.mxu0 0
        %1938 = vmatmul.mubr.bf16.gmra.mrb[0].mxu0 %v830
        %v1939 = vpop.f32.mrb[0].mxu0
        %v1940 = vadd.f32 %v933, %v1939
        %v1941 = vpop.f32.mrb[0].mxu0
        %v1942 = vadd.f32 %v937, %v1941
        %v1943 = vpop.f32.mrb[0].mxu0
        %v1944 = vadd.f32 %v933, %v1943
        %v1945 = vpop.f32.mrb[0].mxu0
        %v1946 = vadd.f32 %v937, %v1945
        %1947 = vmatprep.mubr.bf16.mxu0 0
        %1948 = vmatmul.mubr.bf16.gmra.mrb[0].mxu0 %v831
        %v1949 = vpop.f32.mrb[0].mxu0
        %v1950 = vadd.f32 %v933, %v1949
        %v1951 = vpop.f32.mrb[0].mxu0
        %v1952 = vadd.f32 %v937, %v1951
        %v1953 = vpop.f32.mrb[0].mxu0
        %v1954 = vadd.f32 %v933, %v1953
        %v1955 = vpop.f32.mrb[0].mxu0
        %v1956 = vadd.f32 %v937, %v1955
        %1957 = vmatprep.mubr.bf16.mxu0 0
        %1958 = vmatmul.mubr.bf16.gmra.mrb[0].mxu0 %v832
        %v1959 = vpop.f32.mrb[0].mxu0
        %v1960 = vadd.f32 %v933, %v1959
        %v1961 = vpop.f32.mrb[0].mxu0
        %v1962 = vadd.f32 %v937, %v1961
        %v1963 = vpop.f32.mrb[0].mxu0
        %v1964 = vadd.f32 %v933, %v1963
        %v1965 = vpop.f32.mrb[0].mxu0
        %v1966 = vadd.f32 %v937, %v1965
        %1967 = vmatprep.mubr.bf16.mxu0 0
        %1968 = vmatmul.mubr.bf16.gmra.mrb[0].mxu0 %v833
        %v1969 = vpop.f32.mrb[0].mxu0
        %v1970 = vadd.f32 %v933, %v1969
        %v1971 = vpop.f32.mrb[0].mxu0
        %v1972 = vadd.f32 %v937, %v1971
        %v1973 = vpop.f32.mrb[0].mxu0
        %v1974 = vadd.f32 %v933, %v1973
        %v1975 = vpop.f32.mrb[0].mxu0
        %v1976 = vadd.f32 %v937, %v1975
        %1977 = vmatprep.mubr.bf16.mxu0 0
        %1978 = vmatmul.mubr.bf16.gmra.mrb[0].mxu0 %v834
        %v1979 = vpop.f32.mrb[0].mxu0
        %v1980 = vadd.f32 %v933, %v1979
        %v1981 = vpop.f32.mrb[0].mxu0
        %v1982 = vadd.f32 %v937, %v1981
        %v1983 = vpop.f32.mrb[0].mxu0
        %v1984 = vadd.f32 %v933, %v1983
        %v1985 = vpop.f32.mrb[0].mxu0
        %v1986 = vadd.f32 %v937, %v1985
        %1987 = vmatprep.mubr.bf16.mxu0 0
        %1988 = vmatmul.mubr.bf16.gmra.mrb[0].mxu0 %v835
        %v1989 = vpop.f32.mrb[0].mxu0
        %v1990 = vadd.f32 %v933, %v1989
        %v1991 = vpop.f32.mrb[0].mxu0
        %v1992 = vadd.f32 %v937, %v1991
        %v1993 = vpop.f32.mrb[0].mxu0
        %v1994 = vadd.f32 %v933, %v1993
        %v1995 = vpop.f32.mrb[0].mxu0
        %v1996 = vadd.f32 %v937, %v1995
        %1997 = vmatprep.mubr.bf16.mxu0 0
        %1998 = vmatmul.mubr.bf16.gmra.mrb[0].mxu0 %v836
        %v1999 = vpop.f32.mrb[0].mxu0
        %v2000 = vadd.f32 %v933, %v1999
        %v2001 = vpop.f32.mrb[0].mxu0
        %v2002 = vadd.f32 %v937, %v2001
        %v2003 = vpop.f32.mrb[0].mxu0
        %v2004 = vadd.f32 %v933, %v2003
        %v2005 = vpop.f32.mrb[0].mxu0
        %v2006 = vadd.f32 %v937, %v2005
        %2007 = vmatprep.mubr.bf16.mxu0 0
        %2008 = vmatmul.mubr.bf16.gmra.mrb[0].mxu0 %v837
        %v2009 = vpop.f32.mrb[0].mxu0
        %v2010 = vadd.f32 %v933, %v2009
        %v2011 = vpop.f32.mrb[0].mxu0
        %v2012 = vadd.f32 %v937, %v2011
        %v2013 = vpop.f32.mrb[0].mxu0
        %v2014 = vadd.f32 %v933, %v2013
        %v2015 = vpop.f32.mrb[0].mxu0
        %v2016 = vadd.f32 %v937, %v2015
        %2017 = vmatprep.mubr.bf16.mxu0 0
        %2018 = vmatmul.mubr.bf16.gmra.mrb[0].mxu0 %v838
        %v2019 = vpop.f32.mrb[0].mxu0
        %v2020 = vadd.f32 %v933, %v2019
        %v2021 = vpop.f32.mrb[0].mxu0
        %v2022 = vadd.f32 %v937, %v2021
        %v2023 = vpop.f32.mrb[0].mxu0
        %v2024 = vadd.f32 %v933, %v2023
        %v2025 = vpop.f32.mrb[0].mxu0
        %v2026 = vadd.f32 %v937, %v2025
        %2027 = vmatprep.mubr.bf16.mxu0 0
        %2028 = vmatmul.mubr.bf16.gmra.mrb[0].mxu0 %v839
        %v2029 = vpop.f32.mrb[0].mxu0
        %v2030 = vadd.f32 %v933, %v2029
        %v2031 = vpop.f32.mrb[0].mxu0
        %v2032 = vadd.f32 %v937, %v2031
        %v2033 = vpop.f32.mrb[0].mxu0
        %v2034 = vadd.f32 %v933, %v2033
        %v2035 = vpop.f32.mrb[0].mxu0
        %v2036 = vadd.f32 %v937, %v2035
        %2037 = vdwg.mxu0
        %v2038 = vmax.f32 %v1301, 0.0
        %v2039 = vmax.f32 %v1303, 0.0
        %v2040 = vmax.f32 %v1494, 0.0
        %v2041 = vmax.f32 %v1496, 0.0
        %v2042 = vmax.f32 %v1687, 0.0
        %v2043 = vmax.f32 %v1689, 0.0
        %v2044 = vmax.f32 %v1880, 0.0
        %v2045 = vmax.f32 %v1882, 0.0
        %v2046 = vmax.f32 %v1305, 0.0
        %v2047 = vmax.f32 %v1307, 0.0
        %v2048 = vmax.f32 %v1498, 0.0
        %v2049 = vmax.f32 %v1500, 0.0
        %v2050 = vmax.f32 %v1691, 0.0
        %v2051 = vmax.f32 %v1693, 0.0
        %v2052 = vmax.f32 %v1884, 0.0
        %v2053 = vmax.f32 %v1886, 0.0
        %v2054 = vmax.f32 %v1311, 0.0
        %v2055 = vmax.f32 %v1313, 0.0
        %v2056 = vmax.f32 %v1504, 0.0
        %v2057 = vmax.f32 %v1506, 0.0
        %v2058 = vmax.f32 %v1697, 0.0
        %v2059 = vmax.f32 %v1699, 0.0
        %v2060 = vmax.f32 %v1890, 0.0
        %v2061 = vmax.f32 %v1892, 0.0
        %v2062 = vmax.f32 %v1315, 0.0
        %v2063 = vmax.f32 %v1317, 0.0
        %v2064 = vmax.f32 %v1508, 0.0
        %v2065 = vmax.f32 %v1510, 0.0
        %v2066 = vmax.f32 %v1701, 0.0
        %v2067 = vmax.f32 %v1703, 0.0
        %v2068 = vmax.f32 %v1894, 0.0
        %v2069 = vmax.f32 %v1896, 0.0
        %v2070 = vmax.f32 %v1321, 0.0
        %v2071 = vmax.f32 %v1323, 0.0
        %v2072 = vmax.f32 %v1514, 0.0
        %v2073 = vmax.f32 %v1516, 0.0
        %v2074 = vmax.f32 %v1707, 0.0
        %v2075 = vmax.f32 %v1709, 0.0
        %v2076 = vmax.f32 %v1900, 0.0
        %v2077 = vmax.f32 %v1902, 0.0
        %v2078 = vmax.f32 %v1325, 0.0
        %v2079 = vmax.f32 %v1327, 0.0
        %v2080 = vmax.f32 %v1518, 0.0
        %v2081 = vmax.f32 %v1520, 0.0
        %v2082 = vmax.f32 %v1711, 0.0
        %v2083 = vmax.f32 %v1713, 0.0
        %v2084 = vmax.f32 %v1904, 0.0
        %v2085 = vmax.f32 %v1906, 0.0
        %v2086 = vmax.f32 %v1331, 0.0
        %v2087 = vmax.f32 %v1333, 0.0
        %v2088 = vmax.f32 %v1524, 0.0
        %v2089 = vmax.f32 %v1526, 0.0
        %v2090 = vmax.f32 %v1717, 0.0
        %v2091 = vmax.f32 %v1719, 0.0
        %v2092 = vmax.f32 %v1910, 0.0
        %v2093 = vmax.f32 %v1912, 0.0
        %v2094 = vmax.f32 %v1335, 0.0
        %v2095 = vmax.f32 %v1337, 0.0
        %v2096 = vmax.f32 %v1528, 0.0
        %v2097 = vmax.f32 %v1530, 0.0
        %v2098 = vmax.f32 %v1721, 0.0
        %v2099 = vmax.f32 %v1723, 0.0
        %v2100 = vmax.f32 %v1914, 0.0
        %v2101 = vmax.f32 %v1916, 0.0
        %v2102 = vmax.f32 %v1341, 0.0
        %v2103 = vmax.f32 %v1343, 0.0
        %v2104 = vmax.f32 %v1534, 0.0
        %v2105 = vmax.f32 %v1536, 0.0
        %v2106 = vmax.f32 %v1727, 0.0
        %v2107 = vmax.f32 %v1729, 0.0
        %v2108 = vmax.f32 %v1920, 0.0
        %v2109 = vmax.f32 %v1922, 0.0
        %v2110 = vmax.f32 %v1345, 0.0
        %v2111 = vmax.f32 %v1347, 0.0
        %v2112 = vmax.f32 %v1538, 0.0
        %v2113 = vmax.f32 %v1540, 0.0
        %v2114 = vmax.f32 %v1731, 0.0
        %v2115 = vmax.f32 %v1733, 0.0
        %v2116 = vmax.f32 %v1924, 0.0
        %v2117 = vmax.f32 %v1926, 0.0
        %v2118 = vmax.f32 %v1351, 0.0
        %v2119 = vmax.f32 %v1353, 0.0
        %v2120 = vmax.f32 %v1544, 0.0
        %v2121 = vmax.f32 %v1546, 0.0
        %v2122 = vmax.f32 %v1737, 0.0
        %v2123 = vmax.f32 %v1739, 0.0
        %v2124 = vmax.f32 %v1930, 0.0
        %v2125 = vmax.f32 %v1932, 0.0
        %v2126 = vmax.f32 %v1355, 0.0
        %v2127 = vmax.f32 %v1357, 0.0
        %v2128 = vmax.f32 %v1548, 0.0
        %v2129 = vmax.f32 %v1550, 0.0
        %v2130 = vmax.f32 %v1741, 0.0
        %v2131 = vmax.f32 %v1743, 0.0
        %v2132 = vmax.f32 %v1934, 0.0
        %v2133 = vmax.f32 %v1936, 0.0
        %v2134 = vmax.f32 %v1361, 0.0
        %v2135 = vmax.f32 %v1363, 0.0
        %v2136 = vmax.f32 %v1554, 0.0
        %v2137 = vmax.f32 %v1556, 0.0
        %v2138 = vmax.f32 %v1747, 0.0
        %v2139 = vmax.f32 %v1749, 0.0
        %v2140 = vmax.f32 %v1940, 0.0
        %v2141 = vmax.f32 %v1942, 0.0
        %v2142 = vmax.f32 %v1365, 0.0
        %v2143 = vmax.f32 %v1367, 0.0
        %v2144 = vmax.f32 %v1558, 0.0
        %v2145 = vmax.f32 %v1560, 0.0
        %v2146 = vmax.f32 %v1751, 0.0
        %v2147 = vmax.f32 %v1753, 0.0
        %v2148 = vmax.f32 %v1944, 0.0
        %v2149 = vmax.f32 %v1946, 0.0
        %v2150 = vmax.f32 %v1371, 0.0
        %v2151 = vmax.f32 %v1373, 0.0
        %v2152 = vmax.f32 %v1564, 0.0
        %v2153 = vmax.f32 %v1566, 0.0
        %v2154 = vmax.f32 %v1757, 0.0
        %v2155 = vmax.f32 %v1759, 0.0
        %v2156 = vmax.f32 %v1950, 0.0
        %v2157 = vmax.f32 %v1952, 0.0
        %v2158 = vmax.f32 %v1375, 0.0
        %v2159 = vmax.f32 %v1377, 0.0
        %v2160 = vmax.f32 %v1568, 0.0
        %v2161 = vmax.f32 %v1570, 0.0
        %v2162 = vmax.f32 %v1761, 0.0
        %v2163 = vmax.f32 %v1763, 0.0
        %v2164 = vmax.f32 %v1954, 0.0
        %v2165 = vmax.f32 %v1956, 0.0
        %v2166 = vmax.f32 %v1381, 0.0
        %v2167 = vmax.f32 %v1383, 0.0
        %v2168 = vmax.f32 %v1574, 0.0
        %v2169 = vmax.f32 %v1576, 0.0
        %v2170 = vmax.f32 %v1767, 0.0
        %v2171 = vmax.f32 %v1769, 0.0
        %v2172 = vmax.f32 %v1960, 0.0
        %v2173 = vmax.f32 %v1962, 0.0
        %v2174 = vmax.f32 %v1385, 0.0
        %v2175 = vmax.f32 %v1387, 0.0
        %v2176 = vmax.f32 %v1578, 0.0
        %v2177 = vmax.f32 %v1580, 0.0
        %v2178 = vmax.f32 %v1771, 0.0
        %v2179 = vmax.f32 %v1773, 0.0
        %v2180 = vmax.f32 %v1964, 0.0
        %v2181 = vmax.f32 %v1966, 0.0
        %v2182 = vmax.f32 %v1391, 0.0
        %v2183 = vmax.f32 %v1393, 0.0
        %v2184 = vmax.f32 %v1584, 0.0
        %v2185 = vmax.f32 %v1586, 0.0
        %v2186 = vmax.f32 %v1777, 0.0
        %v2187 = vmax.f32 %v1779, 0.0
        %v2188 = vmax.f32 %v1970, 0.0
        %v2189 = vmax.f32 %v1972, 0.0
        %v2190 = vmax.f32 %v1395, 0.0
        %v2191 = vmax.f32 %v1397, 0.0
        %v2192 = vmax.f32 %v1588, 0.0
        %v2193 = vmax.f32 %v1590, 0.0
        %v2194 = vmax.f32 %v1781, 0.0
        %v2195 = vmax.f32 %v1783, 0.0
        %v2196 = vmax.f32 %v1974, 0.0
        %v2197 = vmax.f32 %v1976, 0.0
        %v2198 = vmax.f32 %v1401, 0.0
        %v2199 = vmax.f32 %v1403, 0.0
        %v2200 = vmax.f32 %v1594, 0.0
        %v2201 = vmax.f32 %v1596, 0.0
        %v2202 = vmax.f32 %v1787, 0.0
        %v2203 = vmax.f32 %v1789, 0.0
        %v2204 = vmax.f32 %v1980, 0.0
        %v2205 = vmax.f32 %v1982, 0.0
        %v2206 = vmax.f32 %v1405, 0.0
        %v2207 = vmax.f32 %v1407, 0.0
        %v2208 = vmax.f32 %v1598, 0.0
        %v2209 = vmax.f32 %v1600, 0.0
        %v2210 = vmax.f32 %v1791, 0.0
        %v2211 = vmax.f32 %v1793, 0.0
        %v2212 = vmax.f32 %v1984, 0.0
        %v2213 = vmax.f32 %v1986, 0.0
        %v2214 = vmax.f32 %v1411, 0.0
        %v2215 = vmax.f32 %v1413, 0.0
        %v2216 = vmax.f32 %v1604, 0.0
        %v2217 = vmax.f32 %v1606, 0.0
        %v2218 = vmax.f32 %v1797, 0.0
        %v2219 = vmax.f32 %v1799, 0.0
        %v2220 = vmax.f32 %v1990, 0.0
        %v2221 = vmax.f32 %v1992, 0.0
        %v2222 = vmax.f32 %v1415, 0.0
        %v2223 = vmax.f32 %v1417, 0.0
        %v2224 = vmax.f32 %v1608, 0.0
        %v2225 = vmax.f32 %v1610, 0.0
        %v2226 = vmax.f32 %v1801, 0.0
        %v2227 = vmax.f32 %v1803, 0.0
        %v2228 = vmax.f32 %v1994, 0.0
        %v2229 = vmax.f32 %v1996, 0.0
        %v2230 = vmax.f32 %v1421, 0.0
        %v2231 = vmax.f32 %v1423, 0.0
        %v2232 = vmax.f32 %v1614, 0.0
        %v2233 = vmax.f32 %v1616, 0.0
        %v2234 = vmax.f32 %v1807, 0.0
        %v2235 = vmax.f32 %v1809, 0.0
        %v2236 = vmax.f32 %v2000, 0.0
        %v2237 = vmax.f32 %v2002, 0.0
        %v2238 = vmax.f32 %v1425, 0.0
        %v2239 = vmax.f32 %v1427, 0.0
        %v2240 = vmax.f32 %v1618, 0.0
        %v2241 = vmax.f32 %v1620, 0.0
        %v2242 = vmax.f32 %v1811, 0.0
        %v2243 = vmax.f32 %v1813, 0.0
        %v2244 = vmax.f32 %v2004, 0.0
        %v2245 = vmax.f32 %v2006, 0.0
        %v2246 = vmax.f32 %v1431, 0.0
        %v2247 = vmax.f32 %v1433, 0.0
        %v2248 = vmax.f32 %v1624, 0.0
        %v2249 = vmax.f32 %v1626, 0.0
        %v2250 = vmax.f32 %v1817, 0.0
        %v2251 = vmax.f32 %v1819, 0.0
        %v2252 = vmax.f32 %v2010, 0.0
        %v2253 = vmax.f32 %v2012, 0.0
        %v2254 = vmax.f32 %v1435, 0.0
        %v2255 = vmax.f32 %v1437, 0.0
        %v2256 = vmax.f32 %v1628, 0.0
        %v2257 = vmax.f32 %v1630, 0.0
        %v2258 = vmax.f32 %v1821, 0.0
        %v2259 = vmax.f32 %v1823, 0.0
        %v2260 = vmax.f32 %v2014, 0.0
        %v2261 = vmax.f32 %v2016, 0.0
        %v2262 = vmax.f32 %v1441, 0.0
        %v2263 = vmax.f32 %v1443, 0.0
        %v2264 = vmax.f32 %v1634, 0.0
        %v2265 = vmax.f32 %v1636, 0.0
        %v2266 = vmax.f32 %v1827, 0.0
        %v2267 = vmax.f32 %v1829, 0.0
        %v2268 = vmax.f32 %v2020, 0.0
        %v2269 = vmax.f32 %v2022, 0.0
        %v2270 = vmax.f32 %v1445, 0.0
        %v2271 = vmax.f32 %v1447, 0.0
        %v2272 = vmax.f32 %v1638, 0.0
        %v2273 = vmax.f32 %v1640, 0.0
        %v2274 = vmax.f32 %v1831, 0.0
        %v2275 = vmax.f32 %v1833, 0.0
        %v2276 = vmax.f32 %v2024, 0.0
        %v2277 = vmax.f32 %v2026, 0.0
        %v2278 = vmax.f32 %v1451, 0.0
        %v2279 = vmax.f32 %v1453, 0.0
        %v2280 = vmax.f32 %v1644, 0.0
        %v2281 = vmax.f32 %v1646, 0.0
        %v2282 = vmax.f32 %v1837, 0.0
        %v2283 = vmax.f32 %v1839, 0.0
        %v2284 = vmax.f32 %v2030, 0.0
        %v2285 = vmax.f32 %v2032, 0.0
        %v2286 = vmax.f32 %v1455, 0.0
        %v2287 = vmax.f32 %v1457, 0.0
        %v2288 = vmax.f32 %v1648, 0.0
        %v2289 = vmax.f32 %v1650, 0.0
        %v2290 = vmax.f32 %v1841, 0.0
        %v2291 = vmax.f32 %v1843, 0.0
        %v2292 = vmax.f32 %v2034, 0.0
        %v2293 = vmax.f32 %v2036, 0.0
        %v2294 = vpack.c.bf16 %v2046, %v2038
        %v2295 = vpack.c.bf16 %v2047, %v2039
        %v2296 = vpack.c.bf16 %v2048, %v2040
        %v2297 = vpack.c.bf16 %v2049, %v2041
        %v2298 = vpack.c.bf16 %v2050, %v2042
        %v2299 = vpack.c.bf16 %v2051, %v2043
        %v2300 = vpack.c.bf16 %v2052, %v2044
        %v2301 = vpack.c.bf16 %v2053, %v2045
        %v2302 = vpack.c.bf16 %v2062, %v2054
        %v2303 = vpack.c.bf16 %v2063, %v2055
        %v2304 = vpack.c.bf16 %v2064, %v2056
        %v2305 = vpack.c.bf16 %v2065, %v2057
        %v2306 = vpack.c.bf16 %v2066, %v2058
        %v2307 = vpack.c.bf16 %v2067, %v2059
        %v2308 = vpack.c.bf16 %v2068, %v2060
        %v2309 = vpack.c.bf16 %v2069, %v2061
        %v2310 = vpack.c.bf16 %v2078, %v2070
        %v2311 = vpack.c.bf16 %v2079, %v2071
        %v2312 = vpack.c.bf16 %v2080, %v2072
        %v2313 = vpack.c.bf16 %v2081, %v2073
        %v2314 = vpack.c.bf16 %v2082, %v2074
        %v2315 = vpack.c.bf16 %v2083, %v2075
        %v2316 = vpack.c.bf16 %v2084, %v2076
        %v2317 = vpack.c.bf16 %v2085, %v2077
        %v2318 = vpack.c.bf16 %v2094, %v2086
        %v2319 = vpack.c.bf16 %v2095, %v2087
        %v2320 = vpack.c.bf16 %v2096, %v2088
        %v2321 = vpack.c.bf16 %v2097, %v2089
        %v2322 = vpack.c.bf16 %v2098, %v2090
        %v2323 = vpack.c.bf16 %v2099, %v2091
        %v2324 = vpack.c.bf16 %v2100, %v2092
        %v2325 = vpack.c.bf16 %v2101, %v2093
        %v2326 = vpack.c.bf16 %v2110, %v2102
        %v2327 = vpack.c.bf16 %v2111, %v2103
        %v2328 = vpack.c.bf16 %v2112, %v2104
        %v2329 = vpack.c.bf16 %v2113, %v2105
        %v2330 = vpack.c.bf16 %v2114, %v2106
        %v2331 = vpack.c.bf16 %v2115, %v2107
        %v2332 = vpack.c.bf16 %v2116, %v2108
        %v2333 = vpack.c.bf16 %v2117, %v2109
        %v2334 = vpack.c.bf16 %v2126, %v2118
        %v2335 = vpack.c.bf16 %v2127, %v2119
        %v2336 = vpack.c.bf16 %v2128, %v2120
        %v2337 = vpack.c.bf16 %v2129, %v2121
        %v2338 = vpack.c.bf16 %v2130, %v2122
        %v2339 = vpack.c.bf16 %v2131, %v2123
        %v2340 = vpack.c.bf16 %v2132, %v2124
        %v2341 = vpack.c.bf16 %v2133, %v2125
        %v2342 = vpack.c.bf16 %v2142, %v2134
        %v2343 = vpack.c.bf16 %v2143, %v2135
        %v2344 = vpack.c.bf16 %v2144, %v2136
        %v2345 = vpack.c.bf16 %v2145, %v2137
        %v2346 = vpack.c.bf16 %v2146, %v2138
        %v2347 = vpack.c.bf16 %v2147, %v2139
        %v2348 = vpack.c.bf16 %v2148, %v2140
        %v2349 = vpack.c.bf16 %v2149, %v2141
        %v2350 = vpack.c.bf16 %v2158, %v2150
        %v2351 = vpack.c.bf16 %v2159, %v2151
        %v2352 = vpack.c.bf16 %v2160, %v2152
        %v2353 = vpack.c.bf16 %v2161, %v2153
        %v2354 = vpack.c.bf16 %v2162, %v2154
        %v2355 = vpack.c.bf16 %v2163, %v2155
        %v2356 = vpack.c.bf16 %v2164, %v2156
        %v2357 = vpack.c.bf16 %v2165, %v2157
        %v2358 = vpack.c.bf16 %v2174, %v2166
        %v2359 = vpack.c.bf16 %v2175, %v2167
        %v2360 = vpack.c.bf16 %v2176, %v2168
        %v2361 = vpack.c.bf16 %v2177, %v2169
        %v2362 = vpack.c.bf16 %v2178, %v2170
        %v2363 = vpack.c.bf16 %v2179, %v2171
        %v2364 = vpack.c.bf16 %v2180, %v2172
        %v2365 = vpack.c.bf16 %v2181, %v2173
        %v2366 = vpack.c.bf16 %v2190, %v2182
        %v2367 = vpack.c.bf16 %v2191, %v2183
        %v2368 = vpack.c.bf16 %v2192, %v2184
        %v2369 = vpack.c.bf16 %v2193, %v2185
        %v2370 = vpack.c.bf16 %v2194, %v2186
        %v2371 = vpack.c.bf16 %v2195, %v2187
        %v2372 = vpack.c.bf16 %v2196, %v2188
        %v2373 = vpack.c.bf16 %v2197, %v2189
        %v2374 = vpack.c.bf16 %v2206, %v2198
        %v2375 = vpack.c.bf16 %v2207, %v2199
        %v2376 = vpack.c.bf16 %v2208, %v2200
        %v2377 = vpack.c.bf16 %v2209, %v2201
        %v2378 = vpack.c.bf16 %v2210, %v2202
        %v2379 = vpack.c.bf16 %v2211, %v2203
        %v2380 = vpack.c.bf16 %v2212, %v2204
        %v2381 = vpack.c.bf16 %v2213, %v2205
        %v2382 = vpack.c.bf16 %v2222, %v2214
        %v2383 = vpack.c.bf16 %v2223, %v2215
        %v2384 = vpack.c.bf16 %v2224, %v2216
        %v2385 = vpack.c.bf16 %v2225, %v2217
        %v2386 = vpack.c.bf16 %v2226, %v2218
        %v2387 = vpack.c.bf16 %v2227, %v2219
        %v2388 = vpack.c.bf16 %v2228, %v2220
        %v2389 = vpack.c.bf16 %v2229, %v2221
        %v2390 = vpack.c.bf16 %v2238, %v2230
        %v2391 = vpack.c.bf16 %v2239, %v2231
        %v2392 = vpack.c.bf16 %v2240, %v2232
        %v2393 = vpack.c.bf16 %v2241, %v2233
        %v2394 = vpack.c.bf16 %v2242, %v2234
        %v2395 = vpack.c.bf16 %v2243, %v2235
        %v2396 = vpack.c.bf16 %v2244, %v2236
        %v2397 = vpack.c.bf16 %v2245, %v2237
        %v2398 = vpack.c.bf16 %v2254, %v2246
        %v2399 = vpack.c.bf16 %v2255, %v2247
        %v2400 = vpack.c.bf16 %v2256, %v2248
        %v2401 = vpack.c.bf16 %v2257, %v2249
        %v2402 = vpack.c.bf16 %v2258, %v2250
        %v2403 = vpack.c.bf16 %v2259, %v2251
        %v2404 = vpack.c.bf16 %v2260, %v2252
        %v2405 = vpack.c.bf16 %v2261, %v2253
        %v2406 = vpack.c.bf16 %v2270, %v2262
        %v2407 = vpack.c.bf16 %v2271, %v2263
        %v2408 = vpack.c.bf16 %v2272, %v2264
        %v2409 = vpack.c.bf16 %v2273, %v2265
        %v2410 = vpack.c.bf16 %v2274, %v2266
        %v2411 = vpack.c.bf16 %v2275, %v2267
        %v2412 = vpack.c.bf16 %v2276, %v2268
        %v2413 = vpack.c.bf16 %v2277, %v2269
        %v2414 = vpack.c.bf16 %v2286, %v2278
        %v2415 = vpack.c.bf16 %v2287, %v2279
        %v2416 = vpack.c.bf16 %v2288, %v2280
        %v2417 = vpack.c.bf16 %v2289, %v2281
        %v2418 = vpack.c.bf16 %v2290, %v2282
        %v2419 = vpack.c.bf16 %v2291, %v2283
        %v2420 = vpack.c.bf16 %v2292, %v2284
        %v2421 = vpack.c.bf16 %v2293, %v2285
        %v2422 = vld [vmem:[#allocation7] sm:$0xf]
        %v2423 = vld [vmem:[#allocation7 + $0x4] sm:$0xf]
        %v2424 = vld [vmem:[#allocation7 + $0x8] sm:$0xf]
        %v2425 = vld [vmem:[#allocation7 + $0xc] sm:$0xf]
        %v2426 = vld [vmem:[#allocation7 + $0x10] sm:$0xf]
        %v2427 = vld [vmem:[#allocation7 + $0x14] sm:$0xf]
        %v2428 = vld [vmem:[#allocation7 + $0x18] sm:$0xf]
        %v2429 = vld [vmem:[#allocation7 + $0x1c] sm:$0xf]
        %v2430 = vld [vmem:[#allocation7 + $0x20] sm:$0xf]
        %v2431 = vld [vmem:[#allocation7 + $0x24] sm:$0xf]
        %v2432 = vld [vmem:[#allocation7 + $0x28] sm:$0xf]
        %v2433 = vld [vmem:[#allocation7 + $0x2c] sm:$0xf]
        %v2434 = vld [vmem:[#allocation7 + $0x30] sm:$0xf]
        %v2435 = vld [vmem:[#allocation7 + $0x34] sm:$0xf]
        %v2436 = vld [vmem:[#allocation7 + $0x38] sm:$0xf]
        %v2437 = vld [vmem:[#allocation7 + $0x3c] sm:$0xf]
        %v2438 = vld [vmem:[#allocation7 + $0x40] sm:$0xf]
        %v2439 = vld [vmem:[#allocation7 + $0x44] sm:$0xf]
        %v2440 = vld [vmem:[#allocation7 + $0x48] sm:$0xf]
        %v2441 = vld [vmem:[#allocation7 + $0x4c] sm:$0xf]
        %v2442 = vld [vmem:[#allocation7 + $0x50] sm:$0xf]
        %v2443 = vld [vmem:[#allocation7 + $0x54] sm:$0xf]
        %v2444 = vld [vmem:[#allocation7 + $0x58] sm:$0xf]
        %v2445 = vld [vmem:[#allocation7 + $0x5c] sm:$0xf]
        %v2446 = vld [vmem:[#allocation7 + $0x60] sm:$0xf]
        %v2447 = vld [vmem:[#allocation7 + $0x64] sm:$0xf]
        %v2448 = vld [vmem:[#allocation7 + $0x68] sm:$0xf]
        %v2449 = vld [vmem:[#allocation7 + $0x6c] sm:$0xf]
        %v2450 = vld [vmem:[#allocation7 + $0x70] sm:$0xf]
        %v2451 = vld [vmem:[#allocation7 + $0x74] sm:$0xf]
        %v2452 = vld [vmem:[#allocation7 + $0x78] sm:$0xf]
        %v2453 = vld [vmem:[#allocation7 + $0x7c] sm:$0xf]
        %v2454 = vld [vmem:[#allocation7 + $0x80] sm:$0xf]
        %v2455 = vld [vmem:[#allocation7 + $0x84] sm:$0xf]
        %v2456 = vld [vmem:[#allocation7 + $0x88] sm:$0xf]
        %v2457 = vld [vmem:[#allocation7 + $0x8c] sm:$0xf]
        %v2458 = vld [vmem:[#allocation7 + $0x90] sm:$0xf]
        %v2459 = vld [vmem:[#allocation7 + $0x94] sm:$0xf]
        %v2460 = vld [vmem:[#allocation7 + $0x98] sm:$0xf]
        %v2461 = vld [vmem:[#allocation7 + $0x9c] sm:$0xf]
        %v2462 = vld [vmem:[#allocation7 + $0xa0] sm:$0xf]
        %v2463 = vld [vmem:[#allocation7 + $0xa4] sm:$0xf]
        %v2464 = vld [vmem:[#allocation7 + $0xa8] sm:$0xf]
        %v2465 = vld [vmem:[#allocation7 + $0xac] sm:$0xf]
        %v2466 = vld [vmem:[#allocation7 + $0xb0] sm:$0xf]
        %v2467 = vld [vmem:[#allocation7 + $0xb4] sm:$0xf]
        %v2468 = vld [vmem:[#allocation7 + $0xb8] sm:$0xf]
        %v2469 = vld [vmem:[#allocation7 + $0xbc] sm:$0xf]
        %v2470 = vld [vmem:[#allocation7 + $0xc0] sm:$0xf]
        %v2471 = vld [vmem:[#allocation7 + $0xc4] sm:$0xf]
        %v2472 = vld [vmem:[#allocation7 + $0xc8] sm:$0xf]
        %v2473 = vld [vmem:[#allocation7 + $0xcc] sm:$0xf]
        %v2474 = vld [vmem:[#allocation7 + $0xd0] sm:$0xf]
        %v2475 = vld [vmem:[#allocation7 + $0xd4] sm:$0xf]
        %v2476 = vld [vmem:[#allocation7 + $0xd8] sm:$0xf]
        %v2477 = vld [vmem:[#allocation7 + $0xdc] sm:$0xf]
        %v2478 = vld [vmem:[#allocation7 + $0xe0] sm:$0xf]
        %v2479 = vld [vmem:[#allocation7 + $0xe4] sm:$0xf]
        %v2480 = vld [vmem:[#allocation7 + $0xe8] sm:$0xf]
        %v2481 = vld [vmem:[#allocation7 + $0xec] sm:$0xf]
        %v2482 = vld [vmem:[#allocation7 + $0xf0] sm:$0xf]
        %v2483 = vld [vmem:[#allocation7 + $0xf4] sm:$0xf]
        %v2484 = vld [vmem:[#allocation7 + $0xf8] sm:$0xf]
        %v2485 = vld [vmem:[#allocation7 + $0xfc] sm:$0xf]
        %v2486 = vld [vmem:[#allocation7 + $0x100] sm:$0xf]
        %v2487 = vld [vmem:[#allocation7 + $0x104] sm:$0xf]
        %v2488 = vld [vmem:[#allocation7 + $0x108] sm:$0xf]
        %v2489 = vld [vmem:[#allocation7 + $0x10c] sm:$0xf]
        %v2490 = vld [vmem:[#allocation7 + $0x110] sm:$0xf]
        %v2491 = vld [vmem:[#allocation7 + $0x114] sm:$0xf]
        %v2492 = vld [vmem:[#allocation7 + $0x118] sm:$0xf]
        %v2493 = vld [vmem:[#allocation7 + $0x11c] sm:$0xf]
        %v2494 = vld [vmem:[#allocation7 + $0x120] sm:$0xf]
        %v2495 = vld [vmem:[#allocation7 + $0x124] sm:$0xf]
        %v2496 = vld [vmem:[#allocation7 + $0x128] sm:$0xf]
        %v2497 = vld [vmem:[#allocation7 + $0x12c] sm:$0xf]
        %v2498 = vld [vmem:[#allocation7 + $0x130] sm:$0xf]
        %v2499 = vld [vmem:[#allocation7 + $0x134] sm:$0xf]
        %v2500 = vld [vmem:[#allocation7 + $0x138] sm:$0xf]
        %v2501 = vld [vmem:[#allocation7 + $0x13c] sm:$0xf]
        %v2502 = vld [vmem:[#allocation7 + $0x140] sm:$0xf]
        %v2503 = vld [vmem:[#allocation7 + $0x144] sm:$0xf]
        %v2504 = vld [vmem:[#allocation7 + $0x148] sm:$0xf]
        %v2505 = vld [vmem:[#allocation7 + $0x14c] sm:$0xf]
        %v2506 = vld [vmem:[#allocation7 + $0x150] sm:$0xf]
        %v2507 = vld [vmem:[#allocation7 + $0x154] sm:$0xf]
        %v2508 = vld [vmem:[#allocation7 + $0x158] sm:$0xf]
        %v2509 = vld [vmem:[#allocation7 + $0x15c] sm:$0xf]
        %v2510 = vld [vmem:[#allocation7 + $0x160] sm:$0xf]
        %v2511 = vld [vmem:[#allocation7 + $0x164] sm:$0xf]
        %v2512 = vld [vmem:[#allocation7 + $0x168] sm:$0xf]
        %v2513 = vld [vmem:[#allocation7 + $0x16c] sm:$0xf]
        %v2514 = vld [vmem:[#allocation7 + $0x170] sm:$0xf]
        %v2515 = vld [vmem:[#allocation7 + $0x174] sm:$0xf]
        %v2516 = vld [vmem:[#allocation7 + $0x178] sm:$0xf]
        %v2517 = vld [vmem:[#allocation7 + $0x17c] sm:$0xf]
        %v2518 = vld [vmem:[#allocation7 + $0x180] sm:$0xf]
        %v2519 = vld [vmem:[#allocation7 + $0x184] sm:$0xf]
        %v2520 = vld [vmem:[#allocation7 + $0x188] sm:$0xf]
        %v2521 = vld [vmem:[#allocation7 + $0x18c] sm:$0xf]
        %v2522 = vld [vmem:[#allocation7 + $0x190] sm:$0xf]
        %v2523 = vld [vmem:[#allocation7 + $0x194] sm:$0xf]
        %v2524 = vld [vmem:[#allocation7 + $0x198] sm:$0xf]
        %v2525 = vld [vmem:[#allocation7 + $0x19c] sm:$0xf]
        %v2526 = vld [vmem:[#allocation7 + $0x1a0] sm:$0xf]
        %v2527 = vld [vmem:[#allocation7 + $0x1a4] sm:$0xf]
        %v2528 = vld [vmem:[#allocation7 + $0x1a8] sm:$0xf]
        %v2529 = vld [vmem:[#allocation7 + $0x1ac] sm:$0xf]
        %v2530 = vld [vmem:[#allocation7 + $0x1b0] sm:$0xf]
        %v2531 = vld [vmem:[#allocation7 + $0x1b4] sm:$0xf]
        %v2532 = vld [vmem:[#allocation7 + $0x1b8] sm:$0xf]
        %v2533 = vld [vmem:[#allocation7 + $0x1bc] sm:$0xf]
        %v2534 = vld [vmem:[#allocation7 + $0x1c0] sm:$0xf]
        %v2535 = vld [vmem:[#allocation7 + $0x1c4] sm:$0xf]
        %v2536 = vld [vmem:[#allocation7 + $0x1c8] sm:$0xf]
        %v2537 = vld [vmem:[#allocation7 + $0x1cc] sm:$0xf]
        %v2538 = vld [vmem:[#allocation7 + $0x1d0] sm:$0xf]
        %v2539 = vld [vmem:[#allocation7 + $0x1d4] sm:$0xf]
        %v2540 = vld [vmem:[#allocation7 + $0x1d8] sm:$0xf]
        %v2541 = vld [vmem:[#allocation7 + $0x1dc] sm:$0xf]
        %v2542 = vld [vmem:[#allocation7 + $0x1e0] sm:$0xf]
        %v2543 = vld [vmem:[#allocation7 + $0x1e4] sm:$0xf]
        %v2544 = vld [vmem:[#allocation7 + $0x1e8] sm:$0xf]
        %v2545 = vld [vmem:[#allocation7 + $0x1ec] sm:$0xf]
        %v2546 = vld [vmem:[#allocation7 + $0x1f0] sm:$0xf]
        %v2547 = vld [vmem:[#allocation7 + $0x1f4] sm:$0xf]
        %v2548 = vld [vmem:[#allocation7 + $0x1f8] sm:$0xf]
        %v2549 = vld [vmem:[#allocation7 + $0x1fc] sm:$0xf]
        %v2550 = vld [vmem:[%s6] sm:$0x1]
        %v2552 = vlaneseq
        %v2553 = vshrl.u32 %v2552, 7
        %v2554 = vsub.s32 0, %v2553
        %v2555 = vrot.slane %v2550, %v2554
        %v2685 = vunpack.c.l.b16 %v2422
        %v2686 = vunpack.c.l.b16 %v2423
        %v2687 = vunpack.c.l.b16 %v2424
        %v2688 = vunpack.c.l.b16 %v2425
        %v2689 = vunpack.c.l.b16 %v2426
        %v2690 = vunpack.c.l.b16 %v2427
        %v2691 = vunpack.c.l.b16 %v2428
        %v2692 = vunpack.c.l.b16 %v2429
        %v2693 = vunpack.c.l.b16 %v2430
        %v2694 = vunpack.c.l.b16 %v2431
        %v2695 = vunpack.c.l.b16 %v2432
        %v2696 = vunpack.c.l.b16 %v2433
        %v2697 = vunpack.c.l.b16 %v2434
        %v2698 = vunpack.c.l.b16 %v2435
        %v2699 = vunpack.c.l.b16 %v2436
        %v2700 = vunpack.c.l.b16 %v2437
        %v2701 = vunpack.c.l.b16 %v2438
        %v2702 = vunpack.c.l.b16 %v2439
        %v2703 = vunpack.c.l.b16 %v2440
        %v2704 = vunpack.c.l.b16 %v2441
        %v2705 = vunpack.c.l.b16 %v2442
        %v2706 = vunpack.c.l.b16 %v2443
        %v2707 = vunpack.c.l.b16 %v2444
        %v2708 = vunpack.c.l.b16 %v2445
        %v2709 = vunpack.c.l.b16 %v2446
        %v2710 = vunpack.c.l.b16 %v2447
        %v2711 = vunpack.c.l.b16 %v2448
        %v2712 = vunpack.c.l.b16 %v2449
        %v2713 = vunpack.c.l.b16 %v2450
        %v2714 = vunpack.c.l.b16 %v2451
        %v2715 = vunpack.c.l.b16 %v2452
        %v2716 = vunpack.c.l.b16 %v2453
        %v2717 = vunpack.c.l.b16 %v2454
        %v2718 = vunpack.c.l.b16 %v2455
        %v2719 = vunpack.c.l.b16 %v2456
        %v2720 = vunpack.c.l.b16 %v2457
        %v2721 = vunpack.c.l.b16 %v2458
        %v2722 = vunpack.c.l.b16 %v2459
        %v2723 = vunpack.c.l.b16 %v2460
        %v2724 = vunpack.c.l.b16 %v2461
        %v2725 = vunpack.c.l.b16 %v2462
        %v2726 = vunpack.c.l.b16 %v2463
        %v2727 = vunpack.c.l.b16 %v2464
        %v2728 = vunpack.c.l.b16 %v2465
        %v2729 = vunpack.c.l.b16 %v2466
        %v2730 = vunpack.c.l.b16 %v2467
        %v2731 = vunpack.c.l.b16 %v2468
        %v2732 = vunpack.c.l.b16 %v2469
        %v2733 = vunpack.c.l.b16 %v2470
        %v2734 = vunpack.c.l.b16 %v2471
        %v2735 = vunpack.c.l.b16 %v2472
        %v2736 = vunpack.c.l.b16 %v2473
        %v2737 = vunpack.c.l.b16 %v2474
        %v2738 = vunpack.c.l.b16 %v2475
        %v2739 = vunpack.c.l.b16 %v2476
        %v2740 = vunpack.c.l.b16 %v2477
        %v2741 = vunpack.c.l.b16 %v2478
        %v2742 = vunpack.c.l.b16 %v2479
        %v2743 = vunpack.c.l.b16 %v2480
        %v2744 = vunpack.c.l.b16 %v2481
        %v2745 = vunpack.c.l.b16 %v2482
        %v2746 = vunpack.c.l.b16 %v2483
        %v2747 = vunpack.c.l.b16 %v2484
        %v2748 = vunpack.c.l.b16 %v2485
        %v2749 = vunpack.c.l.b16 %v2486
        %v2750 = vunpack.c.l.b16 %v2487
        %v2751 = vunpack.c.l.b16 %v2488
        %v2752 = vunpack.c.l.b16 %v2489
        %v2753 = vunpack.c.l.b16 %v2490
        %v2754 = vunpack.c.l.b16 %v2491
        %v2755 = vunpack.c.l.b16 %v2492
        %v2756 = vunpack.c.l.b16 %v2493
        %v2757 = vunpack.c.l.b16 %v2494
        %v2758 = vunpack.c.l.b16 %v2495
        %v2759 = vunpack.c.l.b16 %v2496
        %v2760 = vunpack.c.l.b16 %v2497
        %v2761 = vunpack.c.l.b16 %v2498
        %v2762 = vunpack.c.l.b16 %v2499
        %v2763 = vunpack.c.l.b16 %v2500
        %v2764 = vunpack.c.l.b16 %v2501
        %v2765 = vunpack.c.l.b16 %v2502
        %v2766 = vunpack.c.l.b16 %v2503
        %v2767 = vunpack.c.l.b16 %v2504
        %v2768 = vunpack.c.l.b16 %v2505
        %v2769 = vunpack.c.l.b16 %v2506
        %v2770 = vunpack.c.l.b16 %v2507
        %v2771 = vunpack.c.l.b16 %v2508
        %v2772 = vunpack.c.l.b16 %v2509
        %v2773 = vunpack.c.l.b16 %v2510
        %v2774 = vunpack.c.l.b16 %v2511
        %v2775 = vunpack.c.l.b16 %v2512
        %v2776 = vunpack.c.l.b16 %v2513
        %v2777 = vunpack.c.l.b16 %v2514
        %v2778 = vunpack.c.l.b16 %v2515
        %v2779 = vunpack.c.l.b16 %v2516
        %v2780 = vunpack.c.l.b16 %v2517
        %v2781 = vunpack.c.l.b16 %v2518
        %v2782 = vunpack.c.l.b16 %v2519
        %v2783 = vunpack.c.l.b16 %v2520
        %v2784 = vunpack.c.l.b16 %v2521
        %v2785 = vunpack.c.l.b16 %v2522
        %v2786 = vunpack.c.l.b16 %v2523
        %v2787 = vunpack.c.l.b16 %v2524
        %v2788 = vunpack.c.l.b16 %v2525
        %v2789 = vunpack.c.l.b16 %v2526
        %v2790 = vunpack.c.l.b16 %v2527
        %v2791 = vunpack.c.l.b16 %v2528
        %v2792 = vunpack.c.l.b16 %v2529
        %v2793 = vunpack.c.l.b16 %v2530
        %v2794 = vunpack.c.l.b16 %v2531
        %v2795 = vunpack.c.l.b16 %v2532
        %v2796 = vunpack.c.l.b16 %v2533
        %v2797 = vunpack.c.l.b16 %v2534
        %v2798 = vunpack.c.l.b16 %v2535
        %v2799 = vunpack.c.l.b16 %v2536
        %v2800 = vunpack.c.l.b16 %v2537
        %v2801 = vunpack.c.l.b16 %v2538
        %v2802 = vunpack.c.l.b16 %v2539
        %v2803 = vunpack.c.l.b16 %v2540
        %v2804 = vunpack.c.l.b16 %v2541
        %v2805 = vunpack.c.l.b16 %v2542
        %v2806 = vunpack.c.l.b16 %v2543
        %v2807 = vunpack.c.l.b16 %v2544
        %v2808 = vunpack.c.l.b16 %v2545
        %v2809 = vunpack.c.l.b16 %v2546
        %v2810 = vunpack.c.l.b16 %v2547
        %v2811 = vunpack.c.l.b16 %v2548
        %v2812 = vunpack.c.l.b16 %v2549
        %v2813 = vpack.c.b16 %v2686, %v2685
        %v2814 = vpack.c.b16 %v2688, %v2687
        %v2815 = vpack.c.b16 %v2690, %v2689
        %v2816 = vpack.c.b16 %v2692, %v2691
        %v2817 = vpack.c.b16 %v2694, %v2693
        %v2818 = vpack.c.b16 %v2696, %v2695
        %v2819 = vpack.c.b16 %v2698, %v2697
        %v2820 = vpack.c.b16 %v2700, %v2699
        %v2821 = vpack.c.b16 %v2702, %v2701
        %v2822 = vpack.c.b16 %v2704, %v2703
        %v2823 = vpack.c.b16 %v2706, %v2705
        %v2824 = vpack.c.b16 %v2708, %v2707
        %v2825 = vpack.c.b16 %v2710, %v2709
        %v2826 = vpack.c.b16 %v2712, %v2711
        %v2827 = vpack.c.b16 %v2714, %v2713
        %v2828 = vpack.c.b16 %v2716, %v2715
        %v2829 = vpack.c.b16 %v2718, %v2717
        %v2830 = vpack.c.b16 %v2720, %v2719
        %v2831 = vpack.c.b16 %v2722, %v2721
        %v2832 = vpack.c.b16 %v2724, %v2723
        %v2833 = vpack.c.b16 %v2726, %v2725
        %v2834 = vpack.c.b16 %v2728, %v2727
        %v2835 = vpack.c.b16 %v2730, %v2729
        %v2836 = vpack.c.b16 %v2732, %v2731
        %v2837 = vpack.c.b16 %v2734, %v2733
        %v2838 = vpack.c.b16 %v2736, %v2735
        %v2839 = vpack.c.b16 %v2738, %v2737
        %v2840 = vpack.c.b16 %v2740, %v2739
        %v2841 = vpack.c.b16 %v2742, %v2741
        %v2842 = vpack.c.b16 %v2744, %v2743
        %v2843 = vpack.c.b16 %v2746, %v2745
        %v2844 = vpack.c.b16 %v2748, %v2747
        %v2845 = vpack.c.b16 %v2750, %v2749
        %v2846 = vpack.c.b16 %v2752, %v2751
        %v2847 = vpack.c.b16 %v2754, %v2753
        %v2848 = vpack.c.b16 %v2756, %v2755
        %v2849 = vpack.c.b16 %v2758, %v2757
        %v2850 = vpack.c.b16 %v2760, %v2759
        %v2851 = vpack.c.b16 %v2762, %v2761
        %v2852 = vpack.c.b16 %v2764, %v2763
        %v2853 = vpack.c.b16 %v2766, %v2765
        %v2854 = vpack.c.b16 %v2768, %v2767
        %v2855 = vpack.c.b16 %v2770, %v2769
        %v2856 = vpack.c.b16 %v2772, %v2771
        %v2857 = vpack.c.b16 %v2774, %v2773
        %v2858 = vpack.c.b16 %v2776, %v2775
        %v2859 = vpack.c.b16 %v2778, %v2777
        %v2860 = vpack.c.b16 %v2780, %v2779
        %v2861 = vpack.c.b16 %v2782, %v2781
        %v2862 = vpack.c.b16 %v2784, %v2783
        %v2863 = vpack.c.b16 %v2786, %v2785
        %v2864 = vpack.c.b16 %v2788, %v2787
        %v2865 = vpack.c.b16 %v2790, %v2789
        %v2866 = vpack.c.b16 %v2792, %v2791
        %v2867 = vpack.c.b16 %v2794, %v2793
        %v2868 = vpack.c.b16 %v2796, %v2795
        %v2869 = vpack.c.b16 %v2798, %v2797
        %v2870 = vpack.c.b16 %v2800, %v2799
        %v2871 = vpack.c.b16 %v2802, %v2801
        %v2872 = vpack.c.b16 %v2804, %v2803
        %v2873 = vpack.c.b16 %v2806, %v2805
        %v2874 = vpack.c.b16 %v2808, %v2807
        %v2875 = vpack.c.b16 %v2810, %v2809
        %v2876 = vpack.c.b16 %v2812, %v2811
        %2941 = vmatprep.subr.bf16.mxu0 0
        %2942 = vmatpush1.bf16.msra.mxu0 %v2813
        %2943 = vmatprep.subr.bf16.mxu0 0
        %2944 = vmatpush1.bf16.msra.mxu0 %v2814
        %2945 = vmatprep.subr.bf16.mxu0 0
        %2946 = vmatpush1.bf16.msra.mxu0 %v2815
        %2947 = vmatprep.subr.bf16.mxu0 0
        %2948 = vmatpush1.bf16.msra.mxu0 %v2816
        %2949 = vmatprep.subr.bf16.mxu0 0
        %2950 = vmatpush1.bf16.msra.mxu0 %v2817
        %2951 = vmatprep.subr.bf16.mxu0 0
        %2952 = vmatpush1.bf16.msra.mxu0 %v2818
        %2953 = vmatprep.subr.bf16.mxu0 0
        %2954 = vmatpush1.bf16.msra.mxu0 %v2819
        %2955 = vmatprep.subr.bf16.mxu0 0
        %2956 = vmatpush1.bf16.msra.mxu0 %v2820
        %2957 = vmatprep.subr.bf16.mxu0 0
        %2958 = vmatpush1.bf16.msra.mxu0 %v2821
        %2959 = vmatprep.subr.bf16.mxu0 0
        %2960 = vmatpush1.bf16.msra.mxu0 %v2822
        %2961 = vmatprep.subr.bf16.mxu0 0
        %2962 = vmatpush1.bf16.msra.mxu0 %v2823
        %2963 = vmatprep.subr.bf16.mxu0 0
        %2964 = vmatpush1.bf16.msra.mxu0 %v2824
        %2965 = vmatprep.subr.bf16.mxu0 0
        %2966 = vmatpush1.bf16.msra.mxu0 %v2825
        %2967 = vmatprep.subr.bf16.mxu0 0
        %2968 = vmatpush1.bf16.msra.mxu0 %v2826
        %2969 = vmatprep.subr.bf16.mxu0 0
        %2970 = vmatpush1.bf16.msra.mxu0 %v2827
        %2971 = vmatprep.subr.bf16.mxu0 0
        %2972 = vmatpush1.bf16.msra.mxu0 %v2828
        %2973 = vmatprep.mubr.bf16.mxu0 %v2295
        %2974 = vmatmul.mubr.bf16.gmra.mrb[0].mxu0 %v2294
        %v2975 = vpop.f32.mrb[0].mxu0
        %v2976 = vadd.f32 %v2555, %v2975
        %v2977 = vpop.f32.mrb[0].mxu0
        %v2978 = vpop.f32.mrb[0].mxu0
        %v2979 = vadd.f32 %v2555, %v2978
        %v2980 = vpop.f32.mrb[0].mxu0
        %2981 = vmatprep.mubr.bf16.mxu0 %v2303
        %2982 = vmatmul.mubr.bf16.gmra.mrb[0].mxu0 %v2302
        %v2983 = vpop.f32.mrb[0].mxu0
        %v2984 = vadd.f32 %v2555, %v2983
        %v2985 = vpop.f32.mrb[0].mxu0
        %v2986 = vpop.f32.mrb[0].mxu0
        %v2987 = vadd.f32 %v2555, %v2986
        %v2988 = vpop.f32.mrb[0].mxu0
        %2989 = vmatprep.mubr.bf16.mxu0 %v2311
        %2990 = vmatmul.mubr.bf16.gmra.mrb[0].mxu0 %v2310
        %v2991 = vpop.f32.mrb[0].mxu0
        %v2992 = vadd.f32 %v2555, %v2991
        %v2993 = vpop.f32.mrb[0].mxu0
        %v2994 = vpop.f32.mrb[0].mxu0
        %v2995 = vadd.f32 %v2555, %v2994
        %v2996 = vpop.f32.mrb[0].mxu0
        %2997 = vmatprep.mubr.bf16.mxu0 %v2319
        %2998 = vmatmul.mubr.bf16.gmra.mrb[0].mxu0 %v2318
        %v2999 = vpop.f32.mrb[0].mxu0
        %v3000 = vadd.f32 %v2555, %v2999
        %v3001 = vpop.f32.mrb[0].mxu0
        %v3002 = vpop.f32.mrb[0].mxu0
        %v3003 = vadd.f32 %v2555, %v3002
        %v3004 = vpop.f32.mrb[0].mxu0
        %3005 = vmatprep.mubr.bf16.mxu0 %v2327
        %3006 = vmatmul.mubr.bf16.gmra.mrb[0].mxu0 %v2326
        %v3007 = vpop.f32.mrb[0].mxu0
        %v3008 = vadd.f32 %v2555, %v3007
        %v3009 = vpop.f32.mrb[0].mxu0
        %v3010 = vpop.f32.mrb[0].mxu0
        %v3011 = vadd.f32 %v2555, %v3010
        %v3012 = vpop.f32.mrb[0].mxu0
        %3013 = vmatprep.mubr.bf16.mxu0 %v2335
        %3014 = vmatmul.mubr.bf16.gmra.mrb[0].mxu0 %v2334
        %v3015 = vpop.f32.mrb[0].mxu0
        %v3016 = vadd.f32 %v2555, %v3015
        %v3017 = vpop.f32.mrb[0].mxu0
        %v3018 = vpop.f32.mrb[0].mxu0
        %v3019 = vadd.f32 %v2555, %v3018
        %v3020 = vpop.f32.mrb[0].mxu0
        %3021 = vmatprep.mubr.bf16.mxu0 %v2343
        %3022 = vmatmul.mubr.bf16.gmra.mrb[0].mxu0 %v2342
        %v3023 = vpop.f32.mrb[0].mxu0
        %v3024 = vadd.f32 %v2555, %v3023
        %v3025 = vpop.f32.mrb[0].mxu0
        %v3026 = vpop.f32.mrb[0].mxu0
        %v3027 = vadd.f32 %v2555, %v3026
        %v3028 = vpop.f32.mrb[0].mxu0
        %3029 = vmatprep.mubr.bf16.mxu0 %v2351
        %3030 = vmatmul.mubr.bf16.gmra.mrb[0].mxu0 %v2350
        %v3031 = vpop.f32.mrb[0].mxu0
        %v3032 = vadd.f32 %v2555, %v3031
        %v3033 = vpop.f32.mrb[0].mxu0
        %v3034 = vpop.f32.mrb[0].mxu0
        %v3035 = vadd.f32 %v2555, %v3034
        %v3036 = vpop.f32.mrb[0].mxu0
        %3037 = vmatprep.mubr.bf16.mxu0 %v2359
        %3038 = vmatmul.mubr.bf16.gmra.mrb[0].mxu0 %v2358
        %v3039 = vpop.f32.mrb[0].mxu0
        %v3040 = vadd.f32 %v2555, %v3039
        %v3041 = vpop.f32.mrb[0].mxu0
        %v3042 = vpop.f32.mrb[0].mxu0
        %v3043 = vadd.f32 %v2555, %v3042
        %v3044 = vpop.f32.mrb[0].mxu0
        %3045 = vmatprep.mubr.bf16.mxu0 %v2367
        %3046 = vmatmul.mubr.bf16.gmra.mrb[0].mxu0 %v2366
        %v3047 = vpop.f32.mrb[0].mxu0
        %v3048 = vadd.f32 %v2555, %v3047
        %v3049 = vpop.f32.mrb[0].mxu0
        %v3050 = vpop.f32.mrb[0].mxu0
        %v3051 = vadd.f32 %v2555, %v3050
        %v3052 = vpop.f32.mrb[0].mxu0
        %3053 = vmatprep.mubr.bf16.mxu0 %v2375
        %3054 = vmatmul.mubr.bf16.gmra.mrb[0].mxu0 %v2374
        %v3055 = vpop.f32.mrb[0].mxu0
        %v3056 = vadd.f32 %v2555, %v3055
        %v3057 = vpop.f32.mrb[0].mxu0
        %v3058 = vpop.f32.mrb[0].mxu0
        %v3059 = vadd.f32 %v2555, %v3058
        %v3060 = vpop.f32.mrb[0].mxu0
        %3061 = vmatprep.mubr.bf16.mxu0 %v2383
        %3062 = vmatmul.mubr.bf16.gmra.mrb[0].mxu0 %v2382
        %v3063 = vpop.f32.mrb[0].mxu0
        %v3064 = vadd.f32 %v2555, %v3063
        %v3065 = vpop.f32.mrb[0].mxu0
        %v3066 = vpop.f32.mrb[0].mxu0
        %v3067 = vadd.f32 %v2555, %v3066
        %v3068 = vpop.f32.mrb[0].mxu0
        %3069 = vmatprep.mubr.bf16.mxu0 %v2391
        %3070 = vmatmul.mubr.bf16.gmra.mrb[0].mxu0 %v2390
        %v3071 = vpop.f32.mrb[0].mxu0
        %v3072 = vadd.f32 %v2555, %v3071
        %v3073 = vpop.f32.mrb[0].mxu0
        %v3074 = vpop.f32.mrb[0].mxu0
        %v3075 = vadd.f32 %v2555, %v3074
        %v3076 = vpop.f32.mrb[0].mxu0
        %3077 = vmatprep.mubr.bf16.mxu0 %v2399
        %3078 = vmatmul.mubr.bf16.gmra.mrb[0].mxu0 %v2398
        %v3079 = vpop.f32.mrb[0].mxu0
        %v3080 = vadd.f32 %v2555, %v3079
        %v3081 = vpop.f32.mrb[0].mxu0
        %v3082 = vpop.f32.mrb[0].mxu0
        %v3083 = vadd.f32 %v2555, %v3082
        %v3084 = vpop.f32.mrb[0].mxu0
        %3085 = vmatprep.mubr.bf16.mxu0 %v2407
        %3086 = vmatmul.mubr.bf16.gmra.mrb[0].mxu0 %v2406
        %v3087 = vpop.f32.mrb[0].mxu0
        %v3088 = vadd.f32 %v2555, %v3087
        %v3089 = vpop.f32.mrb[0].mxu0
        %v3090 = vpop.f32.mrb[0].mxu0
        %v3091 = vadd.f32 %v2555, %v3090
        %v3092 = vpop.f32.mrb[0].mxu0
        %3093 = vmatprep.mubr.bf16.mxu0 %v2415
        %3094 = vmatmul.mubr.bf16.gmra.mrb[0].mxu0 %v2414
        %v3095 = vpop.f32.mrb[0].mxu0
        %v3096 = vadd.f32 %v2555, %v3095
        %v3097 = vpop.f32.mrb[0].mxu0
        %v3098 = vpop.f32.mrb[0].mxu0
        %v3099 = vadd.f32 %v2555, %v3098
        %v3100 = vpop.f32.mrb[0].mxu0
        %3101 = vdwg.mxu0
        %3102 = vmatprep.subr.bf16.mxu0 0
        %3103 = vmatpush1.bf16.msra.mxu0 %v2829
        %3104 = vmatprep.subr.bf16.mxu0 0
        %3105 = vmatpush1.bf16.msra.mxu0 %v2830
        %3106 = vmatprep.subr.bf16.mxu0 0
        %3107 = vmatpush1.bf16.msra.mxu0 %v2831
        %3108 = vmatprep.subr.bf16.mxu0 0
        %3109 = vmatpush1.bf16.msra.mxu0 %v2832
        %3110 = vmatprep.subr.bf16.mxu0 0
        %3111 = vmatpush1.bf16.msra.mxu0 %v2833
        %3112 = vmatprep.subr.bf16.mxu0 0
        %3113 = vmatpush1.bf16.msra.mxu0 %v2834
        %3114 = vmatprep.subr.bf16.mxu0 0
        %3115 = vmatpush1.bf16.msra.mxu0 %v2835
        %3116 = vmatprep.subr.bf16.mxu0 0
        %3117 = vmatpush1.bf16.msra.mxu0 %v2836
        %3118 = vmatprep.subr.bf16.mxu0 0
        %3119 = vmatpush1.bf16.msra.mxu0 %v2837
        %3120 = vmatprep.subr.bf16.mxu0 0
        %3121 = vmatpush1.bf16.msra.mxu0 %v2838
        %3122 = vmatprep.subr.bf16.mxu0 0
        %3123 = vmatpush1.bf16.msra.mxu0 %v2839
        %3124 = vmatprep.subr.bf16.mxu0 0
        %3125 = vmatpush1.bf16.msra.mxu0 %v2840
        %3126 = vmatprep.subr.bf16.mxu0 0
        %3127 = vmatpush1.bf16.msra.mxu0 %v2841
        %3128 = vmatprep.subr.bf16.mxu0 0
        %3129 = vmatpush1.bf16.msra.mxu0 %v2842
        %3130 = vmatprep.subr.bf16.mxu0 0
        %3131 = vmatpush1.bf16.msra.mxu0 %v2843
        %3132 = vmatprep.subr.bf16.mxu0 0
        %3133 = vmatpush1.bf16.msra.mxu0 %v2844
        %3134 = vmatprep.mubr.bf16.mxu0 %v2297
        %3135 = vmatmul.mubr.bf16.gmra.mrb[0].mxu0 %v2296
        %v3136 = vpop.f32.mrb[0].mxu0
        %v3137 = vadd.f32 %v2976, %v3136
        %v3138 = vpop.f32.mrb[0].mxu0
        %v3139 = vpop.f32.mrb[0].mxu0
        %v3140 = vadd.f32 %v2979, %v3139
        %v3141 = vpop.f32.mrb[0].mxu0
        %3142 = vmatprep.mubr.bf16.mxu0 %v2305
        %3143 = vmatmul.mubr.bf16.gmra.mrb[0].mxu0 %v2304
        %v3144 = vpop.f32.mrb[0].mxu0
        %v3145 = vadd.f32 %v2984, %v3144
        %v3146 = vpop.f32.mrb[0].mxu0
        %v3147 = vpop.f32.mrb[0].mxu0
        %v3148 = vadd.f32 %v2987, %v3147
        %v3149 = vpop.f32.mrb[0].mxu0
        %3150 = vmatprep.mubr.bf16.mxu0 %v2313
        %3151 = vmatmul.mubr.bf16.gmra.mrb[0].mxu0 %v2312
        %v3152 = vpop.f32.mrb[0].mxu0
        %v3153 = vadd.f32 %v2992, %v3152
        %v3154 = vpop.f32.mrb[0].mxu0
        %v3155 = vpop.f32.mrb[0].mxu0
        %v3156 = vadd.f32 %v2995, %v3155
        %v3157 = vpop.f32.mrb[0].mxu0
        %3158 = vmatprep.mubr.bf16.mxu0 %v2321
        %3159 = vmatmul.mubr.bf16.gmra.mrb[0].mxu0 %v2320
        %v3160 = vpop.f32.mrb[0].mxu0
        %v3161 = vadd.f32 %v3000, %v3160
        %v3162 = vpop.f32.mrb[0].mxu0
        %v3163 = vpop.f32.mrb[0].mxu0
        %v3164 = vadd.f32 %v3003, %v3163
        %v3165 = vpop.f32.mrb[0].mxu0
        %3166 = vmatprep.mubr.bf16.mxu0 %v2329
        %3167 = vmatmul.mubr.bf16.gmra.mrb[0].mxu0 %v2328
        %v3168 = vpop.f32.mrb[0].mxu0
        %v3169 = vadd.f32 %v3008, %v3168
        %v3170 = vpop.f32.mrb[0].mxu0
        %v3171 = vpop.f32.mrb[0].mxu0
        %v3172 = vadd.f32 %v3011, %v3171
        %v3173 = vpop.f32.mrb[0].mxu0
        %3174 = vmatprep.mubr.bf16.mxu0 %v2337
        %3175 = vmatmul.mubr.bf16.gmra.mrb[0].mxu0 %v2336
        %v3176 = vpop.f32.mrb[0].mxu0
        %v3177 = vadd.f32 %v3016, %v3176
        %v3178 = vpop.f32.mrb[0].mxu0
        %v3179 = vpop.f32.mrb[0].mxu0
        %v3180 = vadd.f32 %v3019, %v3179
        %v3181 = vpop.f32.mrb[0].mxu0
        %3182 = vmatprep.mubr.bf16.mxu0 %v2345
        %3183 = vmatmul.mubr.bf16.gmra.mrb[0].mxu0 %v2344
        %v3184 = vpop.f32.mrb[0].mxu0
        %v3185 = vadd.f32 %v3024, %v3184
        %v3186 = vpop.f32.mrb[0].mxu0
        %v3187 = vpop.f32.mrb[0].mxu0
        %v3188 = vadd.f32 %v3027, %v3187
        %v3189 = vpop.f32.mrb[0].mxu0
        %3190 = vmatprep.mubr.bf16.mxu0 %v2353
        %3191 = vmatmul.mubr.bf16.gmra.mrb[0].mxu0 %v2352
        %v3192 = vpop.f32.mrb[0].mxu0
        %v3193 = vadd.f32 %v3032, %v3192
        %v3194 = vpop.f32.mrb[0].mxu0
        %v3195 = vpop.f32.mrb[0].mxu0
        %v3196 = vadd.f32 %v3035, %v3195
        %v3197 = vpop.f32.mrb[0].mxu0
        %3198 = vmatprep.mubr.bf16.mxu0 %v2361
        %3199 = vmatmul.mubr.bf16.gmra.mrb[0].mxu0 %v2360
        %v3200 = vpop.f32.mrb[0].mxu0
        %v3201 = vadd.f32 %v3040, %v3200
        %v3202 = vpop.f32.mrb[0].mxu0
        %v3203 = vpop.f32.mrb[0].mxu0
        %v3204 = vadd.f32 %v3043, %v3203
        %v3205 = vpop.f32.mrb[0].mxu0
        %3206 = vmatprep.mubr.bf16.mxu0 %v2369
        %3207 = vmatmul.mubr.bf16.gmra.mrb[0].mxu0 %v2368
        %v3208 = vpop.f32.mrb[0].mxu0
        %v3209 = vadd.f32 %v3048, %v3208
        %v3210 = vpop.f32.mrb[0].mxu0
        %v3211 = vpop.f32.mrb[0].mxu0
        %v3212 = vadd.f32 %v3051, %v3211
        %v3213 = vpop.f32.mrb[0].mxu0
        %3214 = vmatprep.mubr.bf16.mxu0 %v2377
        %3215 = vmatmul.mubr.bf16.gmra.mrb[0].mxu0 %v2376
        %v3216 = vpop.f32.mrb[0].mxu0
        %v3217 = vadd.f32 %v3056, %v3216
        %v3218 = vpop.f32.mrb[0].mxu0
        %v3219 = vpop.f32.mrb[0].mxu0
        %v3220 = vadd.f32 %v3059, %v3219
        %v3221 = vpop.f32.mrb[0].mxu0
        %3222 = vmatprep.mubr.bf16.mxu0 %v2385
        %3223 = vmatmul.mubr.bf16.gmra.mrb[0].mxu0 %v2384
        %v3224 = vpop.f32.mrb[0].mxu0
        %v3225 = vadd.f32 %v3064, %v3224
        %v3226 = vpop.f32.mrb[0].mxu0
        %v3227 = vpop.f32.mrb[0].mxu0
        %v3228 = vadd.f32 %v3067, %v3227
        %v3229 = vpop.f32.mrb[0].mxu0
        %3230 = vmatprep.mubr.bf16.mxu0 %v2393
        %3231 = vmatmul.mubr.bf16.gmra.mrb[0].mxu0 %v2392
        %v3232 = vpop.f32.mrb[0].mxu0
        %v3233 = vadd.f32 %v3072, %v3232
        %v3234 = vpop.f32.mrb[0].mxu0
        %v3235 = vpop.f32.mrb[0].mxu0
        %v3236 = vadd.f32 %v3075, %v3235
        %v3237 = vpop.f32.mrb[0].mxu0
        %3238 = vmatprep.mubr.bf16.mxu0 %v2401
        %3239 = vmatmul.mubr.bf16.gmra.mrb[0].mxu0 %v2400
        %v3240 = vpop.f32.mrb[0].mxu0
        %v3241 = vadd.f32 %v3080, %v3240
        %v3242 = vpop.f32.mrb[0].mxu0
        %v3243 = vpop.f32.mrb[0].mxu0
        %v3244 = vadd.f32 %v3083, %v3243
        %v3245 = vpop.f32.mrb[0].mxu0
        %3246 = vmatprep.mubr.bf16.mxu0 %v2409
        %3247 = vmatmul.mubr.bf16.gmra.mrb[0].mxu0 %v2408
        %v3248 = vpop.f32.mrb[0].mxu0
        %v3249 = vadd.f32 %v3088, %v3248
        %v3250 = vpop.f32.mrb[0].mxu0
        %v3251 = vpop.f32.mrb[0].mxu0
        %v3252 = vadd.f32 %v3091, %v3251
        %v3253 = vpop.f32.mrb[0].mxu0
        %3254 = vmatprep.mubr.bf16.mxu0 %v2417
        %3255 = vmatmul.mubr.bf16.gmra.mrb[0].mxu0 %v2416
        %v3256 = vpop.f32.mrb[0].mxu0
        %v3257 = vadd.f32 %v3096, %v3256
        %v3258 = vpop.f32.mrb[0].mxu0
        %v3259 = vpop.f32.mrb[0].mxu0
        %v3260 = vadd.f32 %v3099, %v3259
        %v3261 = vpop.f32.mrb[0].mxu0
        %3262 = vdwg.mxu0
        %3263 = vmatprep.subr.bf16.mxu0 0
        %3264 = vmatpush1.bf16.msra.mxu0 %v2845
        %3265 = vmatprep.subr.bf16.mxu0 0
        %3266 = vmatpush1.bf16.msra.mxu0 %v2846
        %3267 = vmatprep.subr.bf16.mxu0 0
        %3268 = vmatpush1.bf16.msra.mxu0 %v2847
        %3269 = vmatprep.subr.bf16.mxu0 0
        %3270 = vmatpush1.bf16.msra.mxu0 %v2848
        %3271 = vmatprep.subr.bf16.mxu0 0
        %3272 = vmatpush1.bf16.msra.mxu0 %v2849
        %3273 = vmatprep.subr.bf16.mxu0 0
        %3274 = vmatpush1.bf16.msra.mxu0 %v2850
        %3275 = vmatprep.subr.bf16.mxu0 0
        %3276 = vmatpush1.bf16.msra.mxu0 %v2851
        %3277 = vmatprep.subr.bf16.mxu0 0
        %3278 = vmatpush1.bf16.msra.mxu0 %v2852
        %3279 = vmatprep.subr.bf16.mxu0 0
        %3280 = vmatpush1.bf16.msra.mxu0 %v2853
        %3281 = vmatprep.subr.bf16.mxu0 0
        %3282 = vmatpush1.bf16.msra.mxu0 %v2854
        %3283 = vmatprep.subr.bf16.mxu0 0
        %3284 = vmatpush1.bf16.msra.mxu0 %v2855
        %3285 = vmatprep.subr.bf16.mxu0 0
        %3286 = vmatpush1.bf16.msra.mxu0 %v2856
        %3287 = vmatprep.subr.bf16.mxu0 0
        %3288 = vmatpush1.bf16.msra.mxu0 %v2857
        %3289 = vmatprep.subr.bf16.mxu0 0
        %3290 = vmatpush1.bf16.msra.mxu0 %v2858
        %3291 = vmatprep.subr.bf16.mxu0 0
        %3292 = vmatpush1.bf16.msra.mxu0 %v2859
        %3293 = vmatprep.subr.bf16.mxu0 0
        %3294 = vmatpush1.bf16.msra.mxu0 %v2860
        %3295 = vmatprep.mubr.bf16.mxu0 %v2299
        %3296 = vmatmul.mubr.bf16.gmra.mrb[0].mxu0 %v2298
        %v3297 = vpop.f32.mrb[0].mxu0
        %v3298 = vadd.f32 %v3137, %v3297
        %v3299 = vpop.f32.mrb[0].mxu0
        %v3300 = vpop.f32.mrb[0].mxu0
        %v3301 = vadd.f32 %v3140, %v3300
        %v3302 = vpop.f32.mrb[0].mxu0
        %3303 = vmatprep.mubr.bf16.mxu0 %v2307
        %3304 = vmatmul.mubr.bf16.gmra.mrb[0].mxu0 %v2306
        %v3305 = vpop.f32.mrb[0].mxu0
        %v3306 = vadd.f32 %v3145, %v3305
        %v3307 = vpop.f32.mrb[0].mxu0
        %v3308 = vpop.f32.mrb[0].mxu0
        %v3309 = vadd.f32 %v3148, %v3308
        %v3310 = vpop.f32.mrb[0].mxu0
        %3311 = vmatprep.mubr.bf16.mxu0 %v2315
        %3312 = vmatmul.mubr.bf16.gmra.mrb[0].mxu0 %v2314
        %v3313 = vpop.f32.mrb[0].mxu0
        %v3314 = vadd.f32 %v3153, %v3313
        %v3315 = vpop.f32.mrb[0].mxu0
        %v3316 = vpop.f32.mrb[0].mxu0
        %v3317 = vadd.f32 %v3156, %v3316
        %v3318 = vpop.f32.mrb[0].mxu0
        %3319 = vmatprep.mubr.bf16.mxu0 %v2323
        %3320 = vmatmul.mubr.bf16.gmra.mrb[0].mxu0 %v2322
        %v3321 = vpop.f32.mrb[0].mxu0
        %v3322 = vadd.f32 %v3161, %v3321
        %v3323 = vpop.f32.mrb[0].mxu0
        %v3324 = vpop.f32.mrb[0].mxu0
        %v3325 = vadd.f32 %v3164, %v3324
        %v3326 = vpop.f32.mrb[0].mxu0
        %3327 = vmatprep.mubr.bf16.mxu0 %v2331
        %3328 = vmatmul.mubr.bf16.gmra.mrb[0].mxu0 %v2330
        %v3329 = vpop.f32.mrb[0].mxu0
        %v3330 = vadd.f32 %v3169, %v3329
        %v3331 = vpop.f32.mrb[0].mxu0
        %v3332 = vpop.f32.mrb[0].mxu0
        %v3333 = vadd.f32 %v3172, %v3332
        %v3334 = vpop.f32.mrb[0].mxu0
        %3335 = vmatprep.mubr.bf16.mxu0 %v2339
        %3336 = vmatmul.mubr.bf16.gmra.mrb[0].mxu0 %v2338
        %v3337 = vpop.f32.mrb[0].mxu0
        %v3338 = vadd.f32 %v3177, %v3337
        %v3339 = vpop.f32.mrb[0].mxu0
        %v3340 = vpop.f32.mrb[0].mxu0
        %v3341 = vadd.f32 %v3180, %v3340
        %v3342 = vpop.f32.mrb[0].mxu0
        %3343 = vmatprep.mubr.bf16.mxu0 %v2347
        %3344 = vmatmul.mubr.bf16.gmra.mrb[0].mxu0 %v2346
        %v3345 = vpop.f32.mrb[0].mxu0
        %v3346 = vadd.f32 %v3185, %v3345
        %v3347 = vpop.f32.mrb[0].mxu0
        %v3348 = vpop.f32.mrb[0].mxu0
        %v3349 = vadd.f32 %v3188, %v3348
        %v3350 = vpop.f32.mrb[0].mxu0
        %3351 = vmatprep.mubr.bf16.mxu0 %v2355
        %3352 = vmatmul.mubr.bf16.gmra.mrb[0].mxu0 %v2354
        %v3353 = vpop.f32.mrb[0].mxu0
        %v3354 = vadd.f32 %v3193, %v3353
        %v3355 = vpop.f32.mrb[0].mxu0
        %v3356 = vpop.f32.mrb[0].mxu0
        %v3357 = vadd.f32 %v3196, %v3356
        %v3358 = vpop.f32.mrb[0].mxu0
        %3359 = vmatprep.mubr.bf16.mxu0 %v2363
        %3360 = vmatmul.mubr.bf16.gmra.mrb[0].mxu0 %v2362
        %v3361 = vpop.f32.mrb[0].mxu0
        %v3362 = vadd.f32 %v3201, %v3361
        %v3363 = vpop.f32.mrb[0].mxu0
        %v3364 = vpop.f32.mrb[0].mxu0
        %v3365 = vadd.f32 %v3204, %v3364
        %v3366 = vpop.f32.mrb[0].mxu0
        %3367 = vmatprep.mubr.bf16.mxu0 %v2371
        %3368 = vmatmul.mubr.bf16.gmra.mrb[0].mxu0 %v2370
        %v3369 = vpop.f32.mrb[0].mxu0
        %v3370 = vadd.f32 %v3209, %v3369
        %v3371 = vpop.f32.mrb[0].mxu0
        %v3372 = vpop.f32.mrb[0].mxu0
        %v3373 = vadd.f32 %v3212, %v3372
        %v3374 = vpop.f32.mrb[0].mxu0
        %3375 = vmatprep.mubr.bf16.mxu0 %v2379
        %3376 = vmatmul.mubr.bf16.gmra.mrb[0].mxu0 %v2378
        %v3377 = vpop.f32.mrb[0].mxu0
        %v3378 = vadd.f32 %v3217, %v3377
        %v3379 = vpop.f32.mrb[0].mxu0
        %v3380 = vpop.f32.mrb[0].mxu0
        %v3381 = vadd.f32 %v3220, %v3380
        %v3382 = vpop.f32.mrb[0].mxu0
        %3383 = vmatprep.mubr.bf16.mxu0 %v2387
        %3384 = vmatmul.mubr.bf16.gmra.mrb[0].mxu0 %v2386
        %v3385 = vpop.f32.mrb[0].mxu0
        %v3386 = vadd.f32 %v3225, %v3385
        %v3387 = vpop.f32.mrb[0].mxu0
        %v3388 = vpop.f32.mrb[0].mxu0
        %v3389 = vadd.f32 %v3228, %v3388
        %v3390 = vpop.f32.mrb[0].mxu0
        %3391 = vmatprep.mubr.bf16.mxu0 %v2395
        %3392 = vmatmul.mubr.bf16.gmra.mrb[0].mxu0 %v2394
        %v3393 = vpop.f32.mrb[0].mxu0
        %v3394 = vadd.f32 %v3233, %v3393
        %v3395 = vpop.f32.mrb[0].mxu0
        %v3396 = vpop.f32.mrb[0].mxu0
        %v3397 = vadd.f32 %v3236, %v3396
        %v3398 = vpop.f32.mrb[0].mxu0
        %3399 = vmatprep.mubr.bf16.mxu0 %v2403
        %3400 = vmatmul.mubr.bf16.gmra.mrb[0].mxu0 %v2402
        %v3401 = vpop.f32.mrb[0].mxu0
        %v3402 = vadd.f32 %v3241, %v3401
        %v3403 = vpop.f32.mrb[0].mxu0
        %v3404 = vpop.f32.mrb[0].mxu0
        %v3405 = vadd.f32 %v3244, %v3404
        %v3406 = vpop.f32.mrb[0].mxu0
        %3407 = vmatprep.mubr.bf16.mxu0 %v2411
        %3408 = vmatmul.mubr.bf16.gmra.mrb[0].mxu0 %v2410
        %v3409 = vpop.f32.mrb[0].mxu0
        %v3410 = vadd.f32 %v3249, %v3409
        %v3411 = vpop.f32.mrb[0].mxu0
        %v3412 = vpop.f32.mrb[0].mxu0
        %v3413 = vadd.f32 %v3252, %v3412
        %v3414 = vpop.f32.mrb[0].mxu0
        %3415 = vmatprep.mubr.bf16.mxu0 %v2419
        %3416 = vmatmul.mubr.bf16.gmra.mrb[0].mxu0 %v2418
        %v3417 = vpop.f32.mrb[0].mxu0
        %v3418 = vadd.f32 %v3257, %v3417
        %v3419 = vpop.f32.mrb[0].mxu0
        %v3420 = vpop.f32.mrb[0].mxu0
        %v3421 = vadd.f32 %v3260, %v3420
        %v3422 = vpop.f32.mrb[0].mxu0
        %3423 = vdwg.mxu0
        %3424 = vmatprep.subr.bf16.mxu0 0
        %3425 = vmatpush1.bf16.msra.mxu0 %v2861
        %3426 = vmatprep.subr.bf16.mxu0 0
        %3427 = vmatpush1.bf16.msra.mxu0 %v2862
        %3428 = vmatprep.subr.bf16.mxu0 0
        %3429 = vmatpush1.bf16.msra.mxu0 %v2863
        %3430 = vmatprep.subr.bf16.mxu0 0
        %3431 = vmatpush1.bf16.msra.mxu0 %v2864
        %3432 = vmatprep.subr.bf16.mxu0 0
        %3433 = vmatpush1.bf16.msra.mxu0 %v2865
        %3434 = vmatprep.subr.bf16.mxu0 0
        %3435 = vmatpush1.bf16.msra.mxu0 %v2866
        %3436 = vmatprep.subr.bf16.mxu0 0
        %3437 = vmatpush1.bf16.msra.mxu0 %v2867
        %3438 = vmatprep.subr.bf16.mxu0 0
        %3439 = vmatpush1.bf16.msra.mxu0 %v2868
        %3440 = vmatprep.subr.bf16.mxu0 0
        %3441 = vmatpush1.bf16.msra.mxu0 %v2869
        %3442 = vmatprep.subr.bf16.mxu0 0
        %3443 = vmatpush1.bf16.msra.mxu0 %v2870
        %3444 = vmatprep.subr.bf16.mxu0 0
        %3445 = vmatpush1.bf16.msra.mxu0 %v2871
        %3446 = vmatprep.subr.bf16.mxu0 0
        %3447 = vmatpush1.bf16.msra.mxu0 %v2872
        %3448 = vmatprep.subr.bf16.mxu0 0
        %3449 = vmatpush1.bf16.msra.mxu0 %v2873
        %3450 = vmatprep.subr.bf16.mxu0 0
        %3451 = vmatpush1.bf16.msra.mxu0 %v2874
        %3452 = vmatprep.subr.bf16.mxu0 0
        %3453 = vmatpush1.bf16.msra.mxu0 %v2875
        %3454 = vmatprep.subr.bf16.mxu0 0
        %3455 = vmatpush1.bf16.msra.mxu0 %v2876
        %3456 = vmatprep.mubr.bf16.mxu0 %v2301
        %3457 = vmatmul.mubr.bf16.gmra.mrb[0].mxu0 %v2300
        %v3458 = vpop.f32.mrb[0].mxu0
        %v3459 = vadd.f32 %v3298, %v3458
        %v3460 = vpop.f32.mrb[0].mxu0
        %v3461 = vpop.f32.mrb[0].mxu0
        %v3462 = vadd.f32 %v3301, %v3461
        %v3463 = vpop.f32.mrb[0].mxu0
        %3464 = vmatprep.mubr.bf16.mxu0 %v2309
        %3465 = vmatmul.mubr.bf16.gmra.mrb[0].mxu0 %v2308
        %v3466 = vpop.f32.mrb[0].mxu0
        %v3467 = vadd.f32 %v3306, %v3466
        %v3468 = vpop.f32.mrb[0].mxu0
        %v3469 = vpop.f32.mrb[0].mxu0
        %v3470 = vadd.f32 %v3309, %v3469
        %v3471 = vpop.f32.mrb[0].mxu0
        %3472 = vmatprep.mubr.bf16.mxu0 %v2317
        %3473 = vmatmul.mubr.bf16.gmra.mrb[0].mxu0 %v2316
        %v3474 = vpop.f32.mrb[0].mxu0
        %v3475 = vadd.f32 %v3314, %v3474
        %v3476 = vpop.f32.mrb[0].mxu0
        %v3477 = vpop.f32.mrb[0].mxu0
        %v3478 = vadd.f32 %v3317, %v3477
        %v3479 = vpop.f32.mrb[0].mxu0
        %3480 = vmatprep.mubr.bf16.mxu0 %v2325
        %3481 = vmatmul.mubr.bf16.gmra.mrb[0].mxu0 %v2324
        %v3482 = vpop.f32.mrb[0].mxu0
        %v3483 = vadd.f32 %v3322, %v3482
        %v3484 = vpop.f32.mrb[0].mxu0
        %v3485 = vpop.f32.mrb[0].mxu0
        %v3486 = vadd.f32 %v3325, %v3485
        %v3487 = vpop.f32.mrb[0].mxu0
        %3488 = vmatprep.mubr.bf16.mxu0 %v2333
        %3489 = vmatmul.mubr.bf16.gmra.mrb[0].mxu0 %v2332
        %v3490 = vpop.f32.mrb[0].mxu0
        %v3491 = vadd.f32 %v3330, %v3490
        %v3492 = vpop.f32.mrb[0].mxu0
        %v3493 = vpop.f32.mrb[0].mxu0
        %v3494 = vadd.f32 %v3333, %v3493
        %v3495 = vpop.f32.mrb[0].mxu0
        %3496 = vmatprep.mubr.bf16.mxu0 %v2341
        %3497 = vmatmul.mubr.bf16.gmra.mrb[0].mxu0 %v2340
        %v3498 = vpop.f32.mrb[0].mxu0
        %v3499 = vadd.f32 %v3338, %v3498
        %v3500 = vpop.f32.mrb[0].mxu0
        %v3501 = vpop.f32.mrb[0].mxu0
        %v3502 = vadd.f32 %v3341, %v3501
        %v3503 = vpop.f32.mrb[0].mxu0
        %3504 = vmatprep.mubr.bf16.mxu0 %v2349
        %3505 = vmatmul.mubr.bf16.gmra.mrb[0].mxu0 %v2348
        %v3506 = vpop.f32.mrb[0].mxu0
        %v3507 = vadd.f32 %v3346, %v3506
        %v3508 = vpop.f32.mrb[0].mxu0
        %v3509 = vpop.f32.mrb[0].mxu0
        %v3510 = vadd.f32 %v3349, %v3509
        %v3511 = vpop.f32.mrb[0].mxu0
        %3512 = vmatprep.mubr.bf16.mxu0 %v2357
        %3513 = vmatmul.mubr.bf16.gmra.mrb[0].mxu0 %v2356
        %v3514 = vpop.f32.mrb[0].mxu0
        %v3515 = vadd.f32 %v3354, %v3514
        %v3516 = vpop.f32.mrb[0].mxu0
        %v3517 = vpop.f32.mrb[0].mxu0
        %v3518 = vadd.f32 %v3357, %v3517
        %v3519 = vpop.f32.mrb[0].mxu0
        %3520 = vmatprep.mubr.bf16.mxu0 %v2365
        %3521 = vmatmul.mubr.bf16.gmra.mrb[0].mxu0 %v2364
        %v3522 = vpop.f32.mrb[0].mxu0
        %v3523 = vadd.f32 %v3362, %v3522
        %v3524 = vpop.f32.mrb[0].mxu0
        %v3525 = vpop.f32.mrb[0].mxu0
        %v3526 = vadd.f32 %v3365, %v3525
        %v3527 = vpop.f32.mrb[0].mxu0
        %3528 = vmatprep.mubr.bf16.mxu0 %v2373
        %3529 = vmatmul.mubr.bf16.gmra.mrb[0].mxu0 %v2372
        %v3530 = vpop.f32.mrb[0].mxu0
        %v3531 = vadd.f32 %v3370, %v3530
        %v3532 = vpop.f32.mrb[0].mxu0
        %v3533 = vpop.f32.mrb[0].mxu0
        %v3534 = vadd.f32 %v3373, %v3533
        %v3535 = vpop.f32.mrb[0].mxu0
        %3536 = vmatprep.mubr.bf16.mxu0 %v2381
        %3537 = vmatmul.mubr.bf16.gmra.mrb[0].mxu0 %v2380
        %v3538 = vpop.f32.mrb[0].mxu0
        %v3539 = vadd.f32 %v3378, %v3538
        %v3540 = vpop.f32.mrb[0].mxu0
        %v3541 = vpop.f32.mrb[0].mxu0
        %v3542 = vadd.f32 %v3381, %v3541
        %v3543 = vpop.f32.mrb[0].mxu0
        %3544 = vmatprep.mubr.bf16.mxu0 %v2389
        %3545 = vmatmul.mubr.bf16.gmra.mrb[0].mxu0 %v2388
        %v3546 = vpop.f32.mrb[0].mxu0
        %v3547 = vadd.f32 %v3386, %v3546
        %v3548 = vpop.f32.mrb[0].mxu0
        %v3549 = vpop.f32.mrb[0].mxu0
        %v3550 = vadd.f32 %v3389, %v3549
        %v3551 = vpop.f32.mrb[0].mxu0
        %3552 = vmatprep.mubr.bf16.mxu0 %v2397
        %3553 = vmatmul.mubr.bf16.gmra.mrb[0].mxu0 %v2396
        %v3554 = vpop.f32.mrb[0].mxu0
        %v3555 = vadd.f32 %v3394, %v3554
        %v3556 = vpop.f32.mrb[0].mxu0
        %v3557 = vpop.f32.mrb[0].mxu0
        %v3558 = vadd.f32 %v3397, %v3557
        %v3559 = vpop.f32.mrb[0].mxu0
        %3560 = vmatprep.mubr.bf16.mxu0 %v2405
        %3561 = vmatmul.mubr.bf16.gmra.mrb[0].mxu0 %v2404
        %v3562 = vpop.f32.mrb[0].mxu0
        %v3563 = vadd.f32 %v3402, %v3562
        %v3564 = vpop.f32.mrb[0].mxu0
        %v3565 = vpop.f32.mrb[0].mxu0
        %v3566 = vadd.f32 %v3405, %v3565
        %v3567 = vpop.f32.mrb[0].mxu0
        %3568 = vmatprep.mubr.bf16.mxu0 %v2413
        %3569 = vmatmul.mubr.bf16.gmra.mrb[0].mxu0 %v2412
        %v3570 = vpop.f32.mrb[0].mxu0
        %v3571 = vadd.f32 %v3410, %v3570
        %v3572 = vpop.f32.mrb[0].mxu0
        %v3573 = vpop.f32.mrb[0].mxu0
        %v3574 = vadd.f32 %v3413, %v3573
        %v3575 = vpop.f32.mrb[0].mxu0
        %3576 = vmatprep.mubr.bf16.mxu0 %v2421
        %3577 = vmatmul.mubr.bf16.gmra.mrb[0].mxu0 %v2420
        %v3578 = vpop.f32.mrb[0].mxu0
        %v3579 = vadd.f32 %v3418, %v3578
        %v3580 = vpop.f32.mrb[0].mxu0
        %v3581 = vpop.f32.mrb[0].mxu0
        %v3582 = vadd.f32 %v3421, %v3581
        %v3583 = vpop.f32.mrb[0].mxu0
        %3584 = vdwg.mxu0
        %v3585 = vadd.f32 %v3459, %v361
        %v3586 = vadd.f32 %v3462, %v362
        %v3587 = vadd.f32 %v3467, %v363
        %v3588 = vadd.f32 %v3470, %v364
        %v3589 = vadd.f32 %v3475, %v365
        %v3590 = vadd.f32 %v3478, %v366
        %v3591 = vadd.f32 %v3483, %v367
        %v3592 = vadd.f32 %v3486, %v368
        %v3593 = vadd.f32 %v3491, %v369
        %v3594 = vadd.f32 %v3494, %v370
        %v3595 = vadd.f32 %v3499, %v371
        %v3596 = vadd.f32 %v3502, %v372
        %v3597 = vadd.f32 %v3507, %v373
        %v3598 = vadd.f32 %v3510, %v374
        %v3599 = vadd.f32 %v3515, %v375
        %v3600 = vadd.f32 %v3518, %v376
        %v3601 = vadd.f32 %v3523, %v377
        %v3602 = vadd.f32 %v3526, %v378
        %v3603 = vadd.f32 %v3531, %v379
        %v3604 = vadd.f32 %v3534, %v380
        %v3605 = vadd.f32 %v3539, %v381
        %v3606 = vadd.f32 %v3542, %v382
        %v3607 = vadd.f32 %v3547, %v383
        %v3608 = vadd.f32 %v3550, %v384
        %v3609 = vadd.f32 %v3555, %v385
        %v3610 = vadd.f32 %v3558, %v386
        %v3611 = vadd.f32 %v3563, %v387
        %v3612 = vadd.f32 %v3566, %v388
        %v3613 = vadd.f32 %v3571, %v389
        %v3614 = vadd.f32 %v3574, %v390
        %v3615 = vadd.f32 %v3579, %v391
        %v3616 = vadd.f32 %v3582, %v392
        %v3617 = vpack.c.bf16 %v3586, %v3585
        %v3618 = vpack.c.bf16 %v3588, %v3587
        %v3619 = vpack.c.bf16 %v3590, %v3589
        %v3620 = vpack.c.bf16 %v3592, %v3591
        %v3621 = vpack.c.bf16 %v3594, %v3593
        %v3622 = vpack.c.bf16 %v3596, %v3595
        %v3623 = vpack.c.bf16 %v3598, %v3597
        %v3624 = vpack.c.bf16 %v3600, %v3599
        %v3625 = vpack.c.bf16 %v3602, %v3601
        %v3626 = vpack.c.bf16 %v3604, %v3603
        %v3627 = vpack.c.bf16 %v3606, %v3605
        %v3628 = vpack.c.bf16 %v3608, %v3607
        %v3629 = vpack.c.bf16 %v3610, %v3609
        %v3630 = vpack.c.bf16 %v3612, %v3611
        %v3631 = vpack.c.bf16 %v3614, %v3613
        %v3632 = vpack.c.bf16 %v3616, %v3615
        %v3649 = vunpack.c.l.b16 %v3617
        %v3650 = vunpack.c.h.b16 %v3617
        %v3651 = vunpack.c.l.b16 %v3618
        %v3652 = vunpack.c.h.b16 %v3618
        %v3653 = vunpack.c.l.b16 %v3619
        %v3654 = vunpack.c.h.b16 %v3619
        %v3655 = vunpack.c.l.b16 %v3620
        %v3656 = vunpack.c.h.b16 %v3620
        %v3657 = vunpack.c.l.b16 %v3621
        %v3658 = vunpack.c.h.b16 %v3621
        %v3659 = vunpack.c.l.b16 %v3622
        %v3660 = vunpack.c.h.b16 %v3622
        %v3661 = vunpack.c.l.b16 %v3623
        %v3662 = vunpack.c.h.b16 %v3623
        %v3663 = vunpack.c.l.b16 %v3624
        %v3664 = vunpack.c.h.b16 %v3624
        %v3665 = vunpack.c.l.b16 %v3625
        %v3666 = vunpack.c.h.b16 %v3625
        %v3667 = vunpack.c.l.b16 %v3626
        %v3668 = vunpack.c.h.b16 %v3626
        %v3669 = vunpack.c.l.b16 %v3627
        %v3670 = vunpack.c.h.b16 %v3627
        %v3671 = vunpack.c.l.b16 %v3628
        %v3672 = vunpack.c.h.b16 %v3628
        %v3673 = vunpack.c.l.b16 %v3629
        %v3674 = vunpack.c.h.b16 %v3629
        %v3675 = vunpack.c.l.b16 %v3630
        %v3676 = vunpack.c.h.b16 %v3630
        %v3677 = vunpack.c.l.b16 %v3631
        %v3678 = vunpack.c.h.b16 %v3631
        %v3679 = vunpack.c.l.b16 %v3632
        %v3680 = vunpack.c.h.b16 %v3632
        %v3681 = vpack.c.b16 %v3649, %v3649
        %v3682 = vpack.c.b16 %v3650, %v3650
        %v3683 = vpack.c.b16 %v3651, %v3651
        %v3684 = vpack.c.b16 %v3652, %v3652
        %v3685 = vpack.c.b16 %v3653, %v3653
        %v3686 = vpack.c.b16 %v3654, %v3654
        %v3687 = vpack.c.b16 %v3655, %v3655
        %v3688 = vpack.c.b16 %v3656, %v3656
        %v3689 = vpack.c.b16 %v3657, %v3657
        %v3690 = vpack.c.b16 %v3658, %v3658
        %v3691 = vpack.c.b16 %v3659, %v3659
        %v3692 = vpack.c.b16 %v3660, %v3660
        %v3693 = vpack.c.b16 %v3661, %v3661
        %v3694 = vpack.c.b16 %v3662, %v3662
        %v3695 = vpack.c.b16 %v3663, %v3663
        %v3696 = vpack.c.b16 %v3664, %v3664
        %v3697 = vpack.c.b16 %v3665, %v3665
        %v3698 = vpack.c.b16 %v3666, %v3666
        %v3699 = vpack.c.b16 %v3667, %v3667
        %v3700 = vpack.c.b16 %v3668, %v3668
        %v3701 = vpack.c.b16 %v3669, %v3669
        %v3702 = vpack.c.b16 %v3670, %v3670
        %v3703 = vpack.c.b16 %v3671, %v3671
        %v3704 = vpack.c.b16 %v3672, %v3672
        %v3705 = vpack.c.b16 %v3673, %v3673
        %v3706 = vpack.c.b16 %v3674, %v3674
        %v3707 = vpack.c.b16 %v3675, %v3675
        %v3708 = vpack.c.b16 %v3676, %v3676
        %v3709 = vpack.c.b16 %v3677, %v3677
        %v3710 = vpack.c.b16 %v3678, %v3678
        %v3711 = vpack.c.b16 %v3679, %v3679
        %v3712 = vpack.c.b16 %v3680, %v3680
        %3745 = vst [vmem:[%s325] sm:$0xf] %v3681
        %3746 = vst [vmem:[%s325 + $0x4] sm:$0xf] %v3682
        %3747 = vst [vmem:[%s325 + $0x8] sm:$0xf] %v3683
        %3748 = vst [vmem:[%s325 + $0xc] sm:$0xf] %v3684
        %3749 = vst [vmem:[%s325 + $0x10] sm:$0xf] %v3685
        %3750 = vst [vmem:[%s325 + $0x14] sm:$0xf] %v3686
        %3751 = vst [vmem:[%s325 + $0x18] sm:$0xf] %v3687
        %3752 = vst [vmem:[%s325 + $0x1c] sm:$0xf] %v3688
        %3753 = vst [vmem:[%s325 + $0x20] sm:$0xf] %v3689
        %3754 = vst [vmem:[%s325 + $0x24] sm:$0xf] %v3690
        %3755 = vst [vmem:[%s325 + $0x28] sm:$0xf] %v3691
        %3756 = vst [vmem:[%s325 + $0x2c] sm:$0xf] %v3692
        %3757 = vst [vmem:[%s325 + $0x30] sm:$0xf] %v3693
        %3758 = vst [vmem:[%s325 + $0x34] sm:$0xf] %v3694
        %3759 = vst [vmem:[%s325 + $0x38] sm:$0xf] %v3695
        %3760 = vst [vmem:[%s325 + $0x3c] sm:$0xf] %v3696
        %3761 = vst [vmem:[%s325 + $0x40] sm:$0xf] %v3697
        %3762 = vst [vmem:[%s325 + $0x44] sm:$0xf] %v3698
        %3763 = vst [vmem:[%s325 + $0x48] sm:$0xf] %v3699
        %3764 = vst [vmem:[%s325 + $0x4c] sm:$0xf] %v3700
        %3765 = vst [vmem:[%s325 + $0x50] sm:$0xf] %v3701
        %3766 = vst [vmem:[%s325 + $0x54] sm:$0xf] %v3702
        %3767 = vst [vmem:[%s325 + $0x58] sm:$0xf] %v3703
        %3768 = vst [vmem:[%s325 + $0x5c] sm:$0xf] %v3704
        %3769 = vst [vmem:[%s325 + $0x60] sm:$0xf] %v3705
        %3770 = vst [vmem:[%s325 + $0x64] sm:$0xf] %v3706
        %3771 = vst [vmem:[%s325 + $0x68] sm:$0xf] %v3707
        %3772 = vst [vmem:[%s325 + $0x6c] sm:$0xf] %v3708
        %3773 = vst [vmem:[%s325 + $0x70] sm:$0xf] %v3709
        %3774 = vst [vmem:[%s325 + $0x74] sm:$0xf] %v3710
        %3775 = vst [vmem:[%s325 + $0x78] sm:$0xf] %v3711
        %3776 = vst [vmem:[%s325 + $0x7c] sm:$0xf] %v3712
        %s3777 = sand.u32 %s185, 1
        %s3778 = scalar_lea.sflag [#allocation4], %s3777
        %s3779 = sand.u32 %s185, 1
        %s3780 = smul.addr %s3779, 128
        %s3781 = scalar_lea.vmem [#allocation8], %s3780
        // Predicated region
        $region61: #{tpu_custom_call.1} parent=47 // pred_check
          %p3782 = pneg %p195
        $region62: #{tpu_custom_call.1} parent=47 // pred_check_branch
          %3784 = sbr.rel (%p3782) target = $region64
        $region63: #{tpu_custom_call.1} parent=47 // pred_region
          %s3785 = smul.u32 32, %s25
          %s3787 = ssub.s32 2048, 2048
          %3788 = vsyncadd %s3778, %s3787
          %s3789 = smul.addr %s3785, 64
          %s3790 = scalar_lea.hbm %s7, %s3789
          %s3791 = sshll.u32 %s3781, 4
          %s3792 = int_to_ptr.vmem [resolvable:$true] %s3791
          %3797 = dma.vmem_to_hbm [thread:$0]  %s3792, 2048, %s3790, %s3778, 64, 64, 4
        $region64: #{tpu_custom_call.1} parent=47 // pred_fallthru
          _
      $region48: #{tpu_custom_call.1} parent=5 // pred_fallthru
        _
      %p3798 = scmp.le.s32.totalorder 2, %s20
      // Predicated region
      $region65: #{tpu_custom_call.1} parent=5 // pred_check
        %p3799 = pneg %p3798
      $region66: #{tpu_custom_call.1} parent=5 // pred_check_branch
        %3801 = sbr.rel (%p3799) target = $region68
      $region67: #{tpu_custom_call.1} parent=5 // pred_region
        %s3802 = ssub.s32 %s20, 2
        // Predicated region
        $region69: #{tpu_custom_call.1} parent=67 // pred_check
          %p3803 = pneg %p201
        $region70: #{tpu_custom_call.1} parent=67 // pred_check_branch
          %3805 = sbr.rel (%p3803) target = $region72
        $region71: #{tpu_custom_call.1} parent=67 // pred_region
          %s3806 = sand.u32 %s186, 1
          %s3807 = scalar_lea.sflag [#allocation4], %s3806
          %s3808 = sand.u32 %s186, 1
          %s3809 = smul.addr %s3808, 128
          %s3810 = scalar_lea.vmem [#allocation8], %s3809
          %3811 = dma.done %s3807, 2048
        $region72: #{tpu_custom_call.1} parent=67 // pred_fallthru
          _
      $region68: #{tpu_custom_call.1} parent=5 // pred_fallthru
        _
    $region6: #{tpu_custom_call.1} parent=1 // loop_footer
      %s24 = sadd.s32 1, %s20
    $region7: #{tpu_custom_call.1} parent=1 // loop_footer_branch
      %19 = sbr.rel target = $region3
    $region8: #{tpu_custom_call.1} parent=1 // loop_exit
      _
    %3812 = vsyncpa [#allocation3], 1
    %s3813 = scalar_lea.sflag [#allocation3], 1
    %3814 = vsyncpa %s3813, 1
    %3815 = vsyncpa [#allocation6], 1
    %3816 = vsyncpa [#allocation4], 1
    %s3817 = scalar_lea.sflag [#allocation4], 1
    %3818 = vsyncpa %s3817, 1

// kernel: tpu_custom_call.1
$region0: #{tpu_custom_call.1}
  #allocation0 [shape = 'u32[]', space=smem, size = 0x4, offset = 0x4, fixed_abs, tag = 'smem constant byte address 0x4 - core index']
  #allocation1 [shape = 'u32[144,128]{1,0:T(1,128)}', space=vmem, size = 0x12000, scoped, tag = 'internal scratch']
  %s0 = inlined_call_operand.hbm [shape: bf16[512,128], index: 0, kind: input, shape index: {}]
  %s1 = inlined_call_operand.vmem [shape: f32[1,128], index: 1, kind: input, shape index: {}]
  %s2 = inlined_call_operand.vmem [shape: f32[1,128], index: 2, kind: input, shape index: {}]
  %s3 = inlined_call_operand.hbm [shape: bf16[128,1024], index: 3, kind: input, shape index: {}]
  %s4 = inlined_call_operand.vmem [shape: f32[1,1024], index: 4, kind: input, shape index: {}]
  %s5 = inlined_call_operand.hbm [shape: bf16[1024,128], index: 5, kind: input, shape index: {}]
  %s6 = inlined_call_operand.vmem [shape: f32[1,128], index: 6, kind: input, shape index: {}]
  %s7 = inlined_call_operand.hbm [shape: bf16[512,128], index: 7, kind: output, shape index: {}]
  %s8 = sld [smem:[#allocation0]]
  $region73: #{tpu_custom_call.1} parent=0
    _
  %s10 = ssub.s32 1, %s8
  %s11 = scalar_select 0, %s10, %s8
  $region1: #{tpu_custom_call.1} parent=0
    #allocation2 [shape = 'u8[131072]{0}', space=vmem, size = 0x20000, scoped, tag = 'input window, operand 0']
    #allocation3 [shape = 's32[2]{0}', space=sflag, size = 0x8, scoped, tag = 'scoped memory for tpu_custom_call.1']
    #allocation4 [shape = 's32[2]{0}', space=sflag, size = 0x8, scoped, tag = 'scoped memory for tpu_custom_call.1']
    #allocation5 [shape = 'u8[262144]{0}', space=vmem, size = 0x40000, scoped, tag = 'input window, operand 3, single buffered']
    #allocation6 [shape = 's32[1]{0}', space=sflag, size = 0x4, scoped, tag = 'scoped memory for tpu_custom_call.1']
    #allocation7 [shape = 'u8[262144]{0}', space=vmem, size = 0x40000, scoped, tag = 'input window, operand 5, single buffered']
    #allocation8 [shape = 'u8[131072]{0}', space=vmem, size = 0x20000, scoped, tag = 'output window, operand 0']
    %12 = vsyncpa [#allocation3], 0
    %s13 = scalar_lea.sflag [#allocation3], 1
    %14 = vsyncpa %s13, 0
    %15 = vsyncpa [#allocation6], 0
    %16 = vsyncpa [#allocation4], 0
    %s17 = scalar_lea.sflag [#allocation4], 1
    %18 = vsyncpa %s17, 0
    loop: start=0, step=1, limit=4
    $region2: #{tpu_custom_call.1} parent=1 // loop_pre_header
      _
    $region3: #{tpu_custom_call.1} parent=1 // loop_header
      %s20 = sphi 0, %s24
      %p21 = scmp.ge.s32.totalorder %s20, 4
      %s30 = sphi 0, %s32
      %s33 = sphi 0, %s30
      %s34 = sphi 0, %s33
      %s50 = sphi 0, %s34
      %s54 = sphi 0, %s54
      %s56 = sphi 0, %s54
      %s57 = sphi 0, %s56
      %s71 = sphi 0, %s57
      %s75 = sphi 0, %s75
      %s77 = sphi 0, %s75
      %s78 = sphi 0, %s77
      %s92 = sphi 0, %s78
      %s96 = sphi 0, %s96
      %s98 = sphi 0, %s96
      %s99 = sphi 0, %s98
      %s113 = sphi 0, %s99
      %s117 = sphi 0, %s117
      %s119 = sphi 0, %s117
      %s120 = sphi 0, %s119
      %s134 = sphi 0, %s120
      %s138 = sphi 0, %s138
      %s140 = sphi 0, %s138
      %s141 = sphi 0, %s140
      %s155 = sphi 0, %s141
      %s159 = sphi 0, %s159
      %s161 = sphi 0, %s159
      %s162 = sphi 0, %s161
      %s176 = sphi 0, %s162
      %s182 = sphi 0, %s184
      %s185 = sphi 0, %s182
      %s186 = sphi 0, %s185
      %s202 = sphi 0, %s186
    $region4: #{tpu_custom_call.1} parent=1 // loop_header_branch
      %23 = sbr.rel (%p21) target = $region8
    $region5: #{tpu_custom_call.1} parent=1 // loop_body
      %s25 = ssub.s32 %s20, 1
      %s26 = ssub.s32 %s20, 2
      %s27 = sadd.s32 %s20, 1
      %s28 = ssub.s32 %s20, %s27
      %p29 = scmp.eq.s32.totalorder %s28, 0
      %s31 = sadd.s32 %s30, 1
      %s32 = scalar_select %p29, %s30, %s31
      %p35 = pneg %p29
      %p36 = scmp.eq.s32.totalorder %s20, 1
      %p37 = por %p35, %p36
      %p38 = scmp.ne.s32.totalorder %s30, %s33
      %p39 = scmp.eq.s32.totalorder %s20, 0
      %p40 = por %p38, %p39
      %p41 = scmp.ne.s32.totalorder %s30, %s33
      %p42 = scmp.eq.s32.totalorder %s25, 1
      %p43 = por %p41, %p42
      %p44 = scmp.ne.s32.totalorder %s33, %s34
      %p45 = scmp.eq.s32.totalorder %s25, 0
      %p46 = por %p44, %p45
      %p47 = scmp.ne.s32.totalorder %s33, %s34
      %p48 = scmp.eq.s32.totalorder %s26, 1
      %p49 = por %p47, %p48
      %p51 = scmp.ne.s32.totalorder %s34, %s50
      %p52 = scmp.eq.s32.totalorder %s26, 0
      %p53 = por %p51, %p52
      %s55 = sadd.s32 %s54, 1
      %p58 = scmp.eq.s32.totalorder %s20, 1
      %p59 = scmp.ne.s32.totalorder %s54, %s56
      %p60 = scmp.eq.s32.totalorder %s20, 0
      %p61 = por %p59, %p60
      %p62 = scmp.ne.s32.totalorder %s54, %s56
      %p63 = scmp.eq.s32.totalorder %s25, 1
      %p64 = por %p62, %p63
      %p65 = scmp.ne.s32.totalorder %s56, %s57
      %p66 = scmp.eq.s32.totalorder %s25, 0
      %p67 = por %p65, %p66
      %p68 = scmp.ne.s32.totalorder %s56, %s57
      %p69 = scmp.eq.s32.totalorder %s26, 1
      %p70 = por %p68, %p69
      %p72 = scmp.ne.s32.totalorder %s57, %s71
      %p73 = scmp.eq.s32.totalorder %s26, 0
      %p74 = por %p72, %p73
      %s76 = sadd.s32 %s75, 1
      %p79 = scmp.eq.s32.totalorder %s20, 1
      %p80 = scmp.ne.s32.totalorder %s75, %s77
      %p81 = scmp.eq.s32.totalorder %s20, 0
      %p82 = por %p80, %p81
      %p83 = scmp.ne.s32.totalorder %s75, %s77
      %p84 = scmp.eq.s32.totalorder %s25, 1
      %p85 = por %p83, %p84
      %p86 = scmp.ne.s32.totalorder %s77, %s78
      %p87 = scmp.eq.s32.totalorder %s25, 0
      %p88 = por %p86, %p87
      %p89 = scmp.ne.s32.totalorder %s77, %s78
      %p90 = scmp.eq.s32.totalorder %s26, 1
      %p91 = por %p89, %p90
      %p93 = scmp.ne.s32.totalorder %s78, %s92
      %p94 = scmp.eq.s32.totalorder %s26, 0
      %p95 = por %p93, %p94
      %s97 = sadd.s32 %s96, 1
      %p100 = scmp.eq.s32.totalorder %s20, 1
      %p101 = scmp.ne.s32.totalorder %s96, %s98
      %p102 = scmp.eq.s32.totalorder %s20, 0
      %p103 = por %p101, %p102
      %p104 = scmp.ne.s32.totalorder %s96, %s98
      %p105 = scmp.eq.s32.totalorder %s25, 1
      %p106 = por %p104, %p105
      %p107 = scmp.ne.s32.totalorder %s98, %s99
      %p108 = scmp.eq.s32.totalorder %s25, 0
      %p109 = por %p107, %p108
      %p110 = scmp.ne.s32.totalorder %s98, %s99
      %p111 = scmp.eq.s32.totalorder %s26, 1
      %p112 = por %p110, %p111
      %p114 = scmp.ne.s32.totalorder %s99, %s113
      %p115 = scmp.eq.s32.totalorder %s26, 0
      %p116 = por %p114, %p115
      %s118 = sadd.s32 %s117, 1
      %p121 = scmp.eq.s32.totalorder %s20, 1
      %p122 = scmp.ne.s32.totalorder %s117, %s119
      %p123 = scmp.eq.s32.totalorder %s20, 0
      %p124 = por %p122, %p123
      %p125 = scmp.ne.s32.totalorder %s117, %s119
      %p126 = scmp.eq.s32.totalorder %s25, 1
      %p127 = por %p125, %p126
      %p128 = scmp.ne.s32.totalorder %s119, %s120
      %p129 = scmp.eq.s32.totalorder %s25, 0
      %p130 = por %p128, %p129
      %p131 = scmp.ne.s32.totalorder %s119, %s120
      %p132 = scmp.eq.s32.totalorder %s26, 1
      %p133 = por %p131, %p132
      %p135 = scmp.ne.s32.totalorder %s120, %s134
      %p136 = scmp.eq.s32.totalorder %s26, 0
      %p137 = por %p135, %p136
      %s139 = sadd.s32 %s138, 1
      %p142 = scmp.eq.s32.totalorder %s20, 1
      %p143 = scmp.ne.s32.totalorder %s138, %s140
      %p144 = scmp.eq.s32.totalorder %s20, 0
      %p145 = por %p143, %p144
      %p146 = scmp.ne.s32.totalorder %s138, %s140
      %p147 = scmp.eq.s32.totalorder %s25, 1
      %p148 = por %p146, %p147
      %p149 = scmp.ne.s32.totalorder %s140, %s141
      %p150 = scmp.eq.s32.totalorder %s25, 0
      %p151 = por %p149, %p150
      %p152 = scmp.ne.s32.totalorder %s140, %s141
      %p153 = scmp.eq.s32.totalorder %s26, 1
      %p154 = por %p152, %p153
      %p156 = scmp.ne.s32.totalorder %s141, %s155
      %p157 = scmp.eq.s32.totalorder %s26, 0
      %p158 = por %p156, %p157
      %s160 = sadd.s32 %s159, 1
      %p163 = scmp.eq.s32.totalorder %s20, 1
      %p164 = scmp.ne.s32.totalorder %s159, %s161
      %p165 = scmp.eq.s32.totalorder %s20, 0
      %p166 = por %p164, %p165
      %p167 = scmp.ne.s32.totalorder %s159, %s161
      %p168 = scmp.eq.s32.totalorder %s25, 1
      %p169 = por %p167, %p168
      %p170 = scmp.ne.s32.totalorder %s161, %s162
      %p171 = scmp.eq.s32.totalorder %s25, 0
      %p172 = por %p170, %p171
      %p173 = scmp.ne.s32.totalorder %s161, %s162
      %p174 = scmp.eq.s32.totalorder %s26, 1
      %p175 = por %p173, %p174
      %p177 = scmp.ne.s32.totalorder %s162, %s176
      %p178 = scmp.eq.s32.totalorder %s26, 0
      %p179 = por %p177, %p178
      %s180 = ssub.s32 %s20, %s27
      %p181 = scmp.eq.s32.totalorder %s180, 0
      %s183 = sadd.s32 %s182, 1
      %s184 = scalar_select %p181, %s182, %s183
      %p187 = pneg %p181
      %p188 = scmp.eq.s32.totalorder %s20, 1
      %p189 = por %p187, %p188
      %p190 = scmp.ne.s32.totalorder %s182, %s185
      %p191 = scmp.eq.s32.totalorder %s20, 0
      %p192 = por %p190, %p191
      %p193 = scmp.ne.s32.totalorder %s182, %s185
      %p194 = scmp.eq.s32.totalorder %s25, 1
      %p195 = por %p193, %p194
      %p196 = scmp.ne.s32.totalorder %s185, %s186
      %p197 = scmp.eq.s32.totalorder %s25, 0
      %p198 = por %p196, %p197
      %p199 = scmp.ne.s32.totalorder %s185, %s186
      %p200 = scmp.eq.s32.totalorder %s26, 1
      %p201 = por %p199, %p200
      %p203 = scmp.ne.s32.totalorder %s186, %s202
      %p204 = scmp.eq.s32.totalorder %s26, 0
      %p205 = por %p203, %p204
      %p206 = scmp.le.s32.totalorder 1, %s20
      %p207 = scmp.lt.s32.totalorder %s20, 3
      %p208 = pnand %p206, %p207
      %p209 = pneg %p208
      // Predicated region
      $region9: #{tpu_custom_call.1} parent=5 // pred_check
        _
      $region10: #{tpu_custom_call.1} parent=5 // pred_check_branch
        %211 = sbr.rel (%p208) target = $region12
      $region11: #{tpu_custom_call.1} parent=5 // pred_region
        %s212 = ssub.s32 %s20, 1
        // Predicated region
        $region13: #{tpu_custom_call.1} parent=11 // pred_check
          %p213 = pneg %p67
        $region14: #{tpu_custom_call.1} parent=11 // pred_check_branch
          %215 = sbr.rel (%p213) target = $region16
        $region15: #{tpu_custom_call.1} parent=11 // pred_region
          _
        $region16: #{tpu_custom_call.1} parent=11 // pred_fallthru
          _
        // Predicated region
        $region17: #{tpu_custom_call.1} parent=11 // pred_check
          %p216 = pneg %p88
        $region18: #{tpu_custom_call.1} parent=11 // pred_check_branch
          %218 = sbr.rel (%p216) target = $region20
        $region19: #{tpu_custom_call.1} parent=11 // pred_region
          _
        $region20: #{tpu_custom_call.1} parent=11 // pred_fallthru
          _
        // Predicated region
        $region21: #{tpu_custom_call.1} parent=11 // pred_check
          %p219 = pneg %p109
        $region22: #{tpu_custom_call.1} parent=11 // pred_check_branch
          %221 = sbr.rel (%p219) target = $region24
        $region23: #{tpu_custom_call.1} parent=11 // pred_region
          %s223 = ssub.s32 8192, 8192
          %224 = vsyncadd [#allocation6], %s223
          %s225 = sshll.u32 [#allocation5], 4
          %s226 = int_to_ptr.vmem [resolvable:$true] %s225
          %231 = dma.hbm_to_vmem [thread:$0]  %s3, 8192, %s226, [#allocation6], 512, 512, 32
        $region24: #{tpu_custom_call.1} parent=11 // pred_fallthru
          _
        // Predicated region
        $region25: #{tpu_custom_call.1} parent=11 // pred_check
          %p232 = pneg %p130
        $region26: #{tpu_custom_call.1} parent=11 // pred_check_branch
          %234 = sbr.rel (%p232) target = $region28
        $region27: #{tpu_custom_call.1} parent=11 // pred_region
          _
        $region28: #{tpu_custom_call.1} parent=11 // pred_fallthru
          _
        // Predicated region
        $region29: #{tpu_custom_call.1} parent=11 // pred_check
          %p235 = pneg %p151
        $region30: #{tpu_custom_call.1} parent=11 // pred_check_branch
          %237 = sbr.rel (%p235) target = $region32
        $region31: #{tpu_custom_call.1} parent=11 // pred_region
          %s239 = ssub.s32 8192, 8192
          %240 = vsyncadd [#allocation6], %s239
          %s241 = sshll.u32 [#allocation7], 4
          %s242 = int_to_ptr.vmem [resolvable:$true] %s241
          %247 = dma.hbm_to_vmem [thread:$0]  %s5, 8192, %s242, [#allocation6], 64, 64, 4
        $region32: #{tpu_custom_call.1} parent=11 // pred_fallthru
          _
        // Predicated region
        $region33: #{tpu_custom_call.1} parent=11 // pred_check
          %p248 = pneg %p172
        $region34: #{tpu_custom_call.1} parent=11 // pred_check_branch
          %250 = sbr.rel (%p248) target = $region36
        $region35: #{tpu_custom_call.1} parent=11 // pred_region
          _
        $region36: #{tpu_custom_call.1} parent=11 // pred_fallthru
          _
      $region12: #{tpu_custom_call.1} parent=5 // pred_fallthru
        _
      %p251 = scmp.lt.s32.totalorder %s20, 2
      // Predicated region
      $region37: #{tpu_custom_call.1} parent=5 // pred_check
        %p252 = pneg %p251
      $region38: #{tpu_custom_call.1} parent=5 // pred_check_branch
        %254 = sbr.rel (%p252) target = $region40
      $region39: #{tpu_custom_call.1} parent=5 // pred_region
        // Predicated region
        $region41: #{tpu_custom_call.1} parent=39 // pred_check
          %p255 = pneg %p40
        $region42: #{tpu_custom_call.1} parent=39 // pred_check_branch
          %257 = sbr.rel (%p255) target = $region44
        $region43: #{tpu_custom_call.1} parent=39 // pred_region
          %s258 = sand.u32 %s30, 1
          %s259 = scalar_lea.sflag [#allocation3], %s258
          %s260 = sand.u32 %s30, 1
          %s261 = smul.addr %s260, 128
          %s262 = scalar_lea.vmem [#allocation2], %s261
          %s263 = smul.u32 32, %s20
          %s265 = ssub.s32 2048, 2048
          %266 = vsyncadd %s259, %s265
          %s267 = smul.addr %s263, 64
          %s268 = scalar_lea.hbm %s0, %s267
          %s269 = sshll.u32 %s262, 4
          %s270 = int_to_ptr.vmem [resolvable:$true] %s269
          %275 = dma.hbm_to_vmem [thread:$0]  %s268, 2048, %s270, %s259, 64, 64, 4
        $region44: #{tpu_custom_call.1} parent=39 // pred_fallthru
          _
      $region40: #{tpu_custom_call.1} parent=5 // pred_fallthru
        _
      %p276 = scmp.le.s32.totalorder 1, %s20
      %p277 = scmp.lt.s32.totalorder %s20, 3
      %p278 = pnand %p276, %p277
      %p279 = pneg %p278
      // Predicated region
      $region45: #{tpu_custom_call.1} parent=5 // pred_check
        _
      $region46: #{tpu_custom_call.1} parent=5 // pred_check_branch
        %281 = sbr.rel (%p278) target = $region48
      $region47: #{tpu_custom_call.1} parent=5 // pred_region
        %s282 = ssub.s32 %s20, 1
        %s283 = sand.u32 %s33, 1
        %s284 = scalar_lea.sflag [#allocation3], %s283
        %s285 = sand.u32 %s33, 1
        %s286 = smul.addr %s285, 128
        %s287 = scalar_lea.vmem [#allocation2], %s286
        // Predicated region
        $region49: #{tpu_custom_call.1} parent=47 // pred_check
          %p288 = pneg %p46
        $region50: #{tpu_custom_call.1} parent=47 // pred_check_branch
          %290 = sbr.rel (%p288) target = $region52
        $region51: #{tpu_custom_call.1} parent=47 // pred_region
          %291 = dma.done %s284, 2048
        $region52: #{tpu_custom_call.1} parent=47 // pred_fallthru
          _
        // Predicated region
        $region53: #{tpu_custom_call.1} parent=47 // pred_check
          %p292 = pneg %p109
        $region54: #{tpu_custom_call.1} parent=47 // pred_check_branch
          %294 = sbr.rel (%p292) target = $region56
        $region55: #{tpu_custom_call.1} parent=47 // pred_region
          %295 = dma.done [#allocation6], 8192
        $region56: #{tpu_custom_call.1} parent=47 // pred_fallthru
          _
        // Predicated region
        $region57: #{tpu_custom_call.1} parent=47 // pred_check
          %p296 = pneg %p151
        $region58: #{tpu_custom_call.1} parent=47 // pred_check_branch
          %298 = sbr.rel (%p296) target = $region60
        $region59: #{tpu_custom_call.1} parent=47 // pred_region
          %299 = dma.done [#allocation6], 8192
        $region60: #{tpu_custom_call.1} parent=47 // pred_fallthru
          _
        %s300 = sand.u32 %s33, 1
        %s301 = scalar_lea.sflag [#allocation3], %s300
        %s302 = sand.u32 %s33, 1
        %s303 = smul.addr %s302, 128
        %s304 = scalar_lea.vmem [#allocation2], %s303
        %p305 = pneg %p46
        %p306 = pneg %p43
        %p307 = pneg %p67
        %p308 = pneg %p64
        %p309 = pneg %p88
        %p310 = pneg %p85
        %p311 = pneg %p109
        %p312 = pneg %p106
        %p313 = pneg %p130
        %p314 = pneg %p127
        %p315 = pneg %p151
        %p316 = pneg %p148
        %p317 = pneg %p172
        %p318 = pneg %p169
        %p319 = pneg %p198
        %p320 = pneg %p195
        %s321 = sand.u32 %s185, 1
        %s322 = scalar_lea.sflag [#allocation4], %s321
        %s323 = sand.u32 %s185, 1
        %s324 = smul.addr %s323, 128
        %s325 = scalar_lea.vmem [#allocation8], %s324
        %s326 = smul.u32 32, %s25
        %s327 = smul.u32 32, %s25
        %v329 = vld [vmem:[%s287] sm:$0xf]
        %v330 = vld [vmem:[%s287 + $0x4] sm:$0xf]
        %v331 = vld [vmem:[%s287 + $0x8] sm:$0xf]
        %v332 = vld [vmem:[%s287 + $0xc] sm:$0xf]
        %v333 = vld [vmem:[%s287 + $0x10] sm:$0xf]
        %v334 = vld [vmem:[%s287 + $0x14] sm:$0xf]
        %v335 = vld [vmem:[%s287 + $0x18] sm:$0xf]
        %v336 = vld [vmem:[%s287 + $0x1c] sm:$0xf]
        %v337 = vld [vmem:[%s287 + $0x20] sm:$0xf]
        %v338 = vld [vmem:[%s287 + $0x24] sm:$0xf]
        %v339 = vld [vmem:[%s287 + $0x28] sm:$0xf]
        %v340 = vld [vmem:[%s287 + $0x2c] sm:$0xf]
        %v341 = vld [vmem:[%s287 + $0x30] sm:$0xf]
        %v342 = vld [vmem:[%s287 + $0x34] sm:$0xf]
        %v343 = vld [vmem:[%s287 + $0x38] sm:$0xf]
        %v344 = vld [vmem:[%s287 + $0x3c] sm:$0xf]
        %v345 = vld [vmem:[%s287 + $0x40] sm:$0xf]
        %v346 = vld [vmem:[%s287 + $0x44] sm:$0xf]
        %v347 = vld [vmem:[%s287 + $0x48] sm:$0xf]
        %v348 = vld [vmem:[%s287 + $0x4c] sm:$0xf]
        %v349 = vld [vmem:[%s287 + $0x50] sm:$0xf]
        %v350 = vld [vmem:[%s287 + $0x54] sm:$0xf]
        %v351 = vld [vmem:[%s287 + $0x58] sm:$0xf]
        %v352 = vld [vmem:[%s287 + $0x5c] sm:$0xf]
        %v353 = vld [vmem:[%s287 + $0x60] sm:$0xf]
        %v354 = vld [vmem:[%s287 + $0x64] sm:$0xf]
        %v355 = vld [vmem:[%s287 + $0x68] sm:$0xf]
        %v356 = vld [vmem:[%s287 + $0x6c] sm:$0xf]
        %v357 = vld [vmem:[%s287 + $0x70] sm:$0xf]
        %v358 = vld [vmem:[%s287 + $0x74] sm:$0xf]
        %v359 = vld [vmem:[%s287 + $0x78] sm:$0xf]
        %v360 = vld [vmem:[%s287 + $0x7c] sm:$0xf]
        %v361 = vunpack.c.l.bf16 %v329
        %v362 = vunpack.c.l.bf16 %v330
        %v363 = vunpack.c.l.bf16 %v331
        %v364 = vunpack.c.l.bf16 %v332
        %v365 = vunpack.c.l.bf16 %v333
        %v366 = vunpack.c.l.bf16 %v334
        %v367 = vunpack.c.l.bf16 %v335
        %v368 = vunpack.c.l.bf16 %v336
        %v369 = vunpack.c.l.bf16 %v337
        %v370 = vunpack.c.l.bf16 %v338
        %v371 = vunpack.c.l.bf16 %v339
        %v372 = vunpack.c.l.bf16 %v340
        %v373 = vunpack.c.l.bf16 %v341
        %v374 = vunpack.c.l.bf16 %v342
        %v375 = vunpack.c.l.bf16 %v343
        %v376 = vunpack.c.l.bf16 %v344
        %v377 = vunpack.c.l.bf16 %v345
        %v378 = vunpack.c.l.bf16 %v346
        %v379 = vunpack.c.l.bf16 %v347
        %v380 = vunpack.c.l.bf16 %v348
        %v381 = vunpack.c.l.bf16 %v349
        %v382 = vunpack.c.l.bf16 %v350
        %v383 = vunpack.c.l.bf16 %v351
        %v384 = vunpack.c.l.bf16 %v352
        %v385 = vunpack.c.l.bf16 %v353
        %v386 = vunpack.c.l.bf16 %v354
        %v387 = vunpack.c.l.bf16 %v355
        %v388 = vunpack.c.l.bf16 %v356
        %v389 = vunpack.c.l.bf16 %v357
        %v390 = vunpack.c.l.bf16 %v358
        %v391 = vunpack.c.l.bf16 %v359
        %v392 = vunpack.c.l.bf16 %v360
        %393 = vadd.xlane.f32.xlu0 %v361
        %v394 = vpop.xlane.xlu0 %393
        %395 = vadd.xlane.f32.xlu0 %v362
        %v396 = vpop.xlane.xlu0 %395
        %397 = vadd.xlane.f32.xlu0 %v363
        %v398 = vpop.xlane.xlu0 %397
        %399 = vadd.xlane.f32.xlu0 %v364
        %v400 = vpop.xlane.xlu0 %399
        %401 = vadd.xlane.f32.xlu0 %v365
        %v402 = vpop.xlane.xlu0 %401
        %403 = vadd.xlane.f32.xlu0 %v366
        %v404 = vpop.xlane.xlu0 %403
        %405 = vadd.xlane.f32.xlu0 %v367
        %v406 = vpop.xlane.xlu0 %405
        %407 = vadd.xlane.f32.xlu0 %v368
        %v408 = vpop.xlane.xlu0 %407
        %409 = vadd.xlane.f32.xlu0 %v369
        %v410 = vpop.xlane.xlu0 %409
        %411 = vadd.xlane.f32.xlu0 %v370
        %v412 = vpop.xlane.xlu0 %411
        %413 = vadd.xlane.f32.xlu0 %v371
        %v414 = vpop.xlane.xlu0 %413
        %415 = vadd.xlane.f32.xlu0 %v372
        %v416 = vpop.xlane.xlu0 %415
        %417 = vadd.xlane.f32.xlu0 %v373
        %v418 = vpop.xlane.xlu0 %417
        %419 = vadd.xlane.f32.xlu0 %v374
        %v420 = vpop.xlane.xlu0 %419
        %421 = vadd.xlane.f32.xlu0 %v375
        %v422 = vpop.xlane.xlu0 %421
        %423 = vadd.xlane.f32.xlu0 %v376
        %v424 = vpop.xlane.xlu0 %423
        %425 = vadd.xlane.f32.xlu0 %v377
        %v426 = vpop.xlane.xlu0 %425
        %427 = vadd.xlane.f32.xlu0 %v378
        %v428 = vpop.xlane.xlu0 %427
        %429 = vadd.xlane.f32.xlu0 %v379
        %v430 = vpop.xlane.xlu0 %429
        %431 = vadd.xlane.f32.xlu0 %v380
        %v432 = vpop.xlane.xlu0 %431
        %433 = vadd.xlane.f32.xlu0 %v381
        %v434 = vpop.xlane.xlu0 %433
        %435 = vadd.xlane.f32.xlu0 %v382
        %v436 = vpop.xlane.xlu0 %435
        %437 = vadd.xlane.f32.xlu0 %v383
        %v438 = vpop.xlane.xlu0 %437
        %439 = vadd.xlane.f32.xlu0 %v384
        %v440 = vpop.xlane.xlu0 %439
        %441 = vadd.xlane.f32.xlu0 %v385
        %v442 = vpop.xlane.xlu0 %441
        %443 = vadd.xlane.f32.xlu0 %v386
        %v444 = vpop.xlane.xlu0 %443
        %445 = vadd.xlane.f32.xlu0 %v387
        %v446 = vpop.xlane.xlu0 %445
        %447 = vadd.xlane.f32.xlu0 %v388
        %v448 = vpop.xlane.xlu0 %447
        %449 = vadd.xlane.f32.xlu0 %v389
        %v450 = vpop.xlane.xlu0 %449
        %451 = vadd.xlane.f32.xlu0 %v390
        %v452 = vpop.xlane.xlu0 %451
        %453 = vadd.xlane.f32.xlu0 %v391
        %v454 = vpop.xlane.xlu0 %453
        %455 = vadd.xlane.f32.xlu0 %v392
        %v456 = vpop.xlane.xlu0 %455
        %v457 = vrcp.pop 128.0
        %v458 = vmul.f32 %v394, %v457
        %v459 = vmul.f32 %v396, %v457
        %v460 = vmul.f32 %v398, %v457
        %v461 = vmul.f32 %v400, %v457
        %v462 = vmul.f32 %v402, %v457
        %v463 = vmul.f32 %v404, %v457
        %v464 = vmul.f32 %v406, %v457
        %v465 = vmul.f32 %v408, %v457
        %v466 = vmul.f32 %v410, %v457
        %v467 = vmul.f32 %v412, %v457
        %v468 = vmul.f32 %v414, %v457
        %v469 = vmul.f32 %v416, %v457
        %v470 = vmul.f32 %v418, %v457
        %v471 = vmul.f32 %v420, %v457
        %v472 = vmul.f32 %v422, %v457
        %v473 = vmul.f32 %v424, %v457
        %v474 = vmul.f32 %v426, %v457
        %v475 = vmul.f32 %v428, %v457
        %v476 = vmul.f32 %v430, %v457
        %v477 = vmul.f32 %v432, %v457
        %v478 = vmul.f32 %v434, %v457
        %v479 = vmul.f32 %v436, %v457
        %v480 = vmul.f32 %v438, %v457
        %v481 = vmul.f32 %v440, %v457
        %v482 = vmul.f32 %v442, %v457
        %v483 = vmul.f32 %v444, %v457
        %v484 = vmul.f32 %v446, %v457
        %v485 = vmul.f32 %v448, %v457
        %v486 = vmul.f32 %v450, %v457
        %v487 = vmul.f32 %v452, %v457
        %v488 = vmul.f32 %v454, %v457
        %v489 = vmul.f32 %v456, %v457
        %v490 = vsub.f32 %v361, %v458
        %v491 = vsub.f32 %v362, %v459
        %v492 = vsub.f32 %v363, %v460
        %v493 = vsub.f32 %v364, %v461
        %v494 = vsub.f32 %v365, %v462
        %v495 = vsub.f32 %v366, %v463
        %v496 = vsub.f32 %v367, %v464
        %v497 = vsub.f32 %v368, %v465
        %v498 = vsub.f32 %v369, %v466
        %v499 = vsub.f32 %v370, %v467
        %v500 = vsub.f32 %v371, %v468
        %v501 = vsub.f32 %v372, %v469
        %v502 = vsub.f32 %v373, %v470
        %v503 = vsub.f32 %v374, %v471
        %v504 = vsub.f32 %v375, %v472
        %v505 = vsub.f32 %v376, %v473
        %v506 = vsub.f32 %v377, %v474
        %v507 = vsub.f32 %v378, %v475
        %v508 = vsub.f32 %v379, %v476
        %v509 = vsub.f32 %v380, %v477
        %v510 = vsub.f32 %v381, %v478
        %v511 = vsub.f32 %v382, %v479
        %v512 = vsub.f32 %v383, %v480
        %v513 = vsub.f32 %v384, %v481
        %v514 = vsub.f32 %v385, %v482
        %v515 = vsub.f32 %v386, %v483
        %v516 = vsub.f32 %v387, %v484
        %v517 = vsub.f32 %v388, %v485
        %v518 = vsub.f32 %v389, %v486
        %v519 = vsub.f32 %v390, %v487
        %v520 = vsub.f32 %v391, %v488
        %v521 = vsub.f32 %v392, %v489
        %v522 = vmul.f32 %v490, %v490
        %v523 = vmul.f32 %v491, %v491
        %v524 = vmul.f32 %v492, %v492
        %v525 = vmul.f32 %v493, %v493
        %v526 = vmul.f32 %v494, %v494
        %v527 = vmul.f32 %v495, %v495
        %v528 = vmul.f32 %v496, %v496
        %v529 = vmul.f32 %v497, %v497
        %v530 = vmul.f32 %v498, %v498
        %v531 = vmul.f32 %v499, %v499
        %v532 = vmul.f32 %v500, %v500
        %v533 = vmul.f32 %v501, %v501
        %v534 = vmul.f32 %v502, %v502
        %v535 = vmul.f32 %v503, %v503
        %v536 = vmul.f32 %v504, %v504
        %v537 = vmul.f32 %v505, %v505
        %v538 = vmul.f32 %v506, %v506
        %v539 = vmul.f32 %v507, %v507
        %v540 = vmul.f32 %v508, %v508
        %v541 = vmul.f32 %v509, %v509
        %v542 = vmul.f32 %v510, %v510
        %v543 = vmul.f32 %v511, %v511
        %v544 = vmul.f32 %v512, %v512
        %v545 = vmul.f32 %v513, %v513
        %v546 = vmul.f32 %v514, %v514
        %v547 = vmul.f32 %v515, %v515
        %v548 = vmul.f32 %v516, %v516
        %v549 = vmul.f32 %v517, %v517
        %v550 = vmul.f32 %v518, %v518
        %v551 = vmul.f32 %v519, %v519
        %v552 = vmul.f32 %v520, %v520
        %v553 = vmul.f32 %v521, %v521
        %554 = vadd.xlane.f32.xlu0 %v522
        %v555 = vpop.xlane.xlu0 %554
        %556 = vadd.xlane.f32.xlu0 %v523
        %v557 = vpop.xlane.xlu0 %556
        %558 = vadd.xlane.f32.xlu0 %v524
        %v559 = vpop.xlane.xlu0 %558
        %560 = vadd.xlane.f32.xlu0 %v525
        %v561 = vpop.xlane.xlu0 %560
        %562 = vadd.xlane.f32.xlu0 %v526
        %v563 = vpop.xlane.xlu0 %562
        %564 = vadd.xlane.f32.xlu0 %v527
        %v565 = vpop.xlane.xlu0 %564
        %566 = vadd.xlane.f32.xlu0 %v528
        %v567 = vpop.xlane.xlu0 %566
        %568 = vadd.xlane.f32.xlu0 %v529
        %v569 = vpop.xlane.xlu0 %568
        %570 = vadd.xlane.f32.xlu0 %v530
        %v571 = vpop.xlane.xlu0 %570
        %572 = vadd.xlane.f32.xlu0 %v531
        %v573 = vpop.xlane.xlu0 %572
        %574 = vadd.xlane.f32.xlu0 %v532
        %v575 = vpop.xlane.xlu0 %574
        %576 = vadd.xlane.f32.xlu0 %v533
        %v577 = vpop.xlane.xlu0 %576
        %578 = vadd.xlane.f32.xlu0 %v534
        %v579 = vpop.xlane.xlu0 %578
        %580 = vadd.xlane.f32.xlu0 %v535
        %v581 = vpop.xlane.xlu0 %580
        %582 = vadd.xlane.f32.xlu0 %v536
        %v583 = vpop.xlane.xlu0 %582
        %584 = vadd.xlane.f32.xlu0 %v537
        %v585 = vpop.xlane.xlu0 %584
        %586 = vadd.xlane.f32.xlu0 %v538
        %v587 = vpop.xlane.xlu0 %586
        %588 = vadd.xlane.f32.xlu0 %v539
        %v589 = vpop.xlane.xlu0 %588
        %590 = vadd.xlane.f32.xlu0 %v540
        %v591 = vpop.xlane.xlu0 %590
        %592 = vadd.xlane.f32.xlu0 %v541
        %v593 = vpop.xlane.xlu0 %592
        %594 = vadd.xlane.f32.xlu0 %v542
        %v595 = vpop.xlane.xlu0 %594
        %596 = vadd.xlane.f32.xlu0 %v543
        %v597 = vpop.xlane.xlu0 %596
        %598 = vadd.xlane.f32.xlu0 %v544
        %v599 = vpop.xlane.xlu0 %598
        %600 = vadd.xlane.f32.xlu0 %v545
        %v601 = vpop.xlane.xlu0 %600
        %602 = vadd.xlane.f32.xlu0 %v546
        %v603 = vpop.xlane.xlu0 %602
        %604 = vadd.xlane.f32.xlu0 %v547
        %v605 = vpop.xlane.xlu0 %604
        %606 = vadd.xlane.f32.xlu0 %v548
        %v607 = vpop.xlane.xlu0 %606
        %608 = vadd.xlane.f32.xlu0 %v549
        %v609 = vpop.xlane.xlu0 %608
        %610 = vadd.xlane.f32.xlu0 %v550
        %v611 = vpop.xlane.xlu0 %610
        %612 = vadd.xlane.f32.xlu0 %v551
        %v613 = vpop.xlane.xlu0 %612
        %614 = vadd.xlane.f32.xlu0 %v552
        %v615 = vpop.xlane.xlu0 %614
        %616 = vadd.xlane.f32.xlu0 %v553
        %v617 = vpop.xlane.xlu0 %616
        %v618 = vmul.f32 %v555, %v457
        %v619 = vmul.f32 %v557, %v457
        %v620 = vmul.f32 %v559, %v457
        %v621 = vmul.f32 %v561, %v457
        %v622 = vmul.f32 %v563, %v457
        %v623 = vmul.f32 %v565, %v457
        %v624 = vmul.f32 %v567, %v457
        %v625 = vmul.f32 %v569, %v457
        %v626 = vmul.f32 %v571, %v457
        %v627 = vmul.f32 %v573, %v457
        %v628 = vmul.f32 %v575, %v457
        %v629 = vmul.f32 %v577, %v457
        %v630 = vmul.f32 %v579, %v457
        %v631 = vmul.f32 %v581, %v457
        %v632 = vmul.f32 %v583, %v457
        %v633 = vmul.f32 %v585, %v457
        %v634 = vmul.f32 %v587, %v457
        %v635 = vmul.f32 %v589, %v457
        %v636 = vmul.f32 %v591, %v457
        %v637 = vmul.f32 %v593, %v457
        %v638 = vmul.f32 %v595, %v457
        %v639 = vmul.f32 %v597, %v457
        %v640 = vmul.f32 %v599, %v457
        %v641 = vmul.f32 %v601, %v457
        %v642 = vmul.f32 %v603, %v457
        %v643 = vmul.f32 %v605, %v457
        %v644 = vmul.f32 %v607, %v457
        %v645 = vmul.f32 %v609, %v457
        %v646 = vmul.f32 %v611, %v457
        %v647 = vmul.f32 %v613, %v457
        %v648 = vmul.f32 %v615, %v457
        %v649 = vmul.f32 %v617, %v457
        %v650 = vadd.f32 %v618, 1e-06
        %v651 = vadd.f32 %v619, 1e-06
        %v652 = vadd.f32 %v620, 1e-06
        %v653 = vadd.f32 %v621, 1e-06
        %v654 = vadd.f32 %v622, 1e-06
        %v655 = vadd.f32 %v623, 1e-06
        %v656 = vadd.f32 %v624, 1e-06
        %v657 = vadd.f32 %v625, 1e-06
        %v658 = vadd.f32 %v626, 1e-06
        %v659 = vadd.f32 %v627, 1e-06
        %v660 = vadd.f32 %v628, 1e-06
        %v661 = vadd.f32 %v629, 1e-06
        %v662 = vadd.f32 %v630, 1e-06
        %v663 = vadd.f32 %v631, 1e-06
        %v664 = vadd.f32 %v632, 1e-06
        %v665 = vadd.f32 %v633, 1e-06
        %v666 = vadd.f32 %v634, 1e-06
        %v667 = vadd.f32 %v635, 1e-06
        %v668 = vadd.f32 %v636, 1e-06
        %v669 = vadd.f32 %v637, 1e-06
        %v670 = vadd.f32 %v638, 1e-06
        %v671 = vadd.f32 %v639, 1e-06
        %v672 = vadd.f32 %v640, 1e-06
        %v673 = vadd.f32 %v641, 1e-06
        %v674 = vadd.f32 %v642, 1e-06
        %v675 = vadd.f32 %v643, 1e-06
        %v676 = vadd.f32 %v644, 1e-06
        %v677 = vadd.f32 %v645, 1e-06
        %v678 = vadd.f32 %v646, 1e-06
        %v679 = vadd.f32 %v647, 1e-06
        %v680 = vadd.f32 %v648, 1e-06
        %v681 = vadd.f32 %v649, 1e-06
        %v682 = vrsqrt.pop %v650
        %v683 = vrsqrt.pop %v651
        %v684 = vrsqrt.pop %v652
        %v685 = vrsqrt.pop %v653
        %v686 = vrsqrt.pop %v654
        %v687 = vrsqrt.pop %v655
        %v688 = vrsqrt.pop %v656
        %v689 = vrsqrt.pop %v657
        %v690 = vrsqrt.pop %v658
        %v691 = vrsqrt.pop %v659
        %v692 = vrsqrt.pop %v660
        %v693 = vrsqrt.pop %v661
        %v694 = vrsqrt.pop %v662
        %v695 = vrsqrt.pop %v663
        %v696 = vrsqrt.pop %v664
        %v697 = vrsqrt.pop %v665
        %v698 = vrsqrt.pop %v666
        %v699 = vrsqrt.pop %v667
        %v700 = vrsqrt.pop %v668
        %v701 = vrsqrt.pop %v669
        %v702 = vrsqrt.pop %v670
        %v703 = vrsqrt.pop %v671
        %v704 = vrsqrt.pop %v672
        %v705 = vrsqrt.pop %v673
        %v706 = vrsqrt.pop %v674
        %v707 = vrsqrt.pop %v675
        %v708 = vrsqrt.pop %v676
        %v709 = vrsqrt.pop %v677
        %v710 = vrsqrt.pop %v678
        %v711 = vrsqrt.pop %v679
        %v712 = vrsqrt.pop %v680
        %v713 = vrsqrt.pop %v681
        %v714 = vmul.f32 %v490, %v682
        %v715 = vmul.f32 %v491, %v683
        %v716 = vmul.f32 %v492, %v684
        %v717 = vmul.f32 %v493, %v685
        %v718 = vmul.f32 %v494, %v686
        %v719 = vmul.f32 %v495, %v687
        %v720 = vmul.f32 %v496, %v688
        %v721 = vmul.f32 %v497, %v689
        %v722 = vmul.f32 %v498, %v690
        %v723 = vmul.f32 %v499, %v691
        %v724 = vmul.f32 %v500, %v692
        %v725 = vmul.f32 %v501, %v693
        %v726 = vmul.f32 %v502, %v694
        %v727 = vmul.f32 %v503, %v695
        %v728 = vmul.f32 %v504, %v696
        %v729 = vmul.f32 %v505, %v697
        %v730 = vmul.f32 %v506, %v698
        %v731 = vmul.f32 %v507, %v699
        %v732 = vmul.f32 %v508, %v700
        %v733 = vmul.f32 %v509, %v701
        %v734 = vmul.f32 %v510, %v702
        %v735 = vmul.f32 %v511, %v703
        %v736 = vmul.f32 %v512, %v704
        %v737 = vmul.f32 %v513, %v705
        %v738 = vmul.f32 %v514, %v706
        %v739 = vmul.f32 %v515, %v707
        %v740 = vmul.f32 %v516, %v708
        %v741 = vmul.f32 %v517, %v709
        %v742 = vmul.f32 %v518, %v710
        %v743 = vmul.f32 %v519, %v711
        %v744 = vmul.f32 %v520, %v712
        %v745 = vmul.f32 %v521, %v713
        %v746 = vld [vmem:[%s1] sm:$0x1]
        %v748 = vlaneseq
        %v749 = vshrl.u32 %v748, 7
        %v750 = vsub.s32 0, %v749
        %v751 = vrot.slane %v746, %v750
        %v753 = vmul.f32 %v714, %v751
        %v754 = vmul.f32 %v715, %v751
        %v755 = vmul.f32 %v716, %v751
        %v756 = vmul.f32 %v717, %v751
        %v757 = vmul.f32 %v718, %v751
        %v758 = vmul.f32 %v719, %v751
        %v759 = vmul.f32 %v720, %v751
        %v760 = vmul.f32 %v721, %v751
        %v761 = vmul.f32 %v722, %v751
        %v762 = vmul.f32 %v723, %v751
        %v763 = vmul.f32 %v724, %v751
        %v764 = vmul.f32 %v725, %v751
        %v765 = vmul.f32 %v726, %v751
        %v766 = vmul.f32 %v727, %v751
        %v767 = vmul.f32 %v728, %v751
        %v768 = vmul.f32 %v729, %v751
        %v769 = vmul.f32 %v730, %v751
        %v770 = vmul.f32 %v731, %v751
        %v771 = vmul.f32 %v732, %v751
        %v772 = vmul.f32 %v733, %v751
        %v773 = vmul.f32 %v734, %v751
        %v774 = vmul.f32 %v735, %v751
        %v775 = vmul.f32 %v736, %v751
        %v776 = vmul.f32 %v737, %v751
        %v777 = vmul.f32 %v738, %v751
        %v778 = vmul.f32 %v739, %v751
        %v779 = vmul.f32 %v740, %v751
        %v780 = vmul.f32 %v741, %v751
        %v781 = vmul.f32 %v742, %v751
        %v782 = vmul.f32 %v743, %v751
        %v783 = vmul.f32 %v744, %v751
        %v784 = vmul.f32 %v745, %v751
        %v785 = vld [vmem:[%s2] sm:$0x1]
        %v787 = vlaneseq
        %v788 = vshrl.u32 %v787, 7
        %v789 = vsub.s32 0, %v788
        %v790 = vrot.slane %v785, %v789
        %v792 = vadd.f32 %v753, %v790
        %v793 = vadd.f32 %v754, %v790
        %v794 = vadd.f32 %v755, %v790
        %v795 = vadd.f32 %v756, %v790
        %v796 = vadd.f32 %v757, %v790
        %v797 = vadd.f32 %v758, %v790
        %v798 = vadd.f32 %v759, %v790
        %v799 = vadd.f32 %v760, %v790
        %v800 = vadd.f32 %v761, %v790
        %v801 = vadd.f32 %v762, %v790
        %v802 = vadd.f32 %v763, %v790
        %v803 = vadd.f32 %v764, %v790
        %v804 = vadd.f32 %v765, %v790
        %v805 = vadd.f32 %v766, %v790
        %v806 = vadd.f32 %v767, %v790
        %v807 = vadd.f32 %v768, %v790
        %v808 = vadd.f32 %v769, %v790
        %v809 = vadd.f32 %v770, %v790
        %v810 = vadd.f32 %v771, %v790
        %v811 = vadd.f32 %v772, %v790
        %v812 = vadd.f32 %v773, %v790
        %v813 = vadd.f32 %v774, %v790
        %v814 = vadd.f32 %v775, %v790
        %v815 = vadd.f32 %v776, %v790
        %v816 = vadd.f32 %v777, %v790
        %v817 = vadd.f32 %v778, %v790
        %v818 = vadd.f32 %v779, %v790
        %v819 = vadd.f32 %v780, %v790
        %v820 = vadd.f32 %v781, %v790
        %v821 = vadd.f32 %v782, %v790
        %v822 = vadd.f32 %v783, %v790
        %v823 = vadd.f32 %v784, %v790
        %v824 = vpack.c.bf16 %v793, %v792
        %v825 = vpack.c.bf16 %v795, %v794
        %v826 = vpack.c.bf16 %v797, %v796
        %v827 = vpack.c.bf16 %v799, %v798
        %v828 = vpack.c.bf16 %v801, %v800
        %v829 = vpack.c.bf16 %v803, %v802
        %v830 = vpack.c.bf16 %v805, %v804
        %v831 = vpack.c.bf16 %v807, %v806
        %v832 = vpack.c.bf16 %v809, %v808
        %v833 = vpack.c.bf16 %v811, %v810
        %v834 = vpack.c.bf16 %v813, %v812
        %v835 = vpack.c.bf16 %v815, %v814
        %v836 = vpack.c.bf16 %v817, %v816
        %v837 = vpack.c.bf16 %v819, %v818
        %v838 = vpack.c.bf16 %v821, %v820
        %v839 = vpack.c.bf16 %v823, %v822
        %v840 = vld [vmem:[#allocation5] sm:$0xff]
        %v841 = vld [vmem:[#allocation5 + $0x8] sm:$0xff]
        %v842 = vld [vmem:[#allocation5 + $0x10] sm:$0xff]
        %v843 = vld [vmem:[#allocation5 + $0x18] sm:$0xff]
        %v844 = vld [vmem:[#allocation5 + $0x20] sm:$0xff]
        %v845 = vld [vmem:[#allocation5 + $0x28] sm:$0xff]
        %v846 = vld [vmem:[#allocation5 + $0x30] sm:$0xff]
        %v847 = vld [vmem:[#allocation5 + $0x38] sm:$0xff]
        %v848 = vld [vmem:[#allocation5 + $0x40] sm:$0xff]
        %v849 = vld [vmem:[#allocation5 + $0x48] sm:$0xff]
        %v850 = vld [vmem:[#allocation5 + $0x50] sm:$0xff]
        %v851 = vld [vmem:[#allocation5 + $0x58] sm:$0xff]
        %v852 = vld [vmem:[#allocation5 + $0x60] sm:$0xff]
        %v853 = vld [vmem:[#allocation5 + $0x68] sm:$0xff]
        %v854 = vld [vmem:[#allocation5 + $0x70] sm:$0xff]
        %v855 = vld [vmem:[#allocation5 + $0x78] sm:$0xff]
        %v856 = vld [vmem:[#allocation5 + $0x80] sm:$0xff]
        %v857 = vld [vmem:[#allocation5 + $0x88] sm:$0xff]
        %v858 = vld [vmem:[#allocation5 + $0x90] sm:$0xff]
        %v859 = vld [vmem:[#allocation5 + $0x98] sm:$0xff]
        %v860 = vld [vmem:[#allocation5 + $0xa0] sm:$0xff]
        %v861 = vld [vmem:[#allocation5 + $0xa8] sm:$0xff]
        %v862 = vld [vmem:[#allocation5 + $0xb0] sm:$0xff]
        %v863 = vld [vmem:[#allocation5 + $0xb8] sm:$0xff]
        %v864 = vld [vmem:[#allocation5 + $0xc0] sm:$0xff]
        %v865 = vld [vmem:[#allocation5 + $0xc8] sm:$0xff]
        %v866 = vld [vmem:[#allocation5 + $0xd0] sm:$0xff]
        %v867 = vld [vmem:[#allocation5 + $0xd8] sm:$0xff]
        %v868 = vld [vmem:[#allocation5 + $0xe0] sm:$0xff]
        %v869 = vld [vmem:[#allocation5 + $0xe8] sm:$0xff]
        %v870 = vld [vmem:[#allocation5 + $0xf0] sm:$0xff]
        %v871 = vld [vmem:[#allocation5 + $0xf8] sm:$0xff]
        %v872 = vld [vmem:[#allocation5 + $0x100] sm:$0xff]
        %v873 = vld [vmem:[#allocation5 + $0x108] sm:$0xff]
        %v874 = vld [vmem:[#allocation5 + $0x110] sm:$0xff]
        %v875 = vld [vmem:[#allocation5 + $0x118] sm:$0xff]
        %v876 = vld [vmem:[#allocation5 + $0x120] sm:$0xff]
        %v877 = vld [vmem:[#allocation5 + $0x128] sm:$0xff]
        %v878 = vld [vmem:[#allocation5 + $0x130] sm:$0xff]
        %v879 = vld [vmem:[#allocation5 + $0x138] sm:$0xff]
        %v880 = vld [vmem:[#allocation5 + $0x140] sm:$0xff]
        %v881 = vld [vmem:[#allocation5 + $0x148] sm:$0xff]
        %v882 = vld [vmem:[#allocation5 + $0x150] sm:$0xff]
        %v883 = vld [vmem:[#allocation5 + $0x158] sm:$0xff]
        %v884 = vld [vmem:[#allocation5 + $0x160] sm:$0xff]
        %v885 = vld [vmem:[#allocation5 + $0x168] sm:$0xff]
        %v886 = vld [vmem:[#allocation5 + $0x170] sm:$0xff]
        %v887 = vld [vmem:[#allocation5 + $0x178] sm:$0xff]
        %v888 = vld [vmem:[#allocation5 + $0x180] sm:$0xff]
        %v889 = vld [vmem:[#allocation5 + $0x188] sm:$0xff]
        %v890 = vld [vmem:[#allocation5 + $0x190] sm:$0xff]
        %v891 = vld [vmem:[#allocation5 + $0x198] sm:$0xff]
        %v892 = vld [vmem:[#allocation5 + $0x1a0] sm:$0xff]
        %v893 = vld [vmem:[#allocation5 + $0x1a8] sm:$0xff]
        %v894 = vld [vmem:[#allocation5 + $0x1b0] sm:$0xff]
        %v895 = vld [vmem:[#allocation5 + $0x1b8] sm:$0xff]
        %v896 = vld [vmem:[#allocation5 + $0x1c0] sm:$0xff]
        %v897 = vld [vmem:[#allocation5 + $0x1c8] sm:$0xff]
        %v898 = vld [vmem:[#allocation5 + $0x1d0] sm:$0xff]
        %v899 = vld [vmem:[#allocation5 + $0x1d8] sm:$0xff]
        %v900 = vld [vmem:[#allocation5 + $0x1e0] sm:$0xff]
        %v901 = vld [vmem:[#allocation5 + $0x1e8] sm:$0xff]
        %v902 = vld [vmem:[#allocation5 + $0x1f0] sm:$0xff]
        %v903 = vld [vmem:[#allocation5 + $0x1f8] sm:$0xff]
        %v904 = vld [vmem:[%s4] sm:$0xff]
        %v906 = vlaneseq
        %v907 = vshrl.u32 %v906, 7
        %v908 = vsub.s32 0, %v907
        %v909 = vrot.slane %v904, %v908
        %v910 = vlaneseq
        %v911 = vshrl.u32 %v910, 7
        %v912 = vsub.s32 1, %v911
        %v913 = vrot.slane %v904, %v912
        %v914 = vlaneseq
        %v915 = vshrl.u32 %v914, 7
        %v916 = vsub.s32 2, %v915
        %v917 = vrot.slane %v904, %v916
        %v918 = vlaneseq
        %v919 = vshrl.u32 %v918, 7
        %v920 = vsub.s32 3, %v919
        %v921 = vrot.slane %v904, %v920
        %v922 = vlaneseq
        %v923 = vshrl.u32 %v922, 7
        %v924 = vsub.s32 4, %v923
        %v925 = vrot.slane %v904, %v924
        %v926 = vlaneseq
        %v927 = vshrl.u32 %v926, 7
        %v928 = vsub.s32 5, %v927
        %v929 = vrot.slane %v904, %v928
        %v930 = vlaneseq
        %v931 = vshrl.u32 %v930, 7
        %v932 = vsub.s32 6, %v931
        %v933 = vrot.slane %v904, %v932
        %v934 = vlaneseq
        %v935 = vshrl.u32 %v934, 7
        %v936 = vsub.s32 7, %v935
        %v937 = vrot.slane %v904, %v936
        %v1010 = vunpack.c.l.b16 %v840
        %v1011 = vunpack.c.h.b16 %v840
        %v1012 = vunpack.c.l.b16 %v841
        %v1013 = vunpack.c.h.b16 %v841
        %v1014 = vunpack.c.l.b16 %v842
        %v1015 = vunpack.c.h.b16 %v842
        %v1016 = vunpack.c.l.b16 %v843
        %v1017 = vunpack.c.h.b16 %v843
        %v1018 = vunpack.c.l.b16 %v844
        %v1019 = vunpack.c.h.b16 %v844
        %v1020 = vunpack.c.l.b16 %v845
        %v1021 = vunpack.c.h.b16 %v845
        %v1022 = vunpack.c.l.b16 %v846
        %v1023 = vunpack.c.h.b16 %v846
        %v1024 = vunpack.c.l.b16 %v847
        %v1025 = vunpack.c.h.b16 %v847
        %v1026 = vunpack.c.l.b16 %v848
        %v1027 = vunpack.c.h.b16 %v848
        %v1028 = vunpack.c.l.b16 %v849
        %v1029 = vunpack.c.h.b16 %v849
        %v1030 = vunpack.c.l.b16 %v850
        %v1031 = vunpack.c.h.b16 %v850
        %v1032 = vunpack.c.l.b16 %v851
        %v1033 = vunpack.c.h.b16 %v851
        %v1034 = vunpack.c.l.b16 %v852
        %v1035 = vunpack.c.h.b16 %v852
        %v1036 = vunpack.c.l.b16 %v853
        %v1037 = vunpack.c.h.b16 %v853
        %v1038 = vunpack.c.l.b16 %v854
        %v1039 = vunpack.c.h.b16 %v854
        %v1040 = vunpack.c.l.b16 %v855
        %v1041 = vunpack.c.h.b16 %v855
        %v1042 = vunpack.c.l.b16 %v856
        %v1043 = vunpack.c.h.b16 %v856
        %v1044 = vunpack.c.l.b16 %v857
        %v1045 = vunpack.c.h.b16 %v857
        %v1046 = vunpack.c.l.b16 %v858
        %v1047 = vunpack.c.h.b16 %v858
        %v1048 = vunpack.c.l.b16 %v859
        %v1049 = vunpack.c.h.b16 %v859
        %v1050 = vunpack.c.l.b16 %v860
        %v1051 = vunpack.c.h.b16 %v860
        %v1052 = vunpack.c.l.b16 %v861
        %v1053 = vunpack.c.h.b16 %v861
        %v1054 = vunpack.c.l.b16 %v862
        %v1055 = vunpack.c.h.b16 %v862
        %v1056 = vunpack.c.l.b16 %v863
        %v1057 = vunpack.c.h.b16 %v863
        %v1058 = vunpack.c.l.b16 %v864
        %v1059 = vunpack.c.h.b16 %v864
        %v1060 = vunpack.c.l.b16 %v865
        %v1061 = vunpack.c.h.b16 %v865
        %v1062 = vunpack.c.l.b16 %v866
        %v1063 = vunpack.c.h.b16 %v866
        %v1064 = vunpack.c.l.b16 %v867
        %v1065 = vunpack.c.h.b16 %v867
        %v1066 = vunpack.c.l.b16 %v868
        %v1067 = vunpack.c.h.b16 %v868
        %v1068 = vunpack.c.l.b16 %v869
        %v1069 = vunpack.c.h.b16 %v869
        %v1070 = vunpack.c.l.b16 %v870
        %v1071 = vunpack.c.h.b16 %v870
        %v1072 = vunpack.c.l.b16 %v871
        %v1073 = vunpack.c.h.b16 %v871
        %v1074 = vunpack.c.l.b16 %v872
        %v1075 = vunpack.c.h.b16 %v872
        %v1076 = vunpack.c.l.b16 %v873
        %v1077 = vunpack.c.h.b16 %v873
        %v1078 = vunpack.c.l.b16 %v874
        %v1079 = vunpack.c.h.b16 %v874
        %v1080 = vunpack.c.l.b16 %v875
        %v1081 = vunpack.c.h.b16 %v875
        %v1082 = vunpack.c.l.b16 %v876
        %v1083 = vunpack.c.h.b16 %v876
        %v1084 = vunpack.c.l.b16 %v877
        %v1085 = vunpack.c.h.b16 %v877
        %v1086 = vunpack.c.l.b16 %v878
        %v1087 = vunpack.c.h.b16 %v878
        %v1088 = vunpack.c.l.b16 %v879
        %v1089 = vunpack.c.h.b16 %v879
        %v1090 = vunpack.c.l.b16 %v880
        %v1091 = vunpack.c.h.b16 %v880
        %v1092 = vunpack.c.l.b16 %v881
        %v1093 = vunpack.c.h.b16 %v881
        %v1094 = vunpack.c.l.b16 %v882
        %v1095 = vunpack.c.h.b16 %v882
        %v1096 = vunpack.c.l.b16 %v883
        %v1097 = vunpack.c.h.b16 %v883
        %v1098 = vunpack.c.l.b16 %v884
        %v1099 = vunpack.c.h.b16 %v884
        %v1100 = vunpack.c.l.b16 %v885
        %v1101 = vunpack.c.h.b16 %v885
        %v1102 = vunpack.c.l.b16 %v886
        %v1103 = vunpack.c.h.b16 %v886
        %v1104 = vunpack.c.l.b16 %v887
        %v1105 = vunpack.c.h.b16 %v887
        %v1106 = vunpack.c.l.b16 %v888
        %v1107 = vunpack.c.h.b16 %v888
        %v1108 = vunpack.c.l.b16 %v889
        %v1109 = vunpack.c.h.b16 %v889
        %v1110 = vunpack.c.l.b16 %v890
        %v1111 = vunpack.c.h.b16 %v890
        %v1112 = vunpack.c.l.b16 %v891
        %v1113 = vunpack.c.h.b16 %v891
        %v1114 = vunpack.c.l.b16 %v892
        %v1115 = vunpack.c.h.b16 %v892
        %v1116 = vunpack.c.l.b16 %v893
        %v1117 = vunpack.c.h.b16 %v893
        %v1118 = vunpack.c.l.b16 %v894
        %v1119 = vunpack.c.h.b16 %v894
        %v1120 = vunpack.c.l.b16 %v895
        %v1121 = vunpack.c.h.b16 %v895
        %v1122 = vunpack.c.l.b16 %v896
        %v1123 = vunpack.c.h.b16 %v896
        %v1124 = vunpack.c.l.b16 %v897
        %v1125 = vunpack.c.h.b16 %v897
        %v1126 = vunpack.c.l.b16 %v898
        %v1127 = vunpack.c.h.b16 %v898
        %v1128 = vunpack.c.l.b16 %v899
        %v1129 = vunpack.c.h.b16 %v899
        %v1130 = vunpack.c.l.b16 %v900
        %v1131 = vunpack.c.h.b16 %v900
        %v1132 = vunpack.c.l.b16 %v901
        %v1133 = vunpack.c.h.b16 %v901
        %v1134 = vunpack.c.l.b16 %v902
        %v1135 = vunpack.c.h.b16 %v902
        %v1136 = vunpack.c.l.b16 %v903
        %v1137 = vunpack.c.h.b16 %v903
        %v1138 = vpack.c.b16 %v1018, %v1010
        %v1139 = vpack.c.b16 %v1019, %v1011
        %v1140 = vpack.c.b16 %v1020, %v1012
        %v1141 = vpack.c.b16 %v1021, %v1013
        %v1142 = vpack.c.b16 %v1022, %v1014
        %v1143 = vpack.c.b16 %v1023, %v1015
        %v1144 = vpack.c.b16 %v1024, %v1016
        %v1145 = vpack.c.b16 %v1025, %v1017
        %v1146 = vpack.c.b16 %v1034, %v1026
        %v1147 = vpack.c.b16 %v1035, %v1027
        %v1148 = vpack.c.b16 %v1036, %v1028
        %v1149 = vpack.c.b16 %v1037, %v1029
        %v1150 = vpack.c.b16 %v1038, %v1030
        %v1151 = vpack.c.b16 %v1039, %v1031
        %v1152 = vpack.c.b16 %v1040, %v1032
        %v1153 = vpack.c.b16 %v1041, %v1033
        %v1154 = vpack.c.b16 %v1050, %v1042
        %v1155 = vpack.c.b16 %v1051, %v1043
        %v1156 = vpack.c.b16 %v1052, %v1044
        %v1157 = vpack.c.b16 %v1053, %v1045
        %v1158 = vpack.c.b16 %v1054, %v1046
        %v1159 = vpack.c.b16 %v1055, %v1047
        %v1160 = vpack.c.b16 %v1056, %v1048
        %v1161 = vpack.c.b16 %v1057, %v1049
        %v1162 = vpack.c.b16 %v1066, %v1058
        %v1163 = vpack.c.b16 %v1067, %v1059
        %v1164 = vpack.c.b16 %v1068, %v1060
        %v1165 = vpack.c.b16 %v1069, %v1061
        %v1166 = vpack.c.b16 %v1070, %v1062
        %v1167 = vpack.c.b16 %v1071, %v1063
        %v1168 = vpack.c.b16 %v1072, %v1064
        %v1169 = vpack.c.b16 %v1073, %v1065
        %v1170 = vpack.c.b16 %v1082, %v1074
        %v1171 = vpack.c.b16 %v1083, %v1075
        %v1172 = vpack.c.b16 %v1084, %v1076
        %v1173 = vpack.c.b16 %v1085, %v1077
        %v1174 = vpack.c.b16 %v1086, %v1078
        %v1175 = vpack.c.b16 %v1087, %v1079
        %v1176 = vpack.c.b16 %v1088, %v1080
        %v1177 = vpack.c.b16 %v1089, %v1081
        %v1178 = vpack.c.b16 %v1098, %v1090
        %v1179 = vpack.c.b16 %v1099, %v1091
        %v1180 = vpack.c.b16 %v1100, %v1092
        %v1181 = vpack.c.b16 %v1101, %v1093
        %v1182 = vpack.c.b16 %v1102, %v1094
        %v1183 = vpack.c.b16 %v1103, %v1095
        %v1184 = vpack.c.b16 %v1104, %v1096
        %v1185 = vpack.c.b16 %v1105, %v1097
        %v1186 = vpack.c.b16 %v1114, %v1106
        %v1187 = vpack.c.b16 %v1115, %v1107
        %v1188 = vpack.c.b16 %v1116, %v1108
        %v1189 = vpack.c.b16 %v1117, %v1109
        %v1190 = vpack.c.b16 %v1118, %v1110
        %v1191 = vpack.c.b16 %v1119, %v1111
        %v1192 = vpack.c.b16 %v1120, %v1112
        %v1193 = vpack.c.b16 %v1121, %v1113
        %v1194 = vpack.c.b16 %v1130, %v1122
        %v1195 = vpack.c.b16 %v1131, %v1123
        %v1196 = vpack.c.b16 %v1132, %v1124
        %v1197 = vpack.c.b16 %v1133, %v1125
        %v1198 = vpack.c.b16 %v1134, %v1126
        %v1199 = vpack.c.b16 %v1135, %v1127
        %v1200 = vpack.c.b16 %v1136, %v1128
        %v1201 = vpack.c.b16 %v1137, %v1129
        %1266 = vmatprep.subr.bf16.mxu0 %v1139
        %1267 = vmatpush1.bf16.msra.mxu0 %v1138
        %1268 = vmatprep.subr.bf16.mxu0 %v1147
        %1269 = vmatpush1.bf16.msra.mxu0 %v1146
        %1270 = vmatprep.subr.bf16.mxu0 %v1155
        %1271 = vmatpush1.bf16.msra.mxu0 %v1154
        %1272 = vmatprep.subr.bf16.mxu0 %v1163
        %1273 = vmatpush1.bf16.msra.mxu0 %v1162
        %1274 = vmatprep.subr.bf16.mxu0 %v1171
        %1275 = vmatpush1.bf16.msra.mxu0 %v1170
        %1276 = vmatprep.subr.bf16.mxu0 %v1179
        %1277 = vmatpush1.bf16.msra.mxu0 %v1178
        %1278 = vmatprep.subr.bf16.mxu0 %v1187
        %1279 = vmatpush1.bf16.msra.mxu0 %v1186
        %1280 = vmatprep.subr.bf16.mxu0 %v1195
        %1281 = vmatpush1.bf16.msra.mxu0 %v1194
        %1282 = vmatprep.subr.bf16.mxu0 0
        %1283 = vmatpush1.bf16.msra.mxu0 0
        %1284 = vmatprep.subr.bf16.mxu0 0
        %1285 = vmatpush1.bf16.msra.mxu0 0
        %1286 = vmatprep.subr.bf16.mxu0 0
        %1287 = vmatpush1.bf16.msra.mxu0 0
        %1288 = vmatprep.subr.bf16.mxu0 0
        %1289 = vmatpush1.bf16.msra.mxu0 0
        %1290 = vmatprep.subr.bf16.mxu0 0
        %1291 = vmatpush1.bf16.msra.mxu0 0
        %1292 = vmatprep.subr.bf16.mxu0 0
        %1293 = vmatpush1.bf16.msra.mxu0 0
        %1294 = vmatprep.subr.bf16.mxu0 0
        %1295 = vmatpush1.bf16.msra.mxu0 0
        %1296 = vmatprep.subr.bf16.mxu0 0
        %1297 = vmatpush1.bf16.msra.mxu0 0
        %1298 = vmatprep.mubr.bf16.mxu0 0
        %1299 = vmatmul.mubr.bf16.gmra.mrb[0].mxu0 %v824
        %v1300 = vpop.f32.mrb[0].mxu0
        %v1301 = vadd.f32 %v909, %v1300
        %v1302 = vpop.f32.mrb[0].mxu0
        %v1303 = vadd.f32 %v913, %v1302
        %v1304 = vpop.f32.mrb[0].mxu0
        %v1305 = vadd.f32 %v909, %v1304
        %v1306 = vpop.f32.mrb[0].mxu0
        %v1307 = vadd.f32 %v913, %v1306
        %1308 = vmatprep.mubr.bf16.mxu0 0
        %1309 = vmatmul.mubr.bf16.gmra.mrb[0].mxu0 %v825
        %v1310 = vpop.f32.mrb[0].mxu0
        %v1311 = vadd.f32 %v909, %v1310
        %v1312 = vpop.f32.mrb[0].mxu0
        %v1313 = vadd.f32 %v913, %v1312
        %v1314 = vpop.f32.mrb[0].mxu0
        %v1315 = vadd.f32 %v909, %v1314
        %v1316 = vpop.f32.mrb[0].mxu0
        %v1317 = vadd.f32 %v913, %v1316
        %1318 = vmatprep.mubr.bf16.mxu0 0
        %1319 = vmatmul.mubr.bf16.gmra.mrb[0].mxu0 %v826
        %v1320 = vpop.f32.mrb[0].mxu0
        %v1321 = vadd.f32 %v909, %v1320
        %v1322 = vpop.f32.mrb[0].mxu0
        %v1323 = vadd.f32 %v913, %v1322
        %v1324 = vpop.f32.mrb[0].mxu0
        %v1325 = vadd.f32 %v909, %v1324
        %v1326 = vpop.f32.mrb[0].mxu0
        %v1327 = vadd.f32 %v913, %v1326
        %1328 = vmatprep.mubr.bf16.mxu0 0
        %1329 = vmatmul.mubr.bf16.gmra.mrb[0].mxu0 %v827
        %v1330 = vpop.f32.mrb[0].mxu0
        %v1331 = vadd.f32 %v909, %v1330
        %v1332 = vpop.f32.mrb[0].mxu0
        %v1333 = vadd.f32 %v913, %v1332
        %v1334 = vpop.f32.mrb[0].mxu0
        %v1335 = vadd.f32 %v909, %v1334
        %v1336 = vpop.f32.mrb[0].mxu0
        %v1337 = vadd.f32 %v913, %v1336
        %1338 = vmatprep.mubr.bf16.mxu0 0
        %1339 = vmatmul.mubr.bf16.gmra.mrb[0].mxu0 %v828
        %v1340 = vpop.f32.mrb[0].mxu0
        %v1341 = vadd.f32 %v909, %v1340
        %v1342 = vpop.f32.mrb[0].mxu0
        %v1343 = vadd.f32 %v913, %v1342
        %v1344 = vpop.f32.mrb[0].mxu0
        %v1345 = vadd.f32 %v909, %v1344
        %v1346 = vpop.f32.mrb[0].mxu0
        %v1347 = vadd.f32 %v913, %v1346
        %1348 = vmatprep.mubr.bf16.mxu0 0
        %1349 = vmatmul.mubr.bf16.gmra.mrb[0].mxu0 %v829
        %v1350 = vpop.f32.mrb[0].mxu0
        %v1351 = vadd.f32 %v909, %v1350
        %v1352 = vpop.f32.mrb[0].mxu0
        %v1353 = vadd.f32 %v913, %v1352
        %v1354 = vpop.f32.mrb[0].mxu0
        %v1355 = vadd.f32 %v909, %v1354
        %v1356 = vpop.f32.mrb[0].mxu0
        %v1357 = vadd.f32 %v913, %v1356
        %1358 = vmatprep.mubr.bf16.mxu0 0
        %1359 = vmatmul.mubr.bf16.gmra.mrb[0].mxu0 %v830
        %v1360 = vpop.f32.mrb[0].mxu0
        %v1361 = vadd.f32 %v909, %v1360
        %v1362 = vpop.f32.mrb[0].mxu0
        %v1363 = vadd.f32 %v913, %v1362
        %v1364 = vpop.f32.mrb[0].mxu0
        %v1365 = vadd.f32 %v909, %v1364
        %v1366 = vpop.f32.mrb[0].mxu0
        %v1367 = vadd.f32 %v913, %v1366
        %1368 = vmatprep.mubr.bf16.mxu0 0
        %1369 = vmatmul.mubr.bf16.gmra.mrb[0].mxu0 %v831
        %v1370 = vpop.f32.mrb[0].mxu0
        %v1371 = vadd.f32 %v909, %v1370
        %v1372 = vpop.f32.mrb[0].mxu0
        %v1373 = vadd.f32 %v913, %v1372
        %v1374 = vpop.f32.mrb[0].mxu0
        %v1375 = vadd.f32 %v909, %v1374
        %v1376 = vpop.f32.mrb[0].mxu0
        %v1377 = vadd.f32 %v913, %v1376
        %1378 = vmatprep.mubr.bf16.mxu0 0
        %1379 = vmatmul.mubr.bf16.gmra.mrb[0].mxu0 %v832
        %v1380 = vpop.f32.mrb[0].mxu0
        %v1381 = vadd.f32 %v909, %v1380
        %v1382 = vpop.f32.mrb[0].mxu0
        %v1383 = vadd.f32 %v913, %v1382
        %v1384 = vpop.f32.mrb[0].mxu0
        %v1385 = vadd.f32 %v909, %v1384
        %v1386 = vpop.f32.mrb[0].mxu0
        %v1387 = vadd.f32 %v913, %v1386
        %1388 = vmatprep.mubr.bf16.mxu0 0
        %1389 = vmatmul.mubr.bf16.gmra.mrb[0].mxu0 %v833
        %v1390 = vpop.f32.mrb[0].mxu0
        %v1391 = vadd.f32 %v909, %v1390
        %v1392 = vpop.f32.mrb[0].mxu0
        %v1393 = vadd.f32 %v913, %v1392
        %v1394 = vpop.f32.mrb[0].mxu0
        %v1395 = vadd.f32 %v909, %v1394
        %v1396 = vpop.f32.mrb[0].mxu0
        %v1397 = vadd.f32 %v913, %v1396
        %1398 = vmatprep.mubr.bf16.mxu0 0
        %1399 = vmatmul.mubr.bf16.gmra.mrb[0].mxu0 %v834
        %v1400 = vpop.f32.mrb[0].mxu0
        %v1401 = vadd.f32 %v909, %v1400
        %v1402 = vpop.f32.mrb[0].mxu0
        %v1403 = vadd.f32 %v913, %v1402
        %v1404 = vpop.f32.mrb[0].mxu0
        %v1405 = vadd.f32 %v909, %v1404
        %v1406 = vpop.f32.mrb[0].mxu0
        %v1407 = vadd.f32 %v913, %v1406
        %1408 = vmatprep.mubr.bf16.mxu0 0
        %1409 = vmatmul.mubr.bf16.gmra.mrb[0].mxu0 %v835
        %v1410 = vpop.f32.mrb[0].mxu0
        %v1411 = vadd.f32 %v909, %v1410
        %v1412 = vpop.f32.mrb[0].mxu0
        %v1413 = vadd.f32 %v913, %v1412
        %v1414 = vpop.f32.mrb[0].mxu0
        %v1415 = vadd.f32 %v909, %v1414
        %v1416 = vpop.f32.mrb[0].mxu0
        %v1417 = vadd.f32 %v913, %v1416
        %1418 = vmatprep.mubr.bf16.mxu0 0
        %1419 = vmatmul.mubr.bf16.gmra.mrb[0].mxu0 %v836
        %v1420 = vpop.f32.mrb[0].mxu0
        %v1421 = vadd.f32 %v909, %v1420
        %v1422 = vpop.f32.mrb[0].mxu0
        %v1423 = vadd.f32 %v913, %v1422
        %v1424 = vpop.f32.mrb[0].mxu0
        %v1425 = vadd.f32 %v909, %v1424
        %v1426 = vpop.f32.mrb[0].mxu0
        %v1427 = vadd.f32 %v913, %v1426
        %1428 = vmatprep.mubr.bf16.mxu0 0
        %1429 = vmatmul.mubr.bf16.gmra.mrb[0].mxu0 %v837
        %v1430 = vpop.f32.mrb[0].mxu0
        %v1431 = vadd.f32 %v909, %v1430
        %v1432 = vpop.f32.mrb[0].mxu0
        %v1433 = vadd.f32 %v913, %v1432
        %v1434 = vpop.f32.mrb[0].mxu0
        %v1435 = vadd.f32 %v909, %v1434
        %v1436 = vpop.f32.mrb[0].mxu0
        %v1437 = vadd.f32 %v913, %v1436
        %1438 = vmatprep.mubr.bf16.mxu0 0
        %1439 = vmatmul.mubr.bf16.gmra.mrb[0].mxu0 %v838
        %v1440 = vpop.f32.mrb[0].mxu0
        %v1441 = vadd.f32 %v909, %v1440
        %v1442 = vpop.f32.mrb[0].mxu0
        %v1443 = vadd.f32 %v913, %v1442
        %v1444 = vpop.f32.mrb[0].mxu0
        %v1445 = vadd.f32 %v909, %v1444
        %v1446 = vpop.f32.mrb[0].mxu0
        %v1447 = vadd.f32 %v913, %v1446
        %1448 = vmatprep.mubr.bf16.mxu0 0
        %1449 = vmatmul.mubr.bf16.gmra.mrb[0].mxu0 %v839
        %v1450 = vpop.f32.mrb[0].mxu0
        %v1451 = vadd.f32 %v909, %v1450
        %v1452 = vpop.f32.mrb[0].mxu0
        %v1453 = vadd.f32 %v913, %v1452
        %v1454 = vpop.f32.mrb[0].mxu0
        %v1455 = vadd.f32 %v909, %v1454
        %v1456 = vpop.f32.mrb[0].mxu0
        %v1457 = vadd.f32 %v913, %v1456
        %1458 = vdwg.mxu0
        %1459 = vmatprep.subr.bf16.mxu0 %v1141
        %1460 = vmatpush1.bf16.msra.mxu0 %v1140
        %1461 = vmatprep.subr.bf16.mxu0 %v1149
        %1462 = vmatpush1.bf16.msra.mxu0 %v1148
        %1463 = vmatprep.subr.bf16.mxu0 %v1157
        %1464 = vmatpush1.bf16.msra.mxu0 %v1156
        %1465 = vmatprep.subr.bf16.mxu0 %v1165
        %1466 = vmatpush1.bf16.msra.mxu0 %v1164
        %1467 = vmatprep.subr.bf16.mxu0 %v1173
        %1468 = vmatpush1.bf16.msra.mxu0 %v1172
        %1469 = vmatprep.subr.bf16.mxu0 %v1181
        %1470 = vmatpush1.bf16.msra.mxu0 %v1180
        %1471 = vmatprep.subr.bf16.mxu0 %v1189
        %1472 = vmatpush1.bf16.msra.mxu0 %v1188
        %1473 = vmatprep.subr.bf16.mxu0 %v1197
        %1474 = vmatpush1.bf16.msra.mxu0 %v1196
        %1475 = vmatprep.subr.bf16.mxu0 0
        %1476 = vmatpush1.bf16.msra.mxu0 0
        %1477 = vmatprep.subr.bf16.mxu0 0
        %1478 = vmatpush1.bf16.msra.mxu0 0
        %1479 = vmatprep.subr.bf16.mxu0 0
        %1480 = vmatpush1.bf16.msra.mxu0 0
        %1481 = vmatprep.subr.bf16.mxu0 0
        %1482 = vmatpush1.bf16.msra.mxu0 0
        %1483 = vmatprep.subr.bf16.mxu0 0
        %1484 = vmatpush1.bf16.msra.mxu0 0
        %1485 = vmatprep.subr.bf16.mxu0 0
        %1486 = vmatpush1.bf16.msra.mxu0 0
        %1487 = vmatprep.subr.bf16.mxu0 0
        %1488 = vmatpush1.bf16.msra.mxu0 0
        %1489 = vmatprep.subr.bf16.mxu0 0
        %1490 = vmatpush1.bf16.msra.mxu0 0
        %1491 = vmatprep.mubr.bf16.mxu0 0
        %1492 = vmatmul.mubr.bf16.gmra.mrb[0].mxu0 %v824
        %v1493 = vpop.f32.mrb[0].mxu0
        %v1494 = vadd.f32 %v917, %v1493
        %v1495 = vpop.f32.mrb[0].mxu0
        %v1496 = vadd.f32 %v921, %v1495
        %v1497 = vpop.f32.mrb[0].mxu0
        %v1498 = vadd.f32 %v917, %v1497
        %v1499 = vpop.f32.mrb[0].mxu0
        %v1500 = vadd.f32 %v921, %v1499
        %1501 = vmatprep.mubr.bf16.mxu0 0
        %1502 = vmatmul.mubr.bf16.gmra.mrb[0].mxu0 %v825
        %v1503 = vpop.f32.mrb[0].mxu0
        %v1504 = vadd.f32 %v917, %v1503
        %v1505 = vpop.f32.mrb[0].mxu0
        %v1506 = vadd.f32 %v921, %v1505
        %v1507 = vpop.f32.mrb[0].mxu0
        %v1508 = vadd.f32 %v917, %v1507
        %v1509 = vpop.f32.mrb[0].mxu0
        %v1510 = vadd.f32 %v921, %v1509
        %1511 = vmatprep.mubr.bf16.mxu0 0
        %1512 = vmatmul.mubr.bf16.gmra.mrb[0].mxu0 %v826
        %v1513 = vpop.f32.mrb[0].mxu0
        %v1514 = vadd.f32 %v917, %v1513
        %v1515 = vpop.f32.mrb[0].mxu0
        %v1516 = vadd.f32 %v921, %v1515
        %v1517 = vpop.f32.mrb[0].mxu0
        %v1518 = vadd.f32 %v917, %v1517
        %v1519 = vpop.f32.mrb[0].mxu0
        %v1520 = vadd.f32 %v921, %v1519
        %1521 = vmatprep.mubr.bf16.mxu0 0
        %1522 = vmatmul.mubr.bf16.gmra.mrb[0].mxu0 %v827
        %v1523 = vpop.f32.mrb[0].mxu0
        %v1524 = vadd.f32 %v917, %v1523
        %v1525 = vpop.f32.mrb[0].mxu0
        %v1526 = vadd.f32 %v921, %v1525
        %v1527 = vpop.f32.mrb[0].mxu0
        %v1528 = vadd.f32 %v917, %v1527
        %v1529 = vpop.f32.mrb[0].mxu0
        %v1530 = vadd.f32 %v921, %v1529
        %1531 = vmatprep.mubr.bf16.mxu0 0
        %1532 = vmatmul.mubr.bf16.gmra.mrb[0].mxu0 %v828
        %v1533 = vpop.f32.mrb[0].mxu0
        %v1534 = vadd.f32 %v917, %v1533
        %v1535 = vpop.f32.mrb[0].mxu0
        %v1536 = vadd.f32 %v921, %v1535
        %v1537 = vpop.f32.mrb[0].mxu0
        %v1538 = vadd.f32 %v917, %v1537
        %v1539 = vpop.f32.mrb[0].mxu0
        %v1540 = vadd.f32 %v921, %v1539
        %1541 = vmatprep.mubr.bf16.mxu0 0
        %1542 = vmatmul.mubr.bf16.gmra.mrb[0].mxu0 %v829
        %v1543 = vpop.f32.mrb[0].mxu0
        %v1544 = vadd.f32 %v917, %v1543
        %v1545 = vpop.f32.mrb[0].mxu0
        %v1546 = vadd.f32 %v921, %v1545
        %v1547 = vpop.f32.mrb[0].mxu0
        %v1548 = vadd.f32 %v917, %v1547
        %v1549 = vpop.f32.mrb[0].mxu0
        %v1550 = vadd.f32 %v921, %v1549
        %1551 = vmatprep.mubr.bf16.mxu0 0
        %1552 = vmatmul.mubr.bf16.gmra.mrb[0].mxu0 %v830
        %v1553 = vpop.f32.mrb[0].mxu0
        %v1554 = vadd.f32 %v917, %v1553
        %v1555 = vpop.f32.mrb[0].mxu0
        %v1556 = vadd.f32 %v921, %v1555
        %v1557 = vpop.f32.mrb[0].mxu0
        %v1558 = vadd.f32 %v917, %v1557
        %v1559 = vpop.f32.mrb[0].mxu0
        %v1560 = vadd.f32 %v921, %v1559
        %1561 = vmatprep.mubr.bf16.mxu0 0
        %1562 = vmatmul.mubr.bf16.gmra.mrb[0].mxu0 %v831
        %v1563 = vpop.f32.mrb[0].mxu0
        %v1564 = vadd.f32 %v917, %v1563
        %v1565 = vpop.f32.mrb[0].mxu0
        %v1566 = vadd.f32 %v921, %v1565
        %v1567 = vpop.f32.mrb[0].mxu0
        %v1568 = vadd.f32 %v917, %v1567
        %v1569 = vpop.f32.mrb[0].mxu0
        %v1570 = vadd.f32 %v921, %v1569
        %1571 = vmatprep.mubr.bf16.mxu0 0
        %1572 = vmatmul.mubr.bf16.gmra.mrb[0].mxu0 %v832
        %v1573 = vpop.f32.mrb[0].mxu0
        %v1574 = vadd.f32 %v917, %v1573
        %v1575 = vpop.f32.mrb[0].mxu0
        %v1576 = vadd.f32 %v921, %v1575
        %v1577 = vpop.f32.mrb[0].mxu0
        %v1578 = vadd.f32 %v917, %v1577
        %v1579 = vpop.f32.mrb[0].mxu0
        %v1580 = vadd.f32 %v921, %v1579
        %1581 = vmatprep.mubr.bf16.mxu0 0
        %1582 = vmatmul.mubr.bf16.gmra.mrb[0].mxu0 %v833
        %v1583 = vpop.f32.mrb[0].mxu0
        %v1584 = vadd.f32 %v917, %v1583
        %v1585 = vpop.f32.mrb[0].mxu0
        %v1586 = vadd.f32 %v921, %v1585
        %v1587 = vpop.f32.mrb[0].mxu0
        %v1588 = vadd.f32 %v917, %v1587
        %v1589 = vpop.f32.mrb[0].mxu0
        %v1590 = vadd.f32 %v921, %v1589
        %1591 = vmatprep.mubr.bf16.mxu0 0
        %1592 = vmatmul.mubr.bf16.gmra.mrb[0].mxu0 %v834
        %v1593 = vpop.f32.mrb[0].mxu0
        %v1594 = vadd.f32 %v917, %v1593
        %v1595 = vpop.f32.mrb[0].mxu0
        %v1596 = vadd.f32 %v921, %v1595
        %v1597 = vpop.f32.mrb[0].mxu0
        %v1598 = vadd.f32 %v917, %v1597
        %v1599 = vpop.f32.mrb[0].mxu0
        %v1600 = vadd.f32 %v921, %v1599
        %1601 = vmatprep.mubr.bf16.mxu0 0
        %1602 = vmatmul.mubr.bf16.gmra.mrb[0].mxu0 %v835
        %v1603 = vpop.f32.mrb[0].mxu0
        %v1604 = vadd.f32 %v917, %v1603
        %v1605 = vpop.f32.mrb[0].mxu0
        %v1606 = vadd.f32 %v921, %v1605
        %v1607 = vpop.f32.mrb[0].mxu0
        %v1608 = vadd.f32 %v917, %v1607
        %v1609 = vpop.f32.mrb[0].mxu0
        %v1610 = vadd.f32 %v921, %v1609
        %1611 = vmatprep.mubr.bf16.mxu0 0
        %1612 = vmatmul.mubr.bf16.gmra.mrb[0].mxu0 %v836
        %v1613 = vpop.f32.mrb[0].mxu0
        %v1614 = vadd.f32 %v917, %v1613
        %v1615 = vpop.f32.mrb[0].mxu0
        %v1616 = vadd.f32 %v921, %v1615
        %v1617 = vpop.f32.mrb[0].mxu0
        %v1618 = vadd.f32 %v917, %v1617
        %v1619 = vpop.f32.mrb[0].mxu0
        %v1620 = vadd.f32 %v921, %v1619
        %1621 = vmatprep.mubr.bf16.mxu0 0
        %1622 = vmatmul.mubr.bf16.gmra.mrb[0].mxu0 %v837
        %v1623 = vpop.f32.mrb[0].mxu0
        %v1624 = vadd.f32 %v917, %v1623
        %v1625 = vpop.f32.mrb[0].mxu0
        %v1626 = vadd.f32 %v921, %v1625
        %v1627 = vpop.f32.mrb[0].mxu0
        %v1628 = vadd.f32 %v917, %v1627
        %v1629 = vpop.f32.mrb[0].mxu0
        %v1630 = vadd.f32 %v921, %v1629
        %1631 = vmatprep.mubr.bf16.mxu0 0
        %1632 = vmatmul.mubr.bf16.gmra.mrb[0].mxu0 %v838
        %v1633 = vpop.f32.mrb[0].mxu0
        %v1634 = vadd.f32 %v917, %v1633
        %v1635 = vpop.f32.mrb[0].mxu0
        %v1636 = vadd.f32 %v921, %v1635
        %v1637 = vpop.f32.mrb[0].mxu0
        %v1638 = vadd.f32 %v917, %v1637
        %v1639 = vpop.f32.mrb[0].mxu0
        %v1640 = vadd.f32 %v921, %v1639
        %1641 = vmatprep.mubr.bf16.mxu0 0
        %1642 = vmatmul.mubr.bf16.gmra.mrb[0].mxu0 %v839
        %v1643 = vpop.f32.mrb[0].mxu0
        %v1644 = vadd.f32 %v917, %v1643
        %v1645 = vpop.f32.mrb[0].mxu0
        %v1646 = vadd.f32 %v921, %v1645
        %v1647 = vpop.f32.mrb[0].mxu0
        %v1648 = vadd.f32 %v917, %v1647
        %v1649 = vpop.f32.mrb[0].mxu0
        %v1650 = vadd.f32 %v921, %v1649
        %1651 = vdwg.mxu0
        %1652 = vmatprep.subr.bf16.mxu0 %v1143
        %1653 = vmatpush1.bf16.msra.mxu0 %v1142
        %1654 = vmatprep.subr.bf16.mxu0 %v1151
        %1655 = vmatpush1.bf16.msra.mxu0 %v1150
        %1656 = vmatprep.subr.bf16.mxu0 %v1159
        %1657 = vmatpush1.bf16.msra.mxu0 %v1158
        %1658 = vmatprep.subr.bf16.mxu0 %v1167
        %1659 = vmatpush1.bf16.msra.mxu0 %v1166
        %1660 = vmatprep.subr.bf16.mxu0 %v1175
        %1661 = vmatpush1.bf16.msra.mxu0 %v1174
        %1662 = vmatprep.subr.bf16.mxu0 %v1183
        %1663 = vmatpush1.bf16.msra.mxu0 %v1182
        %1664 = vmatprep.subr.bf16.mxu0 %v1191
        %1665 = vmatpush1.bf16.msra.mxu0 %v1190
        %1666 = vmatprep.subr.bf16.mxu0 %v1199
        %1667 = vmatpush1.bf16.msra.mxu0 %v1198
        %1668 = vmatprep.subr.bf16.mxu0 0
        %1669 = vmatpush1.bf16.msra.mxu0 0
        %1670 = vmatprep.subr.bf16.mxu0 0
        %1671 = vmatpush1.bf16.msra.mxu0 0
        %1672 = vmatprep.subr.bf16.mxu0 0
        %1673 = vmatpush1.bf16.msra.mxu0 0
        %1674 = vmatprep.subr.bf16.mxu0 0
        %1675 = vmatpush1.bf16.msra.mxu0 0
        %1676 = vmatprep.subr.bf16.mxu0 0
        %1677 = vmatpush1.bf16.msra.mxu0 0
        %1678 = vmatprep.subr.bf16.mxu0 0
        %1679 = vmatpush1.bf16.msra.mxu0 0
        %1680 = vmatprep.subr.bf16.mxu0 0
        %1681 = vmatpush1.bf16.msra.mxu0 0
        %1682 = vmatprep.subr.bf16.mxu0 0
        %1683 = vmatpush1.bf16.msra.mxu0 0
        %1684 = vmatprep.mubr.bf16.mxu0 0
        %1685 = vmatmul.mubr.bf16.gmra.mrb[0].mxu0 %v824
        %v1686 = vpop.f32.mrb[0].mxu0
        %v1687 = vadd.f32 %v925, %v1686
        %v1688 = vpop.f32.mrb[0].mxu0
        %v1689 = vadd.f32 %v929, %v1688
        %v1690 = vpop.f32.mrb[0].mxu0
        %v1691 = vadd.f32 %v925, %v1690
        %v1692 = vpop.f32.mrb[0].mxu0
        %v1693 = vadd.f32 %v929, %v1692
        %1694 = vmatprep.mubr.bf16.mxu0 0
        %1695 = vmatmul.mubr.bf16.gmra.mrb[0].mxu0 %v825
        %v1696 = vpop.f32.mrb[0].mxu0
        %v1697 = vadd.f32 %v925, %v1696
        %v1698 = vpop.f32.mrb[0].mxu0
        %v1699 = vadd.f32 %v929, %v1698
        %v1700 = vpop.f32.mrb[0].mxu0
        %v1701 = vadd.f32 %v925, %v1700
        %v1702 = vpop.f32.mrb[0].mxu0
        %v1703 = vadd.f32 %v929, %v1702
        %1704 = vmatprep.mubr.bf16.mxu0 0
        %1705 = vmatmul.mubr.bf16.gmra.mrb[0].mxu0 %v826
        %v1706 = vpop.f32.mrb[0].mxu0
        %v1707 = vadd.f32 %v925, %v1706
        %v1708 = vpop.f32.mrb[0].mxu0
        %v1709 = vadd.f32 %v929, %v1708
        %v1710 = vpop.f32.mrb[0].mxu0
        %v1711 = vadd.f32 %v925, %v1710
        %v1712 = vpop.f32.mrb[0].mxu0
        %v1713 = vadd.f32 %v929, %v1712
        %1714 = vmatprep.mubr.bf16.mxu0 0
        %1715 = vmatmul.mubr.bf16.gmra.mrb[0].mxu0 %v827
        %v1716 = vpop.f32.mrb[0].mxu0
        %v1717 = vadd.f32 %v925, %v1716
        %v1718 = vpop.f32.mrb[0].mxu0
        %v1719 = vadd.f32 %v929, %v1718
        %v1720 = vpop.f32.mrb[0].mxu0
        %v1721 = vadd.f32 %v925, %v1720
        %v1722 = vpop.f32.mrb[0].mxu0
        %v1723 = vadd.f32 %v929, %v1722
        %1724 = vmatprep.mubr.bf16.mxu0 0
        %1725 = vmatmul.mubr.bf16.gmra.mrb[0].mxu0 %v828
        %v1726 = vpop.f32.mrb[0].mxu0
        %v1727 = vadd.f32 %v925, %v1726
        %v1728 = vpop.f32.mrb[0].mxu0
        %v1729 = vadd.f32 %v929, %v1728
        %v1730 = vpop.f32.mrb[0].mxu0
        %v1731 = vadd.f32 %v925, %v1730
        %v1732 = vpop.f32.mrb[0].mxu0
        %v1733 = vadd.f32 %v929, %v1732
        %1734 = vmatprep.mubr.bf16.mxu0 0
        %1735 = vmatmul.mubr.bf16.gmra.mrb[0].mxu0 %v829
        %v1736 = vpop.f32.mrb[0].mxu0
        %v1737 = vadd.f32 %v925, %v1736
        %v1738 = vpop.f32.mrb[0].mxu0
        %v1739 = vadd.f32 %v929, %v1738
        %v1740 = vpop.f32.mrb[0].mxu0
        %v1741 = vadd.f32 %v925, %v1740
        %v1742 = vpop.f32.mrb[0].mxu0
        %v1743 = vadd.f32 %v929, %v1742
        %1744 = vmatprep.mubr.bf16.mxu0 0
        %1745 = vmatmul.mubr.bf16.gmra.mrb[0].mxu0 %v830
        %v1746 = vpop.f32.mrb[0].mxu0
        %v1747 = vadd.f32 %v925, %v1746
        %v1748 = vpop.f32.mrb[0].mxu0
        %v1749 = vadd.f32 %v929, %v1748
        %v1750 = vpop.f32.mrb[0].mxu0
        %v1751 = vadd.f32 %v925, %v1750
        %v1752 = vpop.f32.mrb[0].mxu0
        %v1753 = vadd.f32 %v929, %v1752
        %1754 = vmatprep.mubr.bf16.mxu0 0
        %1755 = vmatmul.mubr.bf16.gmra.mrb[0].mxu0 %v831
        %v1756 = vpop.f32.mrb[0].mxu0
        %v1757 = vadd.f32 %v925, %v1756
        %v1758 = vpop.f32.mrb[0].mxu0
        %v1759 = vadd.f32 %v929, %v1758
        %v1760 = vpop.f32.mrb[0].mxu0
        %v1761 = vadd.f32 %v925, %v1760
        %v1762 = vpop.f32.mrb[0].mxu0
        %v1763 = vadd.f32 %v929, %v1762
        %1764 = vmatprep.mubr.bf16.mxu0 0
        %1765 = vmatmul.mubr.bf16.gmra.mrb[0].mxu0 %v832
        %v1766 = vpop.f32.mrb[0].mxu0
        %v1767 = vadd.f32 %v925, %v1766
        %v1768 = vpop.f32.mrb[0].mxu0
        %v1769 = vadd.f32 %v929, %v1768
        %v1770 = vpop.f32.mrb[0].mxu0
        %v1771 = vadd.f32 %v925, %v1770
        %v1772 = vpop.f32.mrb[0].mxu0
        %v1773 = vadd.f32 %v929, %v1772
        %1774 = vmatprep.mubr.bf16.mxu0 0
        %1775 = vmatmul.mubr.bf16.gmra.mrb[0].mxu0 %v833
        %v1776 = vpop.f32.mrb[0].mxu0
        %v1777 = vadd.f32 %v925, %v1776
        %v1778 = vpop.f32.mrb[0].mxu0
        %v1779 = vadd.f32 %v929, %v1778
        %v1780 = vpop.f32.mrb[0].mxu0
        %v1781 = vadd.f32 %v925, %v1780
        %v1782 = vpop.f32.mrb[0].mxu0
        %v1783 = vadd.f32 %v929, %v1782
        %1784 = vmatprep.mubr.bf16.mxu0 0
        %1785 = vmatmul.mubr.bf16.gmra.mrb[0].mxu0 %v834
        %v1786 = vpop.f32.mrb[0].mxu0
        %v1787 = vadd.f32 %v925, %v1786
        %v1788 = vpop.f32.mrb[0].mxu0
        %v1789 = vadd.f32 %v929, %v1788
        %v1790 = vpop.f32.mrb[0].mxu0
        %v1791 = vadd.f32 %v925, %v1790
        %v1792 = vpop.f32.mrb[0].mxu0
        %v1793 = vadd.f32 %v929, %v1792
        %1794 = vmatprep.mubr.bf16.mxu0 0
        %1795 = vmatmul.mubr.bf16.gmra.mrb[0].mxu0 %v835
        %v1796 = vpop.f32.mrb[0].mxu0
        %v1797 = vadd.f32 %v925, %v1796
        %v1798 = vpop.f32.mrb[0].mxu0
        %v1799 = vadd.f32 %v929, %v1798
        %v1800 = vpop.f32.mrb[0].mxu0
        %v1801 = vadd.f32 %v925, %v1800
        %v1802 = vpop.f32.mrb[0].mxu0
        %v1803 = vadd.f32 %v929, %v1802
        %1804 = vmatprep.mubr.bf16.mxu0 0
        %1805 = vmatmul.mubr.bf16.gmra.mrb[0].mxu0 %v836
        %v1806 = vpop.f32.mrb[0].mxu0
        %v1807 = vadd.f32 %v925, %v1806
        %v1808 = vpop.f32.mrb[0].mxu0
        %v1809 = vadd.f32 %v929, %v1808
        %v1810 = vpop.f32.mrb[0].mxu0
        %v1811 = vadd.f32 %v925, %v1810
        %v1812 = vpop.f32.mrb[0].mxu0
        %v1813 = vadd.f32 %v929, %v1812
        %1814 = vmatprep.mubr.bf16.mxu0 0
        %1815 = vmatmul.mubr.bf16.gmra.mrb[0].mxu0 %v837
        %v1816 = vpop.f32.mrb[0].mxu0
        %v1817 = vadd.f32 %v925, %v1816
        %v1818 = vpop.f32.mrb[0].mxu0
        %v1819 = vadd.f32 %v929, %v1818
        %v1820 = vpop.f32.mrb[0].mxu0
        %v1821 = vadd.f32 %v925, %v1820
        %v1822 = vpop.f32.mrb[0].mxu0
        %v1823 = vadd.f32 %v929, %v1822
        %1824 = vmatprep.mubr.bf16.mxu0 0
        %1825 = vmatmul.mubr.bf16.gmra.mrb[0].mxu0 %v838
        %v1826 = vpop.f32.mrb[0].mxu0
        %v1827 = vadd.f32 %v925, %v1826
        %v1828 = vpop.f32.mrb[0].mxu0
        %v1829 = vadd.f32 %v929, %v1828
        %v1830 = vpop.f32.mrb[0].mxu0
        %v1831 = vadd.f32 %v925, %v1830
        %v1832 = vpop.f32.mrb[0].mxu0
        %v1833 = vadd.f32 %v929, %v1832
        %1834 = vmatprep.mubr.bf16.mxu0 0
        %1835 = vmatmul.mubr.bf16.gmra.mrb[0].mxu0 %v839
        %v1836 = vpop.f32.mrb[0].mxu0
        %v1837 = vadd.f32 %v925, %v1836
        %v1838 = vpop.f32.mrb[0].mxu0
        %v1839 = vadd.f32 %v929, %v1838
        %v1840 = vpop.f32.mrb[0].mxu0
        %v1841 = vadd.f32 %v925, %v1840
        %v1842 = vpop.f32.mrb[0].mxu0
        %v1843 = vadd.f32 %v929, %v1842
        %1844 = vdwg.mxu0
        %1845 = vmatprep.subr.bf16.mxu0 %v1145
        %1846 = vmatpush1.bf16.msra.mxu0 %v1144
        %1847 = vmatprep.subr.bf16.mxu0 %v1153
        %1848 = vmatpush1.bf16.msra.mxu0 %v1152
        %1849 = vmatprep.subr.bf16.mxu0 %v1161
        %1850 = vmatpush1.bf16.msra.mxu0 %v1160
        %1851 = vmatprep.subr.bf16.mxu0 %v1169
        %1852 = vmatpush1.bf16.msra.mxu0 %v1168
        %1853 = vmatprep.subr.bf16.mxu0 %v1177
        %1854 = vmatpush1.bf16.msra.mxu0 %v1176
        %1855 = vmatprep.subr.bf16.mxu0 %v1185
        %1856 = vmatpush1.bf16.msra.mxu0 %v1184
        %1857 = vmatprep.subr.bf16.mxu0 %v1193
        %1858 = vmatpush1.bf16.msra.mxu0 %v1192
        %1859 = vmatprep.subr.bf16.mxu0 %v1201
        %1860 = vmatpush1.bf16.msra.mxu0 %v1200
        %1861 = vmatprep.subr.bf16.mxu0 0
        %1862 = vmatpush1.bf16.msra.mxu0 0
        %1863 = vmatprep.subr.bf16.mxu0 0
        %1864 = vmatpush1.bf16.msra.mxu0 0
        %1865 = vmatprep.subr.bf16.mxu0 0
        %1866 = vmatpush1.bf16.msra.mxu0 0
        %1867 = vmatprep.subr.bf16.mxu0 0
        %1868 = vmatpush1.bf16.msra.mxu0 0
        %1869 = vmatprep.subr.bf16.mxu0 0
        %1870 = vmatpush1.bf16.msra.mxu0 0
        %1871 = vmatprep.subr.bf16.mxu0 0
        %1872 = vmatpush1.bf16.msra.mxu0 0
        %1873 = vmatprep.subr.bf16.mxu0 0
        %1874 = vmatpush1.bf16.msra.mxu0 0
        %1875 = vmatprep.subr.bf16.mxu0 0
        %1876 = vmatpush1.bf16.msra.mxu0 0
        %1877 = vmatprep.mubr.bf16.mxu0 0
        %1878 = vmatmul.mubr.bf16.gmra.mrb[0].mxu0 %v824
        %v1879 = vpop.f32.mrb[0].mxu0
        %v1880 = vadd.f32 %v933, %v1879
        %v1881 = vpop.f32.mrb[0].mxu0
        %v1882 = vadd.f32 %v937, %v1881
        %v1883 = vpop.f32.mrb[0].mxu0
        %v1884 = vadd.f32 %v933, %v1883
        %v1885 = vpop.f32.mrb[0].mxu0
        %v1886 = vadd.f32 %v937, %v1885
        %1887 = vmatprep.mubr.bf16.mxu0 0
        %1888 = vmatmul.mubr.bf16.gmra.mrb[0].mxu0 %v825
        %v1889 = vpop.f32.mrb[0].mxu0
        %v1890 = vadd.f32 %v933, %v1889
        %v1891 = vpop.f32.mrb[0].mxu0
        %v1892 = vadd.f32 %v937, %v1891
        %v1893 = vpop.f32.mrb[0].mxu0
        %v1894 = vadd.f32 %v933, %v1893
        %v1895 = vpop.f32.mrb[0].mxu0
        %v1896 = vadd.f32 %v937, %v1895
        %1897 = vmatprep.mubr.bf16.mxu0 0
        %1898 = vmatmul.mubr.bf16.gmra.mrb[0].mxu0 %v826
        %v1899 = vpop.f32.mrb[0].mxu0
        %v1900 = vadd.f32 %v933, %v1899
        %v1901 = vpop.f32.mrb[0].mxu0
        %v1902 = vadd.f32 %v937, %v1901
        %v1903 = vpop.f32.mrb[0].mxu0
        %v1904 = vadd.f32 %v933, %v1903
        %v1905 = vpop.f32.mrb[0].mxu0
        %v1906 = vadd.f32 %v937, %v1905
        %1907 = vmatprep.mubr.bf16.mxu0 0
        %1908 = vmatmul.mubr.bf16.gmra.mrb[0].mxu0 %v827
        %v1909 = vpop.f32.mrb[0].mxu0
        %v1910 = vadd.f32 %v933, %v1909
        %v1911 = vpop.f32.mrb[0].mxu0
        %v1912 = vadd.f32 %v937, %v1911
        %v1913 = vpop.f32.mrb[0].mxu0
        %v1914 = vadd.f32 %v933, %v1913
        %v1915 = vpop.f32.mrb[0].mxu0
        %v1916 = vadd.f32 %v937, %v1915
        %1917 = vmatprep.mubr.bf16.mxu0 0
        %1918 = vmatmul.mubr.bf16.gmra.mrb[0].mxu0 %v828
        %v1919 = vpop.f32.mrb[0].mxu0
        %v1920 = vadd.f32 %v933, %v1919
        %v1921 = vpop.f32.mrb[0].mxu0
        %v1922 = vadd.f32 %v937, %v1921
        %v1923 = vpop.f32.mrb[0].mxu0
        %v1924 = vadd.f32 %v933, %v1923
        %v1925 = vpop.f32.mrb[0].mxu0
        %v1926 = vadd.f32 %v937, %v1925
        %1927 = vmatprep.mubr.bf16.mxu0 0
        %1928 = vmatmul.mubr.bf16.gmra.mrb[0].mxu0 %v829
        %v1929 = vpop.f32.mrb[0].mxu0
        %v1930 = vadd.f32 %v933, %v1929
        %v1931 = vpop.f32.mrb[0].mxu0
        %v1932 = vadd.f32 %v937, %v1931
        %v1933 = vpop.f32.mrb[0].mxu0
        %v1934 = vadd.f32 %v933, %v1933
        %v1935 = vpop.f32.mrb[0].mxu0
        %v1936 = vadd.f32 %v937, %v1935
        %1937 = vmatprep.mubr.bf16.mxu0 0
        %1938 = vmatmul.mubr.bf16.gmra.mrb[0].mxu0 %v830
        %v1939 = vpop.f32.mrb[0].mxu0
        %v1940 = vadd.f32 %v933, %v1939
        %v1941 = vpop.f32.mrb[0].mxu0
        %v1942 = vadd.f32 %v937, %v1941
        %v1943 = vpop.f32.mrb[0].mxu0
        %v1944 = vadd.f32 %v933, %v1943
        %v1945 = vpop.f32.mrb[0].mxu0
        %v1946 = vadd.f32 %v937, %v1945
        %1947 = vmatprep.mubr.bf16.mxu0 0
        %1948 = vmatmul.mubr.bf16.gmra.mrb[0].mxu0 %v831
        %v1949 = vpop.f32.mrb[0].mxu0
        %v1950 = vadd.f32 %v933, %v1949
        %v1951 = vpop.f32.mrb[0].mxu0
        %v1952 = vadd.f32 %v937, %v1951
        %v1953 = vpop.f32.mrb[0].mxu0
        %v1954 = vadd.f32 %v933, %v1953
        %v1955 = vpop.f32.mrb[0].mxu0
        %v1956 = vadd.f32 %v937, %v1955
        %1957 = vmatprep.mubr.bf16.mxu0 0
        %1958 = vmatmul.mubr.bf16.gmra.mrb[0].mxu0 %v832
        %v1959 = vpop.f32.mrb[0].mxu0
        %v1960 = vadd.f32 %v933, %v1959
        %v1961 = vpop.f32.mrb[0].mxu0
        %v1962 = vadd.f32 %v937, %v1961
        %v1963 = vpop.f32.mrb[0].mxu0
        %v1964 = vadd.f32 %v933, %v1963
        %v1965 = vpop.f32.mrb[0].mxu0
        %v1966 = vadd.f32 %v937, %v1965
        %1967 = vmatprep.mubr.bf16.mxu0 0
        %1968 = vmatmul.mubr.bf16.gmra.mrb[0].mxu0 %v833
        %v1969 = vpop.f32.mrb[0].mxu0
        %v1970 = vadd.f32 %v933, %v1969
        %v1971 = vpop.f32.mrb[0].mxu0
        %v1972 = vadd.f32 %v937, %v1971
        %v1973 = vpop.f32.mrb[0].mxu0
        %v1974 = vadd.f32 %v933, %v1973
        %v1975 = vpop.f32.mrb[0].mxu0
        %v1976 = vadd.f32 %v937, %v1975
        %1977 = vmatprep.mubr.bf16.mxu0 0
        %1978 = vmatmul.mubr.bf16.gmra.mrb[0].mxu0 %v834
        %v1979 = vpop.f32.mrb[0].mxu0
        %v1980 = vadd.f32 %v933, %v1979
        %v1981 = vpop.f32.mrb[0].mxu0
        %v1982 = vadd.f32 %v937, %v1981
        %v1983 = vpop.f32.mrb[0].mxu0
        %v1984 = vadd.f32 %v933, %v1983
        %v1985 = vpop.f32.mrb[0].mxu0
        %v1986 = vadd.f32 %v937, %v1985
        %1987 = vmatprep.mubr.bf16.mxu0 0
        %1988 = vmatmul.mubr.bf16.gmra.mrb[0].mxu0 %v835
        %v1989 = vpop.f32.mrb[0].mxu0
        %v1990 = vadd.f32 %v933, %v1989
        %v1991 = vpop.f32.mrb[0].mxu0
        %v1992 = vadd.f32 %v937, %v1991
        %v1993 = vpop.f32.mrb[0].mxu0
        %v1994 = vadd.f32 %v933, %v1993
        %v1995 = vpop.f32.mrb[0].mxu0
        %v1996 = vadd.f32 %v937, %v1995
        %1997 = vmatprep.mubr.bf16.mxu0 0
        %1998 = vmatmul.mubr.bf16.gmra.mrb[0].mxu0 %v836
        %v1999 = vpop.f32.mrb[0].mxu0
        %v2000 = vadd.f32 %v933, %v1999
        %v2001 = vpop.f32.mrb[0].mxu0
        %v2002 = vadd.f32 %v937, %v2001
        %v2003 = vpop.f32.mrb[0].mxu0
        %v2004 = vadd.f32 %v933, %v2003
        %v2005 = vpop.f32.mrb[0].mxu0
        %v2006 = vadd.f32 %v937, %v2005
        %2007 = vmatprep.mubr.bf16.mxu0 0
        %2008 = vmatmul.mubr.bf16.gmra.mrb[0].mxu0 %v837
        %v2009 = vpop.f32.mrb[0].mxu0
        %v2010 = vadd.f32 %v933, %v2009
        %v2011 = vpop.f32.mrb[0].mxu0
        %v2012 = vadd.f32 %v937, %v2011
        %v2013 = vpop.f32.mrb[0].mxu0
        %v2014 = vadd.f32 %v933, %v2013
        %v2015 = vpop.f32.mrb[0].mxu0
        %v2016 = vadd.f32 %v937, %v2015
        %2017 = vmatprep.mubr.bf16.mxu0 0
        %2018 = vmatmul.mubr.bf16.gmra.mrb[0].mxu0 %v838
        %v2019 = vpop.f32.mrb[0].mxu0
        %v2020 = vadd.f32 %v933, %v2019
        %v2021 = vpop.f32.mrb[0].mxu0
        %v2022 = vadd.f32 %v937, %v2021
        %v2023 = vpop.f32.mrb[0].mxu0
        %v2024 = vadd.f32 %v933, %v2023
        %v2025 = vpop.f32.mrb[0].mxu0
        %v2026 = vadd.f32 %v937, %v2025
        %2027 = vmatprep.mubr.bf16.mxu0 0
        %2028 = vmatmul.mubr.bf16.gmra.mrb[0].mxu0 %v839
        %v2029 = vpop.f32.mrb[0].mxu0
        %v2030 = vadd.f32 %v933, %v2029
        %v2031 = vpop.f32.mrb[0].mxu0
        %v2032 = vadd.f32 %v937, %v2031
        %v2033 = vpop.f32.mrb[0].mxu0
        %v2034 = vadd.f32 %v933, %v2033
        %v2035 = vpop.f32.mrb[0].mxu0
        %v2036 = vadd.f32 %v937, %v2035
        %2037 = vdwg.mxu0
        %v2038 = vmax.f32 %v1301, 0.0
        %v2039 = vmax.f32 %v1303, 0.0
        %v2040 = vmax.f32 %v1494, 0.0
        %v2041 = vmax.f32 %v1496, 0.0
        %v2042 = vmax.f32 %v1687, 0.0
        %v2043 = vmax.f32 %v1689, 0.0
        %v2044 = vmax.f32 %v1880, 0.0
        %v2045 = vmax.f32 %v1882, 0.0
        %v2046 = vmax.f32 %v1305, 0.0
        %v2047 = vmax.f32 %v1307, 0.0
        %v2048 = vmax.f32 %v1498, 0.0
        %v2049 = vmax.f32 %v1500, 0.0
        %v2050 = vmax.f32 %v1691, 0.0
        %v2051 = vmax.f32 %v1693, 0.0
        %v2052 = vmax.f32 %v1884, 0.0
        %v2053 = vmax.f32 %v1886, 0.0
        %v2054 = vmax.f32 %v1311, 0.0
        %v2055 = vmax.f32 %v1313, 0.0
        %v2056 = vmax.f32 %v1504, 0.0
        %v2057 = vmax.f32 %v1506, 0.0
        %v2058 = vmax.f32 %v1697, 0.0
        %v2059 = vmax.f32 %v1699, 0.0
        %v2060 = vmax.f32 %v1890, 0.0
        %v2061 = vmax.f32 %v1892, 0.0
        %v2062 = vmax.f32 %v1315, 0.0
        %v2063 = vmax.f32 %v1317, 0.0
        %v2064 = vmax.f32 %v1508, 0.0
        %v2065 = vmax.f32 %v1510, 0.0
        %v2066 = vmax.f32 %v1701, 0.0
        %v2067 = vmax.f32 %v1703, 0.0
        %v2068 = vmax.f32 %v1894, 0.0
        %v2069 = vmax.f32 %v1896, 0.0
        %v2070 = vmax.f32 %v1321, 0.0
        %v2071 = vmax.f32 %v1323, 0.0
        %v2072 = vmax.f32 %v1514, 0.0
        %v2073 = vmax.f32 %v1516, 0.0
        %v2074 = vmax.f32 %v1707, 0.0
        %v2075 = vmax.f32 %v1709, 0.0
        %v2076 = vmax.f32 %v1900, 0.0
        %v2077 = vmax.f32 %v1902, 0.0
        %v2078 = vmax.f32 %v1325, 0.0
        %v2079 = vmax.f32 %v1327, 0.0
        %v2080 = vmax.f32 %v1518, 0.0
        %v2081 = vmax.f32 %v1520, 0.0
        %v2082 = vmax.f32 %v1711, 0.0
        %v2083 = vmax.f32 %v1713, 0.0
        %v2084 = vmax.f32 %v1904, 0.0
        %v2085 = vmax.f32 %v1906, 0.0
        %v2086 = vmax.f32 %v1331, 0.0
        %v2087 = vmax.f32 %v1333, 0.0
        %v2088 = vmax.f32 %v1524, 0.0
        %v2089 = vmax.f32 %v1526, 0.0
        %v2090 = vmax.f32 %v1717, 0.0
        %v2091 = vmax.f32 %v1719, 0.0
        %v2092 = vmax.f32 %v1910, 0.0
        %v2093 = vmax.f32 %v1912, 0.0
        %v2094 = vmax.f32 %v1335, 0.0
        %v2095 = vmax.f32 %v1337, 0.0
        %v2096 = vmax.f32 %v1528, 0.0
        %v2097 = vmax.f32 %v1530, 0.0
        %v2098 = vmax.f32 %v1721, 0.0
        %v2099 = vmax.f32 %v1723, 0.0
        %v2100 = vmax.f32 %v1914, 0.0
        %v2101 = vmax.f32 %v1916, 0.0
        %v2102 = vmax.f32 %v1341, 0.0
        %v2103 = vmax.f32 %v1343, 0.0
        %v2104 = vmax.f32 %v1534, 0.0
        %v2105 = vmax.f32 %v1536, 0.0
        %v2106 = vmax.f32 %v1727, 0.0
        %v2107 = vmax.f32 %v1729, 0.0
        %v2108 = vmax.f32 %v1920, 0.0
        %v2109 = vmax.f32 %v1922, 0.0
        %v2110 = vmax.f32 %v1345, 0.0
        %v2111 = vmax.f32 %v1347, 0.0
        %v2112 = vmax.f32 %v1538, 0.0
        %v2113 = vmax.f32 %v1540, 0.0
        %v2114 = vmax.f32 %v1731, 0.0
        %v2115 = vmax.f32 %v1733, 0.0
        %v2116 = vmax.f32 %v1924, 0.0
        %v2117 = vmax.f32 %v1926, 0.0
        %v2118 = vmax.f32 %v1351, 0.0
        %v2119 = vmax.f32 %v1353, 0.0
        %v2120 = vmax.f32 %v1544, 0.0
        %v2121 = vmax.f32 %v1546, 0.0
        %v2122 = vmax.f32 %v1737, 0.0
        %v2123 = vmax.f32 %v1739, 0.0
        %v2124 = vmax.f32 %v1930, 0.0
        %v2125 = vmax.f32 %v1932, 0.0
        %v2126 = vmax.f32 %v1355, 0.0
        %v2127 = vmax.f32 %v1357, 0.0
        %v2128 = vmax.f32 %v1548, 0.0
        %v2129 = vmax.f32 %v1550, 0.0
        %v2130 = vmax.f32 %v1741, 0.0
        %v2131 = vmax.f32 %v1743, 0.0
        %v2132 = vmax.f32 %v1934, 0.0
        %v2133 = vmax.f32 %v1936, 0.0
        %v2134 = vmax.f32 %v1361, 0.0
        %v2135 = vmax.f32 %v1363, 0.0
        %v2136 = vmax.f32 %v1554, 0.0
        %v2137 = vmax.f32 %v1556, 0.0
        %v2138 = vmax.f32 %v1747, 0.0
        %v2139 = vmax.f32 %v1749, 0.0
        %v2140 = vmax.f32 %v1940, 0.0
        %v2141 = vmax.f32 %v1942, 0.0
        %v2142 = vmax.f32 %v1365, 0.0
        %v2143 = vmax.f32 %v1367, 0.0
        %v2144 = vmax.f32 %v1558, 0.0
        %v2145 = vmax.f32 %v1560, 0.0
        %v2146 = vmax.f32 %v1751, 0.0
        %v2147 = vmax.f32 %v1753, 0.0
        %v2148 = vmax.f32 %v1944, 0.0
        %v2149 = vmax.f32 %v1946, 0.0
        %v2150 = vmax.f32 %v1371, 0.0
        %v2151 = vmax.f32 %v1373, 0.0
        %v2152 = vmax.f32 %v1564, 0.0
        %v2153 = vmax.f32 %v1566, 0.0
        %v2154 = vmax.f32 %v1757, 0.0
        %v2155 = vmax.f32 %v1759, 0.0
        %v2156 = vmax.f32 %v1950, 0.0
        %v2157 = vmax.f32 %v1952, 0.0
        %v2158 = vmax.f32 %v1375, 0.0
        %v2159 = vmax.f32 %v1377, 0.0
        %v2160 = vmax.f32 %v1568, 0.0
        %v2161 = vmax.f32 %v1570, 0.0
        %v2162 = vmax.f32 %v1761, 0.0
        %v2163 = vmax.f32 %v1763, 0.0
        %v2164 = vmax.f32 %v1954, 0.0
        %v2165 = vmax.f32 %v1956, 0.0
        %v2166 = vmax.f32 %v1381, 0.0
        %v2167 = vmax.f32 %v1383, 0.0
        %v2168 = vmax.f32 %v1574, 0.0
        %v2169 = vmax.f32 %v1576, 0.0
        %v2170 = vmax.f32 %v1767, 0.0
        %v2171 = vmax.f32 %v1769, 0.0
        %v2172 = vmax.f32 %v1960, 0.0
        %v2173 = vmax.f32 %v1962, 0.0
        %v2174 = vmax.f32 %v1385, 0.0
        %v2175 = vmax.f32 %v1387, 0.0
        %v2176 = vmax.f32 %v1578, 0.0
        %v2177 = vmax.f32 %v1580, 0.0
        %v2178 = vmax.f32 %v1771, 0.0
        %v2179 = vmax.f32 %v1773, 0.0
        %v2180 = vmax.f32 %v1964, 0.0
        %v2181 = vmax.f32 %v1966, 0.0
        %v2182 = vmax.f32 %v1391, 0.0
        %v2183 = vmax.f32 %v1393, 0.0
        %v2184 = vmax.f32 %v1584, 0.0
        %v2185 = vmax.f32 %v1586, 0.0
        %v2186 = vmax.f32 %v1777, 0.0
        %v2187 = vmax.f32 %v1779, 0.0
        %v2188 = vmax.f32 %v1970, 0.0
        %v2189 = vmax.f32 %v1972, 0.0
        %v2190 = vmax.f32 %v1395, 0.0
        %v2191 = vmax.f32 %v1397, 0.0
        %v2192 = vmax.f32 %v1588, 0.0
        %v2193 = vmax.f32 %v1590, 0.0
        %v2194 = vmax.f32 %v1781, 0.0
        %v2195 = vmax.f32 %v1783, 0.0
        %v2196 = vmax.f32 %v1974, 0.0
        %v2197 = vmax.f32 %v1976, 0.0
        %v2198 = vmax.f32 %v1401, 0.0
        %v2199 = vmax.f32 %v1403, 0.0
        %v2200 = vmax.f32 %v1594, 0.0
        %v2201 = vmax.f32 %v1596, 0.0
        %v2202 = vmax.f32 %v1787, 0.0
        %v2203 = vmax.f32 %v1789, 0.0
        %v2204 = vmax.f32 %v1980, 0.0
        %v2205 = vmax.f32 %v1982, 0.0
        %v2206 = vmax.f32 %v1405, 0.0
        %v2207 = vmax.f32 %v1407, 0.0
        %v2208 = vmax.f32 %v1598, 0.0
        %v2209 = vmax.f32 %v1600, 0.0
        %v2210 = vmax.f32 %v1791, 0.0
        %v2211 = vmax.f32 %v1793, 0.0
        %v2212 = vmax.f32 %v1984, 0.0
        %v2213 = vmax.f32 %v1986, 0.0
        %v2214 = vmax.f32 %v1411, 0.0
        %v2215 = vmax.f32 %v1413, 0.0
        %v2216 = vmax.f32 %v1604, 0.0
        %v2217 = vmax.f32 %v1606, 0.0
        %v2218 = vmax.f32 %v1797, 0.0
        %v2219 = vmax.f32 %v1799, 0.0
        %v2220 = vmax.f32 %v1990, 0.0
        %v2221 = vmax.f32 %v1992, 0.0
        %v2222 = vmax.f32 %v1415, 0.0
        %v2223 = vmax.f32 %v1417, 0.0
        %v2224 = vmax.f32 %v1608, 0.0
        %v2225 = vmax.f32 %v1610, 0.0
        %v2226 = vmax.f32 %v1801, 0.0
        %v2227 = vmax.f32 %v1803, 0.0
        %v2228 = vmax.f32 %v1994, 0.0
        %v2229 = vmax.f32 %v1996, 0.0
        %v2230 = vmax.f32 %v1421, 0.0
        %v2231 = vmax.f32 %v1423, 0.0
        %v2232 = vmax.f32 %v1614, 0.0
        %v2233 = vmax.f32 %v1616, 0.0
        %v2234 = vmax.f32 %v1807, 0.0
        %v2235 = vmax.f32 %v1809, 0.0
        %v2236 = vmax.f32 %v2000, 0.0
        %v2237 = vmax.f32 %v2002, 0.0
        %v2238 = vmax.f32 %v1425, 0.0
        %v2239 = vmax.f32 %v1427, 0.0
        %v2240 = vmax.f32 %v1618, 0.0
        %v2241 = vmax.f32 %v1620, 0.0
        %v2242 = vmax.f32 %v1811, 0.0
        %v2243 = vmax.f32 %v1813, 0.0
        %v2244 = vmax.f32 %v2004, 0.0
        %v2245 = vmax.f32 %v2006, 0.0
        %v2246 = vmax.f32 %v1431, 0.0
        %v2247 = vmax.f32 %v1433, 0.0
        %v2248 = vmax.f32 %v1624, 0.0
        %v2249 = vmax.f32 %v1626, 0.0
        %v2250 = vmax.f32 %v1817, 0.0
        %v2251 = vmax.f32 %v1819, 0.0
        %v2252 = vmax.f32 %v2010, 0.0
        %v2253 = vmax.f32 %v2012, 0.0
        %v2254 = vmax.f32 %v1435, 0.0
        %v2255 = vmax.f32 %v1437, 0.0
        %v2256 = vmax.f32 %v1628, 0.0
        %v2257 = vmax.f32 %v1630, 0.0
        %v2258 = vmax.f32 %v1821, 0.0
        %v2259 = vmax.f32 %v1823, 0.0
        %v2260 = vmax.f32 %v2014, 0.0
        %v2261 = vmax.f32 %v2016, 0.0
        %v2262 = vmax.f32 %v1441, 0.0
        %v2263 = vmax.f32 %v1443, 0.0
        %v2264 = vmax.f32 %v1634, 0.0
        %v2265 = vmax.f32 %v1636, 0.0
        %v2266 = vmax.f32 %v1827, 0.0
        %v2267 = vmax.f32 %v1829, 0.0
        %v2268 = vmax.f32 %v2020, 0.0
        %v2269 = vmax.f32 %v2022, 0.0
        %v2270 = vmax.f32 %v1445, 0.0
        %v2271 = vmax.f32 %v1447, 0.0
        %v2272 = vmax.f32 %v1638, 0.0
        %v2273 = vmax.f32 %v1640, 0.0
        %v2274 = vmax.f32 %v1831, 0.0
        %v2275 = vmax.f32 %v1833, 0.0
        %v2276 = vmax.f32 %v2024, 0.0
        %v2277 = vmax.f32 %v2026, 0.0
        %v2278 = vmax.f32 %v1451, 0.0
        %v2279 = vmax.f32 %v1453, 0.0
        %v2280 = vmax.f32 %v1644, 0.0
        %v2281 = vmax.f32 %v1646, 0.0
        %v2282 = vmax.f32 %v1837, 0.0
        %v2283 = vmax.f32 %v1839, 0.0
        %v2284 = vmax.f32 %v2030, 0.0
        %v2285 = vmax.f32 %v2032, 0.0
        %v2286 = vmax.f32 %v1455, 0.0
        %v2287 = vmax.f32 %v1457, 0.0
        %v2288 = vmax.f32 %v1648, 0.0
        %v2289 = vmax.f32 %v1650, 0.0
        %v2290 = vmax.f32 %v1841, 0.0
        %v2291 = vmax.f32 %v1843, 0.0
        %v2292 = vmax.f32 %v2034, 0.0
        %v2293 = vmax.f32 %v2036, 0.0
        %v2294 = vpack.c.bf16 %v2046, %v2038
        %v2295 = vpack.c.bf16 %v2047, %v2039
        %v2296 = vpack.c.bf16 %v2048, %v2040
        %v2297 = vpack.c.bf16 %v2049, %v2041
        %v2298 = vpack.c.bf16 %v2050, %v2042
        %v2299 = vpack.c.bf16 %v2051, %v2043
        %v2300 = vpack.c.bf16 %v2052, %v2044
        %v2301 = vpack.c.bf16 %v2053, %v2045
        %v2302 = vpack.c.bf16 %v2062, %v2054
        %v2303 = vpack.c.bf16 %v2063, %v2055
        %v2304 = vpack.c.bf16 %v2064, %v2056
        %v2305 = vpack.c.bf16 %v2065, %v2057
        %v2306 = vpack.c.bf16 %v2066, %v2058
        %v2307 = vpack.c.bf16 %v2067, %v2059
        %v2308 = vpack.c.bf16 %v2068, %v2060
        %v2309 = vpack.c.bf16 %v2069, %v2061
        %v2310 = vpack.c.bf16 %v2078, %v2070
        %v2311 = vpack.c.bf16 %v2079, %v2071
        %v2312 = vpack.c.bf16 %v2080, %v2072
        %v2313 = vpack.c.bf16 %v2081, %v2073
        %v2314 = vpack.c.bf16 %v2082, %v2074
        %v2315 = vpack.c.bf16 %v2083, %v2075
        %v2316 = vpack.c.bf16 %v2084, %v2076
        %v2317 = vpack.c.bf16 %v2085, %v2077
        %v2318 = vpack.c.bf16 %v2094, %v2086
        %v2319 = vpack.c.bf16 %v2095, %v2087
        %v2320 = vpack.c.bf16 %v2096, %v2088
        %v2321 = vpack.c.bf16 %v2097, %v2089
        %v2322 = vpack.c.bf16 %v2098, %v2090
        %v2323 = vpack.c.bf16 %v2099, %v2091
        %v2324 = vpack.c.bf16 %v2100, %v2092
        %v2325 = vpack.c.bf16 %v2101, %v2093
        %v2326 = vpack.c.bf16 %v2110, %v2102
        %v2327 = vpack.c.bf16 %v2111, %v2103
        %v2328 = vpack.c.bf16 %v2112, %v2104
        %v2329 = vpack.c.bf16 %v2113, %v2105
        %v2330 = vpack.c.bf16 %v2114, %v2106
        %v2331 = vpack.c.bf16 %v2115, %v2107
        %v2332 = vpack.c.bf16 %v2116, %v2108
        %v2333 = vpack.c.bf16 %v2117, %v2109
        %v2334 = vpack.c.bf16 %v2126, %v2118
        %v2335 = vpack.c.bf16 %v2127, %v2119
        %v2336 = vpack.c.bf16 %v2128, %v2120
        %v2337 = vpack.c.bf16 %v2129, %v2121
        %v2338 = vpack.c.bf16 %v2130, %v2122
        %v2339 = vpack.c.bf16 %v2131, %v2123
        %v2340 = vpack.c.bf16 %v2132, %v2124
        %v2341 = vpack.c.bf16 %v2133, %v2125
        %v2342 = vpack.c.bf16 %v2142, %v2134
        %v2343 = vpack.c.bf16 %v2143, %v2135
        %v2344 = vpack.c.bf16 %v2144, %v2136
        %v2345 = vpack.c.bf16 %v2145, %v2137
        %v2346 = vpack.c.bf16 %v2146, %v2138
        %v2347 = vpack.c.bf16 %v2147, %v2139
        %v2348 = vpack.c.bf16 %v2148, %v2140
        %v2349 = vpack.c.bf16 %v2149, %v2141
        %v2350 = vpack.c.bf16 %v2158, %v2150
        %v2351 = vpack.c.bf16 %v2159, %v2151
        %v2352 = vpack.c.bf16 %v2160, %v2152
        %v2353 = vpack.c.bf16 %v2161, %v2153
        %v2354 = vpack.c.bf16 %v2162, %v2154
        %v2355 = vpack.c.bf16 %v2163, %v2155
        %v2356 = vpack.c.bf16 %v2164, %v2156
        %v2357 = vpack.c.bf16 %v2165, %v2157
        %v2358 = vpack.c.bf16 %v2174, %v2166
        %v2359 = vpack.c.bf16 %v2175, %v2167
        %v2360 = vpack.c.bf16 %v2176, %v2168
        %v2361 = vpack.c.bf16 %v2177, %v2169
        %v2362 = vpack.c.bf16 %v2178, %v2170
        %v2363 = vpack.c.bf16 %v2179, %v2171
        %v2364 = vpack.c.bf16 %v2180, %v2172
        %v2365 = vpack.c.bf16 %v2181, %v2173
        %v2366 = vpack.c.bf16 %v2190, %v2182
        %v2367 = vpack.c.bf16 %v2191, %v2183
        %v2368 = vpack.c.bf16 %v2192, %v2184
        %v2369 = vpack.c.bf16 %v2193, %v2185
        %v2370 = vpack.c.bf16 %v2194, %v2186
        %v2371 = vpack.c.bf16 %v2195, %v2187
        %v2372 = vpack.c.bf16 %v2196, %v2188
        %v2373 = vpack.c.bf16 %v2197, %v2189
        %v2374 = vpack.c.bf16 %v2206, %v2198
        %v2375 = vpack.c.bf16 %v2207, %v2199
        %v2376 = vpack.c.bf16 %v2208, %v2200
        %v2377 = vpack.c.bf16 %v2209, %v2201
        %v2378 = vpack.c.bf16 %v2210, %v2202
        %v2379 = vpack.c.bf16 %v2211, %v2203
        %v2380 = vpack.c.bf16 %v2212, %v2204
        %v2381 = vpack.c.bf16 %v2213, %v2205
        %v2382 = vpack.c.bf16 %v2222, %v2214
        %v2383 = vpack.c.bf16 %v2223, %v2215
        %v2384 = vpack.c.bf16 %v2224, %v2216
        %v2385 = vpack.c.bf16 %v2225, %v2217
        %v2386 = vpack.c.bf16 %v2226, %v2218
        %v2387 = vpack.c.bf16 %v2227, %v2219
        %v2388 = vpack.c.bf16 %v2228, %v2220
        %v2389 = vpack.c.bf16 %v2229, %v2221
        %v2390 = vpack.c.bf16 %v2238, %v2230
        %v2391 = vpack.c.bf16 %v2239, %v2231
        %v2392 = vpack.c.bf16 %v2240, %v2232
        %v2393 = vpack.c.bf16 %v2241, %v2233
        %v2394 = vpack.c.bf16 %v2242, %v2234
        %v2395 = vpack.c.bf16 %v2243, %v2235
        %v2396 = vpack.c.bf16 %v2244, %v2236
        %v2397 = vpack.c.bf16 %v2245, %v2237
        %v2398 = vpack.c.bf16 %v2254, %v2246
        %v2399 = vpack.c.bf16 %v2255, %v2247
        %v2400 = vpack.c.bf16 %v2256, %v2248
        %v2401 = vpack.c.bf16 %v2257, %v2249
        %v2402 = vpack.c.bf16 %v2258, %v2250
        %v2403 = vpack.c.bf16 %v2259, %v2251
        %v2404 = vpack.c.bf16 %v2260, %v2252
        %v2405 = vpack.c.bf16 %v2261, %v2253
        %v2406 = vpack.c.bf16 %v2270, %v2262
        %v2407 = vpack.c.bf16 %v2271, %v2263
        %v2408 = vpack.c.bf16 %v2272, %v2264
        %v2409 = vpack.c.bf16 %v2273, %v2265
        %v2410 = vpack.c.bf16 %v2274, %v2266
        %v2411 = vpack.c.bf16 %v2275, %v2267
        %v2412 = vpack.c.bf16 %v2276, %v2268
        %v2413 = vpack.c.bf16 %v2277, %v2269
        %v2414 = vpack.c.bf16 %v2286, %v2278
        %v2415 = vpack.c.bf16 %v2287, %v2279
        %v2416 = vpack.c.bf16 %v2288, %v2280
        %v2417 = vpack.c.bf16 %v2289, %v2281
        %v2418 = vpack.c.bf16 %v2290, %v2282
        %v2419 = vpack.c.bf16 %v2291, %v2283
        %v2420 = vpack.c.bf16 %v2292, %v2284
        %v2421 = vpack.c.bf16 %v2293, %v2285
        %v2422 = vld [vmem:[#allocation7] sm:$0xf]
        %v2423 = vld [vmem:[#allocation7 + $0x4] sm:$0xf]
        %v2424 = vld [vmem:[#allocation7 + $0x8] sm:$0xf]
        %v2425 = vld [vmem:[#allocation7 + $0xc] sm:$0xf]
        %v2426 = vld [vmem:[#allocation7 + $0x10] sm:$0xf]
        %v2427 = vld [vmem:[#allocation7 + $0x14] sm:$0xf]
        %v2428 = vld [vmem:[#allocation7 + $0x18] sm:$0xf]
        %v2429 = vld [vmem:[#allocation7 + $0x1c] sm:$0xf]
        %v2430 = vld [vmem:[#allocation7 + $0x20] sm:$0xf]
        %v2431 = vld [vmem:[#allocation7 + $0x24] sm:$0xf]
        %v2432 = vld [vmem:[#allocation7 + $0x28] sm:$0xf]
        %v2433 = vld [vmem:[#allocation7 + $0x2c] sm:$0xf]
        %v2434 = vld [vmem:[#allocation7 + $0x30] sm:$0xf]
        %v2435 = vld [vmem:[#allocation7 + $0x34] sm:$0xf]
        %v2436 = vld [vmem:[#allocation7 + $0x38] sm:$0xf]
        %v2437 = vld [vmem:[#allocation7 + $0x3c] sm:$0xf]
        %v2438 = vld [vmem:[#allocation7 + $0x40] sm:$0xf]
        %v2439 = vld [vmem:[#allocation7 + $0x44] sm:$0xf]
        %v2440 = vld [vmem:[#allocation7 + $0x48] sm:$0xf]
        %v2441 = vld [vmem:[#allocation7 + $0x4c] sm:$0xf]
        %v2442 = vld [vmem:[#allocation7 + $0x50] sm:$0xf]
        %v2443 = vld [vmem:[#allocation7 + $0x54] sm:$0xf]
        %v2444 = vld [vmem:[#allocation7 + $0x58] sm:$0xf]
        %v2445 = vld [vmem:[#allocation7 + $0x5c] sm:$0xf]
        %v2446 = vld [vmem:[#allocation7 + $0x60] sm:$0xf]
        %v2447 = vld [vmem:[#allocation7 + $0x64] sm:$0xf]
        %v2448 = vld [vmem:[#allocation7 + $0x68] sm:$0xf]
        %v2449 = vld [vmem:[#allocation7 + $0x6c] sm:$0xf]
        %v2450 = vld [vmem:[#allocation7 + $0x70] sm:$0xf]
        %v2451 = vld [vmem:[#allocation7 + $0x74] sm:$0xf]
        %v2452 = vld [vmem:[#allocation7 + $0x78] sm:$0xf]
        %v2453 = vld [vmem:[#allocation7 + $0x7c] sm:$0xf]
        %v2454 = vld [vmem:[#allocation7 + $0x80] sm:$0xf]
        %v2455 = vld [vmem:[#allocation7 + $0x84] sm:$0xf]
        %v2456 = vld [vmem:[#allocation7 + $0x88] sm:$0xf]
        %v2457 = vld [vmem:[#allocation7 + $0x8c] sm:$0xf]
        %v2458 = vld [vmem:[#allocation7 + $0x90] sm:$0xf]
        %v2459 = vld [vmem:[#allocation7 + $0x94] sm:$0xf]
        %v2460 = vld [vmem:[#allocation7 + $0x98] sm:$0xf]
        %v2461 = vld [vmem:[#allocation7 + $0x9c] sm:$0xf]
        %v2462 = vld [vmem:[#allocation7 + $0xa0] sm:$0xf]
        %v2463 = vld [vmem:[#allocation7 + $0xa4] sm:$0xf]
        %v2464 = vld [vmem:[#allocation7 + $0xa8] sm:$0xf]
        %v2465 = vld [vmem:[#allocation7 + $0xac] sm:$0xf]
        %v2466 = vld [vmem:[#allocation7 + $0xb0] sm:$0xf]
        %v2467 = vld [vmem:[#allocation7 + $0xb4] sm:$0xf]
        %v2468 = vld [vmem:[#allocation7 + $0xb8] sm:$0xf]
        %v2469 = vld [vmem:[#allocation7 + $0xbc] sm:$0xf]
        %v2470 = vld [vmem:[#allocation7 + $0xc0] sm:$0xf]
        %v2471 = vld [vmem:[#allocation7 + $0xc4] sm:$0xf]
        %v2472 = vld [vmem:[#allocation7 + $0xc8] sm:$0xf]
        %v2473 = vld [vmem:[#allocation7 + $0xcc] sm:$0xf]
        %v2474 = vld [vmem:[#allocation7 + $0xd0] sm:$0xf]
        %v2475 = vld [vmem:[#allocation7 + $0xd4] sm:$0xf]
        %v2476 = vld [vmem:[#allocation7 + $0xd8] sm:$0xf]
        %v2477 = vld [vmem:[#allocation7 + $0xdc] sm:$0xf]
        %v2478 = vld [vmem:[#allocation7 + $0xe0] sm:$0xf]
        %v2479 = vld [vmem:[#allocation7 + $0xe4] sm:$0xf]
        %v2480 = vld [vmem:[#allocation7 + $0xe8] sm:$0xf]
        %v2481 = vld [vmem:[#allocation7 + $0xec] sm:$0xf]
        %v2482 = vld [vmem:[#allocation7 + $0xf0] sm:$0xf]
        %v2483 = vld [vmem:[#allocation7 + $0xf4] sm:$0xf]
        %v2484 = vld [vmem:[#allocation7 + $0xf8] sm:$0xf]
        %v2485 = vld [vmem:[#allocation7 + $0xfc] sm:$0xf]
        %v2486 = vld [vmem:[#allocation7 + $0x100] sm:$0xf]
        %v2487 = vld [vmem:[#allocation7 + $0x104] sm:$0xf]
        %v2488 = vld [vmem:[#allocation7 + $0x108] sm:$0xf]
        %v2489 = vld [vmem:[#allocation7 + $0x10c] sm:$0xf]
        %v2490 = vld [vmem:[#allocation7 + $0x110] sm:$0xf]
        %v2491 = vld [vmem:[#allocation7 + $0x114] sm:$0xf]
        %v2492 = vld [vmem:[#allocation7 + $0x118] sm:$0xf]
        %v2493 = vld [vmem:[#allocation7 + $0x11c] sm:$0xf]
        %v2494 = vld [vmem:[#allocation7 + $0x120] sm:$0xf]
        %v2495 = vld [vmem:[#allocation7 + $0x124] sm:$0xf]
        %v2496 = vld [vmem:[#allocation7 + $0x128] sm:$0xf]
        %v2497 = vld [vmem:[#allocation7 + $0x12c] sm:$0xf]
        %v2498 = vld [vmem:[#allocation7 + $0x130] sm:$0xf]
        %v2499 = vld [vmem:[#allocation7 + $0x134] sm:$0xf]
        %v2500 = vld [vmem:[#allocation7 + $0x138] sm:$0xf]
        %v2501 = vld [vmem:[#allocation7 + $0x13c] sm:$0xf]
        %v2502 = vld [vmem:[#allocation7 + $0x140] sm:$0xf]
        %v2503 = vld [vmem:[#allocation7 + $0x144] sm:$0xf]
        %v2504 = vld [vmem:[#allocation7 + $0x148] sm:$0xf]
        %v2505 = vld [vmem:[#allocation7 + $0x14c] sm:$0xf]
        %v2506 = vld [vmem:[#allocation7 + $0x150] sm:$0xf]
        %v2507 = vld [vmem:[#allocation7 + $0x154] sm:$0xf]
        %v2508 = vld [vmem:[#allocation7 + $0x158] sm:$0xf]
        %v2509 = vld [vmem:[#allocation7 + $0x15c] sm:$0xf]
        %v2510 = vld [vmem:[#allocation7 + $0x160] sm:$0xf]
        %v2511 = vld [vmem:[#allocation7 + $0x164] sm:$0xf]
        %v2512 = vld [vmem:[#allocation7 + $0x168] sm:$0xf]
        %v2513 = vld [vmem:[#allocation7 + $0x16c] sm:$0xf]
        %v2514 = vld [vmem:[#allocation7 + $0x170] sm:$0xf]
        %v2515 = vld [vmem:[#allocation7 + $0x174] sm:$0xf]
        %v2516 = vld [vmem:[#allocation7 + $0x178] sm:$0xf]
        %v2517 = vld [vmem:[#allocation7 + $0x17c] sm:$0xf]
        %v2518 = vld [vmem:[#allocation7 + $0x180] sm:$0xf]
        %v2519 = vld [vmem:[#allocation7 + $0x184] sm:$0xf]
        %v2520 = vld [vmem:[#allocation7 + $0x188] sm:$0xf]
        %v2521 = vld [vmem:[#allocation7 + $0x18c] sm:$0xf]
        %v2522 = vld [vmem:[#allocation7 + $0x190] sm:$0xf]
        %v2523 = vld [vmem:[#allocation7 + $0x194] sm:$0xf]
        %v2524 = vld [vmem:[#allocation7 + $0x198] sm:$0xf]
        %v2525 = vld [vmem:[#allocation7 + $0x19c] sm:$0xf]
        %v2526 = vld [vmem:[#allocation7 + $0x1a0] sm:$0xf]
        %v2527 = vld [vmem:[#allocation7 + $0x1a4] sm:$0xf]
        %v2528 = vld [vmem:[#allocation7 + $0x1a8] sm:$0xf]
        %v2529 = vld [vmem:[#allocation7 + $0x1ac] sm:$0xf]
        %v2530 = vld [vmem:[#allocation7 + $0x1b0] sm:$0xf]
        %v2531 = vld [vmem:[#allocation7 + $0x1b4] sm:$0xf]
        %v2532 = vld [vmem:[#allocation7 + $0x1b8] sm:$0xf]
        %v2533 = vld [vmem:[#allocation7 + $0x1bc] sm:$0xf]
        %v2534 = vld [vmem:[#allocation7 + $0x1c0] sm:$0xf]
        %v2535 = vld [vmem:[#allocation7 + $0x1c4] sm:$0xf]
        %v2536 = vld [vmem:[#allocation7 + $0x1c8] sm:$0xf]
        %v2537 = vld [vmem:[#allocation7 + $0x1cc] sm:$0xf]
        %v2538 = vld [vmem:[#allocation7 + $0x1d0] sm:$0xf]
        %v2539 = vld [vmem:[#allocation7 + $0x1d4] sm:$0xf]
        %v2540 = vld [vmem:[#allocation7 + $0x1d8] sm:$0xf]
        %v2541 = vld [vmem:[#allocation7 + $0x1dc] sm:$0xf]
        %v2542 = vld [vmem:[#allocation7 + $0x1e0] sm:$0xf]
        %v2543 = vld [vmem:[#allocation7 + $0x1e4] sm:$0xf]
        %v2544 = vld [vmem:[#allocation7 + $0x1e8] sm:$0xf]
        %v2545 = vld [vmem:[#allocation7 + $0x1ec] sm:$0xf]
        %v2546 = vld [vmem:[#allocation7 + $0x1f0] sm:$0xf]
        %v2547 = vld [vmem:[#allocation7 + $0x1f4] sm:$0xf]
        %v2548 = vld [vmem:[#allocation7 + $0x1f8] sm:$0xf]
        %v2549 = vld [vmem:[#allocation7 + $0x1fc] sm:$0xf]
        %v2550 = vld [vmem:[%s6] sm:$0x1]
        %v2552 = vlaneseq
        %v2553 = vshrl.u32 %v2552, 7
        %v2554 = vsub.s32 0, %v2553
        %v2555 = vrot.slane %v2550, %v2554
        %v2685 = vunpack.c.l.b16 %v2422
        %v2686 = vunpack.c.l.b16 %v2423
        %v2687 = vunpack.c.l.b16 %v2424
        %v2688 = vunpack.c.l.b16 %v2425
        %v2689 = vunpack.c.l.b16 %v2426
        %v2690 = vunpack.c.l.b16 %v2427
        %v2691 = vunpack.c.l.b16 %v2428
        %v2692 = vunpack.c.l.b16 %v2429
        %v2693 = vunpack.c.l.b16 %v2430
        %v2694 = vunpack.c.l.b16 %v2431
        %v2695 = vunpack.c.l.b16 %v2432
        %v2696 = vunpack.c.l.b16 %v2433
        %v2697 = vunpack.c.l.b16 %v2434
        %v2698 = vunpack.c.l.b16 %v2435
        %v2699 = vunpack.c.l.b16 %v2436
        %v2700 = vunpack.c.l.b16 %v2437
        %v2701 = vunpack.c.l.b16 %v2438
        %v2702 = vunpack.c.l.b16 %v2439
        %v2703 = vunpack.c.l.b16 %v2440
        %v2704 = vunpack.c.l.b16 %v2441
        %v2705 = vunpack.c.l.b16 %v2442
        %v2706 = vunpack.c.l.b16 %v2443
        %v2707 = vunpack.c.l.b16 %v2444
        %v2708 = vunpack.c.l.b16 %v2445
        %v2709 = vunpack.c.l.b16 %v2446
        %v2710 = vunpack.c.l.b16 %v2447
        %v2711 = vunpack.c.l.b16 %v2448
        %v2712 = vunpack.c.l.b16 %v2449
        %v2713 = vunpack.c.l.b16 %v2450
        %v2714 = vunpack.c.l.b16 %v2451
        %v2715 = vunpack.c.l.b16 %v2452
        %v2716 = vunpack.c.l.b16 %v2453
        %v2717 = vunpack.c.l.b16 %v2454
        %v2718 = vunpack.c.l.b16 %v2455
        %v2719 = vunpack.c.l.b16 %v2456
        %v2720 = vunpack.c.l.b16 %v2457
        %v2721 = vunpack.c.l.b16 %v2458
        %v2722 = vunpack.c.l.b16 %v2459
        %v2723 = vunpack.c.l.b16 %v2460
        %v2724 = vunpack.c.l.b16 %v2461
        %v2725 = vunpack.c.l.b16 %v2462
        %v2726 = vunpack.c.l.b16 %v2463
        %v2727 = vunpack.c.l.b16 %v2464
        %v2728 = vunpack.c.l.b16 %v2465
        %v2729 = vunpack.c.l.b16 %v2466
        %v2730 = vunpack.c.l.b16 %v2467
        %v2731 = vunpack.c.l.b16 %v2468
        %v2732 = vunpack.c.l.b16 %v2469
        %v2733 = vunpack.c.l.b16 %v2470
        %v2734 = vunpack.c.l.b16 %v2471
        %v2735 = vunpack.c.l.b16 %v2472
        %v2736 = vunpack.c.l.b16 %v2473
        %v2737 = vunpack.c.l.b16 %v2474
        %v2738 = vunpack.c.l.b16 %v2475
        %v2739 = vunpack.c.l.b16 %v2476
        %v2740 = vunpack.c.l.b16 %v2477
        %v2741 = vunpack.c.l.b16 %v2478
        %v2742 = vunpack.c.l.b16 %v2479
        %v2743 = vunpack.c.l.b16 %v2480
        %v2744 = vunpack.c.l.b16 %v2481
        %v2745 = vunpack.c.l.b16 %v2482
        %v2746 = vunpack.c.l.b16 %v2483
        %v2747 = vunpack.c.l.b16 %v2484
        %v2748 = vunpack.c.l.b16 %v2485
        %v2749 = vunpack.c.l.b16 %v2486
        %v2750 = vunpack.c.l.b16 %v2487
        %v2751 = vunpack.c.l.b16 %v2488
        %v2752 = vunpack.c.l.b16 %v2489
        %v2753 = vunpack.c.l.b16 %v2490
        %v2754 = vunpack.c.l.b16 %v2491
        %v2755 = vunpack.c.l.b16 %v2492
        %v2756 = vunpack.c.l.b16 %v2493
        %v2757 = vunpack.c.l.b16 %v2494
        %v2758 = vunpack.c.l.b16 %v2495
        %v2759 = vunpack.c.l.b16 %v2496
        %v2760 = vunpack.c.l.b16 %v2497
        %v2761 = vunpack.c.l.b16 %v2498
        %v2762 = vunpack.c.l.b16 %v2499
        %v2763 = vunpack.c.l.b16 %v2500
        %v2764 = vunpack.c.l.b16 %v2501
        %v2765 = vunpack.c.l.b16 %v2502
        %v2766 = vunpack.c.l.b16 %v2503
        %v2767 = vunpack.c.l.b16 %v2504
        %v2768 = vunpack.c.l.b16 %v2505
        %v2769 = vunpack.c.l.b16 %v2506
        %v2770 = vunpack.c.l.b16 %v2507
        %v2771 = vunpack.c.l.b16 %v2508
        %v2772 = vunpack.c.l.b16 %v2509
        %v2773 = vunpack.c.l.b16 %v2510
        %v2774 = vunpack.c.l.b16 %v2511
        %v2775 = vunpack.c.l.b16 %v2512
        %v2776 = vunpack.c.l.b16 %v2513
        %v2777 = vunpack.c.l.b16 %v2514
        %v2778 = vunpack.c.l.b16 %v2515
        %v2779 = vunpack.c.l.b16 %v2516
        %v2780 = vunpack.c.l.b16 %v2517
        %v2781 = vunpack.c.l.b16 %v2518
        %v2782 = vunpack.c.l.b16 %v2519
        %v2783 = vunpack.c.l.b16 %v2520
        %v2784 = vunpack.c.l.b16 %v2521
        %v2785 = vunpack.c.l.b16 %v2522
        %v2786 = vunpack.c.l.b16 %v2523
        %v2787 = vunpack.c.l.b16 %v2524
        %v2788 = vunpack.c.l.b16 %v2525
        %v2789 = vunpack.c.l.b16 %v2526
        %v2790 = vunpack.c.l.b16 %v2527
        %v2791 = vunpack.c.l.b16 %v2528
        %v2792 = vunpack.c.l.b16 %v2529
        %v2793 = vunpack.c.l.b16 %v2530
        %v2794 = vunpack.c.l.b16 %v2531
        %v2795 = vunpack.c.l.b16 %v2532
        %v2796 = vunpack.c.l.b16 %v2533
        %v2797 = vunpack.c.l.b16 %v2534
        %v2798 = vunpack.c.l.b16 %v2535
        %v2799 = vunpack.c.l.b16 %v2536
        %v2800 = vunpack.c.l.b16 %v2537
        %v2801 = vunpack.c.l.b16 %v2538
        %v2802 = vunpack.c.l.b16 %v2539
        %v2803 = vunpack.c.l.b16 %v2540
        %v2804 = vunpack.c.l.b16 %v2541
        %v2805 = vunpack.c.l.b16 %v2542
        %v2806 = vunpack.c.l.b16 %v2543
        %v2807 = vunpack.c.l.b16 %v2544
        %v2808 = vunpack.c.l.b16 %v2545
        %v2809 = vunpack.c.l.b16 %v2546
        %v2810 = vunpack.c.l.b16 %v2547
        %v2811 = vunpack.c.l.b16 %v2548
        %v2812 = vunpack.c.l.b16 %v2549
        %v2813 = vpack.c.b16 %v2686, %v2685
        %v2814 = vpack.c.b16 %v2688, %v2687
        %v2815 = vpack.c.b16 %v2690, %v2689
        %v2816 = vpack.c.b16 %v2692, %v2691
        %v2817 = vpack.c.b16 %v2694, %v2693
        %v2818 = vpack.c.b16 %v2696, %v2695
        %v2819 = vpack.c.b16 %v2698, %v2697
        %v2820 = vpack.c.b16 %v2700, %v2699
        %v2821 = vpack.c.b16 %v2702, %v2701
        %v2822 = vpack.c.b16 %v2704, %v2703
        %v2823 = vpack.c.b16 %v2706, %v2705
        %v2824 = vpack.c.b16 %v2708, %v2707
        %v2825 = vpack.c.b16 %v2710, %v2709
        %v2826 = vpack.c.b16 %v2712, %v2711
        %v2827 = vpack.c.b16 %v2714, %v2713
        %v2828 = vpack.c.b16 %v2716, %v2715
        %v2829 = vpack.c.b16 %v2718, %v2717
        %v2830 = vpack.c.b16 %v2720, %v2719
        %v2831 = vpack.c.b16 %v2722, %v2721
        %v2832 = vpack.c.b16 %v2724, %v2723
        %v2833 = vpack.c.b16 %v2726, %v2725
        %v2834 = vpack.c.b16 %v2728, %v2727
        %v2835 = vpack.c.b16 %v2730, %v2729
        %v2836 = vpack.c.b16 %v2732, %v2731
        %v2837 = vpack.c.b16 %v2734, %v2733
        %v2838 = vpack.c.b16 %v2736, %v2735
        %v2839 = vpack.c.b16 %v2738, %v2737
        %v2840 = vpack.c.b16 %v2740, %v2739
        %v2841 = vpack.c.b16 %v2742, %v2741
        %v2842 = vpack.c.b16 %v2744, %v2743
        %v2843 = vpack.c.b16 %v2746, %v2745
        %v2844 = vpack.c.b16 %v2748, %v2747
        %v2845 = vpack.c.b16 %v2750, %v2749
        %v2846 = vpack.c.b16 %v2752, %v2751
        %v2847 = vpack.c.b16 %v2754, %v2753
        %v2848 = vpack.c.b16 %v2756, %v2755
        %v2849 = vpack.c.b16 %v2758, %v2757
        %v2850 = vpack.c.b16 %v2760, %v2759
        %v2851 = vpack.c.b16 %v2762, %v2761
        %v2852 = vpack.c.b16 %v2764, %v2763
        %v2853 = vpack.c.b16 %v2766, %v2765
        %v2854 = vpack.c.b16 %v2768, %v2767
        %v2855 = vpack.c.b16 %v2770, %v2769
        %v2856 = vpack.c.b16 %v2772, %v2771
        %v2857 = vpack.c.b16 %v2774, %v2773
        %v2858 = vpack.c.b16 %v2776, %v2775
        %v2859 = vpack.c.b16 %v2778, %v2777
        %v2860 = vpack.c.b16 %v2780, %v2779
        %v2861 = vpack.c.b16 %v2782, %v2781
        %v2862 = vpack.c.b16 %v2784, %v2783
        %v2863 = vpack.c.b16 %v2786, %v2785
        %v2864 = vpack.c.b16 %v2788, %v2787
        %v2865 = vpack.c.b16 %v2790, %v2789
        %v2866 = vpack.c.b16 %v2792, %v2791
        %v2867 = vpack.c.b16 %v2794, %v2793
        %v2868 = vpack.c.b16 %v2796, %v2795
        %v2869 = vpack.c.b16 %v2798, %v2797
        %v2870 = vpack.c.b16 %v2800, %v2799
        %v2871 = vpack.c.b16 %v2802, %v2801
        %v2872 = vpack.c.b16 %v2804, %v2803
        %v2873 = vpack.c.b16 %v2806, %v2805
        %v2874 = vpack.c.b16 %v2808, %v2807
        %v2875 = vpack.c.b16 %v2810, %v2809
        %v2876 = vpack.c.b16 %v2812, %v2811
        %2941 = vmatprep.subr.bf16.mxu0 0
        %2942 = vmatpush1.bf16.msra.mxu0 %v2813
        %2943 = vmatprep.subr.bf16.mxu0 0
        %2944 = vmatpush1.bf16.msra.mxu0 %v2814
        %2945 = vmatprep.subr.bf16.mxu0 0
        %2946 = vmatpush1.bf16.msra.mxu0 %v2815
        %2947 = vmatprep.subr.bf16.mxu0 0
        %2948 = vmatpush1.bf16.msra.mxu0 %v2816
        %2949 = vmatprep.subr.bf16.mxu0 0
        %2950 = vmatpush1.bf16.msra.mxu0 %v2817
        %2951 = vmatprep.subr.bf16.mxu0 0
        %2952 = vmatpush1.bf16.msra.mxu0 %v2818
        %2953 = vmatprep.subr.bf16.mxu0 0
        %2954 = vmatpush1.bf16.msra.mxu0 %v2819
        %2955 = vmatprep.subr.bf16.mxu0 0
        %2956 = vmatpush1.bf16.msra.mxu0 %v2820
        %2957 = vmatprep.subr.bf16.mxu0 0
        %2958 = vmatpush1.bf16.msra.mxu0 %v2821
        %2959 = vmatprep.subr.bf16.mxu0 0
        %2960 = vmatpush1.bf16.msra.mxu0 %v2822
        %2961 = vmatprep.subr.bf16.mxu0 0
        %2962 = vmatpush1.bf16.msra.mxu0 %v2823
        %2963 = vmatprep.subr.bf16.mxu0 0
        %2964 = vmatpush1.bf16.msra.mxu0 %v2824
        %2965 = vmatprep.subr.bf16.mxu0 0
        %2966 = vmatpush1.bf16.msra.mxu0 %v2825
        %2967 = vmatprep.subr.bf16.mxu0 0
        %2968 = vmatpush1.bf16.msra.mxu0 %v2826
        %2969 = vmatprep.subr.bf16.mxu0 0
        %2970 = vmatpush1.bf16.msra.mxu0 %v2827
        %2971 = vmatprep.subr.bf16.mxu0 0
        %2972 = vmatpush1.bf16.msra.mxu0 %v2828
        %2973 = vmatprep.mubr.bf16.mxu0 %v2295
        %2974 = vmatmul.mubr.bf16.gmra.mrb[0].mxu0 %v2294
        %v2975 = vpop.f32.mrb[0].mxu0
        %v2976 = vadd.f32 %v2555, %v2975
        %v2977 = vpop.f32.mrb[0].mxu0
        %v2978 = vpop.f32.mrb[0].mxu0
        %v2979 = vadd.f32 %v2555, %v2978
        %v2980 = vpop.f32.mrb[0].mxu0
        %2981 = vmatprep.mubr.bf16.mxu0 %v2303
        %2982 = vmatmul.mubr.bf16.gmra.mrb[0].mxu0 %v2302
        %v2983 = vpop.f32.mrb[0].mxu0
        %v2984 = vadd.f32 %v2555, %v2983
        %v2985 = vpop.f32.mrb[0].mxu0
        %v2986 = vpop.f32.mrb[0].mxu0
        %v2987 = vadd.f32 %v2555, %v2986
        %v2988 = vpop.f32.mrb[0].mxu0
        %2989 = vmatprep.mubr.bf16.mxu0 %v2311
        %2990 = vmatmul.mubr.bf16.gmra.mrb[0].mxu0 %v2310
        %v2991 = vpop.f32.mrb[0].mxu0
        %v2992 = vadd.f32 %v2555, %v2991
        %v2993 = vpop.f32.mrb[0].mxu0
        %v2994 = vpop.f32.mrb[0].mxu0
        %v2995 = vadd.f32 %v2555, %v2994
        %v2996 = vpop.f32.mrb[0].mxu0
        %2997 = vmatprep.mubr.bf16.mxu0 %v2319
        %2998 = vmatmul.mubr.bf16.gmra.mrb[0].mxu0 %v2318
        %v2999 = vpop.f32.mrb[0].mxu0
        %v3000 = vadd.f32 %v2555, %v2999
        %v3001 = vpop.f32.mrb[0].mxu0
        %v3002 = vpop.f32.mrb[0].mxu0
        %v3003 = vadd.f32 %v2555, %v3002
        %v3004 = vpop.f32.mrb[0].mxu0
        %3005 = vmatprep.mubr.bf16.mxu0 %v2327
        %3006 = vmatmul.mubr.bf16.gmra.mrb[0].mxu0 %v2326
        %v3007 = vpop.f32.mrb[0].mxu0
        %v3008 = vadd.f32 %v2555, %v3007
        %v3009 = vpop.f32.mrb[0].mxu0
        %v3010 = vpop.f32.mrb[0].mxu0
        %v3011 = vadd.f32 %v2555, %v3010
        %v3012 = vpop.f32.mrb[0].mxu0
        %3013 = vmatprep.mubr.bf16.mxu0 %v2335
        %3014 = vmatmul.mubr.bf16.gmra.mrb[0].mxu0 %v2334
        %v3015 = vpop.f32.mrb[0].mxu0
        %v3016 = vadd.f32 %v2555, %v3015
        %v3017 = vpop.f32.mrb[0].mxu0
        %v3018 = vpop.f32.mrb[0].mxu0
        %v3019 = vadd.f32 %v2555, %v3018
        %v3020 = vpop.f32.mrb[0].mxu0
        %3021 = vmatprep.mubr.bf16.mxu0 %v2343
        %3022 = vmatmul.mubr.bf16.gmra.mrb[0].mxu0 %v2342
        %v3023 = vpop.f32.mrb[0].mxu0
        %v3024 = vadd.f32 %v2555, %v3023
        %v3025 = vpop.f32.mrb[0].mxu0
        %v3026 = vpop.f32.mrb[0].mxu0
        %v3027 = vadd.f32 %v2555, %v3026
        %v3028 = vpop.f32.mrb[0].mxu0
        %3029 = vmatprep.mubr.bf16.mxu0 %v2351
        %3030 = vmatmul.mubr.bf16.gmra.mrb[0].mxu0 %v2350
        %v3031 = vpop.f32.mrb[0].mxu0
        %v3032 = vadd.f32 %v2555, %v3031
        %v3033 = vpop.f32.mrb[0].mxu0
        %v3034 = vpop.f32.mrb[0].mxu0
        %v3035 = vadd.f32 %v2555, %v3034
        %v3036 = vpop.f32.mrb[0].mxu0
        %3037 = vmatprep.mubr.bf16.mxu0 %v2359
        %3038 = vmatmul.mubr.bf16.gmra.mrb[0].mxu0 %v2358
        %v3039 = vpop.f32.mrb[0].mxu0
        %v3040 = vadd.f32 %v2555, %v3039
        %v3041 = vpop.f32.mrb[0].mxu0
        %v3042 = vpop.f32.mrb[0].mxu0
        %v3043 = vadd.f32 %v2555, %v3042
        %v3044 = vpop.f32.mrb[0].mxu0
        %3045 = vmatprep.mubr.bf16.mxu0 %v2367
        %3046 = vmatmul.mubr.bf16.gmra.mrb[0].mxu0 %v2366
        %v3047 = vpop.f32.mrb[0].mxu0
        %v3048 = vadd.f32 %v2555, %v3047
        %v3049 = vpop.f32.mrb[0].mxu0
        %v3050 = vpop.f32.mrb[0].mxu0
        %v3051 = vadd.f32 %v2555, %v3050
        %v3052 = vpop.f32.mrb[0].mxu0
        %3053 = vmatprep.mubr.bf16.mxu0 %v2375
        %3054 = vmatmul.mubr.bf16.gmra.mrb[0].mxu0 %v2374
        %v3055 = vpop.f32.mrb[0].mxu0
        %v3056 = vadd.f32 %v2555, %v3055
        %v3057 = vpop.f32.mrb[0].mxu0
        %v3058 = vpop.f32.mrb[0].mxu0
        %v3059 = vadd.f32 %v2555, %v3058
        %v3060 = vpop.f32.mrb[0].mxu0
        %3061 = vmatprep.mubr.bf16.mxu0 %v2383
        %3062 = vmatmul.mubr.bf16.gmra.mrb[0].mxu0 %v2382
        %v3063 = vpop.f32.mrb[0].mxu0
        %v3064 = vadd.f32 %v2555, %v3063
        %v3065 = vpop.f32.mrb[0].mxu0
        %v3066 = vpop.f32.mrb[0].mxu0
        %v3067 = vadd.f32 %v2555, %v3066
        %v3068 = vpop.f32.mrb[0].mxu0
        %3069 = vmatprep.mubr.bf16.mxu0 %v2391
        %3070 = vmatmul.mubr.bf16.gmra.mrb[0].mxu0 %v2390
        %v3071 = vpop.f32.mrb[0].mxu0
        %v3072 = vadd.f32 %v2555, %v3071
        %v3073 = vpop.f32.mrb[0].mxu0
        %v3074 = vpop.f32.mrb[0].mxu0
        %v3075 = vadd.f32 %v2555, %v3074
        %v3076 = vpop.f32.mrb[0].mxu0
        %3077 = vmatprep.mubr.bf16.mxu0 %v2399
        %3078 = vmatmul.mubr.bf16.gmra.mrb[0].mxu0 %v2398
        %v3079 = vpop.f32.mrb[0].mxu0
        %v3080 = vadd.f32 %v2555, %v3079
        %v3081 = vpop.f32.mrb[0].mxu0
        %v3082 = vpop.f32.mrb[0].mxu0
        %v3083 = vadd.f32 %v2555, %v3082
        %v3084 = vpop.f32.mrb[0].mxu0
        %3085 = vmatprep.mubr.bf16.mxu0 %v2407
        %3086 = vmatmul.mubr.bf16.gmra.mrb[0].mxu0 %v2406
        %v3087 = vpop.f32.mrb[0].mxu0
        %v3088 = vadd.f32 %v2555, %v3087
        %v3089 = vpop.f32.mrb[0].mxu0
        %v3090 = vpop.f32.mrb[0].mxu0
        %v3091 = vadd.f32 %v2555, %v3090
        %v3092 = vpop.f32.mrb[0].mxu0
        %3093 = vmatprep.mubr.bf16.mxu0 %v2415
        %3094 = vmatmul.mubr.bf16.gmra.mrb[0].mxu0 %v2414
        %v3095 = vpop.f32.mrb[0].mxu0
        %v3096 = vadd.f32 %v2555, %v3095
        %v3097 = vpop.f32.mrb[0].mxu0
        %v3098 = vpop.f32.mrb[0].mxu0
        %v3099 = vadd.f32 %v2555, %v3098
        %v3100 = vpop.f32.mrb[0].mxu0
        %3101 = vdwg.mxu0
        %3102 = vmatprep.subr.bf16.mxu0 0
        %3103 = vmatpush1.bf16.msra.mxu0 %v2829
        %3104 = vmatprep.subr.bf16.mxu0 0
        %3105 = vmatpush1.bf16.msra.mxu0 %v2830
        %3106 = vmatprep.subr.bf16.mxu0 0
        %3107 = vmatpush1.bf16.msra.mxu0 %v2831
        %3108 = vmatprep.subr.bf16.mxu0 0
        %3109 = vmatpush1.bf16.msra.mxu0 %v2832
        %3110 = vmatprep.subr.bf16.mxu0 0
        %3111 = vmatpush1.bf16.msra.mxu0 %v2833
        %3112 = vmatprep.subr.bf16.mxu0 0
        %3113 = vmatpush1.bf16.msra.mxu0 %v2834
        %3114 = vmatprep.subr.bf16.mxu0 0
        %3115 = vmatpush1.bf16.msra.mxu0 %v2835
        %3116 = vmatprep.subr.bf16.mxu0 0
        %3117 = vmatpush1.bf16.msra.mxu0 %v2836
        %3118 = vmatprep.subr.bf16.mxu0 0
        %3119 = vmatpush1.bf16.msra.mxu0 %v2837
        %3120 = vmatprep.subr.bf16.mxu0 0
        %3121 = vmatpush1.bf16.msra.mxu0 %v2838
        %3122 = vmatprep.subr.bf16.mxu0 0
        %3123 = vmatpush1.bf16.msra.mxu0 %v2839
        %3124 = vmatprep.subr.bf16.mxu0 0
        %3125 = vmatpush1.bf16.msra.mxu0 %v2840
        %3126 = vmatprep.subr.bf16.mxu0 0
        %3127 = vmatpush1.bf16.msra.mxu0 %v2841
        %3128 = vmatprep.subr.bf16.mxu0 0
        %3129 = vmatpush1.bf16.msra.mxu0 %v2842
        %3130 = vmatprep.subr.bf16.mxu0 0
        %3131 = vmatpush1.bf16.msra.mxu0 %v2843
        %3132 = vmatprep.subr.bf16.mxu0 0
        %3133 = vmatpush1.bf16.msra.mxu0 %v2844
        %3134 = vmatprep.mubr.bf16.mxu0 %v2297
        %3135 = vmatmul.mubr.bf16.gmra.mrb[0].mxu0 %v2296
        %v3136 = vpop.f32.mrb[0].mxu0
        %v3137 = vadd.f32 %v2976, %v3136
        %v3138 = vpop.f32.mrb[0].mxu0
        %v3139 = vpop.f32.mrb[0].mxu0
        %v3140 = vadd.f32 %v2979, %v3139
        %v3141 = vpop.f32.mrb[0].mxu0
        %3142 = vmatprep.mubr.bf16.mxu0 %v2305
        %3143 = vmatmul.mubr.bf16.gmra.mrb[0].mxu0 %v2304
        %v3144 = vpop.f32.mrb[0].mxu0
        %v3145 = vadd.f32 %v2984, %v3144
        %v3146 = vpop.f32.mrb[0].mxu0
        %v3147 = vpop.f32.mrb[0].mxu0
        %v3148 = vadd.f32 %v2987, %v3147
        %v3149 = vpop.f32.mrb[0].mxu0
        %3150 = vmatprep.mubr.bf16.mxu0 %v2313
        %3151 = vmatmul.mubr.bf16.gmra.mrb[0].mxu0 %v2312
        %v3152 = vpop.f32.mrb[0].mxu0
        %v3153 = vadd.f32 %v2992, %v3152
        %v3154 = vpop.f32.mrb[0].mxu0
        %v3155 = vpop.f32.mrb[0].mxu0
        %v3156 = vadd.f32 %v2995, %v3155
        %v3157 = vpop.f32.mrb[0].mxu0
        %3158 = vmatprep.mubr.bf16.mxu0 %v2321
        %3159 = vmatmul.mubr.bf16.gmra.mrb[0].mxu0 %v2320
        %v3160 = vpop.f32.mrb[0].mxu0
        %v3161 = vadd.f32 %v3000, %v3160
        %v3162 = vpop.f32.mrb[0].mxu0
        %v3163 = vpop.f32.mrb[0].mxu0
        %v3164 = vadd.f32 %v3003, %v3163
        %v3165 = vpop.f32.mrb[0].mxu0
        %3166 = vmatprep.mubr.bf16.mxu0 %v2329
        %3167 = vmatmul.mubr.bf16.gmra.mrb[0].mxu0 %v2328
        %v3168 = vpop.f32.mrb[0].mxu0
        %v3169 = vadd.f32 %v3008, %v3168
        %v3170 = vpop.f32.mrb[0].mxu0
        %v3171 = vpop.f32.mrb[0].mxu0
        %v3172 = vadd.f32 %v3011, %v3171
        %v3173 = vpop.f32.mrb[0].mxu0
        %3174 = vmatprep.mubr.bf16.mxu0 %v2337
        %3175 = vmatmul.mubr.bf16.gmra.mrb[0].mxu0 %v2336
        %v3176 = vpop.f32.mrb[0].mxu0
        %v3177 = vadd.f32 %v3016, %v3176
        %v3178 = vpop.f32.mrb[0].mxu0
        %v3179 = vpop.f32.mrb[0].mxu0
        %v3180 = vadd.f32 %v3019, %v3179
        %v3181 = vpop.f32.mrb[0].mxu0
        %3182 = vmatprep.mubr.bf16.mxu0 %v2345
        %3183 = vmatmul.mubr.bf16.gmra.mrb[0].mxu0 %v2344
        %v3184 = vpop.f32.mrb[0].mxu0
        %v3185 = vadd.f32 %v3024, %v3184
        %v3186 = vpop.f32.mrb[0].mxu0
        %v3187 = vpop.f32.mrb[0].mxu0
        %v3188 = vadd.f32 %v3027, %v3187
        %v3189 = vpop.f32.mrb[0].mxu0
        %3190 = vmatprep.mubr.bf16.mxu0 %v2353
        %3191 = vmatmul.mubr.bf16.gmra.mrb[0].mxu0 %v2352
        %v3192 = vpop.f32.mrb[0].mxu0
        %v3193 = vadd.f32 %v3032, %v3192
        %v3194 = vpop.f32.mrb[0].mxu0
        %v3195 = vpop.f32.mrb[0].mxu0
        %v3196 = vadd.f32 %v3035, %v3195
        %v3197 = vpop.f32.mrb[0].mxu0
        %3198 = vmatprep.mubr.bf16.mxu0 %v2361
        %3199 = vmatmul.mubr.bf16.gmra.mrb[0].mxu0 %v2360
        %v3200 = vpop.f32.mrb[0].mxu0
        %v3201 = vadd.f32 %v3040, %v3200
        %v3202 = vpop.f32.mrb[0].mxu0
        %v3203 = vpop.f32.mrb[0].mxu0
        %v3204 = vadd.f32 %v3043, %v3203
        %v3205 = vpop.f32.mrb[0].mxu0
        %3206 = vmatprep.mubr.bf16.mxu0 %v2369
        %3207 = vmatmul.mubr.bf16.gmra.mrb[0].mxu0 %v2368
        %v3208 = vpop.f32.mrb[0].mxu0
        %v3209 = vadd.f32 %v3048, %v3208
        %v3210 = vpop.f32.mrb[0].mxu0
        %v3211 = vpop.f32.mrb[0].mxu0
        %v3212 = vadd.f32 %v3051, %v3211
        %v3213 = vpop.f32.mrb[0].mxu0
        %3214 = vmatprep.mubr.bf16.mxu0 %v2377
        %3215 = vmatmul.mubr.bf16.gmra.mrb[0].mxu0 %v2376
        %v3216 = vpop.f32.mrb[0].mxu0
        %v3217 = vadd.f32 %v3056, %v3216
        %v3218 = vpop.f32.mrb[0].mxu0
        %v3219 = vpop.f32.mrb[0].mxu0
        %v3220 = vadd.f32 %v3059, %v3219
        %v3221 = vpop.f32.mrb[0].mxu0
        %3222 = vmatprep.mubr.bf16.mxu0 %v2385
        %3223 = vmatmul.mubr.bf16.gmra.mrb[0].mxu0 %v2384
        %v3224 = vpop.f32.mrb[0].mxu0
        %v3225 = vadd.f32 %v3064, %v3224
        %v3226 = vpop.f32.mrb[0].mxu0
        %v3227 = vpop.f32.mrb[0].mxu0
        %v3228 = vadd.f32 %v3067, %v3227
        %v3229 = vpop.f32.mrb[0].mxu0
        %3230 = vmatprep.mubr.bf16.mxu0 %v2393
        %3231 = vmatmul.mubr.bf16.gmra.mrb[0].mxu0 %v2392
        %v3232 = vpop.f32.mrb[0].mxu0
        %v3233 = vadd.f32 %v3072, %v3232
        %v3234 = vpop.f32.mrb[0].mxu0
        %v3235 = vpop.f32.mrb[0].mxu0
        %v3236 = vadd.f32 %v3075, %v3235
        %v3237 = vpop.f32.mrb[0].mxu0
        %3238 = vmatprep.mubr.bf16.mxu0 %v2401
        %3239 = vmatmul.mubr.bf16.gmra.mrb[0].mxu0 %v2400
        %v3240 = vpop.f32.mrb[0].mxu0
        %v3241 = vadd.f32 %v3080, %v3240
        %v3242 = vpop.f32.mrb[0].mxu0
        %v3243 = vpop.f32.mrb[0].mxu0
        %v3244 = vadd.f32 %v3083, %v3243
        %v3245 = vpop.f32.mrb[0].mxu0
        %3246 = vmatprep.mubr.bf16.mxu0 %v2409
        %3247 = vmatmul.mubr.bf16.gmra.mrb[0].mxu0 %v2408
        %v3248 = vpop.f32.mrb[0].mxu0
        %v3249 = vadd.f32 %v3088, %v3248
        %v3250 = vpop.f32.mrb[0].mxu0
        %v3251 = vpop.f32.mrb[0].mxu0
        %v3252 = vadd.f32 %v3091, %v3251
        %v3253 = vpop.f32.mrb[0].mxu0
        %3254 = vmatprep.mubr.bf16.mxu0 %v2417
        %3255 = vmatmul.mubr.bf16.gmra.mrb[0].mxu0 %v2416
        %v3256 = vpop.f32.mrb[0].mxu0
        %v3257 = vadd.f32 %v3096, %v3256
        %v3258 = vpop.f32.mrb[0].mxu0
        %v3259 = vpop.f32.mrb[0].mxu0
        %v3260 = vadd.f32 %v3099, %v3259
        %v3261 = vpop.f32.mrb[0].mxu0
        %3262 = vdwg.mxu0
        %3263 = vmatprep.subr.bf16.mxu0 0
        %3264 = vmatpush1.bf16.msra.mxu0 %v2845
        %3265 = vmatprep.subr.bf16.mxu0 0
        %3266 = vmatpush1.bf16.msra.mxu0 %v2846
        %3267 = vmatprep.subr.bf16.mxu0 0
        %3268 = vmatpush1.bf16.msra.mxu0 %v2847
        %3269 = vmatprep.subr.bf16.mxu0 0
        %3270 = vmatpush1.bf16.msra.mxu0 %v2848
        %3271 = vmatprep.subr.bf16.mxu0 0
        %3272 = vmatpush1.bf16.msra.mxu0 %v2849
        %3273 = vmatprep.subr.bf16.mxu0 0
        %3274 = vmatpush1.bf16.msra.mxu0 %v2850
        %3275 = vmatprep.subr.bf16.mxu0 0
        %3276 = vmatpush1.bf16.msra.mxu0 %v2851
        %3277 = vmatprep.subr.bf16.mxu0 0
        %3278 = vmatpush1.bf16.msra.mxu0 %v2852
        %3279 = vmatprep.subr.bf16.mxu0 0
        %3280 = vmatpush1.bf16.msra.mxu0 %v2853
        %3281 = vmatprep.subr.bf16.mxu0 0
        %3282 = vmatpush1.bf16.msra.mxu0 %v2854
        %3283 = vmatprep.subr.bf16.mxu0 0
        %3284 = vmatpush1.bf16.msra.mxu0 %v2855
        %3285 = vmatprep.subr.bf16.mxu0 0
        %3286 = vmatpush1.bf16.msra.mxu0 %v2856
        %3287 = vmatprep.subr.bf16.mxu0 0
        %3288 = vmatpush1.bf16.msra.mxu0 %v2857
        %3289 = vmatprep.subr.bf16.mxu0 0
        %3290 = vmatpush1.bf16.msra.mxu0 %v2858
        %3291 = vmatprep.subr.bf16.mxu0 0
        %3292 = vmatpush1.bf16.msra.mxu0 %v2859
        %3293 = vmatprep.subr.bf16.mxu0 0
        %3294 = vmatpush1.bf16.msra.mxu0 %v2860
        %3295 = vmatprep.mubr.bf16.mxu0 %v2299
        %3296 = vmatmul.mubr.bf16.gmra.mrb[0].mxu0 %v2298
        %v3297 = vpop.f32.mrb[0].mxu0
        %v3298 = vadd.f32 %v3137, %v3297
        %v3299 = vpop.f32.mrb[0].mxu0
        %v3300 = vpop.f32.mrb[0].mxu0
        %v3301 = vadd.f32 %v3140, %v3300
        %v3302 = vpop.f32.mrb[0].mxu0
        %3303 = vmatprep.mubr.bf16.mxu0 %v2307
        %3304 = vmatmul.mubr.bf16.gmra.mrb[0].mxu0 %v2306
        %v3305 = vpop.f32.mrb[0].mxu0
        %v3306 = vadd.f32 %v3145, %v3305
        %v3307 = vpop.f32.mrb[0].mxu0
        %v3308 = vpop.f32.mrb[0].mxu0
        %v3309 = vadd.f32 %v3148, %v3308
        %v3310 = vpop.f32.mrb[0].mxu0
        %3311 = vmatprep.mubr.bf16.mxu0 %v2315
        %3312 = vmatmul.mubr.bf16.gmra.mrb[0].mxu0 %v2314
        %v3313 = vpop.f32.mrb[0].mxu0
        %v3314 = vadd.f32 %v3153, %v3313
        %v3315 = vpop.f32.mrb[0].mxu0
        %v3316 = vpop.f32.mrb[0].mxu0
        %v3317 = vadd.f32 %v3156, %v3316
        %v3318 = vpop.f32.mrb[0].mxu0
        %3319 = vmatprep.mubr.bf16.mxu0 %v2323
        %3320 = vmatmul.mubr.bf16.gmra.mrb[0].mxu0 %v2322
        %v3321 = vpop.f32.mrb[0].mxu0
        %v3322 = vadd.f32 %v3161, %v3321
        %v3323 = vpop.f32.mrb[0].mxu0
        %v3324 = vpop.f32.mrb[0].mxu0
        %v3325 = vadd.f32 %v3164, %v3324
        %v3326 = vpop.f32.mrb[0].mxu0
        %3327 = vmatprep.mubr.bf16.mxu0 %v2331
        %3328 = vmatmul.mubr.bf16.gmra.mrb[0].mxu0 %v2330
        %v3329 = vpop.f32.mrb[0].mxu0
        %v3330 = vadd.f32 %v3169, %v3329
        %v3331 = vpop.f32.mrb[0].mxu0
        %v3332 = vpop.f32.mrb[0].mxu0
        %v3333 = vadd.f32 %v3172, %v3332
        %v3334 = vpop.f32.mrb[0].mxu0
        %3335 = vmatprep.mubr.bf16.mxu0 %v2339
        %3336 = vmatmul.mubr.bf16.gmra.mrb[0].mxu0 %v2338
        %v3337 = vpop.f32.mrb[0].mxu0
        %v3338 = vadd.f32 %v3177, %v3337
        %v3339 = vpop.f32.mrb[0].mxu0
        %v3340 = vpop.f32.mrb[0].mxu0
        %v3341 = vadd.f32 %v3180, %v3340
        %v3342 = vpop.f32.mrb[0].mxu0
        %3343 = vmatprep.mubr.bf16.mxu0 %v2347
        %3344 = vmatmul.mubr.bf16.gmra.mrb[0].mxu0 %v2346
        %v3345 = vpop.f32.mrb[0].mxu0
        %v3346 = vadd.f32 %v3185, %v3345
        %v3347 = vpop.f32.mrb[0].mxu0
        %v3348 = vpop.f32.mrb[0].mxu0
        %v3349 = vadd.f32 %v3188, %v3348
        %v3350 = vpop.f32.mrb[0].mxu0
        %3351 = vmatprep.mubr.bf16.mxu0 %v2355
        %3352 = vmatmul.mubr.bf16.gmra.mrb[0].mxu0 %v2354
        %v3353 = vpop.f32.mrb[0].mxu0
        %v3354 = vadd.f32 %v3193, %v3353
        %v3355 = vpop.f32.mrb[0].mxu0
        %v3356 = vpop.f32.mrb[0].mxu0
        %v3357 = vadd.f32 %v3196, %v3356
        %v3358 = vpop.f32.mrb[0].mxu0
        %3359 = vmatprep.mubr.bf16.mxu0 %v2363
        %3360 = vmatmul.mubr.bf16.gmra.mrb[0].mxu0 %v2362
        %v3361 = vpop.f32.mrb[0].mxu0
        %v3362 = vadd.f32 %v3201, %v3361
        %v3363 = vpop.f32.mrb[0].mxu0
        %v3364 = vpop.f32.mrb[0].mxu0
        %v3365 = vadd.f32 %v3204, %v3364
        %v3366 = vpop.f32.mrb[0].mxu0
        %3367 = vmatprep.mubr.bf16.mxu0 %v2371
        %3368 = vmatmul.mubr.bf16.gmra.mrb[0].mxu0 %v2370
        %v3369 = vpop.f32.mrb[0].mxu0
        %v3370 = vadd.f32 %v3209, %v3369
        %v3371 = vpop.f32.mrb[0].mxu0
        %v3372 = vpop.f32.mrb[0].mxu0
        %v3373 = vadd.f32 %v3212, %v3372
        %v3374 = vpop.f32.mrb[0].mxu0
        %3375 = vmatprep.mubr.bf16.mxu0 %v2379
        %3376 = vmatmul.mubr.bf16.gmra.mrb[0].mxu0 %v2378
        %v3377 = vpop.f32.mrb[0].mxu0
        %v3378 = vadd.f32 %v3217, %v3377
        %v3379 = vpop.f32.mrb[0].mxu0
        %v3380 = vpop.f32.mrb[0].mxu0
        %v3381 = vadd.f32 %v3220, %v3380
        %v3382 = vpop.f32.mrb[0].mxu0
        %3383 = vmatprep.mubr.bf16.mxu0 %v2387
        %3384 = vmatmul.mubr.bf16.gmra.mrb[0].mxu0 %v2386
        %v3385 = vpop.f32.mrb[0].mxu0
        %v3386 = vadd.f32 %v3225, %v3385
        %v3387 = vpop.f32.mrb[0].mxu0
        %v3388 = vpop.f32.mrb[0].mxu0
        %v3389 = vadd.f32 %v3228, %v3388
        %v3390 = vpop.f32.mrb[0].mxu0
        %3391 = vmatprep.mubr.bf16.mxu0 %v2395
        %3392 = vmatmul.mubr.bf16.gmra.mrb[0].mxu0 %v2394
        %v3393 = vpop.f32.mrb[0].mxu0
        %v3394 = vadd.f32 %v3233, %v3393
        %v3395 = vpop.f32.mrb[0].mxu0
        %v3396 = vpop.f32.mrb[0].mxu0
        %v3397 = vadd.f32 %v3236, %v3396
        %v3398 = vpop.f32.mrb[0].mxu0
        %3399 = vmatprep.mubr.bf16.mxu0 %v2403
        %3400 = vmatmul.mubr.bf16.gmra.mrb[0].mxu0 %v2402
        %v3401 = vpop.f32.mrb[0].mxu0
        %v3402 = vadd.f32 %v3241, %v3401
        %v3403 = vpop.f32.mrb[0].mxu0
        %v3404 = vpop.f32.mrb[0].mxu0
        %v3405 = vadd.f32 %v3244, %v3404
        %v3406 = vpop.f32.mrb[0].mxu0
        %3407 = vmatprep.mubr.bf16.mxu0 %v2411
        %3408 = vmatmul.mubr.bf16.gmra.mrb[0].mxu0 %v2410
        %v3409 = vpop.f32.mrb[0].mxu0
        %v3410 = vadd.f32 %v3249, %v3409
        %v3411 = vpop.f32.mrb[0].mxu0
        %v3412 = vpop.f32.mrb[0].mxu0
        %v3413 = vadd.f32 %v3252, %v3412
        %v3414 = vpop.f32.mrb[0].mxu0
        %3415 = vmatprep.mubr.bf16.mxu0 %v2419
        %3416 = vmatmul.mubr.bf16.gmra.mrb[0].mxu0 %v2418
        %v3417 = vpop.f32.mrb[0].mxu0
        %v3418 = vadd.f32 %v3257, %v3417
        %v3419 = vpop.f32.mrb[0].mxu0
        %v3420 = vpop.f32.mrb[0].mxu0
        %v3421 = vadd.f32 %v3260, %v3420
        %v3422 = vpop.f32.mrb[0].mxu0
        %3423 = vdwg.mxu0
        %3424 = vmatprep.subr.bf16.mxu0 0
        %3425 = vmatpush1.bf16.msra.mxu0 %v2861
        %3426 = vmatprep.subr.bf16.mxu0 0
        %3427 = vmatpush1.bf16.msra.mxu0 %v2862
        %3428 = vmatprep.subr.bf16.mxu0 0
        %3429 = vmatpush1.bf16.msra.mxu0 %v2863
        %3430 = vmatprep.subr.bf16.mxu0 0
        %3431 = vmatpush1.bf16.msra.mxu0 %v2864
        %3432 = vmatprep.subr.bf16.mxu0 0
        %3433 = vmatpush1.bf16.msra.mxu0 %v2865
        %3434 = vmatprep.subr.bf16.mxu0 0
        %3435 = vmatpush1.bf16.msra.mxu0 %v2866
        %3436 = vmatprep.subr.bf16.mxu0 0
        %3437 = vmatpush1.bf16.msra.mxu0 %v2867
        %3438 = vmatprep.subr.bf16.mxu0 0
        %3439 = vmatpush1.bf16.msra.mxu0 %v2868
        %3440 = vmatprep.subr.bf16.mxu0 0
        %3441 = vmatpush1.bf16.msra.mxu0 %v2869
        %3442 = vmatprep.subr.bf16.mxu0 0
        %3443 = vmatpush1.bf16.msra.mxu0 %v2870
        %3444 = vmatprep.subr.bf16.mxu0 0
        %3445 = vmatpush1.bf16.msra.mxu0 %v2871
        %3446 = vmatprep.subr.bf16.mxu0 0
        %3447 = vmatpush1.bf16.msra.mxu0 %v2872
        %3448 = vmatprep.subr.bf16.mxu0 0
        %3449 = vmatpush1.bf16.msra.mxu0 %v2873
        %3450 = vmatprep.subr.bf16.mxu0 0
        %3451 = vmatpush1.bf16.msra.mxu0 %v2874
        %3452 = vmatprep.subr.bf16.mxu0 0
        %3453 = vmatpush1.bf16.msra.mxu0 %v2875
        %3454 = vmatprep.subr.bf16.mxu0 0
        %3455 = vmatpush1.bf16.msra.mxu0 %v2876
        %3456 = vmatprep.mubr.bf16.mxu0 %v2301
        %3457 = vmatmul.mubr.bf16.gmra.mrb[0].mxu0 %v2300
        %v3458 = vpop.f32.mrb[0].mxu0
        %v3459 = vadd.f32 %v3298, %v3458
        %v3460 = vpop.f32.mrb[0].mxu0
        %v3461 = vpop.f32.mrb[0].mxu0
        %v3462 = vadd.f32 %v3301, %v3461
        %v3463 = vpop.f32.mrb[0].mxu0
        %3464 = vmatprep.mubr.bf16.mxu0 %v2309
        %3465 = vmatmul.mubr.bf16.gmra.mrb[0].mxu0 %v2308
        %v3466 = vpop.f32.mrb[0].mxu0
        %v3467 = vadd.f32 %v3306, %v3466
        %v3468 = vpop.f32.mrb[0].mxu0
        %v3469 = vpop.f32.mrb[0].mxu0
        %v3470 = vadd.f32 %v3309, %v3469
        %v3471 = vpop.f32.mrb[0].mxu0
        %3472 = vmatprep.mubr.bf16.mxu0 %v2317
        %3473 = vmatmul.mubr.bf16.gmra.mrb[0].mxu0 %v2316
        %v3474 = vpop.f32.mrb[0].mxu0
        %v3475 = vadd.f32 %v3314, %v3474
        %v3476 = vpop.f32.mrb[0].mxu0
        %v3477 = vpop.f32.mrb[0].mxu0
        %v3478 = vadd.f32 %v3317, %v3477
        %v3479 = vpop.f32.mrb[0].mxu0
        %3480 = vmatprep.mubr.bf16.mxu0 %v2325
        %3481 = vmatmul.mubr.bf16.gmra.mrb[0].mxu0 %v2324
        %v3482 = vpop.f32.mrb[0].mxu0
        %v3483 = vadd.f32 %v3322, %v3482
        %v3484 = vpop.f32.mrb[0].mxu0
        %v3485 = vpop.f32.mrb[0].mxu0
        %v3486 = vadd.f32 %v3325, %v3485
        %v3487 = vpop.f32.mrb[0].mxu0
        %3488 = vmatprep.mubr.bf16.mxu0 %v2333
        %3489 = vmatmul.mubr.bf16.gmra.mrb[0].mxu0 %v2332
        %v3490 = vpop.f32.mrb[0].mxu0
        %v3491 = vadd.f32 %v3330, %v3490
        %v3492 = vpop.f32.mrb[0].mxu0
        %v3493 = vpop.f32.mrb[0].mxu0
        %v3494 = vadd.f32 %v3333, %v3493
        %v3495 = vpop.f32.mrb[0].mxu0
        %3496 = vmatprep.mubr.bf16.mxu0 %v2341
        %3497 = vmatmul.mubr.bf16.gmra.mrb[0].mxu0 %v2340
        %v3498 = vpop.f32.mrb[0].mxu0
        %v3499 = vadd.f32 %v3338, %v3498
        %v3500 = vpop.f32.mrb[0].mxu0
        %v3501 = vpop.f32.mrb[0].mxu0
        %v3502 = vadd.f32 %v3341, %v3501
        %v3503 = vpop.f32.mrb[0].mxu0
        %3504 = vmatprep.mubr.bf16.mxu0 %v2349
        %3505 = vmatmul.mubr.bf16.gmra.mrb[0].mxu0 %v2348
        %v3506 = vpop.f32.mrb[0].mxu0
        %v3507 = vadd.f32 %v3346, %v3506
        %v3508 = vpop.f32.mrb[0].mxu0
        %v3509 = vpop.f32.mrb[0].mxu0
        %v3510 = vadd.f32 %v3349, %v3509
        %v3511 = vpop.f32.mrb[0].mxu0
        %3512 = vmatprep.mubr.bf16.mxu0 %v2357
        %3513 = vmatmul.mubr.bf16.gmra.mrb[0].mxu0 %v2356
        %v3514 = vpop.f32.mrb[0].mxu0
        %v3515 = vadd.f32 %v3354, %v3514
        %v3516 = vpop.f32.mrb[0].mxu0
        %v3517 = vpop.f32.mrb[0].mxu0
        %v3518 = vadd.f32 %v3357, %v3517
        %v3519 = vpop.f32.mrb[0].mxu0
        %3520 = vmatprep.mubr.bf16.mxu0 %v2365
        %3521 = vmatmul.mubr.bf16.gmra.mrb[0].mxu0 %v2364
        %v3522 = vpop.f32.mrb[0].mxu0
        %v3523 = vadd.f32 %v3362, %v3522
        %v3524 = vpop.f32.mrb[0].mxu0
        %v3525 = vpop.f32.mrb[0].mxu0
        %v3526 = vadd.f32 %v3365, %v3525
        %v3527 = vpop.f32.mrb[0].mxu0
        %3528 = vmatprep.mubr.bf16.mxu0 %v2373
        %3529 = vmatmul.mubr.bf16.gmra.mrb[0].mxu0 %v2372
        %v3530 = vpop.f32.mrb[0].mxu0
        %v3531 = vadd.f32 %v3370, %v3530
        %v3532 = vpop.f32.mrb[0].mxu0
        %v3533 = vpop.f32.mrb[0].mxu0
        %v3534 = vadd.f32 %v3373, %v3533
        %v3535 = vpop.f32.mrb[0].mxu0
        %3536 = vmatprep.mubr.bf16.mxu0 %v2381
        %3537 = vmatmul.mubr.bf16.gmra.mrb[0].mxu0 %v2380
        %v3538 = vpop.f32.mrb[0].mxu0
        %v3539 = vadd.f32 %v3378, %v3538
        %v3540 = vpop.f32.mrb[0].mxu0
        %v3541 = vpop.f32.mrb[0].mxu0
        %v3542 = vadd.f32 %v3381, %v3541
        %v3543 = vpop.f32.mrb[0].mxu0
        %3544 = vmatprep.mubr.bf16.mxu0 %v2389
        %3545 = vmatmul.mubr.bf16.gmra.mrb[0].mxu0 %v2388
        %v3546 = vpop.f32.mrb[0].mxu0
        %v3547 = vadd.f32 %v3386, %v3546
        %v3548 = vpop.f32.mrb[0].mxu0
        %v3549 = vpop.f32.mrb[0].mxu0
        %v3550 = vadd.f32 %v3389, %v3549
        %v3551 = vpop.f32.mrb[0].mxu0
        %3552 = vmatprep.mubr.bf16.mxu0 %v2397
        %3553 = vmatmul.mubr.bf16.gmra.mrb[0].mxu0 %v2396
        %v3554 = vpop.f32.mrb[0].mxu0
        %v3555 = vadd.f32 %v3394, %v3554
        %v3556 = vpop.f32.mrb[0].mxu0
        %v3557 = vpop.f32.mrb[0].mxu0
        %v3558 = vadd.f32 %v3397, %v3557
        %v3559 = vpop.f32.mrb[0].mxu0
        %3560 = vmatprep.mubr.bf16.mxu0 %v2405
        %3561 = vmatmul.mubr.bf16.gmra.mrb[0].mxu0 %v2404
        %v3562 = vpop.f32.mrb[0].mxu0
        %v3563 = vadd.f32 %v3402, %v3562
        %v3564 = vpop.f32.mrb[0].mxu0
        %v3565 = vpop.f32.mrb[0].mxu0
        %v3566 = vadd.f32 %v3405, %v3565
        %v3567 = vpop.f32.mrb[0].mxu0
        %3568 = vmatprep.mubr.bf16.mxu0 %v2413
        %3569 = vmatmul.mubr.bf16.gmra.mrb[0].mxu0 %v2412
        %v3570 = vpop.f32.mrb[0].mxu0
        %v3571 = vadd.f32 %v3410, %v3570
        %v3572 = vpop.f32.mrb[0].mxu0
        %v3573 = vpop.f32.mrb[0].mxu0
        %v3574 = vadd.f32 %v3413, %v3573
        %v3575 = vpop.f32.mrb[0].mxu0
        %3576 = vmatprep.mubr.bf16.mxu0 %v2421
        %3577 = vmatmul.mubr.bf16.gmra.mrb[0].mxu0 %v2420
        %v3578 = vpop.f32.mrb[0].mxu0
        %v3579 = vadd.f32 %v3418, %v3578
        %v3580 = vpop.f32.mrb[0].mxu0
        %v3581 = vpop.f32.mrb[0].mxu0
        %v3582 = vadd.f32 %v3421, %v3581
        %v3583 = vpop.f32.mrb[0].mxu0
        %3584 = vdwg.mxu0
        %v3585 = vadd.f32 %v3459, %v361
        %v3586 = vadd.f32 %v3462, %v362
        %v3587 = vadd.f32 %v3467, %v363
        %v3588 = vadd.f32 %v3470, %v364
        %v3589 = vadd.f32 %v3475, %v365
        %v3590 = vadd.f32 %v3478, %v366
        %v3591 = vadd.f32 %v3483, %v367
        %v3592 = vadd.f32 %v3486, %v368
        %v3593 = vadd.f32 %v3491, %v369
        %v3594 = vadd.f32 %v3494, %v370
        %v3595 = vadd.f32 %v3499, %v371
        %v3596 = vadd.f32 %v3502, %v372
        %v3597 = vadd.f32 %v3507, %v373
        %v3598 = vadd.f32 %v3510, %v374
        %v3599 = vadd.f32 %v3515, %v375
        %v3600 = vadd.f32 %v3518, %v376
        %v3601 = vadd.f32 %v3523, %v377
        %v3602 = vadd.f32 %v3526, %v378
        %v3603 = vadd.f32 %v3531, %v379
        %v3604 = vadd.f32 %v3534, %v380
        %v3605 = vadd.f32 %v3539, %v381
        %v3606 = vadd.f32 %v3542, %v382
        %v3607 = vadd.f32 %v3547, %v383
        %v3608 = vadd.f32 %v3550, %v384
        %v3609 = vadd.f32 %v3555, %v385
        %v3610 = vadd.f32 %v3558, %v386
        %v3611 = vadd.f32 %v3563, %v387
        %v3612 = vadd.f32 %v3566, %v388
        %v3613 = vadd.f32 %v3571, %v389
        %v3614 = vadd.f32 %v3574, %v390
        %v3615 = vadd.f32 %v3579, %v391
        %v3616 = vadd.f32 %v3582, %v392
        %v3617 = vpack.c.bf16 %v3586, %v3585
        %v3618 = vpack.c.bf16 %v3588, %v3587
        %v3619 = vpack.c.bf16 %v3590, %v3589
        %v3620 = vpack.c.bf16 %v3592, %v3591
        %v3621 = vpack.c.bf16 %v3594, %v3593
        %v3622 = vpack.c.bf16 %v3596, %v3595
        %v3623 = vpack.c.bf16 %v3598, %v3597
        %v3624 = vpack.c.bf16 %v3600, %v3599
        %v3625 = vpack.c.bf16 %v3602, %v3601
        %v3626 = vpack.c.bf16 %v3604, %v3603
        %v3627 = vpack.c.bf16 %v3606, %v3605
        %v3628 = vpack.c.bf16 %v3608, %v3607
        %v3629 = vpack.c.bf16 %v3610, %v3609
        %v3630 = vpack.c.bf16 %v3612, %v3611
        %v3631 = vpack.c.bf16 %v3614, %v3613
        %v3632 = vpack.c.bf16 %v3616, %v3615
        %v3649 = vunpack.c.l.b16 %v3617
        %v3650 = vunpack.c.h.b16 %v3617
        %v3651 = vunpack.c.l.b16 %v3618
        %v3652 = vunpack.c.h.b16 %v3618
        %v3653 = vunpack.c.l.b16 %v3619
        %v3654 = vunpack.c.h.b16 %v3619
        %v3655 = vunpack.c.l.b16 %v3620
        %v3656 = vunpack.c.h.b16 %v3620
        %v3657 = vunpack.c.l.b16 %v3621
        %v3658 = vunpack.c.h.b16 %v3621
        %v3659 = vunpack.c.l.b16 %v3622
        %v3660 = vunpack.c.h.b16 %v3622
        %v3661 = vunpack.c.l.b16 %v3623
        %v3662 = vunpack.c.h.b16 %v3623
        %v3663 = vunpack.c.l.b16 %v3624
        %v3664 = vunpack.c.h.b16 %v3624
        %v3665 = vunpack.c.l.b16 %v3625
        %v3666 = vunpack.c.h.b16 %v3625
        %v3667 = vunpack.c.l.b16 %v3626
        %v3668 = vunpack.c.h.b16 %v3626
        %v3669 = vunpack.c.l.b16 %v3627
        %v3670 = vunpack.c.h.b16 %v3627
        %v3671 = vunpack.c.l.b16 %v3628
        %v3672 = vunpack.c.h.b16 %v3628
        %v3673 = vunpack.c.l.b16 %v3629
        %v3674 = vunpack.c.h.b16 %v3629
        %v3675 = vunpack.c.l.b16 %v3630
        %v3676 = vunpack.c.h.b16 %v3630
        %v3677 = vunpack.c.l.b16 %v3631
        %v3678 = vunpack.c.h.b16 %v3631
        %v3679 = vunpack.c.l.b16 %v3632
        %v3680 = vunpack.c.h.b16 %v3632
        %v3681 = vpack.c.b16 %v3649, %v3649
        %v3682 = vpack.c.b16 %v3650, %v3650
        %v3683 = vpack.c.b16 %v3651, %v3651
        %v3684 = vpack.c.b16 %v3652, %v3652
        %v3685 = vpack.c.b16 %v3653, %v3653
        %v3686 = vpack.c.b16 %v3654, %v3654
        %v3687 = vpack.c.b16 %v3655, %v3655
        %v3688 = vpack.c.b16 %v3656, %v3656
        %v3689 = vpack.c.b16 %v3657, %v3657
        %v3690 = vpack.c.b16 %v3658, %v3658
        %v3691 = vpack.c.b16 %v3659, %v3659
        %v3692 = vpack.c.b16 %v3660, %v3660
        %v3693 = vpack.c.b16 %v3661, %v3661
        %v3694 = vpack.c.b16 %v3662, %v3662
        %v3695 = vpack.c.b16 %v3663, %v3663
        %v3696 = vpack.c.b16 %v3664, %v3664
        %v3697 = vpack.c.b16 %v3665, %v3665
        %v3698 = vpack.c.b16 %v3666, %v3666
        %v3699 = vpack.c.b16 %v3667, %v3667
        %v3700 = vpack.c.b16 %v3668, %v3668
        %v3701 = vpack.c.b16 %v3669, %v3669
        %v3702 = vpack.c.b16 %v3670, %v3670
        %v3703 = vpack.c.b16 %v3671, %v3671
        %v3704 = vpack.c.b16 %v3672, %v3672
        %v3705 = vpack.c.b16 %v3673, %v3673
        %v3706 = vpack.c.b16 %v3674, %v3674
        %v3707 = vpack.c.b16 %v3675, %v3675
        %v3708 = vpack.c.b16 %v3676, %v3676
        %v3709 = vpack.c.b16 %v3677, %v3677
        %v3710 = vpack.c.b16 %v3678, %v3678
        %v3711 = vpack.c.b16 %v3679, %v3679
        %v3712 = vpack.c.b16 %v3680, %v3680
        %3745 = vst [vmem:[%s325] sm:$0xf] %v3681
        %3746 = vst [vmem:[%s325 + $0x4] sm:$0xf] %v3682
        %3747 = vst [vmem:[%s325 + $0x8] sm:$0xf] %v3683
        %3748 = vst [vmem:[%s325 + $0xc] sm:$0xf] %v3684
        %3749 = vst [vmem:[%s325 + $0x10] sm:$0xf] %v3685
        %3750 = vst [vmem:[%s325 + $0x14] sm:$0xf] %v3686
        %3751 = vst [vmem:[%s325 + $0x18] sm:$0xf] %v3687
        %3752 = vst [vmem:[%s325 + $0x1c] sm:$0xf] %v3688
        %3753 = vst [vmem:[%s325 + $0x20] sm:$0xf] %v3689
        %3754 = vst [vmem:[%s325 + $0x24] sm:$0xf] %v3690
        %3755 = vst [vmem:[%s325 + $0x28] sm:$0xf] %v3691
        %3756 = vst [vmem:[%s325 + $0x2c] sm:$0xf] %v3692
        %3757 = vst [vmem:[%s325 + $0x30] sm:$0xf] %v3693
        %3758 = vst [vmem:[%s325 + $0x34] sm:$0xf] %v3694
        %3759 = vst [vmem:[%s325 + $0x38] sm:$0xf] %v3695
        %3760 = vst [vmem:[%s325 + $0x3c] sm:$0xf] %v3696
        %3761 = vst [vmem:[%s325 + $0x40] sm:$0xf] %v3697
        %3762 = vst [vmem:[%s325 + $0x44] sm:$0xf] %v3698
        %3763 = vst [vmem:[%s325 + $0x48] sm:$0xf] %v3699
        %3764 = vst [vmem:[%s325 + $0x4c] sm:$0xf] %v3700
        %3765 = vst [vmem:[%s325 + $0x50] sm:$0xf] %v3701
        %3766 = vst [vmem:[%s325 + $0x54] sm:$0xf] %v3702
        %3767 = vst [vmem:[%s325 + $0x58] sm:$0xf] %v3703
        %3768 = vst [vmem:[%s325 + $0x5c] sm:$0xf] %v3704
        %3769 = vst [vmem:[%s325 + $0x60] sm:$0xf] %v3705
        %3770 = vst [vmem:[%s325 + $0x64] sm:$0xf] %v3706
        %3771 = vst [vmem:[%s325 + $0x68] sm:$0xf] %v3707
        %3772 = vst [vmem:[%s325 + $0x6c] sm:$0xf] %v3708
        %3773 = vst [vmem:[%s325 + $0x70] sm:$0xf] %v3709
        %3774 = vst [vmem:[%s325 + $0x74] sm:$0xf] %v3710
        %3775 = vst [vmem:[%s325 + $0x78] sm:$0xf] %v3711
        %3776 = vst [vmem:[%s325 + $0x7c] sm:$0xf] %v3712
        %s3777 = sand.u32 %s185, 1
        %s3778 = scalar_lea.sflag [#allocation4], %s3777
        %s3779 = sand.u32 %s185, 1
        %s3780 = smul.addr %s3779, 128
        %s3781 = scalar_lea.vmem [#allocation8], %s3780
        // Predicated region
        $region61: #{tpu_custom_call.1} parent=47 // pred_check
          %p3782 = pneg %p195
        $region62: #{tpu_custom_call.1} parent=47 // pred_check_branch
          %3784 = sbr.rel (%p3782) target = $region64
        $region63: #{tpu_custom_call.1} parent=47 // pred_region
          %s3785 = smul.u32 32, %s25
          %s3787 = ssub.s32 2048, 2048
          %3788 = vsyncadd %s3778, %s3787
          %s3789 = smul.addr %s3785, 64
          %s3790 = scalar_lea.hbm %s7, %s3789
          %s3791 = sshll.u32 %s3781, 4
          %s3792 = int_to_ptr.vmem [resolvable:$true] %s3791
          %3797 = dma.vmem_to_hbm [thread:$0]  %s3792, 2048, %s3790, %s3778, 64, 64, 4
        $region64: #{tpu_custom_call.1} parent=47 // pred_fallthru
          _
      $region48: #{tpu_custom_call.1} parent=5 // pred_fallthru
        _
      %p3798 = scmp.le.s32.totalorder 2, %s20
      // Predicated region
      $region65: #{tpu_custom_call.1} parent=5 // pred_check
        %p3799 = pneg %p3798
      $region66: #{tpu_custom_call.1} parent=5 // pred_check_branch
        %3801 = sbr.rel (%p3799) target = $region68
      $region67: #{tpu_custom_call.1} parent=5 // pred_region
        %s3802 = ssub.s32 %s20, 2
        // Predicated region
        $region69: #{tpu_custom_call.1} parent=67 // pred_check
          %p3803 = pneg %p201
        $region70: #{tpu_custom_call.1} parent=67 // pred_check_branch
          %3805 = sbr.rel (%p3803) target = $region72
        $region71: #{tpu_custom_call.1} parent=67 // pred_region
          %s3806 = sand.u32 %s186, 1
          %s3807 = scalar_lea.sflag [#allocation4], %s3806
          %s3808 = sand.u32 %s186, 1
          %s3809 = smul.addr %s3808, 128
          %s3810 = scalar_lea.vmem [#allocation8], %s3809
          %3811 = dma.done %s3807, 2048
        $region72: #{tpu_custom_call.1} parent=67 // pred_fallthru
          _
      $region68: #{tpu_custom_call.1} parent=5 // pred_fallthru
        _
    $region6: #{tpu_custom_call.1} parent=1 // loop_footer
      %s24 = sadd.s32 1, %s20
    $region7: #{tpu_custom_call.1} parent=1 // loop_footer_branch
      %19 = sbr.rel target = $region3
    $region8: #{tpu_custom_call.1} parent=1 // loop_exit
      _
    %3812 = vsyncpa [#allocation3], 1
    %s3813 = scalar_lea.sflag [#allocation3], 1
    %3814 = vsyncpa %s3813, 1
    %3815 = vsyncpa [#allocation6], 1
    %3816 = vsyncpa [#allocation4], 1
    %s3817 = scalar_lea.sflag [#allocation4], 1
    %3818 = vsyncpa %s3817, 1

</llo_original>
